<compile_context>
chip_gen: v7x
topology: tpu7x:2x2x1
jax: 0.10.0
libtpu: 0.0.40
codegen_flags: <defaults>
</compile_context>

<pallas_src>
import functools

import jax
import jax.numpy as jnp
from jax import lax
from jax.experimental import pallas as pl
from jax.experimental.pallas import tpu as pltpu

LN_EPS = 1e-5  # PyTorch nn.LayerNorm default


# ---------------------------------------------------------------------------
# Kernel
# ---------------------------------------------------------------------------
def _self_attn_kernel(*refs, nhead, head_dim, per_batch_am, has_pe):
    """One grid step == one block of Bt batch elements.

    x_ref (/pe_ref)   : (Bt, N, C) f32
    kpm_ref           : (Bt, 1, N) f32 additive key-padding mask
    am_ref            : (1|Bt, N, N) int8 attn mask (1 = disallowed)
    wqk_ref           : (C, 2C) bf16 fused q|k weights (y = x @ W; scale folded)
    wv_ref / wo_ref   : (C, C) bf16
    bqk_ref           : (1, 2C) f32 ; bv/bo/gamma/beta : (1, C) f32
    o_ref             : (Bt, N, C)
    q/k/v_scr         : (Bt*N, C) bf16 scratch ; ctx_scr : (N, C) bf16 scratch
    """
    if has_pe:
        (x_ref, pe_ref, kpm_ref, am_ref,
         wqk_ref, wv_ref, wo_ref, bqk_ref, bv_ref, bo_ref,
         gamma_ref, beta_ref, o_ref,
         q_scr, k_scr, v_scr, ctx_scr) = refs
    else:
        (x_ref, kpm_ref, am_ref,
         wqk_ref, wv_ref, wo_ref, bqk_ref, bv_ref, bo_ref,
         gamma_ref, beta_ref, o_ref,
         q_scr, k_scr, v_scr, ctx_scr) = refs
        pe_ref = None

    Bt, N, C = x_ref.shape
    NEG = jnp.float32(-1e30)

    # Stack the batch block into a (Bt*N, C) slab so the projections feed many
    # MXU rows at once (layout-free when N % 8 == 0).
    x2 = x_ref[...].reshape(Bt * N, C)
    if has_pe:
        qk_in = x2 + pe_ref[...].reshape(Bt * N, C)       # with_pos_embed(x, pe)
    else:
        qk_in = x2

    # Fused q|k in-projection (bf16 MXU, f32 accumulate). 1/sqrt(hd) is already
    # folded into the q-half of wqk / bqk at param-prep time.
    qk = jnp.dot(qk_in.astype(jnp.bfloat16), wqk_ref[...],
                 preferred_element_type=jnp.float32) + bqk_ref[...]   # (Bt*N, 2C)
    q_scr[...] = qk[:, :C].astype(jnp.bfloat16)
    k_scr[...] = qk[:, C:].astype(jnp.bfloat16)
    # v-projection from x (no positional embedding).
    v_scr[...] = (jnp.dot(x2.astype(jnp.bfloat16), wv_ref[...],
                          preferred_element_type=jnp.float32)
                  + bv_ref[...]).astype(jnp.bfloat16)

    bo = bo_ref[...]
    gamma = gamma_ref[...]
    beta = beta_ref[...]

    def per_batch(b, carry):
        r0 = pl.multiple_of(b * N, N)
        qb = q_scr[pl.ds(r0, N), :]                       # (N, C) bf16
        kb = k_scr[pl.ds(r0, N), :]
        vb = v_scr[pl.ds(r0, N), :]

        # int8 mask -> additive -inf, hoisted out of the head loop.
        am_raw = am_ref[b] if per_batch_am else am_ref[0]            # (N, N) i8
        mask_b = am_raw.astype(jnp.float32) * NEG + kpm_ref[b]       # (N, N) f32

        for h in range(nhead):                            # static: lane offsets
            c0 = h * head_dim
            qh = qb[:, c0:c0 + head_dim]                  # (N, hd) bf16
            kh = kb[:, c0:c0 + head_dim]
            vh = vb[:, c0:c0 + head_dim]

            # q . k^T without an explicit XLU transpose of k.
            s = lax.dot_general(qh, kh, (((1,), (1,)), ((), ())),
                                preferred_element_type=jnp.float32)  # (N, N)
            s = s + mask_b
            m = s.max(axis=-1, keepdims=True)
            p = jnp.exp(s - m)
            denom = p.sum(axis=-1, keepdims=True)
            ctx_h = jnp.dot(p.astype(jnp.bfloat16), vh,
                            preferred_element_type=jnp.float32)      # (N, hd)
            # normalize after the PV matmul; approx reciprocal runs on the EUP.
            ctx_h = ctx_h * pl.reciprocal(denom, approx=True)
            # place this head's context at its lane offset; the out-projection
            # below is then ONE full-K matmul for all heads.
            ctx_scr[:, c0:c0 + head_dim] = ctx_h.astype(jnp.bfloat16)

        attn_b = jnp.dot(ctx_scr[...], wo_ref[...],
                         preferred_element_type=jnp.float32) + bo    # (N, C)

        # residual (dropout p=0.0 -> identity) + LayerNorm (f32)
        res = attn_b + x_ref[b]
        mu = res.mean(axis=-1, keepdims=True)
        var = ((res - mu) ** 2).mean(axis=-1, keepdims=True)
        normed = (res - mu) * lax.rsqrt(var + LN_EPS) * gamma + beta
        o_ref[b] = normed.astype(o_ref.dtype)
        return carry

    lax.fori_loop(0, Bt, per_batch, 0)


# ---------------------------------------------------------------------------
# Wrapper
# ---------------------------------------------------------------------------
def _vmem_limit_bytes():
    try:
        cap = int(pltpu.get_tpu_info().vmem_capacity_bytes)
    except Exception:
        cap = 64 * 1024 * 1024       # assume the smallest (v7x) when unknown
    return min(int(cap * 0.75), 100 * 1024 * 1024)


def _pick_batch_block(B, N, C, has_pe, per_batch_am, vmem_budget, block_b=None):
    """Largest divisor of B that targets >=~512 MXU rows per projection,
    fits the VMEM budget, and leaves >= 2 grid steps for the 2 v7x cores."""
    if block_b is not None:
        assert B % block_b == 0
        return block_b

    def vmem_est(bt):
        act = bt * N * C * 4                                   # one f32 block
        streams = act * (3 if has_pe else 2) + bt * N * 4      # x, out (+pe), kpm
        if per_batch_am:
            streams += bt * N * N                              # int8 attn mask
        scratch = 3 * (act // 2) + N * C * 2 + 6 * N * N * 4   # bf16 q/k/v + ctx + temps
        weights = 4 * C * C * 2 + 8 * C * 4                    # bf16 weights + biases
        return 2 * streams + scratch + 2 * weights             # 2x = double buffering

    target = max(1, 512 // max(N, 1))        # ~512 MXU rows (v6e/v7x 256-wide MXU)
    bt = 1
    for cand in range(min(B, target), 0, -1):
        if B % cand == 0 and vmem_est(cand) <= vmem_budget:
            bt = cand
            break
    # v7x has 2 TensorCores; dimension_semantics=("parallel",) shards the grid
    # across them — keep at least 2 grid steps (one extra ~0.35us step on 1-TC
    # chips is negligible vs. a 2x loss on v7x).
    if B // bt < 2 and B >= 2:
        for cand in range(bt, 0, -1):
            if B % cand == 0 and B // cand >= 2:
                bt = cand
                break
    return bt


def self_attention_layer(x, kparams, x_mask=None, attn_mask=None, pe=None, *,
                         nhead, block_b=None):
    """x: (B, N, C) f32; x_mask: (B, N) bool (True = pad) or None;
    attn_mask: (N, N) bool shared across batch, (B, N, N) bool, or None
    (True = disallowed); pe: (B, N, C) or None."""
    B, N, C = x.shape
    assert C % nhead == 0
    head_dim = C // nhead
    NEG = jnp.float32(-1e30)

    wqk, wv, wo, bqk, bv, bo, gamma, beta = kparams
    has_pe = pe is not None

    if x_mask is None:
        kpm = jnp.zeros((B, 1, N), jnp.float32)
    else:
        kpm = jnp.where(x_mask, NEG, 0.0).astype(jnp.float32).reshape(B, 1, N)

    # Stream attention masks as int8 (1 = disallowed); convert in-kernel.
    per_batch_am = attn_mask is not None and attn_mask.ndim == 3
    if attn_mask is None:
        am = jnp.zeros((1, N, N), jnp.int8)
    elif attn_mask.ndim == 2:
        am = attn_mask.astype(jnp.int8).reshape(1, N, N)
    else:
        am = attn_mask.astype(jnp.int8)

    vmem_limit = _vmem_limit_bytes()
    Bt = _pick_batch_block(B, N, C, has_pe, per_batch_am,
                           int(vmem_limit * 0.6), block_b)
    grid = (B // Bt,)

    batched3 = lambda i: (i, 0, 0)
    const2 = lambda i: (0, 0)
    const3 = lambda i: (0, 0, 0)

    kernel = functools.partial(_self_attn_kernel, nhead=nhead, head_dim=head_dim,
                               per_batch_am=per_batch_am, has_pe=has_pe)

    def build_and_run(single_buffer_consts):
        # Constant-index (revisited) streams can be single-buffered: halves their
        # VMEM footprint, which matters on v7x's 64 MiB VMEM with large d_model.
        def cspec(shape, imap):
            if single_buffer_consts:
                return pl.BlockSpec(shape, imap, pipeline_mode=pl.Buffered(1))
            return pl.BlockSpec(shape, imap)

        in_specs = [pl.BlockSpec((Bt, N, C), batched3)]          # x
        args = [x]
        if has_pe:
            in_specs.append(pl.BlockSpec((Bt, N, C), batched3))  # pe
            args.append(pe)
        in_specs.append(pl.BlockSpec((Bt, 1, N), batched3))      # key-pad mask
        args.append(kpm)
        if per_batch_am:
            in_specs.append(pl.BlockSpec((Bt, N, N), batched3))  # per-batch mask
        else:
            in_specs.append(cspec((1, N, N), const3))            # shared mask
        args.append(am)
        in_specs += [
            cspec((C, 2 * C), const2),      # fused wq|wk (bf16, scale folded)
            cspec((C, C), const2),          # wv (bf16)
            cspec((C, C), const2),          # wo (bf16)
            cspec((1, 2 * C), const2),      # fused bq|bk
            cspec((1, C), const2),          # bv
            cspec((1, C), const2),          # bo
            cspec((1, C), const2),          # ln gamma
            cspec((1, C), const2),          # ln beta
        ]
        args += [wqk, wv, wo, bqk, bv, bo, gamma, beta]

        return pl.pallas_call(
            kernel,
            out_shape=jax.ShapeDtypeStruct((B, N, C), x.dtype),
            grid_spec=pltpu.PrefetchScalarGridSpec(
                num_scalar_prefetch=0,
                grid=grid,
                in_specs=in_specs,
                out_specs=pl.BlockSpec((Bt, N, C), batched3),
                scratch_shapes=[
                    pltpu.VMEM((Bt * N, C), jnp.bfloat16),   # q
                    pltpu.VMEM((Bt * N, C), jnp.bfloat16),   # k
                    pltpu.VMEM((Bt * N, C), jnp.bfloat16),   # v
                    pltpu.VMEM((N, C), jnp.bfloat16),        # per-batch ctx (all heads)
                ]),
            compiler_params=pltpu.CompilerParams(
                dimension_semantics=("parallel",),
                vmem_limit_bytes=vmem_limit),
        )(*args)

    try:
        return build_and_run(True)
    except Exception:
        # TODO(synk): pipeline_mode=pl.Buffered(1) rejected by this JAX build;
        # fall back to default double buffering of the weight/mask streams.
        return build_and_run(False)


# ---------------------------------------------------------------------------
# Param prep + pure-JAX reference (mirrors nn.MultiheadAttention + LayerNorm)
# ---------------------------------------------------------------------------
def make_params(key, d_model):
    """Raw PyTorch-style parameters."""
    ks = jax.random.split(key, 5)
    return dict(
        in_proj_w=0.08 * jax.random.normal(ks[0], (3 * d_model, d_model), jnp.float32),
        in_proj_b=0.05 * jax.random.normal(ks[1], (3 * d_model,), jnp.float32),
        out_proj_w=0.08 * jax.random.normal(ks[2], (d_model, d_model), jnp.float32),
        out_proj_b=0.05 * jax.random.normal(ks[3], (d_model,), jnp.float32),
        gamma=jnp.ones((d_model,), jnp.float32)
              + 0.01 * jax.random.normal(ks[4], (d_model,), jnp.float32),
        beta=jnp.zeros((d_model,), jnp.float32),
    )


def prep_kernel_params(raw, d_model, nhead):
    """Transpose (y = x @ W), fuse q|k, fold 1/sqrt(hd) into q, cast to bf16."""
    hd = d_model // nhead
    scale = 1.0 / (hd ** 0.5)
    wq = raw["in_proj_w"][:d_model].T * scale
    wk = raw["in_proj_w"][d_model:2 * d_model].T
    wv = raw["in_proj_w"][2 * d_model:].T
    wo = raw["out_proj_w"].T
    bq = raw["in_proj_b"][:d_model] * scale
    bk = raw["in_proj_b"][d_model:2 * d_model]
    bv = raw["in_proj_b"][2 * d_model:]
    wqk = jnp.concatenate([wq, wk], axis=1).astype(jnp.bfloat16)          # (C, 2C)
    bqk = jnp.concatenate([bq, bk]).reshape(1, 2 * d_model).astype(jnp.float32)
    return (wqk,
            wv.astype(jnp.bfloat16),
            wo.astype(jnp.bfloat16),
            bqk,
            bv.reshape(1, d_model).astype(jnp.float32),
            raw["out_proj_b"].reshape(1, d_model).astype(jnp.float32),
            raw["gamma"].reshape(1, d_model).astype(jnp.float32),
            raw["beta"].reshape(1, d_model).astype(jnp.float32))


def _reference(x, raw, x_mask, attn_mask, pe, nhead):
    B, N, C = x.shape
    hd = C // nhead
    NEG = jnp.float32(-1e30)
    in_w, in_b = raw["in_proj_w"], raw["in_proj_b"]
    wq, wk, wv = in_w[:C], in_w[C:2 * C], in_w[2 * C:]
    bq, bk, bv = in_b[:C], in_b[C:2 * C], in_b[2 * C:]
    qk_in = x if pe is None else x + pe
    q = qk_in @ wq.T + bq
    k = qk_in @ wk.T + bk
    v = x @ wv.T + bv
    qh = q.reshape(B, N, nhead, hd).transpose(0, 2, 1, 3)
    kh = k.reshape(B, N, nhead, hd).transpose(0, 2, 1, 3)
    vh = v.reshape(B, N, nhead, hd).transpose(0, 2, 1, 3)
    s = jnp.einsum('bhqd,bhkd->bhqk', qh, kh) / jnp.sqrt(jnp.float32(hd))
    if attn_mask is not None:
        addm = jnp.where(attn_mask, NEG, 0.0)
        if attn_mask.ndim == 2:
            addm = addm[None]
        s = s + addm[:, None]
    if x_mask is not None:
        s = s + jnp.where(x_mask, NEG, 0.0)[:, None, None, :]
    p = jax.nn.softmax(s, axis=-1)
    ctx = jnp.einsum('bhqk,bhkd->bhqd', p, vh).transpose(0, 2, 1, 3).reshape(B, N, C)
    attn_out = ctx @ raw["out_proj_w"].T + raw["out_proj_b"]
    res = attn_out + x                       # dropout p=0.0 -> identity
    mu = res.mean(-1, keepdims=True)
    var = ((res - mu) ** 2).mean(-1, keepdims=True)
    return (res - mu) * lax.rsqrt(var + LN_EPS) * raw["gamma"] + raw["beta"]


# ---------------------------------------------------------------------------
if __name__ == "__main__":
    # Module defaults (d_model=256, nhead=8) at a small sequence length.
    B, N, d_model, nhead = 2, 16, 256, 8
    key = jax.random.PRNGKey(0)
    kx, kpe, kparam = jax.random.split(key, 3)

    x = jax.random.normal(kx, (B, N, d_model), jnp.float32)
    pe = 0.1 * jax.random.normal(kpe, (B, N, d_model), jnp.float32)
    raw = make_params(kparam, d_model)
    kparams = prep_kernel_params(raw, d_model, nhead)

    # key_padding_mask: True = padded (last token of each sequence)
    x_mask = jnp.zeros((B, N), jnp.bool_).at[:, -1].set(True)
    # attn_mask: True = disallowed (causal); shared across batch -> (N, N)
    attn_mask_shared = ~jnp.tril(jnp.ones((N, N), jnp.bool_))

    TOL = 3e-2   # bf16 MXU operands vs f32 reference

    # 1) shared attention mask path (mask DMA'd once, not per batch element)
    out = jax.block_until_ready(
        self_attention_layer(x, kparams, x_mask=x_mask,
                             attn_mask=attn_mask_shared, pe=pe, nhead=nhead))
    ref = _reference(x, raw, x_mask, attn_mask_shared, pe, nhead)
    assert out.shape == (B, N, d_model)
    assert jnp.allclose(out, ref, rtol=TOL, atol=TOL), (
        f"mismatch (shared mask): max|diff|={float(jnp.max(jnp.abs(out - ref))):.4g}")

    # 2) per-batch attention mask path (streamed as int8, converted in-kernel)
    attn_mask_batched = jnp.broadcast_to(attn_mask_shared, (B, N, N))
    out_b = jax.block_until_ready(
        self_attention_layer(x, kparams, x_mask=x_mask,
                             attn_mask=attn_mask_batched, pe=pe, nhead=nhead))
    assert jnp.allclose(out_b, ref, rtol=TOL, atol=TOL), (
        f"mismatch (batched mask): max|diff|={float(jnp.max(jnp.abs(out_b - ref))):.4g}")

    # 3) pe=None path (no positional-embedding HBM stream at all)
    out_np = jax.block_until_ready(
        self_attention_layer(x, kparams, x_mask=x_mask,
                             attn_mask=attn_mask_shared, pe=None, nhead=nhead))
    ref_np = _reference(x, raw, x_mask, attn_mask_shared, None, nhead)
    assert jnp.allclose(out_np, ref_np, rtol=TOL, atol=TOL), (
        f"mismatch (no pe): max|diff|={float(jnp.max(jnp.abs(out_np - ref_np))):.4g}")

    print("KERNEL_OK")
</pallas_src>

<mosaic_0001>
module attributes {stable_mosaic.version = 11 : i64} {
  func.func @_self_attn_kernel(%arg0: i32, %arg1: memref<1x16x256xf32, #tpu.memory_space<vmem>>, %arg2: memref<1x16x256xf32, #tpu.memory_space<vmem>>, %arg3: memref<1x1x16xf32, #tpu.memory_space<vmem>>, %arg4: memref<1x16x16xi8, #tpu.memory_space<vmem>>, %arg5: memref<256x512xbf16, #tpu.memory_space<vmem>>, %arg6: memref<256x256xbf16, #tpu.memory_space<vmem>>, %arg7: memref<256x256xbf16, #tpu.memory_space<vmem>>, %arg8: memref<1x512xf32, #tpu.memory_space<vmem>>, %arg9: memref<1x256xf32, #tpu.memory_space<vmem>>, %arg10: memref<1x256xf32, #tpu.memory_space<vmem>>, %arg11: memref<1x256xf32, #tpu.memory_space<vmem>>, %arg12: memref<1x256xf32, #tpu.memory_space<vmem>>, %arg13: memref<1x16x256xf32, #tpu.memory_space<vmem>>, %arg14: memref<16x256xbf16, #tpu.memory_space<vmem>>, %arg15: memref<16x256xbf16, #tpu.memory_space<vmem>>, %arg16: memref<16x256xbf16, #tpu.memory_space<vmem>>, %arg17: memref<16x256xbf16, #tpu.memory_space<vmem>>) attributes {dimension_semantics = [#tpu.dimension_semantics<parallel>], iteration_bounds = array<i64: 2>, scalar_prefetch = 0 : i64, scratch_operands = 4 : i64, tpu.core_type = #tpu.core_type<tc>, window_params = [{transform_indices = @transform_0, window_bounds = array<i64: 1, 16, 256>}, {transform_indices = @transform_1, window_bounds = array<i64: 1, 16, 256>}, {transform_indices = @transform_2, window_bounds = array<i64: 1, 1, 16>}, {pipeline_mode = #tpu.pipeline_mode<synchronous>, transform_indices = @transform_3, window_bounds = array<i64: 1, 16, 16>}, {pipeline_mode = #tpu.pipeline_mode<synchronous>, transform_indices = @transform_4, window_bounds = array<i64: 256, 512>}, {pipeline_mode = #tpu.pipeline_mode<synchronous>, transform_indices = @transform_5, window_bounds = array<i64: 256, 256>}, {pipeline_mode = #tpu.pipeline_mode<synchronous>, transform_indices = @transform_6, window_bounds = array<i64: 256, 256>}, {pipeline_mode = #tpu.pipeline_mode<synchronous>, transform_indices = @transform_7, window_bounds = array<i64: 1, 512>}, {pipeline_mode = #tpu.pipeline_mode<synchronous>, transform_indices = @transform_8, window_bounds = array<i64: 1, 256>}, {pipeline_mode = #tpu.pipeline_mode<synchronous>, transform_indices = @transform_9, window_bounds = array<i64: 1, 256>}, {pipeline_mode = #tpu.pipeline_mode<synchronous>, transform_indices = @transform_10, window_bounds = array<i64: 1, 256>}, {pipeline_mode = #tpu.pipeline_mode<synchronous>, transform_indices = @transform_11, window_bounds = array<i64: 1, 256>}, {transform_indices = @transform_12, window_bounds = array<i64: 1, 16, 256>}]} {
    %c0 = arith.constant 0 : index
    %c0_0 = arith.constant 0 : index
    %c0_1 = arith.constant 0 : index
    %0 = vector.load %arg1[%c0, %c0_0, %c0_1] : memref<1x16x256xf32, #tpu.memory_space<vmem>>, vector<1x16x256xf32>
    %1 = vector.shape_cast %0 : vector<1x16x256xf32> to vector<16x256xf32>
    %c0_2 = arith.constant 0 : index
    %c0_3 = arith.constant 0 : index
    %c0_4 = arith.constant 0 : index
    %2 = vector.load %arg2[%c0_2, %c0_3, %c0_4] : memref<1x16x256xf32, #tpu.memory_space<vmem>>, vector<1x16x256xf32>
    %3 = vector.shape_cast %2 : vector<1x16x256xf32> to vector<16x256xf32>
    %4 = arith.addf %1, %3 : vector<16x256xf32>
    %5 = arith.truncf %4 : vector<16x256xf32> to vector<16x256xbf16>
    %c0_5 = arith.constant 0 : index
    %c0_6 = arith.constant 0 : index
    %6 = vector.load %arg5[%c0_5, %c0_6] : memref<256x512xbf16, #tpu.memory_space<vmem>>, vector<256x512xbf16>
    %cst = arith.constant dense<0.000000e+00> : vector<16x512xf32>
    %7 = tpu.matmul %5, %6, %cst {dimension_numbers = #tpu.dot_dimension_numbers<[1], [0], [0], [1], [0, 0, 1, 1], [], []>} : vector<16x256xbf16>, vector<256x512xbf16>, vector<16x512xf32> -> vector<16x512xf32>
    %c0_7 = arith.constant 0 : index
    %c0_8 = arith.constant 0 : index
    %8 = vector.load %arg8[%c0_7, %c0_8] : memref<1x512xf32, #tpu.memory_space<vmem>>, vector<1x512xf32>
    %9 = vector.broadcast %8 : vector<1x512xf32> to vector<16x512xf32>
    %10 = arith.addf %7, %9 : vector<16x512xf32>
    %11 = vector.extract_strided_slice %10 {offsets = [0, 0], sizes = [16, 256], strides = [1, 1]} : vector<16x512xf32> to vector<16x256xf32>
    %12 = arith.truncf %11 : vector<16x256xf32> to vector<16x256xbf16>
    %c0_9 = arith.constant 0 : index
    %c0_10 = arith.constant 0 : index
    %13 = vector.load %arg14[%c0_9, %c0_10] : memref<16x256xbf16, #tpu.memory_space<vmem>>, vector<16x256xbf16>
    tpu.vector_store %arg14[%c0_9, %c0_10], %12 {strides = array<i32>} : memref<16x256xbf16, #tpu.memory_space<vmem>>, vector<16x256xbf16>,
    %14 = vector.extract_strided_slice %10 {offsets = [0, 256], sizes = [16, 256], strides = [1, 1]} : vector<16x512xf32> to vector<16x256xf32>
    %15 = arith.truncf %14 : vector<16x256xf32> to vector<16x256xbf16>
    %c0_11 = arith.constant 0 : index
    %c0_12 = arith.constant 0 : index
    %16 = vector.load %arg15[%c0_11, %c0_12] : memref<16x256xbf16, #tpu.memory_space<vmem>>, vector<16x256xbf16>
    tpu.vector_store %arg15[%c0_11, %c0_12], %15 {strides = array<i32>} : memref<16x256xbf16, #tpu.memory_space<vmem>>, vector<16x256xbf16>,
    %17 = arith.truncf %1 : vector<16x256xf32> to vector<16x256xbf16>
    %c0_13 = arith.constant 0 : index
    %c0_14 = arith.constant 0 : index
    %18 = vector.load %arg6[%c0_13, %c0_14] : memref<256x256xbf16, #tpu.memory_space<vmem>>, vector<256x256xbf16>
    %cst_15 = arith.constant dense<0.000000e+00> : vector<16x256xf32>
    %19 = tpu.matmul %17, %18, %cst_15 {dimension_numbers = #tpu.dot_dimension_numbers<[1], [0], [0], [1], [0, 0, 1, 1], [], []>} : vector<16x256xbf16>, vector<256x256xbf16>, vector<16x256xf32> -> vector<16x256xf32>
    %c0_16 = arith.constant 0 : index
    %c0_17 = arith.constant 0 : index
    %20 = vector.load %arg9[%c0_16, %c0_17] : memref<1x256xf32, #tpu.memory_space<vmem>>, vector<1x256xf32>
    %21 = vector.broadcast %20 : vector<1x256xf32> to vector<16x256xf32>
    %22 = arith.addf %19, %21 : vector<16x256xf32>
    %23 = arith.truncf %22 : vector<16x256xf32> to vector<16x256xbf16>
    %c0_18 = arith.constant 0 : index
    %c0_19 = arith.constant 0 : index
    %24 = vector.load %arg16[%c0_18, %c0_19] : memref<16x256xbf16, #tpu.memory_space<vmem>>, vector<16x256xbf16>
    tpu.vector_store %arg16[%c0_18, %c0_19], %23 {strides = array<i32>} : memref<16x256xbf16, #tpu.memory_space<vmem>>, vector<16x256xbf16>,
    %c0_20 = arith.constant 0 : index
    %c0_21 = arith.constant 0 : index
    %25 = vector.load %arg10[%c0_20, %c0_21] : memref<1x256xf32, #tpu.memory_space<vmem>>, vector<1x256xf32>
    %c0_22 = arith.constant 0 : index
    %c0_23 = arith.constant 0 : index
    %26 = vector.load %arg11[%c0_22, %c0_23] : memref<1x256xf32, #tpu.memory_space<vmem>>, vector<1x256xf32>
    %c0_24 = arith.constant 0 : index
    %c0_25 = arith.constant 0 : index
    %27 = vector.load %arg12[%c0_24, %c0_25] : memref<1x256xf32, #tpu.memory_space<vmem>>, vector<1x256xf32>
    %cst_26 = arith.constant -1.000000e+30 : f32
    %c0_i32 = arith.constant 0 : i32
    %c16_i32 = arith.constant 16 : i32
    %28 = arith.muli %c0_i32, %c16_i32 : i32
    %29 = tpu.assume_multiple %28, 16 : i32
    %30 = arith.index_cast %29 : i32 to index
    %c0_27 = arith.constant 0 : index
    %31 = vector.load %arg14[%30, %c0_27] : memref<16x256xbf16, #tpu.memory_space<vmem>>, vector<16x256xbf16>
    %32 = arith.index_cast %29 : i32 to index
    %c0_28 = arith.constant 0 : index
    %33 = vector.load %arg15[%32, %c0_28] : memref<16x256xbf16, #tpu.memory_space<vmem>>, vector<16x256xbf16>
    %34 = arith.index_cast %29 : i32 to index
    %c0_29 = arith.constant 0 : index
    %35 = vector.load %arg16[%34, %c0_29] : memref<16x256xbf16, #tpu.memory_space<vmem>>, vector<16x256xbf16>
    %c0_30 = arith.constant 0 : index
    %c0_31 = arith.constant 0 : index
    %c0_32 = arith.constant 0 : index
    %36 = vector.load %arg4[%c0_30, %c0_31, %c0_32] : memref<1x16x16xi8, #tpu.memory_space<vmem>>, vector<1x16x16xi8>
    %37 = vector.shape_cast %36 : vector<1x16x16xi8> to vector<16x16xi8>
    %38 = arith.sitofp %37 : vector<16x16xi8> to vector<16x16xf32>
    %39 = vector.broadcast %cst_26 : f32 to vector<16x16xf32>
    %40 = arith.mulf %38, %39 : vector<16x16xf32>
    %41 = arith.index_cast %c0_i32 : i32 to index
    %c0_33 = arith.constant 0 : index
    %c0_34 = arith.constant 0 : index
    %42 = vector.load %arg3[%41, %c0_33, %c0_34] : memref<1x1x16xf32, #tpu.memory_space<vmem>>, vector<1x1x16xf32>
    %43 = vector.shape_cast %42 : vector<1x1x16xf32> to vector<1x16xf32>
    %44 = vector.broadcast %43 : vector<1x16xf32> to vector<16x16xf32>
    %45 = arith.addf %40, %44 : vector<16x16xf32>
    %46 = vector.extract_strided_slice %31 {offsets = [0, 0], sizes = [16, 32], strides = [1, 1]} : vector<16x256xbf16> to vector<16x32xbf16>
    %47 = vector.extract_strided_slice %33 {offsets = [0, 0], sizes = [16, 32], strides = [1, 1]} : vector<16x256xbf16> to vector<16x32xbf16>
    %48 = vector.extract_strided_slice %35 {offsets = [0, 0], sizes = [16, 32], strides = [1, 1]} : vector<16x256xbf16> to vector<16x32xbf16>
    %cst_35 = arith.constant dense<0.000000e+00> : vector<16x16xf32>
    %49 = tpu.matmul %46, %47, %cst_35 {dimension_numbers = #tpu.dot_dimension_numbers<[1], [1], [0], [0], [0, 0, 1, 0], [], []>} : vector<16x32xbf16>, vector<16x32xbf16>, vector<16x16xf32> -> vector<16x16xf32>
    %50 = arith.addf %49, %45 : vector<16x16xf32>
    %cst_36 = arith.constant dense<0xFF800000> : vector<16xf32>
    %51 = vector.multi_reduction <maximumf>, %50, %cst_36 [1] : vector<16x16xf32> to vector<16xf32>
    %52 = vector.shape_cast %51 : vector<16xf32> to vector<16x1xf32>
    %53 = vector.broadcast %52 : vector<16x1xf32> to vector<16x16xf32>
    %54 = arith.subf %50, %53 : vector<16x16xf32>
    %55 = math.exp %54 : vector<16x16xf32>
    %cst_37 = arith.constant dense<0.000000e+00> : vector<16xf32>
    %56 = vector.multi_reduction <add>, %55, %cst_37 [1] : vector<16x16xf32> to vector<16xf32>
    %57 = vector.shape_cast %56 : vector<16xf32> to vector<16x1xf32>
    %58 = arith.truncf %55 : vector<16x16xf32> to vector<16x16xbf16>
    %cst_38 = arith.constant dense<0.000000e+00> : vector<16x32xf32>
    %59 = tpu.matmul %58, %48, %cst_38 {dimension_numbers = #tpu.dot_dimension_numbers<[1], [0], [0], [1], [0, 0, 1, 1], [], []>} : vector<16x16xbf16>, vector<16x32xbf16>, vector<16x32xf32> -> vector<16x32xf32>
    %60 = tpu.reciprocal %57 {approx = true} : vector<16x1xf32> -> vector<16x1xf32>
    %61 = vector.broadcast %60 : vector<16x1xf32> to vector<16x32xf32>
    %62 = arith.mulf %59, %61 : vector<16x32xf32>
    %63 = arith.truncf %62 : vector<16x32xf32> to vector<16x32xbf16>
    %c0_39 = arith.constant 0 : index
    %c0_40 = arith.constant 0 : index
    %64 = vector.load %arg17[%c0_39, %c0_40] : memref<16x256xbf16, #tpu.memory_space<vmem>>, vector<16x32xbf16>
    tpu.vector_store %arg17[%c0_39, %c0_40], %63 {strides = array<i32>} : memref<16x256xbf16, #tpu.memory_space<vmem>>, vector<16x32xbf16>,
    %65 = vector.extract_strided_slice %31 {offsets = [0, 32], sizes = [16, 32], strides = [1, 1]} : vector<16x256xbf16> to vector<16x32xbf16>
    %66 = vector.extract_strided_slice %33 {offsets = [0, 32], sizes = [16, 32], strides = [1, 1]} : vector<16x256xbf16> to vector<16x32xbf16>
    %67 = vector.extract_strided_slice %35 {offsets = [0, 32], sizes = [16, 32], strides = [1, 1]} : vector<16x256xbf16> to vector<16x32xbf16>
    %cst_41 = arith.constant dense<0.000000e+00> : vector<16x16xf32>
    %68 = tpu.matmul %65, %66, %cst_41 {dimension_numbers = #tpu.dot_dimension_numbers<[1], [1], [0], [0], [0, 0, 1, 0], [], []>} : vector<16x32xbf16>, vector<16x32xbf16>, vector<16x16xf32> -> vector<16x16xf32>
    %69 = arith.addf %68, %45 : vector<16x16xf32>
    %cst_42 = arith.constant dense<0xFF800000> : vector<16xf32>
    %70 = vector.multi_reduction <maximumf>, %69, %cst_42 [1] : vector<16x16xf32> to vector<16xf32>
    %71 = vector.shape_cast %70 : vector<16xf32> to vector<16x1xf32>
    %72 = vector.broadcast %71 : vector<16x1xf32> to vector<16x16xf32>
    %73 = arith.subf %69, %72 : vector<16x16xf32>
    %74 = math.exp %73 : vector<16x16xf32>
    %cst_43 = arith.constant dense<0.000000e+00> : vector<16xf32>
    %75 = vector.multi_reduction <add>, %74, %cst_43 [1] : vector<16x16xf32> to vector<16xf32>
    %76 = vector.shape_cast %75 : vector<16xf32> to vector<16x1xf32>
    %77 = arith.truncf %74 : vector<16x16xf32> to vector<16x16xbf16>
    %cst_44 = arith.constant dense<0.000000e+00> : vector<16x32xf32>
    %78 = tpu.matmul %77, %67, %cst_44 {dimension_numbers = #tpu.dot_dimension_numbers<[1], [0], [0], [1], [0, 0, 1, 1], [], []>} : vector<16x16xbf16>, vector<16x32xbf16>, vector<16x32xf32> -> vector<16x32xf32>
    %79 = tpu.reciprocal %76 {approx = true} : vector<16x1xf32> -> vector<16x1xf32>
    %80 = vector.broadcast %79 : vector<16x1xf32> to vector<16x32xf32>
    %81 = arith.mulf %78, %80 : vector<16x32xf32>
    %82 = arith.truncf %81 : vector<16x32xf32> to vector<16x32xbf16>
    %c0_45 = arith.constant 0 : index
    %c32 = arith.constant 32 : index
    %83 = vector.load %arg17[%c0_45, %c32] : memref<16x256xbf16, #tpu.memory_space<vmem>>, vector<16x32xbf16>
    tpu.vector_store %arg17[%c0_45, %c32], %82 {strides = array<i32>} : memref<16x256xbf16, #tpu.memory_space<vmem>>, vector<16x32xbf16>,
    %84 = vector.extract_strided_slice %31 {offsets = [0, 64], sizes = [16, 32], strides = [1, 1]} : vector<16x256xbf16> to vector<16x32xbf16>
    %85 = vector.extract_strided_slice %33 {offsets = [0, 64], sizes = [16, 32], strides = [1, 1]} : vector<16x256xbf16> to vector<16x32xbf16>
    %86 = vector.extract_strided_slice %35 {offsets = [0, 64], sizes = [16, 32], strides = [1, 1]} : vector<16x256xbf16> to vector<16x32xbf16>
    %cst_46 = arith.constant dense<0.000000e+00> : vector<16x16xf32>
    %87 = tpu.matmul %84, %85, %cst_46 {dimension_numbers = #tpu.dot_dimension_numbers<[1], [1], [0], [0], [0, 0, 1, 0], [], []>} : vector<16x32xbf16>, vector<16x32xbf16>, vector<16x16xf32> -> vector<16x16xf32>
    %88 = arith.addf %87, %45 : vector<16x16xf32>
    %cst_47 = arith.constant dense<0xFF800000> : vector<16xf32>
    %89 = vector.multi_reduction <maximumf>, %88, %cst_47 [1] : vector<16x16xf32> to vector<16xf32>
    %90 = vector.shape_cast %89 : vector<16xf32> to vector<16x1xf32>
    %91 = vector.broadcast %90 : vector<16x1xf32> to vector<16x16xf32>
    %92 = arith.subf %88, %91 : vector<16x16xf32>
    %93 = math.exp %92 : vector<16x16xf32>
    %cst_48 = arith.constant dense<0.000000e+00> : vector<16xf32>
    %94 = vector.multi_reduction <add>, %93, %cst_48 [1] : vector<16x16xf32> to vector<16xf32>
    %95 = vector.shape_cast %94 : vector<16xf32> to vector<16x1xf32>
    %96 = arith.truncf %93 : vector<16x16xf32> to vector<16x16xbf16>
    %cst_49 = arith.constant dense<0.000000e+00> : vector<16x32xf32>
    %97 = tpu.matmul %96, %86, %cst_49 {dimension_numbers = #tpu.dot_dimension_numbers<[1], [0], [0], [1], [0, 0, 1, 1], [], []>} : vector<16x16xbf16>, vector<16x32xbf16>, vector<16x32xf32> -> vector<16x32xf32>
    %98 = tpu.reciprocal %95 {approx = true} : vector<16x1xf32> -> vector<16x1xf32>
    %99 = vector.broadcast %98 : vector<16x1xf32> to vector<16x32xf32>
    %100 = arith.mulf %97, %99 : vector<16x32xf32>
    %101 = arith.truncf %100 : vector<16x32xf32> to vector<16x32xbf16>
    %c0_50 = arith.constant 0 : index
    %c64 = arith.constant 64 : index
    %102 = vector.load %arg17[%c0_50, %c64] : memref<16x256xbf16, #tpu.memory_space<vmem>>, vector<16x32xbf16>
    tpu.vector_store %arg17[%c0_50, %c64], %101 {strides = array<i32>} : memref<16x256xbf16, #tpu.memory_space<vmem>>, vector<16x32xbf16>,
    %103 = vector.extract_strided_slice %31 {offsets = [0, 96], sizes = [16, 32], strides = [1, 1]} : vector<16x256xbf16> to vector<16x32xbf16>
    %104 = vector.extract_strided_slice %33 {offsets = [0, 96], sizes = [16, 32], strides = [1, 1]} : vector<16x256xbf16> to vector<16x32xbf16>
    %105 = vector.extract_strided_slice %35 {offsets = [0, 96], sizes = [16, 32], strides = [1, 1]} : vector<16x256xbf16> to vector<16x32xbf16>
    %cst_51 = arith.constant dense<0.000000e+00> : vector<16x16xf32>
    %106 = tpu.matmul %103, %104, %cst_51 {dimension_numbers = #tpu.dot_dimension_numbers<[1], [1], [0], [0], [0, 0, 1, 0], [], []>} : vector<16x32xbf16>, vector<16x32xbf16>, vector<16x16xf32> -> vector<16x16xf32>
    %107 = arith.addf %106, %45 : vector<16x16xf32>
    %cst_52 = arith.constant dense<0xFF800000> : vector<16xf32>
    %108 = vector.multi_reduction <maximumf>, %107, %cst_52 [1] : vector<16x16xf32> to vector<16xf32>
    %109 = vector.shape_cast %108 : vector<16xf32> to vector<16x1xf32>
    %110 = vector.broadcast %109 : vector<16x1xf32> to vector<16x16xf32>
    %111 = arith.subf %107, %110 : vector<16x16xf32>
    %112 = math.exp %111 : vector<16x16xf32>
    %cst_53 = arith.constant dense<0.000000e+00> : vector<16xf32>
    %113 = vector.multi_reduction <add>, %112, %cst_53 [1] : vector<16x16xf32> to vector<16xf32>
    %114 = vector.shape_cast %113 : vector<16xf32> to vector<16x1xf32>
    %115 = arith.truncf %112 : vector<16x16xf32> to vector<16x16xbf16>
    %cst_54 = arith.constant dense<0.000000e+00> : vector<16x32xf32>
    %116 = tpu.matmul %115, %105, %cst_54 {dimension_numbers = #tpu.dot_dimension_numbers<[1], [0], [0], [1], [0, 0, 1, 1], [], []>} : vector<16x16xbf16>, vector<16x32xbf16>, vector<16x32xf32> -> vector<16x32xf32>
    %117 = tpu.reciprocal %114 {approx = true} : vector<16x1xf32> -> vector<16x1xf32>
    %118 = vector.broadcast %117 : vector<16x1xf32> to vector<16x32xf32>
    %119 = arith.mulf %116, %118 : vector<16x32xf32>
    %120 = arith.truncf %119 : vector<16x32xf32> to vector<16x32xbf16>
    %c0_55 = arith.constant 0 : index
    %c96 = arith.constant 96 : index
    %121 = vector.load %arg17[%c0_55, %c96] : memref<16x256xbf16, #tpu.memory_space<vmem>>, vector<16x32xbf16>
    tpu.vector_store %arg17[%c0_55, %c96], %120 {strides = array<i32>} : memref<16x256xbf16, #tpu.memory_space<vmem>>, vector<16x32xbf16>,
    %122 = vector.extract_strided_slice %31 {offsets = [0, 128], sizes = [16, 32], strides = [1, 1]} : vector<16x256xbf16> to vector<16x32xbf16>
    %123 = vector.extract_strided_slice %33 {offsets = [0, 128], sizes = [16, 32], strides = [1, 1]} : vector<16x256xbf16> to vector<16x32xbf16>
    %124 = vector.extract_strided_slice %35 {offsets = [0, 128], sizes = [16, 32], strides = [1, 1]} : vector<16x256xbf16> to vector<16x32xbf16>
    %cst_56 = arith.constant dense<0.000000e+00> : vector<16x16xf32>
    %125 = tpu.matmul %122, %123, %cst_56 {dimension_numbers = #tpu.dot_dimension_numbers<[1], [1], [0], [0], [0, 0, 1, 0], [], []>} : vector<16x32xbf16>, vector<16x32xbf16>, vector<16x16xf32> -> vector<16x16xf32>
    %126 = arith.addf %125, %45 : vector<16x16xf32>
    %cst_57 = arith.constant dense<0xFF800000> : vector<16xf32>
    %127 = vector.multi_reduction <maximumf>, %126, %cst_57 [1] : vector<16x16xf32> to vector<16xf32>
    %128 = vector.shape_cast %127 : vector<16xf32> to vector<16x1xf32>
    %129 = vector.broadcast %128 : vector<16x1xf32> to vector<16x16xf32>
    %130 = arith.subf %126, %129 : vector<16x16xf32>
    %131 = math.exp %130 : vector<16x16xf32>
    %cst_58 = arith.constant dense<0.000000e+00> : vector<16xf32>
    %132 = vector.multi_reduction <add>, %131, %cst_58 [1] : vector<16x16xf32> to vector<16xf32>
    %133 = vector.shape_cast %132 : vector<16xf32> to vector<16x1xf32>
    %134 = arith.truncf %131 : vector<16x16xf32> to vector<16x16xbf16>
    %cst_59 = arith.constant dense<0.000000e+00> : vector<16x32xf32>
    %135 = tpu.matmul %134, %124, %cst_59 {dimension_numbers = #tpu.dot_dimension_numbers<[1], [0], [0], [1], [0, 0, 1, 1], [], []>} : vector<16x16xbf16>, vector<16x32xbf16>, vector<16x32xf32> -> vector<16x32xf32>
    %136 = tpu.reciprocal %133 {approx = true} : vector<16x1xf32> -> vector<16x1xf32>
    %137 = vector.broadcast %136 : vector<16x1xf32> to vector<16x32xf32>
    %138 = arith.mulf %135, %137 : vector<16x32xf32>
    %139 = arith.truncf %138 : vector<16x32xf32> to vector<16x32xbf16>
    %c0_60 = arith.constant 0 : index
    %c128 = arith.constant 128 : index
    %140 = vector.load %arg17[%c0_60, %c128] : memref<16x256xbf16, #tpu.memory_space<vmem>>, vector<16x32xbf16>
    tpu.vector_store %arg17[%c0_60, %c128], %139 {strides = array<i32>} : memref<16x256xbf16, #tpu.memory_space<vmem>>, vector<16x32xbf16>,
    %141 = vector.extract_strided_slice %31 {offsets = [0, 160], sizes = [16, 32], strides = [1, 1]} : vector<16x256xbf16> to vector<16x32xbf16>
    %142 = vector.extract_strided_slice %33 {offsets = [0, 160], sizes = [16, 32], strides = [1, 1]} : vector<16x256xbf16> to vector<16x32xbf16>
    %143 = vector.extract_strided_slice %35 {offsets = [0, 160], sizes = [16, 32], strides = [1, 1]} : vector<16x256xbf16> to vector<16x32xbf16>
    %cst_61 = arith.constant dense<0.000000e+00> : vector<16x16xf32>
    %144 = tpu.matmul %141, %142, %cst_61 {dimension_numbers = #tpu.dot_dimension_numbers<[1], [1], [0], [0], [0, 0, 1, 0], [], []>} : vector<16x32xbf16>, vector<16x32xbf16>, vector<16x16xf32> -> vector<16x16xf32>
    %145 = arith.addf %144, %45 : vector<16x16xf32>
    %cst_62 = arith.constant dense<0xFF800000> : vector<16xf32>
    %146 = vector.multi_reduction <maximumf>, %145, %cst_62 [1] : vector<16x16xf32> to vector<16xf32>
    %147 = vector.shape_cast %146 : vector<16xf32> to vector<16x1xf32>
    %148 = vector.broadcast %147 : vector<16x1xf32> to vector<16x16xf32>
    %149 = arith.subf %145, %148 : vector<16x16xf32>
    %150 = math.exp %149 : vector<16x16xf32>
    %cst_63 = arith.constant dense<0.000000e+00> : vector<16xf32>
    %151 = vector.multi_reduction <add>, %150, %cst_63 [1] : vector<16x16xf32> to vector<16xf32>
    %152 = vector.shape_cast %151 : vector<16xf32> to vector<16x1xf32>
    %153 = arith.truncf %150 : vector<16x16xf32> to vector<16x16xbf16>
    %cst_64 = arith.constant dense<0.000000e+00> : vector<16x32xf32>
    %154 = tpu.matmul %153, %143, %cst_64 {dimension_numbers = #tpu.dot_dimension_numbers<[1], [0], [0], [1], [0, 0, 1, 1], [], []>} : vector<16x16xbf16>, vector<16x32xbf16>, vector<16x32xf32> -> vector<16x32xf32>
    %155 = tpu.reciprocal %152 {approx = true} : vector<16x1xf32> -> vector<16x1xf32>
    %156 = vector.broadcast %155 : vector<16x1xf32> to vector<16x32xf32>
    %157 = arith.mulf %154, %156 : vector<16x32xf32>
    %158 = arith.truncf %157 : vector<16x32xf32> to vector<16x32xbf16>
    %c0_65 = arith.constant 0 : index
    %c160 = arith.constant 160 : index
    %159 = vector.load %arg17[%c0_65, %c160] : memref<16x256xbf16, #tpu.memory_space<vmem>>, vector<16x32xbf16>
    tpu.vector_store %arg17[%c0_65, %c160], %158 {strides = array<i32>} : memref<16x256xbf16, #tpu.memory_space<vmem>>, vector<16x32xbf16>,
    %160 = vector.extract_strided_slice %31 {offsets = [0, 192], sizes = [16, 32], strides = [1, 1]} : vector<16x256xbf16> to vector<16x32xbf16>
    %161 = vector.extract_strided_slice %33 {offsets = [0, 192], sizes = [16, 32], strides = [1, 1]} : vector<16x256xbf16> to vector<16x32xbf16>
    %162 = vector.extract_strided_slice %35 {offsets = [0, 192], sizes = [16, 32], strides = [1, 1]} : vector<16x256xbf16> to vector<16x32xbf16>
    %cst_66 = arith.constant dense<0.000000e+00> : vector<16x16xf32>
    %163 = tpu.matmul %160, %161, %cst_66 {dimension_numbers = #tpu.dot_dimension_numbers<[1], [1], [0], [0], [0, 0, 1, 0], [], []>} : vector<16x32xbf16>, vector<16x32xbf16>, vector<16x16xf32> -> vector<16x16xf32>
    %164 = arith.addf %163, %45 : vector<16x16xf32>
    %cst_67 = arith.constant dense<0xFF800000> : vector<16xf32>
    %165 = vector.multi_reduction <maximumf>, %164, %cst_67 [1] : vector<16x16xf32> to vector<16xf32>
    %166 = vector.shape_cast %165 : vector<16xf32> to vector<16x1xf32>
    %167 = vector.broadcast %166 : vector<16x1xf32> to vector<16x16xf32>
    %168 = arith.subf %164, %167 : vector<16x16xf32>
    %169 = math.exp %168 : vector<16x16xf32>
    %cst_68 = arith.constant dense<0.000000e+00> : vector<16xf32>
    %170 = vector.multi_reduction <add>, %169, %cst_68 [1] : vector<16x16xf32> to vector<16xf32>
    %171 = vector.shape_cast %170 : vector<16xf32> to vector<16x1xf32>
    %172 = arith.truncf %169 : vector<16x16xf32> to vector<16x16xbf16>
    %cst_69 = arith.constant dense<0.000000e+00> : vector<16x32xf32>
    %173 = tpu.matmul %172, %162, %cst_69 {dimension_numbers = #tpu.dot_dimension_numbers<[1], [0], [0], [1], [0, 0, 1, 1], [], []>} : vector<16x16xbf16>, vector<16x32xbf16>, vector<16x32xf32> -> vector<16x32xf32>
    %174 = tpu.reciprocal %171 {approx = true} : vector<16x1xf32> -> vector<16x1xf32>
    %175 = vector.broadcast %174 : vector<16x1xf32> to vector<16x32xf32>
    %176 = arith.mulf %173, %175 : vector<16x32xf32>
    %177 = arith.truncf %176 : vector<16x32xf32> to vector<16x32xbf16>
    %c0_70 = arith.constant 0 : index
    %c192 = arith.constant 192 : index
    %178 = vector.load %arg17[%c0_70, %c192] : memref<16x256xbf16, #tpu.memory_space<vmem>>, vector<16x32xbf16>
    tpu.vector_store %arg17[%c0_70, %c192], %177 {strides = array<i32>} : memref<16x256xbf16, #tpu.memory_space<vmem>>, vector<16x32xbf16>,
    %179 = vector.extract_strided_slice %31 {offsets = [0, 224], sizes = [16, 32], strides = [1, 1]} : vector<16x256xbf16> to vector<16x32xbf16>
    %180 = vector.extract_strided_slice %33 {offsets = [0, 224], sizes = [16, 32], strides = [1, 1]} : vector<16x256xbf16> to vector<16x32xbf16>
    %181 = vector.extract_strided_slice %35 {offsets = [0, 224], sizes = [16, 32], strides = [1, 1]} : vector<16x256xbf16> to vector<16x32xbf16>
    %cst_71 = arith.constant dense<0.000000e+00> : vector<16x16xf32>
    %182 = tpu.matmul %179, %180, %cst_71 {dimension_numbers = #tpu.dot_dimension_numbers<[1], [1], [0], [0], [0, 0, 1, 0], [], []>} : vector<16x32xbf16>, vector<16x32xbf16>, vector<16x16xf32> -> vector<16x16xf32>
    %183 = arith.addf %182, %45 : vector<16x16xf32>
    %cst_72 = arith.constant dense<0xFF800000> : vector<16xf32>
    %184 = vector.multi_reduction <maximumf>, %183, %cst_72 [1] : vector<16x16xf32> to vector<16xf32>
    %185 = vector.shape_cast %184 : vector<16xf32> to vector<16x1xf32>
    %186 = vector.broadcast %185 : vector<16x1xf32> to vector<16x16xf32>
    %187 = arith.subf %183, %186 : vector<16x16xf32>
    %188 = math.exp %187 : vector<16x16xf32>
    %cst_73 = arith.constant dense<0.000000e+00> : vector<16xf32>
    %189 = vector.multi_reduction <add>, %188, %cst_73 [1] : vector<16x16xf32> to vector<16xf32>
    %190 = vector.shape_cast %189 : vector<16xf32> to vector<16x1xf32>
    %191 = arith.truncf %188 : vector<16x16xf32> to vector<16x16xbf16>
    %cst_74 = arith.constant dense<0.000000e+00> : vector<16x32xf32>
    %192 = tpu.matmul %191, %181, %cst_74 {dimension_numbers = #tpu.dot_dimension_numbers<[1], [0], [0], [1], [0, 0, 1, 1], [], []>} : vector<16x16xbf16>, vector<16x32xbf16>, vector<16x32xf32> -> vector<16x32xf32>
    %193 = tpu.reciprocal %190 {approx = true} : vector<16x1xf32> -> vector<16x1xf32>
    %194 = vector.broadcast %193 : vector<16x1xf32> to vector<16x32xf32>
    %195 = arith.mulf %192, %194 : vector<16x32xf32>
    %196 = arith.truncf %195 : vector<16x32xf32> to vector<16x32xbf16>
    %c0_75 = arith.constant 0 : index
    %c224 = arith.constant 224 : index
    %197 = vector.load %arg17[%c0_75, %c224] : memref<16x256xbf16, #tpu.memory_space<vmem>>, vector<16x32xbf16>
    tpu.vector_store %arg17[%c0_75, %c224], %196 {strides = array<i32>} : memref<16x256xbf16, #tpu.memory_space<vmem>>, vector<16x32xbf16>,
    %c0_76 = arith.constant 0 : index
    %c0_77 = arith.constant 0 : index
    %198 = vector.load %arg17[%c0_76, %c0_77] : memref<16x256xbf16, #tpu.memory_space<vmem>>, vector<16x256xbf16>
    %c0_78 = arith.constant 0 : index
    %c0_79 = arith.constant 0 : index
    %199 = vector.load %arg7[%c0_78, %c0_79] : memref<256x256xbf16, #tpu.memory_space<vmem>>, vector<256x256xbf16>
    %cst_80 = arith.constant dense<0.000000e+00> : vector<16x256xf32>
    %200 = tpu.matmul %198, %199, %cst_80 {dimension_numbers = #tpu.dot_dimension_numbers<[1], [0], [0], [1], [0, 0, 1, 1], [], []>} : vector<16x256xbf16>, vector<256x256xbf16>, vector<16x256xf32> -> vector<16x256xf32>
    %201 = vector.broadcast %25 : vector<1x256xf32> to vector<16x256xf32>
    %202 = arith.addf %200, %201 : vector<16x256xf32>
    %203 = arith.index_cast %c0_i32 : i32 to index
    %c0_81 = arith.constant 0 : index
    %c0_82 = arith.constant 0 : index
    %204 = vector.load %arg1[%203, %c0_81, %c0_82] : memref<1x16x256xf32, #tpu.memory_space<vmem>>, vector<1x16x256xf32>
    %205 = vector.shape_cast %204 : vector<1x16x256xf32> to vector<16x256xf32>
    %206 = arith.addf %202, %205 : vector<16x256xf32>
    %cst_83 = arith.constant dense<0.000000e+00> : vector<16xf32>
    %207 = vector.multi_reduction <add>, %206, %cst_83 [1] : vector<16x256xf32> to vector<16xf32>
    %208 = vector.shape_cast %207 : vector<16xf32> to vector<16x1xf32>
    %cst_84 = arith.constant 2.560000e+02 : f32
    %209 = vector.broadcast %cst_84 : f32 to vector<16x1xf32>
    %210 = arith.divf %208, %209 : vector<16x1xf32>
    %211 = vector.broadcast %210 : vector<16x1xf32> to vector<16x256xf32>
    %212 = arith.subf %206, %211 : vector<16x256xf32>
    %213 = arith.mulf %212, %212 : vector<16x256xf32>
    %cst_85 = arith.constant dense<0.000000e+00> : vector<16xf32>
    %214 = vector.multi_reduction <add>, %213, %cst_85 [1] : vector<16x256xf32> to vector<16xf32>
    %215 = vector.shape_cast %214 : vector<16xf32> to vector<16x1xf32>
    %cst_86 = arith.constant 2.560000e+02 : f32
    %216 = vector.broadcast %cst_86 : f32 to vector<16x1xf32>
    %217 = arith.divf %215, %216 : vector<16x1xf32>
    %218 = vector.broadcast %210 : vector<16x1xf32> to vector<16x256xf32>
    %219 = arith.subf %206, %218 : vector<16x256xf32>
    %cst_87 = arith.constant 9.99999974E-6 : f32
    %220 = vector.broadcast %cst_87 : f32 to vector<16x1xf32>
    %221 = arith.addf %217, %220 : vector<16x1xf32>
    %222 = math.rsqrt %221 : vector<16x1xf32>
    %223 = vector.broadcast %222 : vector<16x1xf32> to vector<16x256xf32>
    %224 = arith.mulf %219, %223 : vector<16x256xf32>
    %225 = vector.broadcast %26 : vector<1x256xf32> to vector<16x256xf32>
    %226 = arith.mulf %224, %225 : vector<16x256xf32>
    %227 = vector.broadcast %27 : vector<1x256xf32> to vector<16x256xf32>
    %228 = arith.addf %226, %227 : vector<16x256xf32>
    %229 = arith.index_cast %c0_i32 : i32 to index
    %c0_88 = arith.constant 0 : index
    %c0_89 = arith.constant 0 : index
    %230 = vector.load %arg13[%229, %c0_88, %c0_89] : memref<1x16x256xf32, #tpu.memory_space<vmem>>, vector<1x16x256xf32>
    %231 = vector.shape_cast %230 : vector<1x16x256xf32> to vector<16x256xf32>
    %232 = vector.shape_cast %228 : vector<16x256xf32> to vector<1x16x256xf32>
    tpu.vector_store %arg13[%229, %c0_88, %c0_89], %232 {strides = array<i32>} : memref<1x16x256xf32, #tpu.memory_space<vmem>>, vector<1x16x256xf32>,
    %c1_i32 = arith.constant 1 : i32
    return
  }
  func.func @transform_0(%arg0: i32) -> (i32, i32, i32) {
    %c0_i32 = arith.constant 0 : i32
    %c0_i32_0 = arith.constant 0 : i32
    %c0_i32_1 = arith.constant 0 : i32
    return %arg0, %c0_i32, %c0_i32_0 : i32, i32, i32
  }
  func.func @transform_1(%arg0: i32) -> (i32, i32, i32) {
    %c0_i32 = arith.constant 0 : i32
    %c0_i32_0 = arith.constant 0 : i32
    %c0_i32_1 = arith.constant 0 : i32
    return %arg0, %c0_i32, %c0_i32_0 : i32, i32, i32
  }
  func.func @transform_2(%arg0: i32) -> (i32, i32, i32) {
    %c0_i32 = arith.constant 0 : i32
    %c0_i32_0 = arith.constant 0 : i32
    %c0_i32_1 = arith.constant 0 : i32
    return %arg0, %c0_i32, %c0_i32_0 : i32, i32, i32
  }
  func.func @transform_3(%arg0: i32) -> (i32, i32, i32) {
    %c0_i32 = arith.constant 0 : i32
    %c0_i32_0 = arith.constant 0 : i32
    %c0_i32_1 = arith.constant 0 : i32
    %c0_i32_2 = arith.constant 0 : i32
    return %c0_i32, %c0_i32_0, %c0_i32_1 : i32, i32, i32
  }
  func.func @transform_4(%arg0: i32) -> (i32, i32) {
    %c0_i32 = arith.constant 0 : i32
    %c0_i32_0 = arith.constant 0 : i32
    %c0_i32_1 = arith.constant 0 : i32
    return %c0_i32, %c0_i32_0 : i32, i32
  }
  func.func @transform_5(%arg0: i32) -> (i32, i32) {
    %c0_i32 = arith.constant 0 : i32
    %c0_i32_0 = arith.constant 0 : i32
    %c0_i32_1 = arith.constant 0 : i32
    return %c0_i32, %c0_i32_0 : i32, i32
  }
  func.func @transform_6(%arg0: i32) -> (i32, i32) {
    %c0_i32 = arith.constant 0 : i32
    %c0_i32_0 = arith.constant 0 : i32
    %c0_i32_1 = arith.constant 0 : i32
    return %c0_i32, %c0_i32_0 : i32, i32
  }
  func.func @transform_7(%arg0: i32) -> (i32, i32) {
    %c0_i32 = arith.constant 0 : i32
    %c0_i32_0 = arith.constant 0 : i32
    %c0_i32_1 = arith.constant 0 : i32
    return %c0_i32, %c0_i32_0 : i32, i32
  }
  func.func @transform_8(%arg0: i32) -> (i32, i32) {
    %c0_i32 = arith.constant 0 : i32
    %c0_i32_0 = arith.constant 0 : i32
    %c0_i32_1 = arith.constant 0 : i32
    return %c0_i32, %c0_i32_0 : i32, i32
  }
  func.func @transform_9(%arg0: i32) -> (i32, i32) {
    %c0_i32 = arith.constant 0 : i32
    %c0_i32_0 = arith.constant 0 : i32
    %c0_i32_1 = arith.constant 0 : i32
    return %c0_i32, %c0_i32_0 : i32, i32
  }
  func.func @transform_10(%arg0: i32) -> (i32, i32) {
    %c0_i32 = arith.constant 0 : i32
    %c0_i32_0 = arith.constant 0 : i32
    %c0_i32_1 = arith.constant 0 : i32
    return %c0_i32, %c0_i32_0 : i32, i32
  }
  func.func @transform_11(%arg0: i32) -> (i32, i32) {
    %c0_i32 = arith.constant 0 : i32
    %c0_i32_0 = arith.constant 0 : i32
    %c0_i32_1 = arith.constant 0 : i32
    return %c0_i32, %c0_i32_0 : i32, i32
  }
  func.func @transform_12(%arg0: i32) -> (i32, i32, i32) {
    %c0_i32 = arith.constant 0 : i32
    %c0_i32_0 = arith.constant 0 : i32
    %c0_i32_1 = arith.constant 0 : i32
    return %arg0, %c0_i32, %c0_i32_0 : i32, i32, i32
  }
}

module attributes {stable_mosaic.version = 11 : i64} {
  func.func @_self_attn_kernel(%arg0: i32, %arg1: memref<1x16x256xf32, #tpu.memory_space<vmem>>, %arg2: memref<1x16x256xf32, #tpu.memory_space<vmem>>, %arg3: memref<1x1x16xf32, #tpu.memory_space<vmem>>, %arg4: memref<1x16x16xi8, #tpu.memory_space<vmem>>, %arg5: memref<256x512xbf16, #tpu.memory_space<vmem>>, %arg6: memref<256x256xbf16, #tpu.memory_space<vmem>>, %arg7: memref<256x256xbf16, #tpu.memory_space<vmem>>, %arg8: memref<1x512xf32, #tpu.memory_space<vmem>>, %arg9: memref<1x256xf32, #tpu.memory_space<vmem>>, %arg10: memref<1x256xf32, #tpu.memory_space<vmem>>, %arg11: memref<1x256xf32, #tpu.memory_space<vmem>>, %arg12: memref<1x256xf32, #tpu.memory_space<vmem>>, %arg13: memref<1x16x256xf32, #tpu.memory_space<vmem>>, %arg14: memref<16x256xbf16, #tpu.memory_space<vmem>>, %arg15: memref<16x256xbf16, #tpu.memory_space<vmem>>, %arg16: memref<16x256xbf16, #tpu.memory_space<vmem>>, %arg17: memref<16x256xbf16, #tpu.memory_space<vmem>>) attributes {dimension_semantics = [#tpu.dimension_semantics<parallel>], iteration_bounds = array<i64: 2>, scalar_prefetch = 0 : i64, scratch_operands = 4 : i64, tpu.core_type = #tpu.core_type<tc>, window_params = [{transform_indices = @transform_0, window_bounds = array<i64: 1, 16, 256>}, {transform_indices = @transform_1, window_bounds = array<i64: 1, 16, 256>}, {transform_indices = @transform_2, window_bounds = array<i64: 1, 1, 16>}, {pipeline_mode = #tpu.pipeline_mode<synchronous>, transform_indices = @transform_3, window_bounds = array<i64: 1, 16, 16>}, {pipeline_mode = #tpu.pipeline_mode<synchronous>, transform_indices = @transform_4, window_bounds = array<i64: 256, 512>}, {pipeline_mode = #tpu.pipeline_mode<synchronous>, transform_indices = @transform_5, window_bounds = array<i64: 256, 256>}, {pipeline_mode = #tpu.pipeline_mode<synchronous>, transform_indices = @transform_6, window_bounds = array<i64: 256, 256>}, {pipeline_mode = #tpu.pipeline_mode<synchronous>, transform_indices = @transform_7, window_bounds = array<i64: 1, 512>}, {pipeline_mode = #tpu.pipeline_mode<synchronous>, transform_indices = @transform_8, window_bounds = array<i64: 1, 256>}, {pipeline_mode = #tpu.pipeline_mode<synchronous>, transform_indices = @transform_9, window_bounds = array<i64: 1, 256>}, {pipeline_mode = #tpu.pipeline_mode<synchronous>, transform_indices = @transform_10, window_bounds = array<i64: 1, 256>}, {pipeline_mode = #tpu.pipeline_mode<synchronous>, transform_indices = @transform_11, window_bounds = array<i64: 1, 256>}, {transform_indices = @transform_12, window_bounds = array<i64: 1, 16, 256>}]} {
    %c0 = arith.constant 0 : index
    %c0_0 = arith.constant 0 : index
    %c0_1 = arith.constant 0 : index
    %0 = vector.load %arg1[%c0, %c0_0, %c0_1] : memref<1x16x256xf32, #tpu.memory_space<vmem>>, vector<1x16x256xf32>
    %1 = vector.shape_cast %0 : vector<1x16x256xf32> to vector<16x256xf32>
    %c0_2 = arith.constant 0 : index
    %c0_3 = arith.constant 0 : index
    %c0_4 = arith.constant 0 : index
    %2 = vector.load %arg2[%c0_2, %c0_3, %c0_4] : memref<1x16x256xf32, #tpu.memory_space<vmem>>, vector<1x16x256xf32>
    %3 = vector.shape_cast %2 : vector<1x16x256xf32> to vector<16x256xf32>
    %4 = arith.addf %1, %3 : vector<16x256xf32>
    %5 = arith.truncf %4 : vector<16x256xf32> to vector<16x256xbf16>
    %c0_5 = arith.constant 0 : index
    %c0_6 = arith.constant 0 : index
    %6 = vector.load %arg5[%c0_5, %c0_6] : memref<256x512xbf16, #tpu.memory_space<vmem>>, vector<256x512xbf16>
    %cst = arith.constant dense<0.000000e+00> : vector<16x512xf32>
    %7 = tpu.matmul %5, %6, %cst {dimension_numbers = #tpu.dot_dimension_numbers<[1], [0], [0], [1], [0, 0, 1, 1], [], []>} : vector<16x256xbf16>, vector<256x512xbf16>, vector<16x512xf32> -> vector<16x512xf32>
    %c0_7 = arith.constant 0 : index
    %c0_8 = arith.constant 0 : index
    %8 = vector.load %arg8[%c0_7, %c0_8] : memref<1x512xf32, #tpu.memory_space<vmem>>, vector<1x512xf32>
    %9 = vector.broadcast %8 : vector<1x512xf32> to vector<16x512xf32>
    %10 = arith.addf %7, %9 : vector<16x512xf32>
    %11 = vector.extract_strided_slice %10 {offsets = [0, 0], sizes = [16, 256], strides = [1, 1]} : vector<16x512xf32> to vector<16x256xf32>
    %12 = arith.truncf %11 : vector<16x256xf32> to vector<16x256xbf16>
    %c0_9 = arith.constant 0 : index
    %c0_10 = arith.constant 0 : index
    %13 = vector.load %arg14[%c0_9, %c0_10] : memref<16x256xbf16, #tpu.memory_space<vmem>>, vector<16x256xbf16>
    tpu.vector_store %arg14[%c0_9, %c0_10], %12 {strides = array<i32>} : memref<16x256xbf16, #tpu.memory_space<vmem>>, vector<16x256xbf16>,
    %14 = vector.extract_strided_slice %10 {offsets = [0, 256], sizes = [16, 256], strides = [1, 1]} : vector<16x512xf32> to vector<16x256xf32>
    %15 = arith.truncf %14 : vector<16x256xf32> to vector<16x256xbf16>
    %c0_11 = arith.constant 0 : index
    %c0_12 = arith.constant 0 : index
    %16 = vector.load %arg15[%c0_11, %c0_12] : memref<16x256xbf16, #tpu.memory_space<vmem>>, vector<16x256xbf16>
    tpu.vector_store %arg15[%c0_11, %c0_12], %15 {strides = array<i32>} : memref<16x256xbf16, #tpu.memory_space<vmem>>, vector<16x256xbf16>,
    %17 = arith.truncf %1 : vector<16x256xf32> to vector<16x256xbf16>
    %c0_13 = arith.constant 0 : index
    %c0_14 = arith.constant 0 : index
    %18 = vector.load %arg6[%c0_13, %c0_14] : memref<256x256xbf16, #tpu.memory_space<vmem>>, vector<256x256xbf16>
    %cst_15 = arith.constant dense<0.000000e+00> : vector<16x256xf32>
    %19 = tpu.matmul %17, %18, %cst_15 {dimension_numbers = #tpu.dot_dimension_numbers<[1], [0], [0], [1], [0, 0, 1, 1], [], []>} : vector<16x256xbf16>, vector<256x256xbf16>, vector<16x256xf32> -> vector<16x256xf32>
    %c0_16 = arith.constant 0 : index
    %c0_17 = arith.constant 0 : index
    %20 = vector.load %arg9[%c0_16, %c0_17] : memref<1x256xf32, #tpu.memory_space<vmem>>, vector<1x256xf32>
    %21 = vector.broadcast %20 : vector<1x256xf32> to vector<16x256xf32>
    %22 = arith.addf %19, %21 : vector<16x256xf32>
    %23 = arith.truncf %22 : vector<16x256xf32> to vector<16x256xbf16>
    %c0_18 = arith.constant 0 : index
    %c0_19 = arith.constant 0 : index
    %24 = vector.load %arg16[%c0_18, %c0_19] : memref<16x256xbf16, #tpu.memory_space<vmem>>, vector<16x256xbf16>
    tpu.vector_store %arg16[%c0_18, %c0_19], %23 {strides = array<i32>} : memref<16x256xbf16, #tpu.memory_space<vmem>>, vector<16x256xbf16>,
    %c0_20 = arith.constant 0 : index
    %c0_21 = arith.constant 0 : index
    %25 = vector.load %arg10[%c0_20, %c0_21] : memref<1x256xf32, #tpu.memory_space<vmem>>, vector<1x256xf32>
    %c0_22 = arith.constant 0 : index
    %c0_23 = arith.constant 0 : index
    %26 = vector.load %arg11[%c0_22, %c0_23] : memref<1x256xf32, #tpu.memory_space<vmem>>, vector<1x256xf32>
    %c0_24 = arith.constant 0 : index
    %c0_25 = arith.constant 0 : index
    %27 = vector.load %arg12[%c0_24, %c0_25] : memref<1x256xf32, #tpu.memory_space<vmem>>, vector<1x256xf32>
    %cst_26 = arith.constant -1.000000e+30 : f32
    %c0_i32 = arith.constant 0 : i32
    %c16_i32 = arith.constant 16 : i32
    %28 = arith.muli %c0_i32, %c16_i32 : i32
    %29 = tpu.assume_multiple %28, 16 : i32
    %30 = arith.index_cast %29 : i32 to index
    %c0_27 = arith.constant 0 : index
    %31 = vector.load %arg14[%30, %c0_27] : memref<16x256xbf16, #tpu.memory_space<vmem>>, vector<16x256xbf16>
    %32 = arith.index_cast %29 : i32 to index
    %c0_28 = arith.constant 0 : index
    %33 = vector.load %arg15[%32, %c0_28] : memref<16x256xbf16, #tpu.memory_space<vmem>>, vector<16x256xbf16>
    %34 = arith.index_cast %29 : i32 to index
    %c0_29 = arith.constant 0 : index
    %35 = vector.load %arg16[%34, %c0_29] : memref<16x256xbf16, #tpu.memory_space<vmem>>, vector<16x256xbf16>
    %c0_30 = arith.constant 0 : index
    %c0_31 = arith.constant 0 : index
    %c0_32 = arith.constant 0 : index
    %36 = vector.load %arg4[%c0_30, %c0_31, %c0_32] : memref<1x16x16xi8, #tpu.memory_space<vmem>>, vector<1x16x16xi8>
    %37 = vector.shape_cast %36 : vector<1x16x16xi8> to vector<16x16xi8>
    %38 = arith.sitofp %37 : vector<16x16xi8> to vector<16x16xf32>
    %39 = vector.broadcast %cst_26 : f32 to vector<16x16xf32>
    %40 = arith.mulf %38, %39 : vector<16x16xf32>
    %41 = arith.index_cast %c0_i32 : i32 to index
    %c0_33 = arith.constant 0 : index
    %c0_34 = arith.constant 0 : index
    %42 = vector.load %arg3[%41, %c0_33, %c0_34] : memref<1x1x16xf32, #tpu.memory_space<vmem>>, vector<1x1x16xf32>
    %43 = vector.shape_cast %42 : vector<1x1x16xf32> to vector<1x16xf32>
    %44 = vector.broadcast %43 : vector<1x16xf32> to vector<16x16xf32>
    %45 = arith.addf %40, %44 : vector<16x16xf32>
    %46 = vector.extract_strided_slice %31 {offsets = [0, 0], sizes = [16, 32], strides = [1, 1]} : vector<16x256xbf16> to vector<16x32xbf16>
    %47 = vector.extract_strided_slice %33 {offsets = [0, 0], sizes = [16, 32], strides = [1, 1]} : vector<16x256xbf16> to vector<16x32xbf16>
    %48 = vector.extract_strided_slice %35 {offsets = [0, 0], sizes = [16, 32], strides = [1, 1]} : vector<16x256xbf16> to vector<16x32xbf16>
    %cst_35 = arith.constant dense<0.000000e+00> : vector<16x16xf32>
    %49 = tpu.matmul %46, %47, %cst_35 {dimension_numbers = #tpu.dot_dimension_numbers<[1], [1], [0], [0], [0, 0, 1, 0], [], []>} : vector<16x32xbf16>, vector<16x32xbf16>, vector<16x16xf32> -> vector<16x16xf32>
    %50 = arith.addf %49, %45 : vector<16x16xf32>
    %cst_36 = arith.constant dense<0xFF800000> : vector<16xf32>
    %51 = vector.multi_reduction <maximumf>, %50, %cst_36 [1] : vector<16x16xf32> to vector<16xf32>
    %52 = vector.shape_cast %51 : vector<16xf32> to vector<16x1xf32>
    %53 = vector.broadcast %52 : vector<16x1xf32> to vector<16x16xf32>
    %54 = arith.subf %50, %53 : vector<16x16xf32>
    %55 = math.exp %54 : vector<16x16xf32>
    %cst_37 = arith.constant dense<0.000000e+00> : vector<16xf32>
    %56 = vector.multi_reduction <add>, %55, %cst_37 [1] : vector<16x16xf32> to vector<16xf32>
    %57 = vector.shape_cast %56 : vector<16xf32> to vector<16x1xf32>
    %58 = arith.truncf %55 : vector<16x16xf32> to vector<16x16xbf16>
    %cst_38 = arith.constant dense<0.000000e+00> : vector<16x32xf32>
    %59 = tpu.matmul %58, %48, %cst_38 {dimension_numbers = #tpu.dot_dimension_numbers<[1], [0], [0], [1], [0, 0, 1, 1], [], []>} : vector<16x16xbf16>, vector<16x32xbf16>, vector<16x32xf32> -> vector<16x32xf32>
    %60 = tpu.reciprocal %57 {approx = true} : vector<16x1xf32> -> vector<16x1xf32>
    %61 = vector.broadcast %60 : vector<16x1xf32> to vector<16x32xf32>
    %62 = arith.mulf %59, %61 : vector<16x32xf32>
    %63 = arith.truncf %62 : vector<16x32xf32> to vector<16x32xbf16>
    %c0_39 = arith.constant 0 : index
    %c0_40 = arith.constant 0 : index
    %64 = vector.load %arg17[%c0_39, %c0_40] : memref<16x256xbf16, #tpu.memory_space<vmem>>, vector<16x32xbf16>
    tpu.vector_store %arg17[%c0_39, %c0_40], %63 {strides = array<i32>} : memref<16x256xbf16, #tpu.memory_space<vmem>>, vector<16x32xbf16>,
    %65 = vector.extract_strided_slice %31 {offsets = [0, 32], sizes = [16, 32], strides = [1, 1]} : vector<16x256xbf16> to vector<16x32xbf16>
    %66 = vector.extract_strided_slice %33 {offsets = [0, 32], sizes = [16, 32], strides = [1, 1]} : vector<16x256xbf16> to vector<16x32xbf16>
    %67 = vector.extract_strided_slice %35 {offsets = [0, 32], sizes = [16, 32], strides = [1, 1]} : vector<16x256xbf16> to vector<16x32xbf16>
    %cst_41 = arith.constant dense<0.000000e+00> : vector<16x16xf32>
    %68 = tpu.matmul %65, %66, %cst_41 {dimension_numbers = #tpu.dot_dimension_numbers<[1], [1], [0], [0], [0, 0, 1, 0], [], []>} : vector<16x32xbf16>, vector<16x32xbf16>, vector<16x16xf32> -> vector<16x16xf32>
    %69 = arith.addf %68, %45 : vector<16x16xf32>
    %cst_42 = arith.constant dense<0xFF800000> : vector<16xf32>
    %70 = vector.multi_reduction <maximumf>, %69, %cst_42 [1] : vector<16x16xf32> to vector<16xf32>
    %71 = vector.shape_cast %70 : vector<16xf32> to vector<16x1xf32>
    %72 = vector.broadcast %71 : vector<16x1xf32> to vector<16x16xf32>
    %73 = arith.subf %69, %72 : vector<16x16xf32>
    %74 = math.exp %73 : vector<16x16xf32>
    %cst_43 = arith.constant dense<0.000000e+00> : vector<16xf32>
    %75 = vector.multi_reduction <add>, %74, %cst_43 [1] : vector<16x16xf32> to vector<16xf32>
    %76 = vector.shape_cast %75 : vector<16xf32> to vector<16x1xf32>
    %77 = arith.truncf %74 : vector<16x16xf32> to vector<16x16xbf16>
    %cst_44 = arith.constant dense<0.000000e+00> : vector<16x32xf32>
    %78 = tpu.matmul %77, %67, %cst_44 {dimension_numbers = #tpu.dot_dimension_numbers<[1], [0], [0], [1], [0, 0, 1, 1], [], []>} : vector<16x16xbf16>, vector<16x32xbf16>, vector<16x32xf32> -> vector<16x32xf32>
    %79 = tpu.reciprocal %76 {approx = true} : vector<16x1xf32> -> vector<16x1xf32>
    %80 = vector.broadcast %79 : vector<16x1xf32> to vector<16x32xf32>
    %81 = arith.mulf %78, %80 : vector<16x32xf32>
    %82 = arith.truncf %81 : vector<16x32xf32> to vector<16x32xbf16>
    %c0_45 = arith.constant 0 : index
    %c32 = arith.constant 32 : index
    %83 = vector.load %arg17[%c0_45, %c32] : memref<16x256xbf16, #tpu.memory_space<vmem>>, vector<16x32xbf16>
    tpu.vector_store %arg17[%c0_45, %c32], %82 {strides = array<i32>} : memref<16x256xbf16, #tpu.memory_space<vmem>>, vector<16x32xbf16>,
    %84 = vector.extract_strided_slice %31 {offsets = [0, 64], sizes = [16, 32], strides = [1, 1]} : vector<16x256xbf16> to vector<16x32xbf16>
    %85 = vector.extract_strided_slice %33 {offsets = [0, 64], sizes = [16, 32], strides = [1, 1]} : vector<16x256xbf16> to vector<16x32xbf16>
    %86 = vector.extract_strided_slice %35 {offsets = [0, 64], sizes = [16, 32], strides = [1, 1]} : vector<16x256xbf16> to vector<16x32xbf16>
    %cst_46 = arith.constant dense<0.000000e+00> : vector<16x16xf32>
    %87 = tpu.matmul %84, %85, %cst_46 {dimension_numbers = #tpu.dot_dimension_numbers<[1], [1], [0], [0], [0, 0, 1, 0], [], []>} : vector<16x32xbf16>, vector<16x32xbf16>, vector<16x16xf32> -> vector<16x16xf32>
    %88 = arith.addf %87, %45 : vector<16x16xf32>
    %cst_47 = arith.constant dense<0xFF800000> : vector<16xf32>
    %89 = vector.multi_reduction <maximumf>, %88, %cst_47 [1] : vector<16x16xf32> to vector<16xf32>
    %90 = vector.shape_cast %89 : vector<16xf32> to vector<16x1xf32>
    %91 = vector.broadcast %90 : vector<16x1xf32> to vector<16x16xf32>
    %92 = arith.subf %88, %91 : vector<16x16xf32>
    %93 = math.exp %92 : vector<16x16xf32>
    %cst_48 = arith.constant dense<0.000000e+00> : vector<16xf32>
    %94 = vector.multi_reduction <add>, %93, %cst_48 [1] : vector<16x16xf32> to vector<16xf32>
    %95 = vector.shape_cast %94 : vector<16xf32> to vector<16x1xf32>
    %96 = arith.truncf %93 : vector<16x16xf32> to vector<16x16xbf16>
    %cst_49 = arith.constant dense<0.000000e+00> : vector<16x32xf32>
    %97 = tpu.matmul %96, %86, %cst_49 {dimension_numbers = #tpu.dot_dimension_numbers<[1], [0], [0], [1], [0, 0, 1, 1], [], []>} : vector<16x16xbf16>, vector<16x32xbf16>, vector<16x32xf32> -> vector<16x32xf32>
    %98 = tpu.reciprocal %95 {approx = true} : vector<16x1xf32> -> vector<16x1xf32>
    %99 = vector.broadcast %98 : vector<16x1xf32> to vector<16x32xf32>
    %100 = arith.mulf %97, %99 : vector<16x32xf32>
    %101 = arith.truncf %100 : vector<16x32xf32> to vector<16x32xbf16>
    %c0_50 = arith.constant 0 : index
    %c64 = arith.constant 64 : index
    %102 = vector.load %arg17[%c0_50, %c64] : memref<16x256xbf16, #tpu.memory_space<vmem>>, vector<16x32xbf16>
    tpu.vector_store %arg17[%c0_50, %c64], %101 {strides = array<i32>} : memref<16x256xbf16, #tpu.memory_space<vmem>>, vector<16x32xbf16>,
    %103 = vector.extract_strided_slice %31 {offsets = [0, 96], sizes = [16, 32], strides = [1, 1]} : vector<16x256xbf16> to vector<16x32xbf16>
    %104 = vector.extract_strided_slice %33 {offsets = [0, 96], sizes = [16, 32], strides = [1, 1]} : vector<16x256xbf16> to vector<16x32xbf16>
    %105 = vector.extract_strided_slice %35 {offsets = [0, 96], sizes = [16, 32], strides = [1, 1]} : vector<16x256xbf16> to vector<16x32xbf16>
    %cst_51 = arith.constant dense<0.000000e+00> : vector<16x16xf32>
    %106 = tpu.matmul %103, %104, %cst_51 {dimension_numbers = #tpu.dot_dimension_numbers<[1], [1], [0], [0], [0, 0, 1, 0], [], []>} : vector<16x32xbf16>, vector<16x32xbf16>, vector<16x16xf32> -> vector<16x16xf32>
    %107 = arith.addf %106, %45 : vector<16x16xf32>
    %cst_52 = arith.constant dense<0xFF800000> : vector<16xf32>
    %108 = vector.multi_reduction <maximumf>, %107, %cst_52 [1] : vector<16x16xf32> to vector<16xf32>
    %109 = vector.shape_cast %108 : vector<16xf32> to vector<16x1xf32>
    %110 = vector.broadcast %109 : vector<16x1xf32> to vector<16x16xf32>
    %111 = arith.subf %107, %110 : vector<16x16xf32>
    %112 = math.exp %111 : vector<16x16xf32>
    %cst_53 = arith.constant dense<0.000000e+00> : vector<16xf32>
    %113 = vector.multi_reduction <add>, %112, %cst_53 [1] : vector<16x16xf32> to vector<16xf32>
    %114 = vector.shape_cast %113 : vector<16xf32> to vector<16x1xf32>
    %115 = arith.truncf %112 : vector<16x16xf32> to vector<16x16xbf16>
    %cst_54 = arith.constant dense<0.000000e+00> : vector<16x32xf32>
    %116 = tpu.matmul %115, %105, %cst_54 {dimension_numbers = #tpu.dot_dimension_numbers<[1], [0], [0], [1], [0, 0, 1, 1], [], []>} : vector<16x16xbf16>, vector<16x32xbf16>, vector<16x32xf32> -> vector<16x32xf32>
    %117 = tpu.reciprocal %114 {approx = true} : vector<16x1xf32> -> vector<16x1xf32>
    %118 = vector.broadcast %117 : vector<16x1xf32> to vector<16x32xf32>
    %119 = arith.mulf %116, %118 : vector<16x32xf32>
    %120 = arith.truncf %119 : vector<16x32xf32> to vector<16x32xbf16>
    %c0_55 = arith.constant 0 : index
    %c96 = arith.constant 96 : index
    %121 = vector.load %arg17[%c0_55, %c96] : memref<16x256xbf16, #tpu.memory_space<vmem>>, vector<16x32xbf16>
    tpu.vector_store %arg17[%c0_55, %c96], %120 {strides = array<i32>} : memref<16x256xbf16, #tpu.memory_space<vmem>>, vector<16x32xbf16>,
    %122 = vector.extract_strided_slice %31 {offsets = [0, 128], sizes = [16, 32], strides = [1, 1]} : vector<16x256xbf16> to vector<16x32xbf16>
    %123 = vector.extract_strided_slice %33 {offsets = [0, 128], sizes = [16, 32], strides = [1, 1]} : vector<16x256xbf16> to vector<16x32xbf16>
    %124 = vector.extract_strided_slice %35 {offsets = [0, 128], sizes = [16, 32], strides = [1, 1]} : vector<16x256xbf16> to vector<16x32xbf16>
    %cst_56 = arith.constant dense<0.000000e+00> : vector<16x16xf32>
    %125 = tpu.matmul %122, %123, %cst_56 {dimension_numbers = #tpu.dot_dimension_numbers<[1], [1], [0], [0], [0, 0, 1, 0], [], []>} : vector<16x32xbf16>, vector<16x32xbf16>, vector<16x16xf32> -> vector<16x16xf32>
    %126 = arith.addf %125, %45 : vector<16x16xf32>
    %cst_57 = arith.constant dense<0xFF800000> : vector<16xf32>
    %127 = vector.multi_reduction <maximumf>, %126, %cst_57 [1] : vector<16x16xf32> to vector<16xf32>
    %128 = vector.shape_cast %127 : vector<16xf32> to vector<16x1xf32>
    %129 = vector.broadcast %128 : vector<16x1xf32> to vector<16x16xf32>
    %130 = arith.subf %126, %129 : vector<16x16xf32>
    %131 = math.exp %130 : vector<16x16xf32>
    %cst_58 = arith.constant dense<0.000000e+00> : vector<16xf32>
    %132 = vector.multi_reduction <add>, %131, %cst_58 [1] : vector<16x16xf32> to vector<16xf32>
    %133 = vector.shape_cast %132 : vector<16xf32> to vector<16x1xf32>
    %134 = arith.truncf %131 : vector<16x16xf32> to vector<16x16xbf16>
    %cst_59 = arith.constant dense<0.000000e+00> : vector<16x32xf32>
    %135 = tpu.matmul %134, %124, %cst_59 {dimension_numbers = #tpu.dot_dimension_numbers<[1], [0], [0], [1], [0, 0, 1, 1], [], []>} : vector<16x16xbf16>, vector<16x32xbf16>, vector<16x32xf32> -> vector<16x32xf32>
    %136 = tpu.reciprocal %133 {approx = true} : vector<16x1xf32> -> vector<16x1xf32>
    %137 = vector.broadcast %136 : vector<16x1xf32> to vector<16x32xf32>
    %138 = arith.mulf %135, %137 : vector<16x32xf32>
    %139 = arith.truncf %138 : vector<16x32xf32> to vector<16x32xbf16>
    %c0_60 = arith.constant 0 : index
    %c128 = arith.constant 128 : index
    %140 = vector.load %arg17[%c0_60, %c128] : memref<16x256xbf16, #tpu.memory_space<vmem>>, vector<16x32xbf16>
    tpu.vector_store %arg17[%c0_60, %c128], %139 {strides = array<i32>} : memref<16x256xbf16, #tpu.memory_space<vmem>>, vector<16x32xbf16>,
    %141 = vector.extract_strided_slice %31 {offsets = [0, 160], sizes = [16, 32], strides = [1, 1]} : vector<16x256xbf16> to vector<16x32xbf16>
    %142 = vector.extract_strided_slice %33 {offsets = [0, 160], sizes = [16, 32], strides = [1, 1]} : vector<16x256xbf16> to vector<16x32xbf16>
    %143 = vector.extract_strided_slice %35 {offsets = [0, 160], sizes = [16, 32], strides = [1, 1]} : vector<16x256xbf16> to vector<16x32xbf16>
    %cst_61 = arith.constant dense<0.000000e+00> : vector<16x16xf32>
    %144 = tpu.matmul %141, %142, %cst_61 {dimension_numbers = #tpu.dot_dimension_numbers<[1], [1], [0], [0], [0, 0, 1, 0], [], []>} : vector<16x32xbf16>, vector<16x32xbf16>, vector<16x16xf32> -> vector<16x16xf32>
    %145 = arith.addf %144, %45 : vector<16x16xf32>
    %cst_62 = arith.constant dense<0xFF800000> : vector<16xf32>
    %146 = vector.multi_reduction <maximumf>, %145, %cst_62 [1] : vector<16x16xf32> to vector<16xf32>
    %147 = vector.shape_cast %146 : vector<16xf32> to vector<16x1xf32>
    %148 = vector.broadcast %147 : vector<16x1xf32> to vector<16x16xf32>
    %149 = arith.subf %145, %148 : vector<16x16xf32>
    %150 = math.exp %149 : vector<16x16xf32>
    %cst_63 = arith.constant dense<0.000000e+00> : vector<16xf32>
    %151 = vector.multi_reduction <add>, %150, %cst_63 [1] : vector<16x16xf32> to vector<16xf32>
    %152 = vector.shape_cast %151 : vector<16xf32> to vector<16x1xf32>
    %153 = arith.truncf %150 : vector<16x16xf32> to vector<16x16xbf16>
    %cst_64 = arith.constant dense<0.000000e+00> : vector<16x32xf32>
    %154 = tpu.matmul %153, %143, %cst_64 {dimension_numbers = #tpu.dot_dimension_numbers<[1], [0], [0], [1], [0, 0, 1, 1], [], []>} : vector<16x16xbf16>, vector<16x32xbf16>, vector<16x32xf32> -> vector<16x32xf32>
    %155 = tpu.reciprocal %152 {approx = true} : vector<16x1xf32> -> vector<16x1xf32>
    %156 = vector.broadcast %155 : vector<16x1xf32> to vector<16x32xf32>
    %157 = arith.mulf %154, %156 : vector<16x32xf32>
    %158 = arith.truncf %157 : vector<16x32xf32> to vector<16x32xbf16>
    %c0_65 = arith.constant 0 : index
    %c160 = arith.constant 160 : index
    %159 = vector.load %arg17[%c0_65, %c160] : memref<16x256xbf16, #tpu.memory_space<vmem>>, vector<16x32xbf16>
    tpu.vector_store %arg17[%c0_65, %c160], %158 {strides = array<i32>} : memref<16x256xbf16, #tpu.memory_space<vmem>>, vector<16x32xbf16>,
    %160 = vector.extract_strided_slice %31 {offsets = [0, 192], sizes = [16, 32], strides = [1, 1]} : vector<16x256xbf16> to vector<16x32xbf16>
    %161 = vector.extract_strided_slice %33 {offsets = [0, 192], sizes = [16, 32], strides = [1, 1]} : vector<16x256xbf16> to vector<16x32xbf16>
    %162 = vector.extract_strided_slice %35 {offsets = [0, 192], sizes = [16, 32], strides = [1, 1]} : vector<16x256xbf16> to vector<16x32xbf16>
    %cst_66 = arith.constant dense<0.000000e+00> : vector<16x16xf32>
    %163 = tpu.matmul %160, %161, %cst_66 {dimension_numbers = #tpu.dot_dimension_numbers<[1], [1], [0], [0], [0, 0, 1, 0], [], []>} : vector<16x32xbf16>, vector<16x32xbf16>, vector<16x16xf32> -> vector<16x16xf32>
    %164 = arith.addf %163, %45 : vector<16x16xf32>
    %cst_67 = arith.constant dense<0xFF800000> : vector<16xf32>
    %165 = vector.multi_reduction <maximumf>, %164, %cst_67 [1] : vector<16x16xf32> to vector<16xf32>
    %166 = vector.shape_cast %165 : vector<16xf32> to vector<16x1xf32>
    %167 = vector.broadcast %166 : vector<16x1xf32> to vector<16x16xf32>
    %168 = arith.subf %164, %167 : vector<16x16xf32>
    %169 = math.exp %168 : vector<16x16xf32>
    %cst_68 = arith.constant dense<0.000000e+00> : vector<16xf32>
    %170 = vector.multi_reduction <add>, %169, %cst_68 [1] : vector<16x16xf32> to vector<16xf32>
    %171 = vector.shape_cast %170 : vector<16xf32> to vector<16x1xf32>
    %172 = arith.truncf %169 : vector<16x16xf32> to vector<16x16xbf16>
    %cst_69 = arith.constant dense<0.000000e+00> : vector<16x32xf32>
    %173 = tpu.matmul %172, %162, %cst_69 {dimension_numbers = #tpu.dot_dimension_numbers<[1], [0], [0], [1], [0, 0, 1, 1], [], []>} : vector<16x16xbf16>, vector<16x32xbf16>, vector<16x32xf32> -> vector<16x32xf32>
    %174 = tpu.reciprocal %171 {approx = true} : vector<16x1xf32> -> vector<16x1xf32>
    %175 = vector.broadcast %174 : vector<16x1xf32> to vector<16x32xf32>
    %176 = arith.mulf %173, %175 : vector<16x32xf32>
    %177 = arith.truncf %176 : vector<16x32xf32> to vector<16x32xbf16>
    %c0_70 = arith.constant 0 : index
    %c192 = arith.constant 192 : index
    %178 = vector.load %arg17[%c0_70, %c192] : memref<16x256xbf16, #tpu.memory_space<vmem>>, vector<16x32xbf16>
    tpu.vector_store %arg17[%c0_70, %c192], %177 {strides = array<i32>} : memref<16x256xbf16, #tpu.memory_space<vmem>>, vector<16x32xbf16>,
    %179 = vector.extract_strided_slice %31 {offsets = [0, 224], sizes = [16, 32], strides = [1, 1]} : vector<16x256xbf16> to vector<16x32xbf16>
    %180 = vector.extract_strided_slice %33 {offsets = [0, 224], sizes = [16, 32], strides = [1, 1]} : vector<16x256xbf16> to vector<16x32xbf16>
    %181 = vector.extract_strided_slice %35 {offsets = [0, 224], sizes = [16, 32], strides = [1, 1]} : vector<16x256xbf16> to vector<16x32xbf16>
    %cst_71 = arith.constant dense<0.000000e+00> : vector<16x16xf32>
    %182 = tpu.matmul %179, %180, %cst_71 {dimension_numbers = #tpu.dot_dimension_numbers<[1], [1], [0], [0], [0, 0, 1, 0], [], []>} : vector<16x32xbf16>, vector<16x32xbf16>, vector<16x16xf32> -> vector<16x16xf32>
    %183 = arith.addf %182, %45 : vector<16x16xf32>
    %cst_72 = arith.constant dense<0xFF800000> : vector<16xf32>
    %184 = vector.multi_reduction <maximumf>, %183, %cst_72 [1] : vector<16x16xf32> to vector<16xf32>
    %185 = vector.shape_cast %184 : vector<16xf32> to vector<16x1xf32>
    %186 = vector.broadcast %185 : vector<16x1xf32> to vector<16x16xf32>
    %187 = arith.subf %183, %186 : vector<16x16xf32>
    %188 = math.exp %187 : vector<16x16xf32>
    %cst_73 = arith.constant dense<0.000000e+00> : vector<16xf32>
    %189 = vector.multi_reduction <add>, %188, %cst_73 [1] : vector<16x16xf32> to vector<16xf32>
    %190 = vector.shape_cast %189 : vector<16xf32> to vector<16x1xf32>
    %191 = arith.truncf %188 : vector<16x16xf32> to vector<16x16xbf16>
    %cst_74 = arith.constant dense<0.000000e+00> : vector<16x32xf32>
    %192 = tpu.matmul %191, %181, %cst_74 {dimension_numbers = #tpu.dot_dimension_numbers<[1], [0], [0], [1], [0, 0, 1, 1], [], []>} : vector<16x16xbf16>, vector<16x32xbf16>, vector<16x32xf32> -> vector<16x32xf32>
    %193 = tpu.reciprocal %190 {approx = true} : vector<16x1xf32> -> vector<16x1xf32>
    %194 = vector.broadcast %193 : vector<16x1xf32> to vector<16x32xf32>
    %195 = arith.mulf %192, %194 : vector<16x32xf32>
    %196 = arith.truncf %195 : vector<16x32xf32> to vector<16x32xbf16>
    %c0_75 = arith.constant 0 : index
    %c224 = arith.constant 224 : index
    %197 = vector.load %arg17[%c0_75, %c224] : memref<16x256xbf16, #tpu.memory_space<vmem>>, vector<16x32xbf16>
    tpu.vector_store %arg17[%c0_75, %c224], %196 {strides = array<i32>} : memref<16x256xbf16, #tpu.memory_space<vmem>>, vector<16x32xbf16>,
    %c0_76 = arith.constant 0 : index
    %c0_77 = arith.constant 0 : index
    %198 = vector.load %arg17[%c0_76, %c0_77] : memref<16x256xbf16, #tpu.memory_space<vmem>>, vector<16x256xbf16>
    %c0_78 = arith.constant 0 : index
    %c0_79 = arith.constant 0 : index
    %199 = vector.load %arg7[%c0_78, %c0_79] : memref<256x256xbf16, #tpu.memory_space<vmem>>, vector<256x256xbf16>
    %cst_80 = arith.constant dense<0.000000e+00> : vector<16x256xf32>
    %200 = tpu.matmul %198, %199, %cst_80 {dimension_numbers = #tpu.dot_dimension_numbers<[1], [0], [0], [1], [0, 0, 1, 1], [], []>} : vector<16x256xbf16>, vector<256x256xbf16>, vector<16x256xf32> -> vector<16x256xf32>
    %201 = vector.broadcast %25 : vector<1x256xf32> to vector<16x256xf32>
    %202 = arith.addf %200, %201 : vector<16x256xf32>
    %203 = arith.index_cast %c0_i32 : i32 to index
    %c0_81 = arith.constant 0 : index
    %c0_82 = arith.constant 0 : index
    %204 = vector.load %arg1[%203, %c0_81, %c0_82] : memref<1x16x256xf32, #tpu.memory_space<vmem>>, vector<1x16x256xf32>
    %205 = vector.shape_cast %204 : vector<1x16x256xf32> to vector<16x256xf32>
    %206 = arith.addf %202, %205 : vector<16x256xf32>
    %cst_83 = arith.constant dense<0.000000e+00> : vector<16xf32>
    %207 = vector.multi_reduction <add>, %206, %cst_83 [1] : vector<16x256xf32> to vector<16xf32>
    %208 = vector.shape_cast %207 : vector<16xf32> to vector<16x1xf32>
    %cst_84 = arith.constant 2.560000e+02 : f32
    %209 = vector.broadcast %cst_84 : f32 to vector<16x1xf32>
    %210 = arith.divf %208, %209 : vector<16x1xf32>
    %211 = vector.broadcast %210 : vector<16x1xf32> to vector<16x256xf32>
    %212 = arith.subf %206, %211 : vector<16x256xf32>
    %213 = arith.mulf %212, %212 : vector<16x256xf32>
    %cst_85 = arith.constant dense<0.000000e+00> : vector<16xf32>
    %214 = vector.multi_reduction <add>, %213, %cst_85 [1] : vector<16x256xf32> to vector<16xf32>
    %215 = vector.shape_cast %214 : vector<16xf32> to vector<16x1xf32>
    %cst_86 = arith.constant 2.560000e+02 : f32
    %216 = vector.broadcast %cst_86 : f32 to vector<16x1xf32>
    %217 = arith.divf %215, %216 : vector<16x1xf32>
    %218 = vector.broadcast %210 : vector<16x1xf32> to vector<16x256xf32>
    %219 = arith.subf %206, %218 : vector<16x256xf32>
    %cst_87 = arith.constant 9.99999974E-6 : f32
    %220 = vector.broadcast %cst_87 : f32 to vector<16x1xf32>
    %221 = arith.addf %217, %220 : vector<16x1xf32>
    %222 = math.rsqrt %221 : vector<16x1xf32>
    %223 = vector.broadcast %222 : vector<16x1xf32> to vector<16x256xf32>
    %224 = arith.mulf %219, %223 : vector<16x256xf32>
    %225 = vector.broadcast %26 : vector<1x256xf32> to vector<16x256xf32>
    %226 = arith.mulf %224, %225 : vector<16x256xf32>
    %227 = vector.broadcast %27 : vector<1x256xf32> to vector<16x256xf32>
    %228 = arith.addf %226, %227 : vector<16x256xf32>
    %229 = arith.index_cast %c0_i32 : i32 to index
    %c0_88 = arith.constant 0 : index
    %c0_89 = arith.constant 0 : index
    %230 = vector.load %arg13[%229, %c0_88, %c0_89] : memref<1x16x256xf32, #tpu.memory_space<vmem>>, vector<1x16x256xf32>
    %231 = vector.shape_cast %230 : vector<1x16x256xf32> to vector<16x256xf32>
    %232 = vector.shape_cast %228 : vector<16x256xf32> to vector<1x16x256xf32>
    tpu.vector_store %arg13[%229, %c0_88, %c0_89], %232 {strides = array<i32>} : memref<1x16x256xf32, #tpu.memory_space<vmem>>, vector<1x16x256xf32>,
    %c1_i32 = arith.constant 1 : i32
    return
  }
  func.func @transform_0(%arg0: i32) -> (i32, i32, i32) {
    %c0_i32 = arith.constant 0 : i32
    %c0_i32_0 = arith.constant 0 : i32
    %c0_i32_1 = arith.constant 0 : i32
    return %arg0, %c0_i32, %c0_i32_0 : i32, i32, i32
  }
  func.func @transform_1(%arg0: i32) -> (i32, i32, i32) {
    %c0_i32 = arith.constant 0 : i32
    %c0_i32_0 = arith.constant 0 : i32
    %c0_i32_1 = arith.constant 0 : i32
    return %arg0, %c0_i32, %c0_i32_0 : i32, i32, i32
  }
  func.func @transform_2(%arg0: i32) -> (i32, i32, i32) {
    %c0_i32 = arith.constant 0 : i32
    %c0_i32_0 = arith.constant 0 : i32
    %c0_i32_1 = arith.constant 0 : i32
    return %arg0, %c0_i32, %c0_i32_0 : i32, i32, i32
  }
  func.func @transform_3(%arg0: i32) -> (i32, i32, i32) {
    %c0_i32 = arith.constant 0 : i32
    %c0_i32_0 = arith.constant 0 : i32
    %c0_i32_1 = arith.constant 0 : i32
    %c0_i32_2 = arith.constant 0 : i32
    return %c0_i32, %c0_i32_0, %c0_i32_1 : i32, i32, i32
  }
  func.func @transform_4(%arg0: i32) -> (i32, i32) {
    %c0_i32 = arith.constant 0 : i32
    %c0_i32_0 = arith.constant 0 : i32
    %c0_i32_1 = arith.constant 0 : i32
    return %c0_i32, %c0_i32_0 : i32, i32
  }
  func.func @transform_5(%arg0: i32) -> (i32, i32) {
    %c0_i32 = arith.constant 0 : i32
    %c0_i32_0 = arith.constant 0 : i32
    %c0_i32_1 = arith.constant 0 : i32
    return %c0_i32, %c0_i32_0 : i32, i32
  }
  func.func @transform_6(%arg0: i32) -> (i32, i32) {
    %c0_i32 = arith.constant 0 : i32
    %c0_i32_0 = arith.constant 0 : i32
    %c0_i32_1 = arith.constant 0 : i32
    return %c0_i32, %c0_i32_0 : i32, i32
  }
  func.func @transform_7(%arg0: i32) -> (i32, i32) {
    %c0_i32 = arith.constant 0 : i32
    %c0_i32_0 = arith.constant 0 : i32
    %c0_i32_1 = arith.constant 0 : i32
    return %c0_i32, %c0_i32_0 : i32, i32
  }
  func.func @transform_8(%arg0: i32) -> (i32, i32) {
    %c0_i32 = arith.constant 0 : i32
    %c0_i32_0 = arith.constant 0 : i32
    %c0_i32_1 = arith.constant 0 : i32
    return %c0_i32, %c0_i32_0 : i32, i32
  }
  func.func @transform_9(%arg0: i32) -> (i32, i32) {
    %c0_i32 = arith.constant 0 : i32
    %c0_i32_0 = arith.constant 0 : i32
    %c0_i32_1 = arith.constant 0 : i32
    return %c0_i32, %c0_i32_0 : i32, i32
  }
  func.func @transform_10(%arg0: i32) -> (i32, i32) {
    %c0_i32 = arith.constant 0 : i32
    %c0_i32_0 = arith.constant 0 : i32
    %c0_i32_1 = arith.constant 0 : i32
    return %c0_i32, %c0_i32_0 : i32, i32
  }
  func.func @transform_11(%arg0: i32) -> (i32, i32) {
    %c0_i32 = arith.constant 0 : i32
    %c0_i32_0 = arith.constant 0 : i32
    %c0_i32_1 = arith.constant 0 : i32
    return %c0_i32, %c0_i32_0 : i32, i32
  }
  func.func @transform_12(%arg0: i32) -> (i32, i32, i32) {
    %c0_i32 = arith.constant 0 : i32
    %c0_i32_0 = arith.constant 0 : i32
    %c0_i32_1 = arith.constant 0 : i32
    return %arg0, %c0_i32, %c0_i32_0 : i32, i32, i32
  }
}

</mosaic_0001>

<llo_original>
// kernel: tpu_custom_call.1
$region0: #{tpu_custom_call.1}
  #allocation0 [shape = 'u32[]', space=smem, size = 0x4, offset = 0x4, fixed_abs, tag = 'smem constant byte address 0x4 - core index']
  #allocation1 [shape = 'u32[144,128]{1,0:T(1,128)}', space=vmem, size = 0x12000, scoped, tag = 'internal scratch']
  #allocation2 [shape = 'bf16[16,256]{1,0:T(16,128)(2,1)}', space=vmem, size = 0x2000, scoped, tag = 'scratch operand']
  #allocation3 [shape = 'bf16[16,256]{1,0:T(16,128)(2,1)}', space=vmem, size = 0x2000, scoped, tag = 'scratch operand']
  #allocation4 [shape = 'bf16[16,256]{1,0:T(16,128)(2,1)}', space=vmem, size = 0x2000, scoped, tag = 'scratch operand']
  #allocation5 [shape = 'bf16[16,256]{1,0:T(16,128)(2,1)}', space=vmem, size = 0x2000, scoped, tag = 'scratch operand']
  %s0 = inlined_call_operand.hbm [shape: f32[2,16,256], index: 0, kind: input, shape index: {}]
  %s1 = inlined_call_operand.hbm [shape: f32[2,16,256], index: 1, kind: input, shape index: {}]
  %s2 = inlined_call_operand.vmem [shape: f32[2,1,16], index: 2, kind: input, shape index: {}]
  %s3 = inlined_call_operand.vmem [shape: s8[1,16,16], index: 3, kind: input, shape index: {}]
  %s4 = inlined_call_operand.hbm [shape: bf16[256,512], index: 4, kind: input, shape index: {}]
  %s5 = inlined_call_operand.hbm [shape: bf16[256,256], index: 5, kind: input, shape index: {}]
  %s6 = inlined_call_operand.hbm [shape: bf16[256,256], index: 6, kind: input, shape index: {}]
  %s7 = inlined_call_operand.vmem [shape: f32[1,512], index: 7, kind: input, shape index: {}]
  %s8 = inlined_call_operand.vmem [shape: f32[1,256], index: 8, kind: input, shape index: {}]
  %s9 = inlined_call_operand.vmem [shape: f32[1,256], index: 9, kind: input, shape index: {}]
  %s10 = inlined_call_operand.vmem [shape: f32[1,256], index: 10, kind: input, shape index: {}]
  %s11 = inlined_call_operand.vmem [shape: f32[1,256], index: 11, kind: input, shape index: {}]
  %s12 = inlined_call_operand.hbm [shape: f32[2,16,256], index: 12, kind: output, shape index: {}]
  %s13 = sld [smem:[#allocation0]]
  $region101: #{tpu_custom_call.1} parent=0
    _
  %s15 = ssub.s32 1, %s13
  %s16 = scalar_select 0, %s15, %s13
  $region1: #{tpu_custom_call.1} parent=0
    #allocation6 [shape = 'u8[32768]{0}', space=vmem, size = 0x8000, scoped, tag = 'input window, operand 0']
    #allocation7 [shape = 's32[2]{0}', space=sflag, size = 0x8, scoped, tag = 'scoped memory for tpu_custom_call.1']
    #allocation8 [shape = 's32[2]{0}', space=sflag, size = 0x8, scoped, tag = 'scoped memory for tpu_custom_call.1']
    #allocation9 [shape = 'u8[32768]{0}', space=vmem, size = 0x8000, scoped, tag = 'input window, operand 1']
    #allocation10 [shape = 's32[2]{0}', space=sflag, size = 0x8, scoped, tag = 'scoped memory for tpu_custom_call.1']
    #allocation11 [shape = 'u8[262144]{0}', space=vmem, size = 0x40000, scoped, tag = 'input window, operand 4, single buffered']
    #allocation12 [shape = 'u8[131072]{0}', space=vmem, size = 0x20000, scoped, tag = 'input window, operand 5, single buffered']
    #allocation13 [shape = 's32[1]{0}', space=sflag, size = 0x4, scoped, tag = 'scoped memory for tpu_custom_call.1']
    #allocation14 [shape = 'u8[131072]{0}', space=vmem, size = 0x20000, scoped, tag = 'input window, operand 6, single buffered']
    #allocation15 [shape = 'u8[32768]{0}', space=vmem, size = 0x8000, scoped, tag = 'output window, operand 0']
    %17 = vsyncpa [#allocation7], 0
    %s18 = scalar_lea.sflag [#allocation7], 1
    %19 = vsyncpa %s18, 0
    %20 = vsyncpa [#allocation10], 0
    %s21 = scalar_lea.sflag [#allocation10], 1
    %22 = vsyncpa %s21, 0
    %23 = vsyncpa [#allocation13], 0
    %24 = vsyncpa [#allocation8], 0
    %s25 = scalar_lea.sflag [#allocation8], 1
    %26 = vsyncpa %s25, 0
    loop: start=0, step=1, limit=4
    $region2: #{tpu_custom_call.1} parent=1 // loop_pre_header
      _
    $region3: #{tpu_custom_call.1} parent=1 // loop_header
      %s28 = sphi 0, %s32
      %p29 = scmp.ge.s32.totalorder %s28, 4
      %s38 = sphi 0, %s40
      %s41 = sphi 0, %s38
      %s42 = sphi 0, %s41
      %s58 = sphi 0, %s42
      %s64 = sphi 0, %s66
      %s67 = sphi 0, %s64
      %s68 = sphi 0, %s67
      %s84 = sphi 0, %s68
      %s90 = sphi 0, %s92
      %s93 = sphi 0, %s90
      %s94 = sphi 0, %s93
      %s110 = sphi 0, %s94
      %s114 = sphi 0, %s114
      %s116 = sphi 0, %s114
      %s117 = sphi 0, %s116
      %s131 = sphi 0, %s117
      %s135 = sphi 0, %s135
      %s137 = sphi 0, %s135
      %s138 = sphi 0, %s137
      %s152 = sphi 0, %s138
      %s156 = sphi 0, %s156
      %s158 = sphi 0, %s156
      %s159 = sphi 0, %s158
      %s173 = sphi 0, %s159
      %s177 = sphi 0, %s177
      %s179 = sphi 0, %s177
      %s180 = sphi 0, %s179
      %s194 = sphi 0, %s180
      %s198 = sphi 0, %s198
      %s200 = sphi 0, %s198
      %s201 = sphi 0, %s200
      %s215 = sphi 0, %s201
      %s219 = sphi 0, %s219
      %s221 = sphi 0, %s219
      %s222 = sphi 0, %s221
      %s236 = sphi 0, %s222
      %s240 = sphi 0, %s240
      %s242 = sphi 0, %s240
      %s243 = sphi 0, %s242
      %s257 = sphi 0, %s243
      %s261 = sphi 0, %s261
      %s263 = sphi 0, %s261
      %s264 = sphi 0, %s263
      %s278 = sphi 0, %s264
      %s282 = sphi 0, %s282
      %s284 = sphi 0, %s282
      %s285 = sphi 0, %s284
      %s299 = sphi 0, %s285
      %s305 = sphi 0, %s307
      %s308 = sphi 0, %s305
      %s309 = sphi 0, %s308
      %s325 = sphi 0, %s309
    $region4: #{tpu_custom_call.1} parent=1 // loop_header_branch
      %31 = sbr.rel (%p29) target = $region8
    $region5: #{tpu_custom_call.1} parent=1 // loop_body
      %s33 = ssub.s32 %s28, 1
      %s34 = ssub.s32 %s28, 2
      %s35 = sadd.s32 %s28, 1
      %s36 = ssub.s32 %s28, %s35
      %p37 = scmp.eq.s32.totalorder %s36, 0
      %s39 = sadd.s32 %s38, 1
      %s40 = scalar_select %p37, %s38, %s39
      %p43 = pneg %p37
      %p44 = scmp.eq.s32.totalorder %s28, 1
      %p45 = por %p43, %p44
      %p46 = scmp.ne.s32.totalorder %s38, %s41
      %p47 = scmp.eq.s32.totalorder %s28, 0
      %p48 = por %p46, %p47
      %p49 = scmp.ne.s32.totalorder %s38, %s41
      %p50 = scmp.eq.s32.totalorder %s33, 1
      %p51 = por %p49, %p50
      %p52 = scmp.ne.s32.totalorder %s41, %s42
      %p53 = scmp.eq.s32.totalorder %s33, 0
      %p54 = por %p52, %p53
      %p55 = scmp.ne.s32.totalorder %s41, %s42
      %p56 = scmp.eq.s32.totalorder %s34, 1
      %p57 = por %p55, %p56
      %p59 = scmp.ne.s32.totalorder %s42, %s58
      %p60 = scmp.eq.s32.totalorder %s34, 0
      %p61 = por %p59, %p60
      %s62 = ssub.s32 %s28, %s35
      %p63 = scmp.eq.s32.totalorder %s62, 0
      %s65 = sadd.s32 %s64, 1
      %s66 = scalar_select %p63, %s64, %s65
      %p69 = pneg %p63
      %p70 = scmp.eq.s32.totalorder %s28, 1
      %p71 = por %p69, %p70
      %p72 = scmp.ne.s32.totalorder %s64, %s67
      %p73 = scmp.eq.s32.totalorder %s28, 0
      %p74 = por %p72, %p73
      %p75 = scmp.ne.s32.totalorder %s64, %s67
      %p76 = scmp.eq.s32.totalorder %s33, 1
      %p77 = por %p75, %p76
      %p78 = scmp.ne.s32.totalorder %s67, %s68
      %p79 = scmp.eq.s32.totalorder %s33, 0
      %p80 = por %p78, %p79
      %p81 = scmp.ne.s32.totalorder %s67, %s68
      %p82 = scmp.eq.s32.totalorder %s34, 1
      %p83 = por %p81, %p82
      %p85 = scmp.ne.s32.totalorder %s68, %s84
      %p86 = scmp.eq.s32.totalorder %s34, 0
      %p87 = por %p85, %p86
      %s88 = ssub.s32 %s28, %s35
      %p89 = scmp.eq.s32.totalorder %s88, 0
      %s91 = sadd.s32 %s90, 1
      %s92 = scalar_select %p89, %s90, %s91
      %p95 = pneg %p89
      %p96 = scmp.eq.s32.totalorder %s28, 1
      %p97 = por %p95, %p96
      %p98 = scmp.ne.s32.totalorder %s90, %s93
      %p99 = scmp.eq.s32.totalorder %s28, 0
      %p100 = por %p98, %p99
      %p101 = scmp.ne.s32.totalorder %s90, %s93
      %p102 = scmp.eq.s32.totalorder %s33, 1
      %p103 = por %p101, %p102
      %p104 = scmp.ne.s32.totalorder %s93, %s94
      %p105 = scmp.eq.s32.totalorder %s33, 0
      %p106 = por %p104, %p105
      %p107 = scmp.ne.s32.totalorder %s93, %s94
      %p108 = scmp.eq.s32.totalorder %s34, 1
      %p109 = por %p107, %p108
      %p111 = scmp.ne.s32.totalorder %s94, %s110
      %p112 = scmp.eq.s32.totalorder %s34, 0
      %p113 = por %p111, %p112
      %s115 = sadd.s32 %s114, 1
      %p118 = scmp.eq.s32.totalorder %s28, 1
      %p119 = scmp.ne.s32.totalorder %s114, %s116
      %p120 = scmp.eq.s32.totalorder %s28, 0
      %p121 = por %p119, %p120
      %p122 = scmp.ne.s32.totalorder %s114, %s116
      %p123 = scmp.eq.s32.totalorder %s33, 1
      %p124 = por %p122, %p123
      %p125 = scmp.ne.s32.totalorder %s116, %s117
      %p126 = scmp.eq.s32.totalorder %s33, 0
      %p127 = por %p125, %p126
      %p128 = scmp.ne.s32.totalorder %s116, %s117
      %p129 = scmp.eq.s32.totalorder %s34, 1
      %p130 = por %p128, %p129
      %p132 = scmp.ne.s32.totalorder %s117, %s131
      %p133 = scmp.eq.s32.totalorder %s34, 0
      %p134 = por %p132, %p133
      %s136 = sadd.s32 %s135, 1
      %p139 = scmp.eq.s32.totalorder %s28, 1
      %p140 = scmp.ne.s32.totalorder %s135, %s137
      %p141 = scmp.eq.s32.totalorder %s28, 0
      %p142 = por %p140, %p141
      %p143 = scmp.ne.s32.totalorder %s135, %s137
      %p144 = scmp.eq.s32.totalorder %s33, 1
      %p145 = por %p143, %p144
      %p146 = scmp.ne.s32.totalorder %s137, %s138
      %p147 = scmp.eq.s32.totalorder %s33, 0
      %p148 = por %p146, %p147
      %p149 = scmp.ne.s32.totalorder %s137, %s138
      %p150 = scmp.eq.s32.totalorder %s34, 1
      %p151 = por %p149, %p150
      %p153 = scmp.ne.s32.totalorder %s138, %s152
      %p154 = scmp.eq.s32.totalorder %s34, 0
      %p155 = por %p153, %p154
      %s157 = sadd.s32 %s156, 1
      %p160 = scmp.eq.s32.totalorder %s28, 1
      %p161 = scmp.ne.s32.totalorder %s156, %s158
      %p162 = scmp.eq.s32.totalorder %s28, 0
      %p163 = por %p161, %p162
      %p164 = scmp.ne.s32.totalorder %s156, %s158
      %p165 = scmp.eq.s32.totalorder %s33, 1
      %p166 = por %p164, %p165
      %p167 = scmp.ne.s32.totalorder %s158, %s159
      %p168 = scmp.eq.s32.totalorder %s33, 0
      %p169 = por %p167, %p168
      %p170 = scmp.ne.s32.totalorder %s158, %s159
      %p171 = scmp.eq.s32.totalorder %s34, 1
      %p172 = por %p170, %p171
      %p174 = scmp.ne.s32.totalorder %s159, %s173
      %p175 = scmp.eq.s32.totalorder %s34, 0
      %p176 = por %p174, %p175
      %s178 = sadd.s32 %s177, 1
      %p181 = scmp.eq.s32.totalorder %s28, 1
      %p182 = scmp.ne.s32.totalorder %s177, %s179
      %p183 = scmp.eq.s32.totalorder %s28, 0
      %p184 = por %p182, %p183
      %p185 = scmp.ne.s32.totalorder %s177, %s179
      %p186 = scmp.eq.s32.totalorder %s33, 1
      %p187 = por %p185, %p186
      %p188 = scmp.ne.s32.totalorder %s179, %s180
      %p189 = scmp.eq.s32.totalorder %s33, 0
      %p190 = por %p188, %p189
      %p191 = scmp.ne.s32.totalorder %s179, %s180
      %p192 = scmp.eq.s32.totalorder %s34, 1
      %p193 = por %p191, %p192
      %p195 = scmp.ne.s32.totalorder %s180, %s194
      %p196 = scmp.eq.s32.totalorder %s34, 0
      %p197 = por %p195, %p196
      %s199 = sadd.s32 %s198, 1
      %p202 = scmp.eq.s32.totalorder %s28, 1
      %p203 = scmp.ne.s32.totalorder %s198, %s200
      %p204 = scmp.eq.s32.totalorder %s28, 0
      %p205 = por %p203, %p204
      %p206 = scmp.ne.s32.totalorder %s198, %s200
      %p207 = scmp.eq.s32.totalorder %s33, 1
      %p208 = por %p206, %p207
      %p209 = scmp.ne.s32.totalorder %s200, %s201
      %p210 = scmp.eq.s32.totalorder %s33, 0
      %p211 = por %p209, %p210
      %p212 = scmp.ne.s32.totalorder %s200, %s201
      %p213 = scmp.eq.s32.totalorder %s34, 1
      %p214 = por %p212, %p213
      %p216 = scmp.ne.s32.totalorder %s201, %s215
      %p217 = scmp.eq.s32.totalorder %s34, 0
      %p218 = por %p216, %p217
      %s220 = sadd.s32 %s219, 1
      %p223 = scmp.eq.s32.totalorder %s28, 1
      %p224 = scmp.ne.s32.totalorder %s219, %s221
      %p225 = scmp.eq.s32.totalorder %s28, 0
      %p226 = por %p224, %p225
      %p227 = scmp.ne.s32.totalorder %s219, %s221
      %p228 = scmp.eq.s32.totalorder %s33, 1
      %p229 = por %p227, %p228
      %p230 = scmp.ne.s32.totalorder %s221, %s222
      %p231 = scmp.eq.s32.totalorder %s33, 0
      %p232 = por %p230, %p231
      %p233 = scmp.ne.s32.totalorder %s221, %s222
      %p234 = scmp.eq.s32.totalorder %s34, 1
      %p235 = por %p233, %p234
      %p237 = scmp.ne.s32.totalorder %s222, %s236
      %p238 = scmp.eq.s32.totalorder %s34, 0
      %p239 = por %p237, %p238
      %s241 = sadd.s32 %s240, 1
      %p244 = scmp.eq.s32.totalorder %s28, 1
      %p245 = scmp.ne.s32.totalorder %s240, %s242
      %p246 = scmp.eq.s32.totalorder %s28, 0
      %p247 = por %p245, %p246
      %p248 = scmp.ne.s32.totalorder %s240, %s242
      %p249 = scmp.eq.s32.totalorder %s33, 1
      %p250 = por %p248, %p249
      %p251 = scmp.ne.s32.totalorder %s242, %s243
      %p252 = scmp.eq.s32.totalorder %s33, 0
      %p253 = por %p251, %p252
      %p254 = scmp.ne.s32.totalorder %s242, %s243
      %p255 = scmp.eq.s32.totalorder %s34, 1
      %p256 = por %p254, %p255
      %p258 = scmp.ne.s32.totalorder %s243, %s257
      %p259 = scmp.eq.s32.totalorder %s34, 0
      %p260 = por %p258, %p259
      %s262 = sadd.s32 %s261, 1
      %p265 = scmp.eq.s32.totalorder %s28, 1
      %p266 = scmp.ne.s32.totalorder %s261, %s263
      %p267 = scmp.eq.s32.totalorder %s28, 0
      %p268 = por %p266, %p267
      %p269 = scmp.ne.s32.totalorder %s261, %s263
      %p270 = scmp.eq.s32.totalorder %s33, 1
      %p271 = por %p269, %p270
      %p272 = scmp.ne.s32.totalorder %s263, %s264
      %p273 = scmp.eq.s32.totalorder %s33, 0
      %p274 = por %p272, %p273
      %p275 = scmp.ne.s32.totalorder %s263, %s264
      %p276 = scmp.eq.s32.totalorder %s34, 1
      %p277 = por %p275, %p276
      %p279 = scmp.ne.s32.totalorder %s264, %s278
      %p280 = scmp.eq.s32.totalorder %s34, 0
      %p281 = por %p279, %p280
      %s283 = sadd.s32 %s282, 1
      %p286 = scmp.eq.s32.totalorder %s28, 1
      %p287 = scmp.ne.s32.totalorder %s282, %s284
      %p288 = scmp.eq.s32.totalorder %s28, 0
      %p289 = por %p287, %p288
      %p290 = scmp.ne.s32.totalorder %s282, %s284
      %p291 = scmp.eq.s32.totalorder %s33, 1
      %p292 = por %p290, %p291
      %p293 = scmp.ne.s32.totalorder %s284, %s285
      %p294 = scmp.eq.s32.totalorder %s33, 0
      %p295 = por %p293, %p294
      %p296 = scmp.ne.s32.totalorder %s284, %s285
      %p297 = scmp.eq.s32.totalorder %s34, 1
      %p298 = por %p296, %p297
      %p300 = scmp.ne.s32.totalorder %s285, %s299
      %p301 = scmp.eq.s32.totalorder %s34, 0
      %p302 = por %p300, %p301
      %s303 = ssub.s32 %s28, %s35
      %p304 = scmp.eq.s32.totalorder %s303, 0
      %s306 = sadd.s32 %s305, 1
      %s307 = scalar_select %p304, %s305, %s306
      %p310 = pneg %p304
      %p311 = scmp.eq.s32.totalorder %s28, 1
      %p312 = por %p310, %p311
      %p313 = scmp.ne.s32.totalorder %s305, %s308
      %p314 = scmp.eq.s32.totalorder %s28, 0
      %p315 = por %p313, %p314
      %p316 = scmp.ne.s32.totalorder %s305, %s308
      %p317 = scmp.eq.s32.totalorder %s33, 1
      %p318 = por %p316, %p317
      %p319 = scmp.ne.s32.totalorder %s308, %s309
      %p320 = scmp.eq.s32.totalorder %s33, 0
      %p321 = por %p319, %p320
      %p322 = scmp.ne.s32.totalorder %s308, %s309
      %p323 = scmp.eq.s32.totalorder %s34, 1
      %p324 = por %p322, %p323
      %p326 = scmp.ne.s32.totalorder %s309, %s325
      %p327 = scmp.eq.s32.totalorder %s34, 0
      %p328 = por %p326, %p327
      %p329 = scmp.le.s32.totalorder 1, %s28
      %p330 = scmp.lt.s32.totalorder %s28, 3
      %p331 = pnand %p329, %p330
      %p332 = pneg %p331
      // Predicated region
      $region9: #{tpu_custom_call.1} parent=5 // pred_check
        _
      $region10: #{tpu_custom_call.1} parent=5 // pred_check_branch
        %334 = sbr.rel (%p331) target = $region12
      $region11: #{tpu_custom_call.1} parent=5 // pred_region
        %s335 = ssub.s32 %s28, 1
        // Predicated region
        $region13: #{tpu_custom_call.1} parent=11 // pred_check
          %p336 = pneg %p127
        $region14: #{tpu_custom_call.1} parent=11 // pred_check_branch
          %338 = sbr.rel (%p336) target = $region16
        $region15: #{tpu_custom_call.1} parent=11 // pred_region
          _
        $region16: #{tpu_custom_call.1} parent=11 // pred_fallthru
          _
        // Predicated region
        $region17: #{tpu_custom_call.1} parent=11 // pred_check
          %p339 = pneg %p148
        $region18: #{tpu_custom_call.1} parent=11 // pred_check_branch
          %341 = sbr.rel (%p339) target = $region20
        $region19: #{tpu_custom_call.1} parent=11 // pred_region
          %s343 = ssub.s32 8192, 8192
          %344 = vsyncadd [#allocation10], %s343
          %s345 = sshll.u32 [#allocation11], 4
          %s346 = int_to_ptr.vmem [resolvable:$true] %s345
          %351 = dma.hbm_to_vmem [thread:$0]  %s4, 8192, %s346, [#allocation10], 256, 256, 16
        $region20: #{tpu_custom_call.1} parent=11 // pred_fallthru
          _
        // Predicated region
        $region21: #{tpu_custom_call.1} parent=11 // pred_check
          %p352 = pneg %p169
        $region22: #{tpu_custom_call.1} parent=11 // pred_check_branch
          %354 = sbr.rel (%p352) target = $region24
        $region23: #{tpu_custom_call.1} parent=11 // pred_region
          %s356 = ssub.s32 4096, 4096
          %357 = vsyncadd [#allocation13], %s356
          %s358 = sshll.u32 [#allocation12], 4
          %s359 = int_to_ptr.vmem [resolvable:$true] %s358
          %364 = dma.hbm_to_vmem [thread:$0]  %s5, 4096, %s359, [#allocation13], 128, 128, 8
        $region24: #{tpu_custom_call.1} parent=11 // pred_fallthru
          _
        // Predicated region
        $region25: #{tpu_custom_call.1} parent=11 // pred_check
          %p365 = pneg %p190
        $region26: #{tpu_custom_call.1} parent=11 // pred_check_branch
          %367 = sbr.rel (%p365) target = $region28
        $region27: #{tpu_custom_call.1} parent=11 // pred_region
          %s369 = ssub.s32 4096, 4096
          %370 = vsyncadd [#allocation13], %s369
          %s371 = sshll.u32 [#allocation14], 4
          %s372 = int_to_ptr.vmem [resolvable:$true] %s371
          %377 = dma.hbm_to_vmem [thread:$0]  %s6, 4096, %s372, [#allocation13], 128, 128, 8
        $region28: #{tpu_custom_call.1} parent=11 // pred_fallthru
          _
        // Predicated region
        $region29: #{tpu_custom_call.1} parent=11 // pred_check
          %p378 = pneg %p211
        $region30: #{tpu_custom_call.1} parent=11 // pred_check_branch
          %380 = sbr.rel (%p378) target = $region32
        $region31: #{tpu_custom_call.1} parent=11 // pred_region
          _
        $region32: #{tpu_custom_call.1} parent=11 // pred_fallthru
          _
        // Predicated region
        $region33: #{tpu_custom_call.1} parent=11 // pred_check
          %p381 = pneg %p232
        $region34: #{tpu_custom_call.1} parent=11 // pred_check_branch
          %383 = sbr.rel (%p381) target = $region36
        $region35: #{tpu_custom_call.1} parent=11 // pred_region
          _
        $region36: #{tpu_custom_call.1} parent=11 // pred_fallthru
          _
        // Predicated region
        $region37: #{tpu_custom_call.1} parent=11 // pred_check
          %p384 = pneg %p253
        $region38: #{tpu_custom_call.1} parent=11 // pred_check_branch
          %386 = sbr.rel (%p384) target = $region40
        $region39: #{tpu_custom_call.1} parent=11 // pred_region
          _
        $region40: #{tpu_custom_call.1} parent=11 // pred_fallthru
          _
        // Predicated region
        $region41: #{tpu_custom_call.1} parent=11 // pred_check
          %p387 = pneg %p274
        $region42: #{tpu_custom_call.1} parent=11 // pred_check_branch
          %389 = sbr.rel (%p387) target = $region44
        $region43: #{tpu_custom_call.1} parent=11 // pred_region
          _
        $region44: #{tpu_custom_call.1} parent=11 // pred_fallthru
          _
        // Predicated region
        $region45: #{tpu_custom_call.1} parent=11 // pred_check
          %p390 = pneg %p295
        $region46: #{tpu_custom_call.1} parent=11 // pred_check_branch
          %392 = sbr.rel (%p390) target = $region48
        $region47: #{tpu_custom_call.1} parent=11 // pred_region
          _
        $region48: #{tpu_custom_call.1} parent=11 // pred_fallthru
          _
      $region12: #{tpu_custom_call.1} parent=5 // pred_fallthru
        _
      %p393 = scmp.lt.s32.totalorder %s28, 2
      // Predicated region
      $region49: #{tpu_custom_call.1} parent=5 // pred_check
        %p394 = pneg %p393
      $region50: #{tpu_custom_call.1} parent=5 // pred_check_branch
        %396 = sbr.rel (%p394) target = $region52
      $region51: #{tpu_custom_call.1} parent=5 // pred_region
        // Predicated region
        $region53: #{tpu_custom_call.1} parent=51 // pred_check
          %p397 = pneg %p48
        $region54: #{tpu_custom_call.1} parent=51 // pred_check_branch
          %399 = sbr.rel (%p397) target = $region56
        $region55: #{tpu_custom_call.1} parent=51 // pred_region
          %s400 = sand.u32 %s38, 1
          %s401 = scalar_lea.sflag [#allocation7], %s400
          %s402 = sand.u32 %s38, 1
          %s403 = smul.addr %s402, 32
          %s404 = scalar_lea.vmem [#allocation6], %s403
          %s406 = ssub.s32 512, 512
          %407 = vsyncadd %s401, %s406
          %s408 = smul.addr %s28, 4
          %s409 = smul.addr %s408, 128
          %s410 = scalar_lea.hbm %s0, %s409
          %s411 = sshll.u32 %s404, 4
          %s412 = int_to_ptr.vmem [resolvable:$true] %s411
          %417 = dma.hbm_to_vmem [thread:$0]  %s410, 512, %s412, %s401, 256, 256, 16
        $region56: #{tpu_custom_call.1} parent=51 // pred_fallthru
          _
        // Predicated region
        $region57: #{tpu_custom_call.1} parent=51 // pred_check
          %p418 = pneg %p74
        $region58: #{tpu_custom_call.1} parent=51 // pred_check_branch
          %420 = sbr.rel (%p418) target = $region60
        $region59: #{tpu_custom_call.1} parent=51 // pred_region
          %s421 = sand.u32 %s28, 1
          %s422 = scalar_lea.sflag [#allocation10], %s421
          %s423 = sand.u32 %s64, 1
          %s424 = smul.addr %s423, 32
          %s425 = scalar_lea.vmem [#allocation9], %s424
          %s427 = ssub.s32 512, 512
          %428 = vsyncadd %s422, %s427
          %s429 = smul.addr %s28, 4
          %s430 = smul.addr %s429, 128
          %s431 = scalar_lea.hbm %s1, %s430
          %s432 = sshll.u32 %s425, 4
          %s433 = int_to_ptr.vmem [resolvable:$true] %s432
          %438 = dma.hbm_to_vmem [thread:$0]  %s431, 512, %s433, %s422, 256, 256, 16
        $region60: #{tpu_custom_call.1} parent=51 // pred_fallthru
          _
        // Predicated region
        $region61: #{tpu_custom_call.1} parent=51 // pred_check
          %p439 = pneg %p100
        $region62: #{tpu_custom_call.1} parent=51 // pred_check_branch
          %441 = sbr.rel (%p439) target = $region64
        $region63: #{tpu_custom_call.1} parent=51 // pred_region
          %p442 = scmp.lt.s32.totalorder %s28, 1
          %s443 = scalar_select %p442, %s28, 1
          %s444 = scalar_lea.vmem %s2, %s443
        $region64: #{tpu_custom_call.1} parent=51 // pred_fallthru
          _
      $region52: #{tpu_custom_call.1} parent=5 // pred_fallthru
        _
      %p445 = scmp.le.s32.totalorder 1, %s28
      %p446 = scmp.lt.s32.totalorder %s28, 3
      %p447 = pnand %p445, %p446
      %p448 = pneg %p447
      // Predicated region
      $region65: #{tpu_custom_call.1} parent=5 // pred_check
        _
      $region66: #{tpu_custom_call.1} parent=5 // pred_check_branch
        %450 = sbr.rel (%p447) target = $region68
      $region67: #{tpu_custom_call.1} parent=5 // pred_region
        %s451 = ssub.s32 %s28, 1
        %s452 = sand.u32 %s41, 1
        %s453 = scalar_lea.sflag [#allocation7], %s452
        %s454 = sand.u32 %s41, 1
        %s455 = smul.addr %s454, 32
        %s456 = scalar_lea.vmem [#allocation6], %s455
        // Predicated region
        $region69: #{tpu_custom_call.1} parent=67 // pred_check
          %p457 = pneg %p54
        $region70: #{tpu_custom_call.1} parent=67 // pred_check_branch
          %459 = sbr.rel (%p457) target = $region72
        $region71: #{tpu_custom_call.1} parent=67 // pred_region
          %460 = dma.done %s453, 512
        $region72: #{tpu_custom_call.1} parent=67 // pred_fallthru
          _
        %s461 = sand.u32 %s33, 1
        %s462 = scalar_lea.sflag [#allocation10], %s461
        %s463 = sand.u32 %s67, 1
        %s464 = smul.addr %s463, 32
        %s465 = scalar_lea.vmem [#allocation9], %s464
        // Predicated region
        $region73: #{tpu_custom_call.1} parent=67 // pred_check
          %p466 = pneg %p80
        $region74: #{tpu_custom_call.1} parent=67 // pred_check_branch
          %468 = sbr.rel (%p466) target = $region76
        $region75: #{tpu_custom_call.1} parent=67 // pred_region
          %469 = dma.done %s462, 512
        $region76: #{tpu_custom_call.1} parent=67 // pred_fallthru
          _
        // Predicated region
        $region77: #{tpu_custom_call.1} parent=67 // pred_check
          %p470 = pneg %p148
        $region78: #{tpu_custom_call.1} parent=67 // pred_check_branch
          %472 = sbr.rel (%p470) target = $region80
        $region79: #{tpu_custom_call.1} parent=67 // pred_region
          %473 = dma.done [#allocation10], 8192
        $region80: #{tpu_custom_call.1} parent=67 // pred_fallthru
          _
        // Predicated region
        $region81: #{tpu_custom_call.1} parent=67 // pred_check
          %p474 = pneg %p169
        $region82: #{tpu_custom_call.1} parent=67 // pred_check_branch
          %476 = sbr.rel (%p474) target = $region84
        $region83: #{tpu_custom_call.1} parent=67 // pred_region
          %477 = dma.done [#allocation13], 4096
        $region84: #{tpu_custom_call.1} parent=67 // pred_fallthru
          _
        // Predicated region
        $region85: #{tpu_custom_call.1} parent=67 // pred_check
          %p478 = pneg %p190
        $region86: #{tpu_custom_call.1} parent=67 // pred_check_branch
          %480 = sbr.rel (%p478) target = $region88
        $region87: #{tpu_custom_call.1} parent=67 // pred_region
          %481 = dma.done [#allocation13], 4096
        $region88: #{tpu_custom_call.1} parent=67 // pred_fallthru
          _
        %s482 = sand.u32 %s41, 1
        %s483 = scalar_lea.sflag [#allocation7], %s482
        %s484 = sand.u32 %s41, 1
        %s485 = smul.addr %s484, 32
        %s486 = scalar_lea.vmem [#allocation6], %s485
        %p487 = pneg %p54
        %p488 = pneg %p51
        %s489 = sand.u32 %s33, 1
        %s490 = scalar_lea.sflag [#allocation10], %s489
        %s491 = sand.u32 %s67, 1
        %s492 = smul.addr %s491, 32
        %s493 = scalar_lea.vmem [#allocation9], %s492
        %p494 = pneg %p80
        %p495 = pneg %p77
        %p496 = scmp.lt.s32.totalorder %s33, 1
        %s497 = scalar_select %p496, %s33, 1
        %s498 = scalar_lea.vmem %s2, %s497
        %p499 = pneg %p106
        %p500 = pneg %p103
        %p501 = pneg %p127
        %p502 = pneg %p124
        %p503 = pneg %p148
        %p504 = pneg %p145
        %p505 = pneg %p169
        %p506 = pneg %p166
        %p507 = pneg %p190
        %p508 = pneg %p187
        %p509 = pneg %p211
        %p510 = pneg %p208
        %p511 = pneg %p232
        %p512 = pneg %p229
        %p513 = pneg %p253
        %p514 = pneg %p250
        %p515 = pneg %p274
        %p516 = pneg %p271
        %p517 = pneg %p295
        %p518 = pneg %p292
        %p519 = pneg %p321
        %p520 = pneg %p318
        %s521 = sand.u32 %s308, 1
        %s522 = scalar_lea.sflag [#allocation8], %s521
        %s523 = sand.u32 %s308, 1
        %s524 = smul.addr %s523, 32
        %s525 = scalar_lea.vmem [#allocation15], %s524
        %p526 = scmp.lt.s32.totalorder %s33, 1
        %s527 = scalar_select %p526, %s33, 1
        %s528 = scalar_lea.vmem %s2, %s527
        %v530 = vld [vmem:[%s456] sm:$0xff]
        %v531 = vld [vmem:[%s456 + $0x8] sm:$0xff]
        %v532 = vld [vmem:[%s456 + $0x10] sm:$0xff]
        %v533 = vld [vmem:[%s456 + $0x18] sm:$0xff]
        %v534 = vld [vmem:[%s465] sm:$0xff]
        %v535 = vld [vmem:[%s465 + $0x8] sm:$0xff]
        %v536 = vld [vmem:[%s465 + $0x10] sm:$0xff]
        %v537 = vld [vmem:[%s465 + $0x18] sm:$0xff]
        %v538 = vadd.f32 %v530, %v534
        %v539 = vadd.f32 %v531, %v535
        %v540 = vadd.f32 %v532, %v536
        %v541 = vadd.f32 %v533, %v537
        %v542 = vpack.c.bf16 %v540, %v538
        %v543 = vpack.c.bf16 %v541, %v539
        %v544 = vld [vmem:[#allocation11] sm:$0xff]
        %v545 = vld [vmem:[#allocation11 + $0x8] sm:$0xff]
        %v546 = vld [vmem:[#allocation11 + $0x10] sm:$0xff]
        %v547 = vld [vmem:[#allocation11 + $0x18] sm:$0xff]
        %v548 = vld [vmem:[#allocation11 + $0x20] sm:$0xff]
        %v549 = vld [vmem:[#allocation11 + $0x28] sm:$0xff]
        %v550 = vld [vmem:[#allocation11 + $0x30] sm:$0xff]
        %v551 = vld [vmem:[#allocation11 + $0x38] sm:$0xff]
        %v552 = vld [vmem:[#allocation11 + $0x40] sm:$0xff]
        %v553 = vld [vmem:[#allocation11 + $0x48] sm:$0xff]
        %v554 = vld [vmem:[#allocation11 + $0x50] sm:$0xff]
        %v555 = vld [vmem:[#allocation11 + $0x58] sm:$0xff]
        %v556 = vld [vmem:[#allocation11 + $0x60] sm:$0xff]
        %v557 = vld [vmem:[#allocation11 + $0x68] sm:$0xff]
        %v558 = vld [vmem:[#allocation11 + $0x70] sm:$0xff]
        %v559 = vld [vmem:[#allocation11 + $0x78] sm:$0xff]
        %v560 = vld [vmem:[#allocation11 + $0x80] sm:$0xff]
        %v561 = vld [vmem:[#allocation11 + $0x88] sm:$0xff]
        %v562 = vld [vmem:[#allocation11 + $0x90] sm:$0xff]
        %v563 = vld [vmem:[#allocation11 + $0x98] sm:$0xff]
        %v564 = vld [vmem:[#allocation11 + $0xa0] sm:$0xff]
        %v565 = vld [vmem:[#allocation11 + $0xa8] sm:$0xff]
        %v566 = vld [vmem:[#allocation11 + $0xb0] sm:$0xff]
        %v567 = vld [vmem:[#allocation11 + $0xb8] sm:$0xff]
        %v568 = vld [vmem:[#allocation11 + $0xc0] sm:$0xff]
        %v569 = vld [vmem:[#allocation11 + $0xc8] sm:$0xff]
        %v570 = vld [vmem:[#allocation11 + $0xd0] sm:$0xff]
        %v571 = vld [vmem:[#allocation11 + $0xd8] sm:$0xff]
        %v572 = vld [vmem:[#allocation11 + $0xe0] sm:$0xff]
        %v573 = vld [vmem:[#allocation11 + $0xe8] sm:$0xff]
        %v574 = vld [vmem:[#allocation11 + $0xf0] sm:$0xff]
        %v575 = vld [vmem:[#allocation11 + $0xf8] sm:$0xff]
        %v576 = vld [vmem:[#allocation11 + $0x100] sm:$0xff]
        %v577 = vld [vmem:[#allocation11 + $0x108] sm:$0xff]
        %v578 = vld [vmem:[#allocation11 + $0x110] sm:$0xff]
        %v579 = vld [vmem:[#allocation11 + $0x118] sm:$0xff]
        %v580 = vld [vmem:[#allocation11 + $0x120] sm:$0xff]
        %v581 = vld [vmem:[#allocation11 + $0x128] sm:$0xff]
        %v582 = vld [vmem:[#allocation11 + $0x130] sm:$0xff]
        %v583 = vld [vmem:[#allocation11 + $0x138] sm:$0xff]
        %v584 = vld [vmem:[#allocation11 + $0x140] sm:$0xff]
        %v585 = vld [vmem:[#allocation11 + $0x148] sm:$0xff]
        %v586 = vld [vmem:[#allocation11 + $0x150] sm:$0xff]
        %v587 = vld [vmem:[#allocation11 + $0x158] sm:$0xff]
        %v588 = vld [vmem:[#allocation11 + $0x160] sm:$0xff]
        %v589 = vld [vmem:[#allocation11 + $0x168] sm:$0xff]
        %v590 = vld [vmem:[#allocation11 + $0x170] sm:$0xff]
        %v591 = vld [vmem:[#allocation11 + $0x178] sm:$0xff]
        %v592 = vld [vmem:[#allocation11 + $0x180] sm:$0xff]
        %v593 = vld [vmem:[#allocation11 + $0x188] sm:$0xff]
        %v594 = vld [vmem:[#allocation11 + $0x190] sm:$0xff]
        %v595 = vld [vmem:[#allocation11 + $0x198] sm:$0xff]
        %v596 = vld [vmem:[#allocation11 + $0x1a0] sm:$0xff]
        %v597 = vld [vmem:[#allocation11 + $0x1a8] sm:$0xff]
        %v598 = vld [vmem:[#allocation11 + $0x1b0] sm:$0xff]
        %v599 = vld [vmem:[#allocation11 + $0x1b8] sm:$0xff]
        %v600 = vld [vmem:[#allocation11 + $0x1c0] sm:$0xff]
        %v601 = vld [vmem:[#allocation11 + $0x1c8] sm:$0xff]
        %v602 = vld [vmem:[#allocation11 + $0x1d0] sm:$0xff]
        %v603 = vld [vmem:[#allocation11 + $0x1d8] sm:$0xff]
        %v604 = vld [vmem:[#allocation11 + $0x1e0] sm:$0xff]
        %v605 = vld [vmem:[#allocation11 + $0x1e8] sm:$0xff]
        %v606 = vld [vmem:[#allocation11 + $0x1f0] sm:$0xff]
        %v607 = vld [vmem:[#allocation11 + $0x1f8] sm:$0xff]
        %v608 = vld [vmem:[%s7] sm:$0xf]
        %v610 = vlaneseq
        %v611 = vshrl.u32 %v610, 7
        %v612 = vsub.s32 0, %v611
        %v613 = vrot.slane %v608, %v612
        %v614 = vlaneseq
        %v615 = vshrl.u32 %v614, 7
        %v616 = vsub.s32 1, %v615
        %v617 = vrot.slane %v608, %v616
        %v618 = vlaneseq
        %v619 = vshrl.u32 %v618, 7
        %v620 = vsub.s32 2, %v619
        %v621 = vrot.slane %v608, %v620
        %v622 = vlaneseq
        %v623 = vshrl.u32 %v622, 7
        %v624 = vsub.s32 3, %v623
        %v625 = vrot.slane %v608, %v624
        %v694 = vunpack.c.l.b16 %v544
        %v695 = vunpack.c.h.b16 %v544
        %v696 = vunpack.c.l.b16 %v545
        %v697 = vunpack.c.h.b16 %v545
        %v698 = vunpack.c.l.b16 %v546
        %v699 = vunpack.c.h.b16 %v546
        %v700 = vunpack.c.l.b16 %v547
        %v701 = vunpack.c.h.b16 %v547
        %v702 = vunpack.c.l.b16 %v548
        %v703 = vunpack.c.h.b16 %v548
        %v704 = vunpack.c.l.b16 %v549
        %v705 = vunpack.c.h.b16 %v549
        %v706 = vunpack.c.l.b16 %v550
        %v707 = vunpack.c.h.b16 %v550
        %v708 = vunpack.c.l.b16 %v551
        %v709 = vunpack.c.h.b16 %v551
        %v710 = vunpack.c.l.b16 %v552
        %v711 = vunpack.c.h.b16 %v552
        %v712 = vunpack.c.l.b16 %v553
        %v713 = vunpack.c.h.b16 %v553
        %v714 = vunpack.c.l.b16 %v554
        %v715 = vunpack.c.h.b16 %v554
        %v716 = vunpack.c.l.b16 %v555
        %v717 = vunpack.c.h.b16 %v555
        %v718 = vunpack.c.l.b16 %v556
        %v719 = vunpack.c.h.b16 %v556
        %v720 = vunpack.c.l.b16 %v557
        %v721 = vunpack.c.h.b16 %v557
        %v722 = vunpack.c.l.b16 %v558
        %v723 = vunpack.c.h.b16 %v558
        %v724 = vunpack.c.l.b16 %v559
        %v725 = vunpack.c.h.b16 %v559
        %v726 = vunpack.c.l.b16 %v560
        %v727 = vunpack.c.h.b16 %v560
        %v728 = vunpack.c.l.b16 %v561
        %v729 = vunpack.c.h.b16 %v561
        %v730 = vunpack.c.l.b16 %v562
        %v731 = vunpack.c.h.b16 %v562
        %v732 = vunpack.c.l.b16 %v563
        %v733 = vunpack.c.h.b16 %v563
        %v734 = vunpack.c.l.b16 %v564
        %v735 = vunpack.c.h.b16 %v564
        %v736 = vunpack.c.l.b16 %v565
        %v737 = vunpack.c.h.b16 %v565
        %v738 = vunpack.c.l.b16 %v566
        %v739 = vunpack.c.h.b16 %v566
        %v740 = vunpack.c.l.b16 %v567
        %v741 = vunpack.c.h.b16 %v567
        %v742 = vunpack.c.l.b16 %v568
        %v743 = vunpack.c.h.b16 %v568
        %v744 = vunpack.c.l.b16 %v569
        %v745 = vunpack.c.h.b16 %v569
        %v746 = vunpack.c.l.b16 %v570
        %v747 = vunpack.c.h.b16 %v570
        %v748 = vunpack.c.l.b16 %v571
        %v749 = vunpack.c.h.b16 %v571
        %v750 = vunpack.c.l.b16 %v572
        %v751 = vunpack.c.h.b16 %v572
        %v752 = vunpack.c.l.b16 %v573
        %v753 = vunpack.c.h.b16 %v573
        %v754 = vunpack.c.l.b16 %v574
        %v755 = vunpack.c.h.b16 %v574
        %v756 = vunpack.c.l.b16 %v575
        %v757 = vunpack.c.h.b16 %v575
        %v758 = vunpack.c.l.b16 %v576
        %v759 = vunpack.c.h.b16 %v576
        %v760 = vunpack.c.l.b16 %v577
        %v761 = vunpack.c.h.b16 %v577
        %v762 = vunpack.c.l.b16 %v578
        %v763 = vunpack.c.h.b16 %v578
        %v764 = vunpack.c.l.b16 %v579
        %v765 = vunpack.c.h.b16 %v579
        %v766 = vunpack.c.l.b16 %v580
        %v767 = vunpack.c.h.b16 %v580
        %v768 = vunpack.c.l.b16 %v581
        %v769 = vunpack.c.h.b16 %v581
        %v770 = vunpack.c.l.b16 %v582
        %v771 = vunpack.c.h.b16 %v582
        %v772 = vunpack.c.l.b16 %v583
        %v773 = vunpack.c.h.b16 %v583
        %v774 = vunpack.c.l.b16 %v584
        %v775 = vunpack.c.h.b16 %v584
        %v776 = vunpack.c.l.b16 %v585
        %v777 = vunpack.c.h.b16 %v585
        %v778 = vunpack.c.l.b16 %v586
        %v779 = vunpack.c.h.b16 %v586
        %v780 = vunpack.c.l.b16 %v587
        %v781 = vunpack.c.h.b16 %v587
        %v782 = vunpack.c.l.b16 %v588
        %v783 = vunpack.c.h.b16 %v588
        %v784 = vunpack.c.l.b16 %v589
        %v785 = vunpack.c.h.b16 %v589
        %v786 = vunpack.c.l.b16 %v590
        %v787 = vunpack.c.h.b16 %v590
        %v788 = vunpack.c.l.b16 %v591
        %v789 = vunpack.c.h.b16 %v591
        %v790 = vunpack.c.l.b16 %v592
        %v791 = vunpack.c.h.b16 %v592
        %v792 = vunpack.c.l.b16 %v593
        %v793 = vunpack.c.h.b16 %v593
        %v794 = vunpack.c.l.b16 %v594
        %v795 = vunpack.c.h.b16 %v594
        %v796 = vunpack.c.l.b16 %v595
        %v797 = vunpack.c.h.b16 %v595
        %v798 = vunpack.c.l.b16 %v596
        %v799 = vunpack.c.h.b16 %v596
        %v800 = vunpack.c.l.b16 %v597
        %v801 = vunpack.c.h.b16 %v597
        %v802 = vunpack.c.l.b16 %v598
        %v803 = vunpack.c.h.b16 %v598
        %v804 = vunpack.c.l.b16 %v599
        %v805 = vunpack.c.h.b16 %v599
        %v806 = vunpack.c.l.b16 %v600
        %v807 = vunpack.c.h.b16 %v600
        %v808 = vunpack.c.l.b16 %v601
        %v809 = vunpack.c.h.b16 %v601
        %v810 = vunpack.c.l.b16 %v602
        %v811 = vunpack.c.h.b16 %v602
        %v812 = vunpack.c.l.b16 %v603
        %v813 = vunpack.c.h.b16 %v603
        %v814 = vunpack.c.l.b16 %v604
        %v815 = vunpack.c.h.b16 %v604
        %v816 = vunpack.c.l.b16 %v605
        %v817 = vunpack.c.h.b16 %v605
        %v818 = vunpack.c.l.b16 %v606
        %v819 = vunpack.c.h.b16 %v606
        %v820 = vunpack.c.l.b16 %v607
        %v821 = vunpack.c.h.b16 %v607
        %v822 = vpack.c.b16 %v698, %v694
        %v823 = vpack.c.b16 %v699, %v695
        %v824 = vpack.c.b16 %v700, %v696
        %v825 = vpack.c.b16 %v701, %v697
        %v826 = vpack.c.b16 %v706, %v702
        %v827 = vpack.c.b16 %v707, %v703
        %v828 = vpack.c.b16 %v708, %v704
        %v829 = vpack.c.b16 %v709, %v705
        %v830 = vpack.c.b16 %v714, %v710
        %v831 = vpack.c.b16 %v715, %v711
        %v832 = vpack.c.b16 %v716, %v712
        %v833 = vpack.c.b16 %v717, %v713
        %v834 = vpack.c.b16 %v722, %v718
        %v835 = vpack.c.b16 %v723, %v719
        %v836 = vpack.c.b16 %v724, %v720
        %v837 = vpack.c.b16 %v725, %v721
        %v838 = vpack.c.b16 %v730, %v726
        %v839 = vpack.c.b16 %v731, %v727
        %v840 = vpack.c.b16 %v732, %v728
        %v841 = vpack.c.b16 %v733, %v729
        %v842 = vpack.c.b16 %v738, %v734
        %v843 = vpack.c.b16 %v739, %v735
        %v844 = vpack.c.b16 %v740, %v736
        %v845 = vpack.c.b16 %v741, %v737
        %v846 = vpack.c.b16 %v746, %v742
        %v847 = vpack.c.b16 %v747, %v743
        %v848 = vpack.c.b16 %v748, %v744
        %v849 = vpack.c.b16 %v749, %v745
        %v850 = vpack.c.b16 %v754, %v750
        %v851 = vpack.c.b16 %v755, %v751
        %v852 = vpack.c.b16 %v756, %v752
        %v853 = vpack.c.b16 %v757, %v753
        %v854 = vpack.c.b16 %v762, %v758
        %v855 = vpack.c.b16 %v763, %v759
        %v856 = vpack.c.b16 %v764, %v760
        %v857 = vpack.c.b16 %v765, %v761
        %v858 = vpack.c.b16 %v770, %v766
        %v859 = vpack.c.b16 %v771, %v767
        %v860 = vpack.c.b16 %v772, %v768
        %v861 = vpack.c.b16 %v773, %v769
        %v862 = vpack.c.b16 %v778, %v774
        %v863 = vpack.c.b16 %v779, %v775
        %v864 = vpack.c.b16 %v780, %v776
        %v865 = vpack.c.b16 %v781, %v777
        %v866 = vpack.c.b16 %v786, %v782
        %v867 = vpack.c.b16 %v787, %v783
        %v868 = vpack.c.b16 %v788, %v784
        %v869 = vpack.c.b16 %v789, %v785
        %v870 = vpack.c.b16 %v794, %v790
        %v871 = vpack.c.b16 %v795, %v791
        %v872 = vpack.c.b16 %v796, %v792
        %v873 = vpack.c.b16 %v797, %v793
        %v874 = vpack.c.b16 %v802, %v798
        %v875 = vpack.c.b16 %v803, %v799
        %v876 = vpack.c.b16 %v804, %v800
        %v877 = vpack.c.b16 %v805, %v801
        %v878 = vpack.c.b16 %v810, %v806
        %v879 = vpack.c.b16 %v811, %v807
        %v880 = vpack.c.b16 %v812, %v808
        %v881 = vpack.c.b16 %v813, %v809
        %v882 = vpack.c.b16 %v818, %v814
        %v883 = vpack.c.b16 %v819, %v815
        %v884 = vpack.c.b16 %v820, %v816
        %v885 = vpack.c.b16 %v821, %v817
        %950 = vmatprep.subr.bf16.mxu0 %v823
        %951 = vmatpush1.bf16.msra.mxu0 %v822
        %952 = vmatprep.subr.bf16.mxu0 %v827
        %953 = vmatpush1.bf16.msra.mxu0 %v826
        %954 = vmatprep.subr.bf16.mxu0 %v831
        %955 = vmatpush1.bf16.msra.mxu0 %v830
        %956 = vmatprep.subr.bf16.mxu0 %v835
        %957 = vmatpush1.bf16.msra.mxu0 %v834
        %958 = vmatprep.subr.bf16.mxu0 %v839
        %959 = vmatpush1.bf16.msra.mxu0 %v838
        %960 = vmatprep.subr.bf16.mxu0 %v843
        %961 = vmatpush1.bf16.msra.mxu0 %v842
        %962 = vmatprep.subr.bf16.mxu0 %v847
        %963 = vmatpush1.bf16.msra.mxu0 %v846
        %964 = vmatprep.subr.bf16.mxu0 %v851
        %965 = vmatpush1.bf16.msra.mxu0 %v850
        %966 = vmatprep.subr.bf16.mxu0 %v855
        %967 = vmatpush1.bf16.msra.mxu0 %v854
        %968 = vmatprep.subr.bf16.mxu0 %v859
        %969 = vmatpush1.bf16.msra.mxu0 %v858
        %970 = vmatprep.subr.bf16.mxu0 %v863
        %971 = vmatpush1.bf16.msra.mxu0 %v862
        %972 = vmatprep.subr.bf16.mxu0 %v867
        %973 = vmatpush1.bf16.msra.mxu0 %v866
        %974 = vmatprep.subr.bf16.mxu0 %v871
        %975 = vmatpush1.bf16.msra.mxu0 %v870
        %976 = vmatprep.subr.bf16.mxu0 %v875
        %977 = vmatpush1.bf16.msra.mxu0 %v874
        %978 = vmatprep.subr.bf16.mxu0 %v879
        %979 = vmatpush1.bf16.msra.mxu0 %v878
        %980 = vmatprep.subr.bf16.mxu0 %v883
        %981 = vmatpush1.bf16.msra.mxu0 %v882
        %982 = vmatprep.mubr.bf16.mxu0 %v543
        %983 = vmatmul.mubr.bf16.gmra.mrb[0].mxu0 %v542
        %v984 = vpop.f32.mrb[0].mxu0
        %v985 = vadd.f32 %v613, %v984
        %v986 = vpop.f32.mrb[0].mxu0
        %v987 = vadd.f32 %v617, %v986
        %v988 = vpop.f32.mrb[0].mxu0
        %v989 = vadd.f32 %v613, %v988
        %v990 = vpop.f32.mrb[0].mxu0
        %v991 = vadd.f32 %v617, %v990
        %992 = vdwg.mxu0
        %993 = vmatprep.subr.bf16.mxu0 %v825
        %994 = vmatpush1.bf16.msra.mxu0 %v824
        %995 = vmatprep.subr.bf16.mxu0 %v829
        %996 = vmatpush1.bf16.msra.mxu0 %v828
        %997 = vmatprep.subr.bf16.mxu0 %v833
        %998 = vmatpush1.bf16.msra.mxu0 %v832
        %999 = vmatprep.subr.bf16.mxu0 %v837
        %1000 = vmatpush1.bf16.msra.mxu0 %v836
        %1001 = vmatprep.subr.bf16.mxu0 %v841
        %1002 = vmatpush1.bf16.msra.mxu0 %v840
        %1003 = vmatprep.subr.bf16.mxu0 %v845
        %1004 = vmatpush1.bf16.msra.mxu0 %v844
        %1005 = vmatprep.subr.bf16.mxu0 %v849
        %1006 = vmatpush1.bf16.msra.mxu0 %v848
        %1007 = vmatprep.subr.bf16.mxu0 %v853
        %1008 = vmatpush1.bf16.msra.mxu0 %v852
        %1009 = vmatprep.subr.bf16.mxu0 %v857
        %1010 = vmatpush1.bf16.msra.mxu0 %v856
        %1011 = vmatprep.subr.bf16.mxu0 %v861
        %1012 = vmatpush1.bf16.msra.mxu0 %v860
        %1013 = vmatprep.subr.bf16.mxu0 %v865
        %1014 = vmatpush1.bf16.msra.mxu0 %v864
        %1015 = vmatprep.subr.bf16.mxu0 %v869
        %1016 = vmatpush1.bf16.msra.mxu0 %v868
        %1017 = vmatprep.subr.bf16.mxu0 %v873
        %1018 = vmatpush1.bf16.msra.mxu0 %v872
        %1019 = vmatprep.subr.bf16.mxu0 %v877
        %1020 = vmatpush1.bf16.msra.mxu0 %v876
        %1021 = vmatprep.subr.bf16.mxu0 %v881
        %1022 = vmatpush1.bf16.msra.mxu0 %v880
        %1023 = vmatprep.subr.bf16.mxu0 %v885
        %1024 = vmatpush1.bf16.msra.mxu0 %v884
        %1025 = vmatprep.mubr.bf16.mxu0 %v543
        %1026 = vmatmul.mubr.bf16.gmra.mrb[0].mxu0 %v542
        %v1027 = vpop.f32.mrb[0].mxu0
        %v1028 = vadd.f32 %v621, %v1027
        %v1029 = vpop.f32.mrb[0].mxu0
        %v1030 = vadd.f32 %v625, %v1029
        %v1031 = vpop.f32.mrb[0].mxu0
        %v1032 = vadd.f32 %v621, %v1031
        %v1033 = vpop.f32.mrb[0].mxu0
        %v1034 = vadd.f32 %v625, %v1033
        %1035 = vdwg.mxu0
        %v1036 = vpack.c.bf16 %v989, %v985
        %v1037 = vpack.c.bf16 %v991, %v987
        %1038 = vst [vmem:[#allocation2] sm:$0xff] %v1036
        %1039 = vst [vmem:[#allocation2 + $0x8] sm:$0xff] %v1037
        %v1040 = vpack.c.bf16 %v1032, %v1028
        %v1041 = vpack.c.bf16 %v1034, %v1030
        %1042 = vst [vmem:[#allocation3] sm:$0xff] %v1040
        %1043 = vst [vmem:[#allocation3 + $0x8] sm:$0xff] %v1041
        %v1044 = vpack.c.bf16 %v532, %v530
        %v1045 = vpack.c.bf16 %v533, %v531
        %v1046 = vld [vmem:[#allocation12] sm:$0xff]
        %v1047 = vld [vmem:[#allocation12 + $0x8] sm:$0xff]
        %v1048 = vld [vmem:[#allocation12 + $0x10] sm:$0xff]
        %v1049 = vld [vmem:[#allocation12 + $0x18] sm:$0xff]
        %v1050 = vld [vmem:[#allocation12 + $0x20] sm:$0xff]
        %v1051 = vld [vmem:[#allocation12 + $0x28] sm:$0xff]
        %v1052 = vld [vmem:[#allocation12 + $0x30] sm:$0xff]
        %v1053 = vld [vmem:[#allocation12 + $0x38] sm:$0xff]
        %v1054 = vld [vmem:[#allocation12 + $0x40] sm:$0xff]
        %v1055 = vld [vmem:[#allocation12 + $0x48] sm:$0xff]
        %v1056 = vld [vmem:[#allocation12 + $0x50] sm:$0xff]
        %v1057 = vld [vmem:[#allocation12 + $0x58] sm:$0xff]
        %v1058 = vld [vmem:[#allocation12 + $0x60] sm:$0xff]
        %v1059 = vld [vmem:[#allocation12 + $0x68] sm:$0xff]
        %v1060 = vld [vmem:[#allocation12 + $0x70] sm:$0xff]
        %v1061 = vld [vmem:[#allocation12 + $0x78] sm:$0xff]
        %v1062 = vld [vmem:[#allocation12 + $0x80] sm:$0xff]
        %v1063 = vld [vmem:[#allocation12 + $0x88] sm:$0xff]
        %v1064 = vld [vmem:[#allocation12 + $0x90] sm:$0xff]
        %v1065 = vld [vmem:[#allocation12 + $0x98] sm:$0xff]
        %v1066 = vld [vmem:[#allocation12 + $0xa0] sm:$0xff]
        %v1067 = vld [vmem:[#allocation12 + $0xa8] sm:$0xff]
        %v1068 = vld [vmem:[#allocation12 + $0xb0] sm:$0xff]
        %v1069 = vld [vmem:[#allocation12 + $0xb8] sm:$0xff]
        %v1070 = vld [vmem:[#allocation12 + $0xc0] sm:$0xff]
        %v1071 = vld [vmem:[#allocation12 + $0xc8] sm:$0xff]
        %v1072 = vld [vmem:[#allocation12 + $0xd0] sm:$0xff]
        %v1073 = vld [vmem:[#allocation12 + $0xd8] sm:$0xff]
        %v1074 = vld [vmem:[#allocation12 + $0xe0] sm:$0xff]
        %v1075 = vld [vmem:[#allocation12 + $0xe8] sm:$0xff]
        %v1076 = vld [vmem:[#allocation12 + $0xf0] sm:$0xff]
        %v1077 = vld [vmem:[#allocation12 + $0xf8] sm:$0xff]
        %v1078 = vld [vmem:[%s8] sm:$0x3]
        %v1080 = vlaneseq
        %v1081 = vshrl.u32 %v1080, 7
        %v1082 = vsub.s32 0, %v1081
        %v1083 = vrot.slane %v1078, %v1082
        %v1084 = vlaneseq
        %v1085 = vshrl.u32 %v1084, 7
        %v1086 = vsub.s32 1, %v1085
        %v1087 = vrot.slane %v1078, %v1086
        %v1122 = vunpack.c.l.b16 %v1046
        %v1123 = vunpack.c.h.b16 %v1046
        %v1124 = vunpack.c.l.b16 %v1047
        %v1125 = vunpack.c.h.b16 %v1047
        %v1126 = vunpack.c.l.b16 %v1048
        %v1127 = vunpack.c.h.b16 %v1048
        %v1128 = vunpack.c.l.b16 %v1049
        %v1129 = vunpack.c.h.b16 %v1049
        %v1130 = vunpack.c.l.b16 %v1050
        %v1131 = vunpack.c.h.b16 %v1050
        %v1132 = vunpack.c.l.b16 %v1051
        %v1133 = vunpack.c.h.b16 %v1051
        %v1134 = vunpack.c.l.b16 %v1052
        %v1135 = vunpack.c.h.b16 %v1052
        %v1136 = vunpack.c.l.b16 %v1053
        %v1137 = vunpack.c.h.b16 %v1053
        %v1138 = vunpack.c.l.b16 %v1054
        %v1139 = vunpack.c.h.b16 %v1054
        %v1140 = vunpack.c.l.b16 %v1055
        %v1141 = vunpack.c.h.b16 %v1055
        %v1142 = vunpack.c.l.b16 %v1056
        %v1143 = vunpack.c.h.b16 %v1056
        %v1144 = vunpack.c.l.b16 %v1057
        %v1145 = vunpack.c.h.b16 %v1057
        %v1146 = vunpack.c.l.b16 %v1058
        %v1147 = vunpack.c.h.b16 %v1058
        %v1148 = vunpack.c.l.b16 %v1059
        %v1149 = vunpack.c.h.b16 %v1059
        %v1150 = vunpack.c.l.b16 %v1060
        %v1151 = vunpack.c.h.b16 %v1060
        %v1152 = vunpack.c.l.b16 %v1061
        %v1153 = vunpack.c.h.b16 %v1061
        %v1154 = vunpack.c.l.b16 %v1062
        %v1155 = vunpack.c.h.b16 %v1062
        %v1156 = vunpack.c.l.b16 %v1063
        %v1157 = vunpack.c.h.b16 %v1063
        %v1158 = vunpack.c.l.b16 %v1064
        %v1159 = vunpack.c.h.b16 %v1064
        %v1160 = vunpack.c.l.b16 %v1065
        %v1161 = vunpack.c.h.b16 %v1065
        %v1162 = vunpack.c.l.b16 %v1066
        %v1163 = vunpack.c.h.b16 %v1066
        %v1164 = vunpack.c.l.b16 %v1067
        %v1165 = vunpack.c.h.b16 %v1067
        %v1166 = vunpack.c.l.b16 %v1068
        %v1167 = vunpack.c.h.b16 %v1068
        %v1168 = vunpack.c.l.b16 %v1069
        %v1169 = vunpack.c.h.b16 %v1069
        %v1170 = vunpack.c.l.b16 %v1070
        %v1171 = vunpack.c.h.b16 %v1070
        %v1172 = vunpack.c.l.b16 %v1071
        %v1173 = vunpack.c.h.b16 %v1071
        %v1174 = vunpack.c.l.b16 %v1072
        %v1175 = vunpack.c.h.b16 %v1072
        %v1176 = vunpack.c.l.b16 %v1073
        %v1177 = vunpack.c.h.b16 %v1073
        %v1178 = vunpack.c.l.b16 %v1074
        %v1179 = vunpack.c.h.b16 %v1074
        %v1180 = vunpack.c.l.b16 %v1075
        %v1181 = vunpack.c.h.b16 %v1075
        %v1182 = vunpack.c.l.b16 %v1076
        %v1183 = vunpack.c.h.b16 %v1076
        %v1184 = vunpack.c.l.b16 %v1077
        %v1185 = vunpack.c.h.b16 %v1077
        %v1186 = vpack.c.b16 %v1124, %v1122
        %v1187 = vpack.c.b16 %v1125, %v1123
        %v1188 = vpack.c.b16 %v1128, %v1126
        %v1189 = vpack.c.b16 %v1129, %v1127
        %v1190 = vpack.c.b16 %v1132, %v1130
        %v1191 = vpack.c.b16 %v1133, %v1131
        %v1192 = vpack.c.b16 %v1136, %v1134
        %v1193 = vpack.c.b16 %v1137, %v1135
        %v1194 = vpack.c.b16 %v1140, %v1138
        %v1195 = vpack.c.b16 %v1141, %v1139
        %v1196 = vpack.c.b16 %v1144, %v1142
        %v1197 = vpack.c.b16 %v1145, %v1143
        %v1198 = vpack.c.b16 %v1148, %v1146
        %v1199 = vpack.c.b16 %v1149, %v1147
        %v1200 = vpack.c.b16 %v1152, %v1150
        %v1201 = vpack.c.b16 %v1153, %v1151
        %v1202 = vpack.c.b16 %v1156, %v1154
        %v1203 = vpack.c.b16 %v1157, %v1155
        %v1204 = vpack.c.b16 %v1160, %v1158
        %v1205 = vpack.c.b16 %v1161, %v1159
        %v1206 = vpack.c.b16 %v1164, %v1162
        %v1207 = vpack.c.b16 %v1165, %v1163
        %v1208 = vpack.c.b16 %v1168, %v1166
        %v1209 = vpack.c.b16 %v1169, %v1167
        %v1210 = vpack.c.b16 %v1172, %v1170
        %v1211 = vpack.c.b16 %v1173, %v1171
        %v1212 = vpack.c.b16 %v1176, %v1174
        %v1213 = vpack.c.b16 %v1177, %v1175
        %v1214 = vpack.c.b16 %v1180, %v1178
        %v1215 = vpack.c.b16 %v1181, %v1179
        %v1216 = vpack.c.b16 %v1184, %v1182
        %v1217 = vpack.c.b16 %v1185, %v1183
        %1250 = vmatprep.subr.bf16.mxu0 %v1187
        %1251 = vmatpush1.bf16.msra.mxu0 %v1186
        %1252 = vmatprep.subr.bf16.mxu0 %v1189
        %1253 = vmatpush1.bf16.msra.mxu0 %v1188
        %1254 = vmatprep.subr.bf16.mxu0 %v1191
        %1255 = vmatpush1.bf16.msra.mxu0 %v1190
        %1256 = vmatprep.subr.bf16.mxu0 %v1193
        %1257 = vmatpush1.bf16.msra.mxu0 %v1192
        %1258 = vmatprep.subr.bf16.mxu0 %v1195
        %1259 = vmatpush1.bf16.msra.mxu0 %v1194
        %1260 = vmatprep.subr.bf16.mxu0 %v1197
        %1261 = vmatpush1.bf16.msra.mxu0 %v1196
        %1262 = vmatprep.subr.bf16.mxu0 %v1199
        %1263 = vmatpush1.bf16.msra.mxu0 %v1198
        %1264 = vmatprep.subr.bf16.mxu0 %v1201
        %1265 = vmatpush1.bf16.msra.mxu0 %v1200
        %1266 = vmatprep.subr.bf16.mxu0 %v1203
        %1267 = vmatpush1.bf16.msra.mxu0 %v1202
        %1268 = vmatprep.subr.bf16.mxu0 %v1205
        %1269 = vmatpush1.bf16.msra.mxu0 %v1204
        %1270 = vmatprep.subr.bf16.mxu0 %v1207
        %1271 = vmatpush1.bf16.msra.mxu0 %v1206
        %1272 = vmatprep.subr.bf16.mxu0 %v1209
        %1273 = vmatpush1.bf16.msra.mxu0 %v1208
        %1274 = vmatprep.subr.bf16.mxu0 %v1211
        %1275 = vmatpush1.bf16.msra.mxu0 %v1210
        %1276 = vmatprep.subr.bf16.mxu0 %v1213
        %1277 = vmatpush1.bf16.msra.mxu0 %v1212
        %1278 = vmatprep.subr.bf16.mxu0 %v1215
        %1279 = vmatpush1.bf16.msra.mxu0 %v1214
        %1280 = vmatprep.subr.bf16.mxu0 %v1217
        %1281 = vmatpush1.bf16.msra.mxu0 %v1216
        %1282 = vmatprep.mubr.bf16.mxu0 %v1045
        %1283 = vmatmul.mubr.bf16.gmra.mrb[0].mxu0 %v1044
        %v1284 = vpop.f32.mrb[0].mxu0
        %v1285 = vadd.f32 %v1083, %v1284
        %v1286 = vpop.f32.mrb[0].mxu0
        %v1287 = vadd.f32 %v1087, %v1286
        %v1288 = vpop.f32.mrb[0].mxu0
        %v1289 = vadd.f32 %v1083, %v1288
        %v1290 = vpop.f32.mrb[0].mxu0
        %v1291 = vadd.f32 %v1087, %v1290
        %1292 = vdwg.mxu0
        %v1293 = vpack.c.bf16 %v1289, %v1285
        %v1294 = vpack.c.bf16 %v1291, %v1287
        %1295 = vst [vmem:[#allocation4] sm:$0xff] %v1293
        %1296 = vst [vmem:[#allocation4 + $0x8] sm:$0xff] %v1294
        %v1297 = vld [vmem:[%s9] sm:$0x3]
        %v1298 = vld [vmem:[%s10] sm:$0x3]
        %v1299 = vld [vmem:[%s11] sm:$0x3]
        %s1300 = smul.u32 0, 2
        %s1301 = smul.addr %s1300, 8
        %s1302 = scalar_lea.vmem [#allocation2], %s1301
        %v1303 = vld [vmem:[%s1302] sm:$0xff]
        %v1304 = vld [vmem:[%s1302 + $0x8] sm:$0xff]
        %s1305 = smul.addr %s1300, 8
        %s1306 = scalar_lea.vmem [#allocation3], %s1305
        %v1307 = vld [vmem:[%s1306] sm:$0xff]
        %v1308 = vld [vmem:[%s1306 + $0x8] sm:$0xff]
        %s1309 = smul.addr %s1300, 8
        %s1310 = scalar_lea.vmem [#allocation4], %s1309
        %v1311 = vld [vmem:[%s1310] sm:$0xff]
        %v1312 = vld [vmem:[%s1310 + $0x8] sm:$0xff]
        %v1313 = vld [vmem:[%s3] sm:$0x3]
        %v1314 = vld [vmem:[%s3 + $0x2] sm:$0x3]
        %v1315 = vunpack.c.0.s8 %v1313
        %v1316 = vunpack.c.0.s8 %v1314
        %v1317 = vcvt.s32.f32 %v1315
        %v1318 = vcvt.s32.f32 %v1316
        %v1319 = vmul.f32 %v1317, -1e+30
        %v1320 = vmul.f32 %v1318, -1e+30
        %v1321 = vld [vmem:[%s528] sm:$0x1]
        %v1323 = vlaneseq
        %v1324 = vshrl.u32 %v1323, 7
        %v1325 = vsub.s32 0, %v1324
        %v1326 = vrot.slane %v1321, %v1325
        %v1328 = vadd.f32 %v1319, %v1326
        %v1329 = vadd.f32 %v1320, %v1326
        %vm1330 = vcmask 261120
        %v1332 = vsel %vm1330, %v1303, 0
        %v1335 = vsel %vm1330, %v1307, 0
        %1337 = vmatprep.subr.bf16.mxu0 0
        %1338 = vmatpush1.bf16.xpose.msra.mxu0 %v1335
        %1339 = vmatprep.subr.bf16.mxu0 0
        %1340 = vmatpush1.bf16.xpose.msra.mxu0 0
        %1341 = vmatprep.subr.bf16.mxu0 0
        %1342 = vmatpush1.bf16.xpose.msra.mxu0 0
        %1343 = vmatprep.subr.bf16.mxu0 0
        %1344 = vmatpush1.bf16.xpose.msra.mxu0 0
        %1345 = vmatprep.subr.bf16.mxu0 0
        %1346 = vmatpush1.bf16.xpose.msra.mxu0 0
        %1347 = vmatprep.subr.bf16.mxu0 0
        %1348 = vmatpush1.bf16.xpose.msra.mxu0 0
        %1349 = vmatprep.subr.bf16.mxu0 0
        %1350 = vmatpush1.bf16.xpose.msra.mxu0 0
        %1351 = vmatprep.subr.bf16.mxu0 0
        %1352 = vmatpush1.bf16.xpose.msra.mxu0 0
        %1353 = vmatprep.subr.bf16.mxu0 0
        %1354 = vmatpush1.bf16.xpose.msra.mxu0 0
        %1355 = vmatprep.subr.bf16.mxu0 0
        %1356 = vmatpush1.bf16.xpose.msra.mxu0 0
        %1357 = vmatprep.subr.bf16.mxu0 0
        %1358 = vmatpush1.bf16.xpose.msra.mxu0 0
        %1359 = vmatprep.subr.bf16.mxu0 0
        %1360 = vmatpush1.bf16.xpose.msra.mxu0 0
        %1361 = vmatprep.subr.bf16.mxu0 0
        %1362 = vmatpush1.bf16.xpose.msra.mxu0 0
        %1363 = vmatprep.subr.bf16.mxu0 0
        %1364 = vmatpush1.bf16.xpose.msra.mxu0 0
        %1365 = vmatprep.subr.bf16.mxu0 0
        %1366 = vmatpush1.bf16.xpose.msra.mxu0 0
        %1367 = vmatprep.subr.bf16.mxu0 0
        %1368 = vmatpush1.bf16.xpose.msra.mxu0 0
        %1369 = vmatprep.mubr.bf16.mxu0 0
        %1370 = vmatmul.mubr.bf16.gmra.mrb[0].mxu0 %v1332
        %v1371 = vpop.f32.mrb[0].mxu0
        %v1372 = vadd.f32 %v1328, %v1371
        %v1373 = vpop.f32.mrb[0].mxu0
        %v1374 = vpop.f32.mrb[0].mxu0
        %v1375 = vadd.f32 %v1329, %v1374
        %v1376 = vpop.f32.mrb[0].mxu0
        %1377 = vdwg.mxu0
        %vm1378 = vcmask 130048
        %v1379 = vsel %vm1378, %v1372, -inf
        %1380 = vmax.xlane.f32.xlu0 %v1379
        %v1381 = vpop.xlane.xlu0 %1380
        %v1382 = vsel %vm1378, %v1375, -inf
        %1383 = vmax.xlane.f32.xlu0 %v1382
        %v1384 = vpop.xlane.xlu0 %1383
        %v1385 = vsub.f32 %v1372, %v1381
        %v1386 = vsub.f32 %v1375, %v1384
        %v1387 = vmul.f32 %v1385, 1.442695
        %v1388 = vpow.pop %v1387
        %v1389 = vmul.f32 %v1386, 1.442695
        %v1390 = vpow.pop %v1389
        %v1391 = vsel %vm1378, %v1388, 0.0
        %1392 = vadd.xlane.f32.xlu0 %v1391
        %v1393 = vpop.xlane.xlu0 %1392
        %v1394 = vsel %vm1378, %v1390, 0.0
        %1395 = vadd.xlane.f32.xlu0 %v1394
        %v1396 = vpop.xlane.xlu0 %1395
        %v1397 = vpack.c.bf16 %v1390, %v1388
        %v1399 = vsel %vm1378, %v1397, 0
        %1401 = vmatprep.subr.bf16.mxu0 0
        %1402 = vmatpush1.bf16.msra.mxu0 %v1311
        %1403 = vmatprep.subr.bf16.mxu0 0
        %1404 = vmatpush1.bf16.msra.mxu0 0
        %1405 = vmatprep.subr.bf16.mxu0 0
        %1406 = vmatpush1.bf16.msra.mxu0 0
        %1407 = vmatprep.subr.bf16.mxu0 0
        %1408 = vmatpush1.bf16.msra.mxu0 0
        %1409 = vmatprep.subr.bf16.mxu0 0
        %1410 = vmatpush1.bf16.msra.mxu0 0
        %1411 = vmatprep.subr.bf16.mxu0 0
        %1412 = vmatpush1.bf16.msra.mxu0 0
        %1413 = vmatprep.subr.bf16.mxu0 0
        %1414 = vmatpush1.bf16.msra.mxu0 0
        %1415 = vmatprep.subr.bf16.mxu0 0
        %1416 = vmatpush1.bf16.msra.mxu0 0
        %1417 = vmatprep.subr.bf16.mxu0 0
        %1418 = vmatpush1.bf16.msra.mxu0 0
        %1419 = vmatprep.subr.bf16.mxu0 0
        %1420 = vmatpush1.bf16.msra.mxu0 0
        %1421 = vmatprep.subr.bf16.mxu0 0
        %1422 = vmatpush1.bf16.msra.mxu0 0
        %1423 = vmatprep.subr.bf16.mxu0 0
        %1424 = vmatpush1.bf16.msra.mxu0 0
        %1425 = vmatprep.subr.bf16.mxu0 0
        %1426 = vmatpush1.bf16.msra.mxu0 0
        %1427 = vmatprep.subr.bf16.mxu0 0
        %1428 = vmatpush1.bf16.msra.mxu0 0
        %1429 = vmatprep.subr.bf16.mxu0 0
        %1430 = vmatpush1.bf16.msra.mxu0 0
        %1431 = vmatprep.subr.bf16.mxu0 0
        %1432 = vmatpush1.bf16.msra.mxu0 0
        %1433 = vmatprep.mubr.bf16.mxu0 0
        %1434 = vmatmul.mubr.bf16.gmra.mrb[0].mxu0 %v1399
        %v1435 = vpop.f32.mrb[0].mxu0
        %v1436 = vadd.f32 0.0, %v1435
        %v1437 = vpop.f32.mrb[0].mxu0
        %v1438 = vpop.f32.mrb[0].mxu0
        %v1439 = vadd.f32 0.0, %v1438
        %v1440 = vpop.f32.mrb[0].mxu0
        %1441 = vdwg.mxu0
        %v1442 = vrcp.pop %v1393
        %v1443 = vrcp.pop %v1396
        %v1444 = vmul.f32 %v1436, %v1442
        %v1445 = vmul.f32 %v1439, %v1443
        %v1446 = vpack.c.bf16 %v1445, %v1444
        %1447 = vst.msk [vmem:[#allocation5] sm:$0xff] %vm1330, %v1446
        %1449 = vrot.lane.b32.xlu0 %v1303, 96
        %v1450 = vpop.permute.xlu0 %1449
        %1452 = vrot.lane.b32.xlu0 %v1307, 96
        %v1453 = vpop.permute.xlu0 %1452
        %v1455 = vsel %vm1330, %v1450, 0
        %v1458 = vsel %vm1330, %v1453, 0
        %1460 = vmatprep.subr.bf16.mxu0 0
        %1461 = vmatpush1.bf16.xpose.msra.mxu0 %v1458
        %1462 = vmatprep.subr.bf16.mxu0 0
        %1463 = vmatpush1.bf16.xpose.msra.mxu0 0
        %1464 = vmatprep.subr.bf16.mxu0 0
        %1465 = vmatpush1.bf16.xpose.msra.mxu0 0
        %1466 = vmatprep.subr.bf16.mxu0 0
        %1467 = vmatpush1.bf16.xpose.msra.mxu0 0
        %1468 = vmatprep.subr.bf16.mxu0 0
        %1469 = vmatpush1.bf16.xpose.msra.mxu0 0
        %1470 = vmatprep.subr.bf16.mxu0 0
        %1471 = vmatpush1.bf16.xpose.msra.mxu0 0
        %1472 = vmatprep.subr.bf16.mxu0 0
        %1473 = vmatpush1.bf16.xpose.msra.mxu0 0
        %1474 = vmatprep.subr.bf16.mxu0 0
        %1475 = vmatpush1.bf16.xpose.msra.mxu0 0
        %1476 = vmatprep.subr.bf16.mxu0 0
        %1477 = vmatpush1.bf16.xpose.msra.mxu0 0
        %1478 = vmatprep.subr.bf16.mxu0 0
        %1479 = vmatpush1.bf16.xpose.msra.mxu0 0
        %1480 = vmatprep.subr.bf16.mxu0 0
        %1481 = vmatpush1.bf16.xpose.msra.mxu0 0
        %1482 = vmatprep.subr.bf16.mxu0 0
        %1483 = vmatpush1.bf16.xpose.msra.mxu0 0
        %1484 = vmatprep.subr.bf16.mxu0 0
        %1485 = vmatpush1.bf16.xpose.msra.mxu0 0
        %1486 = vmatprep.subr.bf16.mxu0 0
        %1487 = vmatpush1.bf16.xpose.msra.mxu0 0
        %1488 = vmatprep.subr.bf16.mxu0 0
        %1489 = vmatpush1.bf16.xpose.msra.mxu0 0
        %1490 = vmatprep.subr.bf16.mxu0 0
        %1491 = vmatpush1.bf16.xpose.msra.mxu0 0
        %1492 = vmatprep.mubr.bf16.mxu0 0
        %1493 = vmatmul.mubr.bf16.gmra.mrb[0].mxu0 %v1455
        %v1494 = vpop.f32.mrb[0].mxu0
        %v1495 = vadd.f32 %v1328, %v1494
        %v1496 = vpop.f32.mrb[0].mxu0
        %v1497 = vpop.f32.mrb[0].mxu0
        %v1498 = vadd.f32 %v1329, %v1497
        %v1499 = vpop.f32.mrb[0].mxu0
        %1500 = vdwg.mxu0
        %v1501 = vsel %vm1378, %v1495, -inf
        %1502 = vmax.xlane.f32.xlu0 %v1501
        %v1503 = vpop.xlane.xlu0 %1502
        %v1504 = vsel %vm1378, %v1498, -inf
        %1505 = vmax.xlane.f32.xlu0 %v1504
        %v1506 = vpop.xlane.xlu0 %1505
        %v1507 = vsub.f32 %v1495, %v1503
        %v1508 = vsub.f32 %v1498, %v1506
        %v1509 = vmul.f32 %v1507, 1.442695
        %v1510 = vpow.pop %v1509
        %v1511 = vmul.f32 %v1508, 1.442695
        %v1512 = vpow.pop %v1511
        %v1513 = vsel %vm1378, %v1510, 0.0
        %1514 = vadd.xlane.f32.xlu0 %v1513
        %v1515 = vpop.xlane.xlu0 %1514
        %v1516 = vsel %vm1378, %v1512, 0.0
        %1517 = vadd.xlane.f32.xlu0 %v1516
        %v1518 = vpop.xlane.xlu0 %1517
        %v1519 = vpack.c.bf16 %v1512, %v1510
        %1521 = vrot.lane.b32.xlu0 %v1311, 96
        %v1522 = vpop.permute.xlu0 %1521
        %v1525 = vsel %vm1378, %v1519, 0
        %1527 = vmatprep.subr.bf16.mxu0 0
        %1528 = vmatpush1.bf16.msra.mxu0 %v1522
        %1529 = vmatprep.subr.bf16.mxu0 0
        %1530 = vmatpush1.bf16.msra.mxu0 0
        %1531 = vmatprep.subr.bf16.mxu0 0
        %1532 = vmatpush1.bf16.msra.mxu0 0
        %1533 = vmatprep.subr.bf16.mxu0 0
        %1534 = vmatpush1.bf16.msra.mxu0 0
        %1535 = vmatprep.subr.bf16.mxu0 0
        %1536 = vmatpush1.bf16.msra.mxu0 0
        %1537 = vmatprep.subr.bf16.mxu0 0
        %1538 = vmatpush1.bf16.msra.mxu0 0
        %1539 = vmatprep.subr.bf16.mxu0 0
        %1540 = vmatpush1.bf16.msra.mxu0 0
        %1541 = vmatprep.subr.bf16.mxu0 0
        %1542 = vmatpush1.bf16.msra.mxu0 0
        %1543 = vmatprep.subr.bf16.mxu0 0
        %1544 = vmatpush1.bf16.msra.mxu0 0
        %1545 = vmatprep.subr.bf16.mxu0 0
        %1546 = vmatpush1.bf16.msra.mxu0 0
        %1547 = vmatprep.subr.bf16.mxu0 0
        %1548 = vmatpush1.bf16.msra.mxu0 0
        %1549 = vmatprep.subr.bf16.mxu0 0
        %1550 = vmatpush1.bf16.msra.mxu0 0
        %1551 = vmatprep.subr.bf16.mxu0 0
        %1552 = vmatpush1.bf16.msra.mxu0 0
        %1553 = vmatprep.subr.bf16.mxu0 0
        %1554 = vmatpush1.bf16.msra.mxu0 0
        %1555 = vmatprep.subr.bf16.mxu0 0
        %1556 = vmatpush1.bf16.msra.mxu0 0
        %1557 = vmatprep.subr.bf16.mxu0 0
        %1558 = vmatpush1.bf16.msra.mxu0 0
        %1559 = vmatprep.mubr.bf16.mxu0 0
        %1560 = vmatmul.mubr.bf16.gmra.mrb[0].mxu0 %v1525
        %v1561 = vpop.f32.mrb[0].mxu0
        %v1562 = vadd.f32 0.0, %v1561
        %v1563 = vpop.f32.mrb[0].mxu0
        %v1564 = vpop.f32.mrb[0].mxu0
        %v1565 = vadd.f32 0.0, %v1564
        %v1566 = vpop.f32.mrb[0].mxu0
        %1567 = vdwg.mxu0
        %v1568 = vrcp.pop %v1515
        %v1569 = vrcp.pop %v1518
        %v1570 = vmul.f32 %v1562, %v1568
        %v1571 = vmul.f32 %v1565, %v1569
        %v1572 = vpack.c.bf16 %v1571, %v1570
        %1574 = vrot.lane.b32.xlu0 %v1572, 32
        %v1575 = vpop.permute.xlu0 %1574
        %vm1577 = vcmask 523520
        %1578 = vst.msk [vmem:[#allocation5] sm:$0xff] %vm1577, %v1575
        %1579 = vrot.lane.b32.xlu0 %v1303, 64
        %v1580 = vpop.permute.xlu0 %1579
        %1581 = vrot.lane.b32.xlu0 %v1307, 64
        %v1582 = vpop.permute.xlu0 %1581
        %v1584 = vsel %vm1330, %v1580, 0
        %v1587 = vsel %vm1330, %v1582, 0
        %1589 = vmatprep.subr.bf16.mxu0 0
        %1590 = vmatpush1.bf16.xpose.msra.mxu0 %v1587
        %1591 = vmatprep.subr.bf16.mxu0 0
        %1592 = vmatpush1.bf16.xpose.msra.mxu0 0
        %1593 = vmatprep.subr.bf16.mxu0 0
        %1594 = vmatpush1.bf16.xpose.msra.mxu0 0
        %1595 = vmatprep.subr.bf16.mxu0 0
        %1596 = vmatpush1.bf16.xpose.msra.mxu0 0
        %1597 = vmatprep.subr.bf16.mxu0 0
        %1598 = vmatpush1.bf16.xpose.msra.mxu0 0
        %1599 = vmatprep.subr.bf16.mxu0 0
        %1600 = vmatpush1.bf16.xpose.msra.mxu0 0
        %1601 = vmatprep.subr.bf16.mxu0 0
        %1602 = vmatpush1.bf16.xpose.msra.mxu0 0
        %1603 = vmatprep.subr.bf16.mxu0 0
        %1604 = vmatpush1.bf16.xpose.msra.mxu0 0
        %1605 = vmatprep.subr.bf16.mxu0 0
        %1606 = vmatpush1.bf16.xpose.msra.mxu0 0
        %1607 = vmatprep.subr.bf16.mxu0 0
        %1608 = vmatpush1.bf16.xpose.msra.mxu0 0
        %1609 = vmatprep.subr.bf16.mxu0 0
        %1610 = vmatpush1.bf16.xpose.msra.mxu0 0
        %1611 = vmatprep.subr.bf16.mxu0 0
        %1612 = vmatpush1.bf16.xpose.msra.mxu0 0
        %1613 = vmatprep.subr.bf16.mxu0 0
        %1614 = vmatpush1.bf16.xpose.msra.mxu0 0
        %1615 = vmatprep.subr.bf16.mxu0 0
        %1616 = vmatpush1.bf16.xpose.msra.mxu0 0
        %1617 = vmatprep.subr.bf16.mxu0 0
        %1618 = vmatpush1.bf16.xpose.msra.mxu0 0
        %1619 = vmatprep.subr.bf16.mxu0 0
        %1620 = vmatpush1.bf16.xpose.msra.mxu0 0
        %1621 = vmatprep.mubr.bf16.mxu0 0
        %1622 = vmatmul.mubr.bf16.gmra.mrb[0].mxu0 %v1584
        %v1623 = vpop.f32.mrb[0].mxu0
        %v1624 = vadd.f32 %v1328, %v1623
        %v1625 = vpop.f32.mrb[0].mxu0
        %v1626 = vpop.f32.mrb[0].mxu0
        %v1627 = vadd.f32 %v1329, %v1626
        %v1628 = vpop.f32.mrb[0].mxu0
        %1629 = vdwg.mxu0
        %v1630 = vsel %vm1378, %v1624, -inf
        %1631 = vmax.xlane.f32.xlu0 %v1630
        %v1632 = vpop.xlane.xlu0 %1631
        %v1633 = vsel %vm1378, %v1627, -inf
        %1634 = vmax.xlane.f32.xlu0 %v1633
        %v1635 = vpop.xlane.xlu0 %1634
        %v1636 = vsub.f32 %v1624, %v1632
        %v1637 = vsub.f32 %v1627, %v1635
        %v1638 = vmul.f32 %v1636, 1.442695
        %v1639 = vpow.pop %v1638
        %v1640 = vmul.f32 %v1637, 1.442695
        %v1641 = vpow.pop %v1640
        %v1642 = vsel %vm1378, %v1639, 0.0
        %1643 = vadd.xlane.f32.xlu0 %v1642
        %v1644 = vpop.xlane.xlu0 %1643
        %v1645 = vsel %vm1378, %v1641, 0.0
        %1646 = vadd.xlane.f32.xlu0 %v1645
        %v1647 = vpop.xlane.xlu0 %1646
        %v1648 = vpack.c.bf16 %v1641, %v1639
        %1649 = vrot.lane.b32.xlu0 %v1311, 64
        %v1650 = vpop.permute.xlu0 %1649
        %v1653 = vsel %vm1378, %v1648, 0
        %1655 = vmatprep.subr.bf16.mxu0 0
        %1656 = vmatpush1.bf16.msra.mxu0 %v1650
        %1657 = vmatprep.subr.bf16.mxu0 0
        %1658 = vmatpush1.bf16.msra.mxu0 0
        %1659 = vmatprep.subr.bf16.mxu0 0
        %1660 = vmatpush1.bf16.msra.mxu0 0
        %1661 = vmatprep.subr.bf16.mxu0 0
        %1662 = vmatpush1.bf16.msra.mxu0 0
        %1663 = vmatprep.subr.bf16.mxu0 0
        %1664 = vmatpush1.bf16.msra.mxu0 0
        %1665 = vmatprep.subr.bf16.mxu0 0
        %1666 = vmatpush1.bf16.msra.mxu0 0
        %1667 = vmatprep.subr.bf16.mxu0 0
        %1668 = vmatpush1.bf16.msra.mxu0 0
        %1669 = vmatprep.subr.bf16.mxu0 0
        %1670 = vmatpush1.bf16.msra.mxu0 0
        %1671 = vmatprep.subr.bf16.mxu0 0
        %1672 = vmatpush1.bf16.msra.mxu0 0
        %1673 = vmatprep.subr.bf16.mxu0 0
        %1674 = vmatpush1.bf16.msra.mxu0 0
        %1675 = vmatprep.subr.bf16.mxu0 0
        %1676 = vmatpush1.bf16.msra.mxu0 0
        %1677 = vmatprep.subr.bf16.mxu0 0
        %1678 = vmatpush1.bf16.msra.mxu0 0
        %1679 = vmatprep.subr.bf16.mxu0 0
        %1680 = vmatpush1.bf16.msra.mxu0 0
        %1681 = vmatprep.subr.bf16.mxu0 0
        %1682 = vmatpush1.bf16.msra.mxu0 0
        %1683 = vmatprep.subr.bf16.mxu0 0
        %1684 = vmatpush1.bf16.msra.mxu0 0
        %1685 = vmatprep.subr.bf16.mxu0 0
        %1686 = vmatpush1.bf16.msra.mxu0 0
        %1687 = vmatprep.mubr.bf16.mxu0 0
        %1688 = vmatmul.mubr.bf16.gmra.mrb[0].mxu0 %v1653
        %v1689 = vpop.f32.mrb[0].mxu0
        %v1690 = vadd.f32 0.0, %v1689
        %v1691 = vpop.f32.mrb[0].mxu0
        %v1692 = vpop.f32.mrb[0].mxu0
        %v1693 = vadd.f32 0.0, %v1692
        %v1694 = vpop.f32.mrb[0].mxu0
        %1695 = vdwg.mxu0
        %v1696 = vrcp.pop %v1644
        %v1697 = vrcp.pop %v1647
        %v1698 = vmul.f32 %v1690, %v1696
        %v1699 = vmul.f32 %v1693, %v1697
        %v1700 = vpack.c.bf16 %v1699, %v1698
        %1702 = vrot.lane.b32.xlu0 %v1700, 64
        %v1703 = vpop.permute.xlu0 %1702
        %vm1705 = vcmask 785920
        %1706 = vst.msk [vmem:[#allocation5] sm:$0xff] %vm1705, %v1703
        %1707 = vrot.lane.b32.xlu0 %v1303, 32
        %v1708 = vpop.permute.xlu0 %1707
        %1709 = vrot.lane.b32.xlu0 %v1307, 32
        %v1710 = vpop.permute.xlu0 %1709
        %v1712 = vsel %vm1330, %v1708, 0
        %v1715 = vsel %vm1330, %v1710, 0
        %1717 = vmatprep.subr.bf16.mxu0 0
        %1718 = vmatpush1.bf16.xpose.msra.mxu0 %v1715
        %1719 = vmatprep.subr.bf16.mxu0 0
        %1720 = vmatpush1.bf16.xpose.msra.mxu0 0
        %1721 = vmatprep.subr.bf16.mxu0 0
        %1722 = vmatpush1.bf16.xpose.msra.mxu0 0
        %1723 = vmatprep.subr.bf16.mxu0 0
        %1724 = vmatpush1.bf16.xpose.msra.mxu0 0
        %1725 = vmatprep.subr.bf16.mxu0 0
        %1726 = vmatpush1.bf16.xpose.msra.mxu0 0
        %1727 = vmatprep.subr.bf16.mxu0 0
        %1728 = vmatpush1.bf16.xpose.msra.mxu0 0
        %1729 = vmatprep.subr.bf16.mxu0 0
        %1730 = vmatpush1.bf16.xpose.msra.mxu0 0
        %1731 = vmatprep.subr.bf16.mxu0 0
        %1732 = vmatpush1.bf16.xpose.msra.mxu0 0
        %1733 = vmatprep.subr.bf16.mxu0 0
        %1734 = vmatpush1.bf16.xpose.msra.mxu0 0
        %1735 = vmatprep.subr.bf16.mxu0 0
        %1736 = vmatpush1.bf16.xpose.msra.mxu0 0
        %1737 = vmatprep.subr.bf16.mxu0 0
        %1738 = vmatpush1.bf16.xpose.msra.mxu0 0
        %1739 = vmatprep.subr.bf16.mxu0 0
        %1740 = vmatpush1.bf16.xpose.msra.mxu0 0
        %1741 = vmatprep.subr.bf16.mxu0 0
        %1742 = vmatpush1.bf16.xpose.msra.mxu0 0
        %1743 = vmatprep.subr.bf16.mxu0 0
        %1744 = vmatpush1.bf16.xpose.msra.mxu0 0
        %1745 = vmatprep.subr.bf16.mxu0 0
        %1746 = vmatpush1.bf16.xpose.msra.mxu0 0
        %1747 = vmatprep.subr.bf16.mxu0 0
        %1748 = vmatpush1.bf16.xpose.msra.mxu0 0
        %1749 = vmatprep.mubr.bf16.mxu0 0
        %1750 = vmatmul.mubr.bf16.gmra.mrb[0].mxu0 %v1712
        %v1751 = vpop.f32.mrb[0].mxu0
        %v1752 = vadd.f32 %v1328, %v1751
        %v1753 = vpop.f32.mrb[0].mxu0
        %v1754 = vpop.f32.mrb[0].mxu0
        %v1755 = vadd.f32 %v1329, %v1754
        %v1756 = vpop.f32.mrb[0].mxu0
        %1757 = vdwg.mxu0
        %v1758 = vsel %vm1378, %v1752, -inf
        %1759 = vmax.xlane.f32.xlu0 %v1758
        %v1760 = vpop.xlane.xlu0 %1759
        %v1761 = vsel %vm1378, %v1755, -inf
        %1762 = vmax.xlane.f32.xlu0 %v1761
        %v1763 = vpop.xlane.xlu0 %1762
        %v1764 = vsub.f32 %v1752, %v1760
        %v1765 = vsub.f32 %v1755, %v1763
        %v1766 = vmul.f32 %v1764, 1.442695
        %v1767 = vpow.pop %v1766
        %v1768 = vmul.f32 %v1765, 1.442695
        %v1769 = vpow.pop %v1768
        %v1770 = vsel %vm1378, %v1767, 0.0
        %1771 = vadd.xlane.f32.xlu0 %v1770
        %v1772 = vpop.xlane.xlu0 %1771
        %v1773 = vsel %vm1378, %v1769, 0.0
        %1774 = vadd.xlane.f32.xlu0 %v1773
        %v1775 = vpop.xlane.xlu0 %1774
        %v1776 = vpack.c.bf16 %v1769, %v1767
        %1777 = vrot.lane.b32.xlu0 %v1311, 32
        %v1778 = vpop.permute.xlu0 %1777
        %v1781 = vsel %vm1378, %v1776, 0
        %1783 = vmatprep.subr.bf16.mxu0 0
        %1784 = vmatpush1.bf16.msra.mxu0 %v1778
        %1785 = vmatprep.subr.bf16.mxu0 0
        %1786 = vmatpush1.bf16.msra.mxu0 0
        %1787 = vmatprep.subr.bf16.mxu0 0
        %1788 = vmatpush1.bf16.msra.mxu0 0
        %1789 = vmatprep.subr.bf16.mxu0 0
        %1790 = vmatpush1.bf16.msra.mxu0 0
        %1791 = vmatprep.subr.bf16.mxu0 0
        %1792 = vmatpush1.bf16.msra.mxu0 0
        %1793 = vmatprep.subr.bf16.mxu0 0
        %1794 = vmatpush1.bf16.msra.mxu0 0
        %1795 = vmatprep.subr.bf16.mxu0 0
        %1796 = vmatpush1.bf16.msra.mxu0 0
        %1797 = vmatprep.subr.bf16.mxu0 0
        %1798 = vmatpush1.bf16.msra.mxu0 0
        %1799 = vmatprep.subr.bf16.mxu0 0
        %1800 = vmatpush1.bf16.msra.mxu0 0
        %1801 = vmatprep.subr.bf16.mxu0 0
        %1802 = vmatpush1.bf16.msra.mxu0 0
        %1803 = vmatprep.subr.bf16.mxu0 0
        %1804 = vmatpush1.bf16.msra.mxu0 0
        %1805 = vmatprep.subr.bf16.mxu0 0
        %1806 = vmatpush1.bf16.msra.mxu0 0
        %1807 = vmatprep.subr.bf16.mxu0 0
        %1808 = vmatpush1.bf16.msra.mxu0 0
        %1809 = vmatprep.subr.bf16.mxu0 0
        %1810 = vmatpush1.bf16.msra.mxu0 0
        %1811 = vmatprep.subr.bf16.mxu0 0
        %1812 = vmatpush1.bf16.msra.mxu0 0
        %1813 = vmatprep.subr.bf16.mxu0 0
        %1814 = vmatpush1.bf16.msra.mxu0 0
        %1815 = vmatprep.mubr.bf16.mxu0 0
        %1816 = vmatmul.mubr.bf16.gmra.mrb[0].mxu0 %v1781
        %v1817 = vpop.f32.mrb[0].mxu0
        %v1818 = vadd.f32 0.0, %v1817
        %v1819 = vpop.f32.mrb[0].mxu0
        %v1820 = vpop.f32.mrb[0].mxu0
        %v1821 = vadd.f32 0.0, %v1820
        %v1822 = vpop.f32.mrb[0].mxu0
        %1823 = vdwg.mxu0
        %v1824 = vrcp.pop %v1772
        %v1825 = vrcp.pop %v1775
        %v1826 = vmul.f32 %v1818, %v1824
        %v1827 = vmul.f32 %v1821, %v1825
        %v1828 = vpack.c.bf16 %v1827, %v1826
        %1830 = vrot.lane.b32.xlu0 %v1828, 96
        %v1831 = vpop.permute.xlu0 %1830
        %vm1833 = vcmask 1048320
        %1834 = vst.msk [vmem:[#allocation5] sm:$0xff] %vm1833, %v1831
        %v1836 = vsel %vm1330, %v1304, 0
        %v1839 = vsel %vm1330, %v1308, 0
        %1841 = vmatprep.subr.bf16.mxu0 0
        %1842 = vmatpush1.bf16.xpose.msra.mxu0 %v1839
        %1843 = vmatprep.subr.bf16.mxu0 0
        %1844 = vmatpush1.bf16.xpose.msra.mxu0 0
        %1845 = vmatprep.subr.bf16.mxu0 0
        %1846 = vmatpush1.bf16.xpose.msra.mxu0 0
        %1847 = vmatprep.subr.bf16.mxu0 0
        %1848 = vmatpush1.bf16.xpose.msra.mxu0 0
        %1849 = vmatprep.subr.bf16.mxu0 0
        %1850 = vmatpush1.bf16.xpose.msra.mxu0 0
        %1851 = vmatprep.subr.bf16.mxu0 0
        %1852 = vmatpush1.bf16.xpose.msra.mxu0 0
        %1853 = vmatprep.subr.bf16.mxu0 0
        %1854 = vmatpush1.bf16.xpose.msra.mxu0 0
        %1855 = vmatprep.subr.bf16.mxu0 0
        %1856 = vmatpush1.bf16.xpose.msra.mxu0 0
        %1857 = vmatprep.subr.bf16.mxu0 0
        %1858 = vmatpush1.bf16.xpose.msra.mxu0 0
        %1859 = vmatprep.subr.bf16.mxu0 0
        %1860 = vmatpush1.bf16.xpose.msra.mxu0 0
        %1861 = vmatprep.subr.bf16.mxu0 0
        %1862 = vmatpush1.bf16.xpose.msra.mxu0 0
        %1863 = vmatprep.subr.bf16.mxu0 0
        %1864 = vmatpush1.bf16.xpose.msra.mxu0 0
        %1865 = vmatprep.subr.bf16.mxu0 0
        %1866 = vmatpush1.bf16.xpose.msra.mxu0 0
        %1867 = vmatprep.subr.bf16.mxu0 0
        %1868 = vmatpush1.bf16.xpose.msra.mxu0 0
        %1869 = vmatprep.subr.bf16.mxu0 0
        %1870 = vmatpush1.bf16.xpose.msra.mxu0 0
        %1871 = vmatprep.subr.bf16.mxu0 0
        %1872 = vmatpush1.bf16.xpose.msra.mxu0 0
        %1873 = vmatprep.mubr.bf16.mxu0 0
        %1874 = vmatmul.mubr.bf16.gmra.mrb[0].mxu0 %v1836
        %v1875 = vpop.f32.mrb[0].mxu0
        %v1876 = vadd.f32 %v1328, %v1875
        %v1877 = vpop.f32.mrb[0].mxu0
        %v1878 = vpop.f32.mrb[0].mxu0
        %v1879 = vadd.f32 %v1329, %v1878
        %v1880 = vpop.f32.mrb[0].mxu0
        %1881 = vdwg.mxu0
        %v1882 = vsel %vm1378, %v1876, -inf
        %1883 = vmax.xlane.f32.xlu0 %v1882
        %v1884 = vpop.xlane.xlu0 %1883
        %v1885 = vsel %vm1378, %v1879, -inf
        %1886 = vmax.xlane.f32.xlu0 %v1885
        %v1887 = vpop.xlane.xlu0 %1886
        %v1888 = vsub.f32 %v1876, %v1884
        %v1889 = vsub.f32 %v1879, %v1887
        %v1890 = vmul.f32 %v1888, 1.442695
        %v1891 = vpow.pop %v1890
        %v1892 = vmul.f32 %v1889, 1.442695
        %v1893 = vpow.pop %v1892
        %v1894 = vsel %vm1378, %v1891, 0.0
        %1895 = vadd.xlane.f32.xlu0 %v1894
        %v1896 = vpop.xlane.xlu0 %1895
        %v1897 = vsel %vm1378, %v1893, 0.0
        %1898 = vadd.xlane.f32.xlu0 %v1897
        %v1899 = vpop.xlane.xlu0 %1898
        %v1900 = vpack.c.bf16 %v1893, %v1891
        %v1902 = vsel %vm1378, %v1900, 0
        %1904 = vmatprep.subr.bf16.mxu0 0
        %1905 = vmatpush1.bf16.msra.mxu0 %v1312
        %1906 = vmatprep.subr.bf16.mxu0 0
        %1907 = vmatpush1.bf16.msra.mxu0 0
        %1908 = vmatprep.subr.bf16.mxu0 0
        %1909 = vmatpush1.bf16.msra.mxu0 0
        %1910 = vmatprep.subr.bf16.mxu0 0
        %1911 = vmatpush1.bf16.msra.mxu0 0
        %1912 = vmatprep.subr.bf16.mxu0 0
        %1913 = vmatpush1.bf16.msra.mxu0 0
        %1914 = vmatprep.subr.bf16.mxu0 0
        %1915 = vmatpush1.bf16.msra.mxu0 0
        %1916 = vmatprep.subr.bf16.mxu0 0
        %1917 = vmatpush1.bf16.msra.mxu0 0
        %1918 = vmatprep.subr.bf16.mxu0 0
        %1919 = vmatpush1.bf16.msra.mxu0 0
        %1920 = vmatprep.subr.bf16.mxu0 0
        %1921 = vmatpush1.bf16.msra.mxu0 0
        %1922 = vmatprep.subr.bf16.mxu0 0
        %1923 = vmatpush1.bf16.msra.mxu0 0
        %1924 = vmatprep.subr.bf16.mxu0 0
        %1925 = vmatpush1.bf16.msra.mxu0 0
        %1926 = vmatprep.subr.bf16.mxu0 0
        %1927 = vmatpush1.bf16.msra.mxu0 0
        %1928 = vmatprep.subr.bf16.mxu0 0
        %1929 = vmatpush1.bf16.msra.mxu0 0
        %1930 = vmatprep.subr.bf16.mxu0 0
        %1931 = vmatpush1.bf16.msra.mxu0 0
        %1932 = vmatprep.subr.bf16.mxu0 0
        %1933 = vmatpush1.bf16.msra.mxu0 0
        %1934 = vmatprep.subr.bf16.mxu0 0
        %1935 = vmatpush1.bf16.msra.mxu0 0
        %1936 = vmatprep.mubr.bf16.mxu0 0
        %1937 = vmatmul.mubr.bf16.gmra.mrb[0].mxu0 %v1902
        %v1938 = vpop.f32.mrb[0].mxu0
        %v1939 = vadd.f32 0.0, %v1938
        %v1940 = vpop.f32.mrb[0].mxu0
        %v1941 = vpop.f32.mrb[0].mxu0
        %v1942 = vadd.f32 0.0, %v1941
        %v1943 = vpop.f32.mrb[0].mxu0
        %1944 = vdwg.mxu0
        %v1945 = vrcp.pop %v1896
        %v1946 = vrcp.pop %v1899
        %v1947 = vmul.f32 %v1939, %v1945
        %v1948 = vmul.f32 %v1942, %v1946
        %v1949 = vpack.c.bf16 %v1948, %v1947
        %1950 = vst.msk [vmem:[#allocation5 + $0x8] sm:$0xff] %vm1330, %v1949
        %1952 = vrot.lane.b32.xlu0 %v1304, 96
        %v1953 = vpop.permute.xlu0 %1952
        %1955 = vrot.lane.b32.xlu0 %v1308, 96
        %v1956 = vpop.permute.xlu0 %1955
        %v1958 = vsel %vm1330, %v1953, 0
        %v1961 = vsel %vm1330, %v1956, 0
        %1963 = vmatprep.subr.bf16.mxu0 0
        %1964 = vmatpush1.bf16.xpose.msra.mxu0 %v1961
        %1965 = vmatprep.subr.bf16.mxu0 0
        %1966 = vmatpush1.bf16.xpose.msra.mxu0 0
        %1967 = vmatprep.subr.bf16.mxu0 0
        %1968 = vmatpush1.bf16.xpose.msra.mxu0 0
        %1969 = vmatprep.subr.bf16.mxu0 0
        %1970 = vmatpush1.bf16.xpose.msra.mxu0 0
        %1971 = vmatprep.subr.bf16.mxu0 0
        %1972 = vmatpush1.bf16.xpose.msra.mxu0 0
        %1973 = vmatprep.subr.bf16.mxu0 0
        %1974 = vmatpush1.bf16.xpose.msra.mxu0 0
        %1975 = vmatprep.subr.bf16.mxu0 0
        %1976 = vmatpush1.bf16.xpose.msra.mxu0 0
        %1977 = vmatprep.subr.bf16.mxu0 0
        %1978 = vmatpush1.bf16.xpose.msra.mxu0 0
        %1979 = vmatprep.subr.bf16.mxu0 0
        %1980 = vmatpush1.bf16.xpose.msra.mxu0 0
        %1981 = vmatprep.subr.bf16.mxu0 0
        %1982 = vmatpush1.bf16.xpose.msra.mxu0 0
        %1983 = vmatprep.subr.bf16.mxu0 0
        %1984 = vmatpush1.bf16.xpose.msra.mxu0 0
        %1985 = vmatprep.subr.bf16.mxu0 0
        %1986 = vmatpush1.bf16.xpose.msra.mxu0 0
        %1987 = vmatprep.subr.bf16.mxu0 0
        %1988 = vmatpush1.bf16.xpose.msra.mxu0 0
        %1989 = vmatprep.subr.bf16.mxu0 0
        %1990 = vmatpush1.bf16.xpose.msra.mxu0 0
        %1991 = vmatprep.subr.bf16.mxu0 0
        %1992 = vmatpush1.bf16.xpose.msra.mxu0 0
        %1993 = vmatprep.subr.bf16.mxu0 0
        %1994 = vmatpush1.bf16.xpose.msra.mxu0 0
        %1995 = vmatprep.mubr.bf16.mxu0 0
        %1996 = vmatmul.mubr.bf16.gmra.mrb[0].mxu0 %v1958
        %v1997 = vpop.f32.mrb[0].mxu0
        %v1998 = vadd.f32 %v1328, %v1997
        %v1999 = vpop.f32.mrb[0].mxu0
        %v2000 = vpop.f32.mrb[0].mxu0
        %v2001 = vadd.f32 %v1329, %v2000
        %v2002 = vpop.f32.mrb[0].mxu0
        %2003 = vdwg.mxu0
        %v2004 = vsel %vm1378, %v1998, -inf
        %2005 = vmax.xlane.f32.xlu0 %v2004
        %v2006 = vpop.xlane.xlu0 %2005
        %v2007 = vsel %vm1378, %v2001, -inf
        %2008 = vmax.xlane.f32.xlu0 %v2007
        %v2009 = vpop.xlane.xlu0 %2008
        %v2010 = vsub.f32 %v1998, %v2006
        %v2011 = vsub.f32 %v2001, %v2009
        %v2012 = vmul.f32 %v2010, 1.442695
        %v2013 = vpow.pop %v2012
        %v2014 = vmul.f32 %v2011, 1.442695
        %v2015 = vpow.pop %v2014
        %v2016 = vsel %vm1378, %v2013, 0.0
        %2017 = vadd.xlane.f32.xlu0 %v2016
        %v2018 = vpop.xlane.xlu0 %2017
        %v2019 = vsel %vm1378, %v2015, 0.0
        %2020 = vadd.xlane.f32.xlu0 %v2019
        %v2021 = vpop.xlane.xlu0 %2020
        %v2022 = vpack.c.bf16 %v2015, %v2013
        %2024 = vrot.lane.b32.xlu0 %v1312, 96
        %v2025 = vpop.permute.xlu0 %2024
        %v2028 = vsel %vm1378, %v2022, 0
        %2030 = vmatprep.subr.bf16.mxu0 0
        %2031 = vmatpush1.bf16.msra.mxu0 %v2025
        %2032 = vmatprep.subr.bf16.mxu0 0
        %2033 = vmatpush1.bf16.msra.mxu0 0
        %2034 = vmatprep.subr.bf16.mxu0 0
        %2035 = vmatpush1.bf16.msra.mxu0 0
        %2036 = vmatprep.subr.bf16.mxu0 0
        %2037 = vmatpush1.bf16.msra.mxu0 0
        %2038 = vmatprep.subr.bf16.mxu0 0
        %2039 = vmatpush1.bf16.msra.mxu0 0
        %2040 = vmatprep.subr.bf16.mxu0 0
        %2041 = vmatpush1.bf16.msra.mxu0 0
        %2042 = vmatprep.subr.bf16.mxu0 0
        %2043 = vmatpush1.bf16.msra.mxu0 0
        %2044 = vmatprep.subr.bf16.mxu0 0
        %2045 = vmatpush1.bf16.msra.mxu0 0
        %2046 = vmatprep.subr.bf16.mxu0 0
        %2047 = vmatpush1.bf16.msra.mxu0 0
        %2048 = vmatprep.subr.bf16.mxu0 0
        %2049 = vmatpush1.bf16.msra.mxu0 0
        %2050 = vmatprep.subr.bf16.mxu0 0
        %2051 = vmatpush1.bf16.msra.mxu0 0
        %2052 = vmatprep.subr.bf16.mxu0 0
        %2053 = vmatpush1.bf16.msra.mxu0 0
        %2054 = vmatprep.subr.bf16.mxu0 0
        %2055 = vmatpush1.bf16.msra.mxu0 0
        %2056 = vmatprep.subr.bf16.mxu0 0
        %2057 = vmatpush1.bf16.msra.mxu0 0
        %2058 = vmatprep.subr.bf16.mxu0 0
        %2059 = vmatpush1.bf16.msra.mxu0 0
        %2060 = vmatprep.subr.bf16.mxu0 0
        %2061 = vmatpush1.bf16.msra.mxu0 0
        %2062 = vmatprep.mubr.bf16.mxu0 0
        %2063 = vmatmul.mubr.bf16.gmra.mrb[0].mxu0 %v2028
        %v2064 = vpop.f32.mrb[0].mxu0
        %v2065 = vadd.f32 0.0, %v2064
        %v2066 = vpop.f32.mrb[0].mxu0
        %v2067 = vpop.f32.mrb[0].mxu0
        %v2068 = vadd.f32 0.0, %v2067
        %v2069 = vpop.f32.mrb[0].mxu0
        %2070 = vdwg.mxu0
        %v2071 = vrcp.pop %v2018
        %v2072 = vrcp.pop %v2021
        %v2073 = vmul.f32 %v2065, %v2071
        %v2074 = vmul.f32 %v2068, %v2072
        %v2075 = vpack.c.bf16 %v2074, %v2073
        %2077 = vrot.lane.b32.xlu0 %v2075, 32
        %v2078 = vpop.permute.xlu0 %2077
        %2080 = vst.msk [vmem:[#allocation5 + $0x8] sm:$0xff] %vm1577, %v2078
        %2081 = vrot.lane.b32.xlu0 %v1304, 64
        %v2082 = vpop.permute.xlu0 %2081
        %2083 = vrot.lane.b32.xlu0 %v1308, 64
        %v2084 = vpop.permute.xlu0 %2083
        %v2086 = vsel %vm1330, %v2082, 0
        %v2089 = vsel %vm1330, %v2084, 0
        %2091 = vmatprep.subr.bf16.mxu0 0
        %2092 = vmatpush1.bf16.xpose.msra.mxu0 %v2089
        %2093 = vmatprep.subr.bf16.mxu0 0
        %2094 = vmatpush1.bf16.xpose.msra.mxu0 0
        %2095 = vmatprep.subr.bf16.mxu0 0
        %2096 = vmatpush1.bf16.xpose.msra.mxu0 0
        %2097 = vmatprep.subr.bf16.mxu0 0
        %2098 = vmatpush1.bf16.xpose.msra.mxu0 0
        %2099 = vmatprep.subr.bf16.mxu0 0
        %2100 = vmatpush1.bf16.xpose.msra.mxu0 0
        %2101 = vmatprep.subr.bf16.mxu0 0
        %2102 = vmatpush1.bf16.xpose.msra.mxu0 0
        %2103 = vmatprep.subr.bf16.mxu0 0
        %2104 = vmatpush1.bf16.xpose.msra.mxu0 0
        %2105 = vmatprep.subr.bf16.mxu0 0
        %2106 = vmatpush1.bf16.xpose.msra.mxu0 0
        %2107 = vmatprep.subr.bf16.mxu0 0
        %2108 = vmatpush1.bf16.xpose.msra.mxu0 0
        %2109 = vmatprep.subr.bf16.mxu0 0
        %2110 = vmatpush1.bf16.xpose.msra.mxu0 0
        %2111 = vmatprep.subr.bf16.mxu0 0
        %2112 = vmatpush1.bf16.xpose.msra.mxu0 0
        %2113 = vmatprep.subr.bf16.mxu0 0
        %2114 = vmatpush1.bf16.xpose.msra.mxu0 0
        %2115 = vmatprep.subr.bf16.mxu0 0
        %2116 = vmatpush1.bf16.xpose.msra.mxu0 0
        %2117 = vmatprep.subr.bf16.mxu0 0
        %2118 = vmatpush1.bf16.xpose.msra.mxu0 0
        %2119 = vmatprep.subr.bf16.mxu0 0
        %2120 = vmatpush1.bf16.xpose.msra.mxu0 0
        %2121 = vmatprep.subr.bf16.mxu0 0
        %2122 = vmatpush1.bf16.xpose.msra.mxu0 0
        %2123 = vmatprep.mubr.bf16.mxu0 0
        %2124 = vmatmul.mubr.bf16.gmra.mrb[0].mxu0 %v2086
        %v2125 = vpop.f32.mrb[0].mxu0
        %v2126 = vadd.f32 %v1328, %v2125
        %v2127 = vpop.f32.mrb[0].mxu0
        %v2128 = vpop.f32.mrb[0].mxu0
        %v2129 = vadd.f32 %v1329, %v2128
        %v2130 = vpop.f32.mrb[0].mxu0
        %2131 = vdwg.mxu0
        %v2132 = vsel %vm1378, %v2126, -inf
        %2133 = vmax.xlane.f32.xlu0 %v2132
        %v2134 = vpop.xlane.xlu0 %2133
        %v2135 = vsel %vm1378, %v2129, -inf
        %2136 = vmax.xlane.f32.xlu0 %v2135
        %v2137 = vpop.xlane.xlu0 %2136
        %v2138 = vsub.f32 %v2126, %v2134
        %v2139 = vsub.f32 %v2129, %v2137
        %v2140 = vmul.f32 %v2138, 1.442695
        %v2141 = vpow.pop %v2140
        %v2142 = vmul.f32 %v2139, 1.442695
        %v2143 = vpow.pop %v2142
        %v2144 = vsel %vm1378, %v2141, 0.0
        %2145 = vadd.xlane.f32.xlu0 %v2144
        %v2146 = vpop.xlane.xlu0 %2145
        %v2147 = vsel %vm1378, %v2143, 0.0
        %2148 = vadd.xlane.f32.xlu0 %v2147
        %v2149 = vpop.xlane.xlu0 %2148
        %v2150 = vpack.c.bf16 %v2143, %v2141
        %2151 = vrot.lane.b32.xlu0 %v1312, 64
        %v2152 = vpop.permute.xlu0 %2151
        %v2155 = vsel %vm1378, %v2150, 0
        %2157 = vmatprep.subr.bf16.mxu0 0
        %2158 = vmatpush1.bf16.msra.mxu0 %v2152
        %2159 = vmatprep.subr.bf16.mxu0 0
        %2160 = vmatpush1.bf16.msra.mxu0 0
        %2161 = vmatprep.subr.bf16.mxu0 0
        %2162 = vmatpush1.bf16.msra.mxu0 0
        %2163 = vmatprep.subr.bf16.mxu0 0
        %2164 = vmatpush1.bf16.msra.mxu0 0
        %2165 = vmatprep.subr.bf16.mxu0 0
        %2166 = vmatpush1.bf16.msra.mxu0 0
        %2167 = vmatprep.subr.bf16.mxu0 0
        %2168 = vmatpush1.bf16.msra.mxu0 0
        %2169 = vmatprep.subr.bf16.mxu0 0
        %2170 = vmatpush1.bf16.msra.mxu0 0
        %2171 = vmatprep.subr.bf16.mxu0 0
        %2172 = vmatpush1.bf16.msra.mxu0 0
        %2173 = vmatprep.subr.bf16.mxu0 0
        %2174 = vmatpush1.bf16.msra.mxu0 0
        %2175 = vmatprep.subr.bf16.mxu0 0
        %2176 = vmatpush1.bf16.msra.mxu0 0
        %2177 = vmatprep.subr.bf16.mxu0 0
        %2178 = vmatpush1.bf16.msra.mxu0 0
        %2179 = vmatprep.subr.bf16.mxu0 0
        %2180 = vmatpush1.bf16.msra.mxu0 0
        %2181 = vmatprep.subr.bf16.mxu0 0
        %2182 = vmatpush1.bf16.msra.mxu0 0
        %2183 = vmatprep.subr.bf16.mxu0 0
        %2184 = vmatpush1.bf16.msra.mxu0 0
        %2185 = vmatprep.subr.bf16.mxu0 0
        %2186 = vmatpush1.bf16.msra.mxu0 0
        %2187 = vmatprep.subr.bf16.mxu0 0
        %2188 = vmatpush1.bf16.msra.mxu0 0
        %2189 = vmatprep.mubr.bf16.mxu0 0
        %2190 = vmatmul.mubr.bf16.gmra.mrb[0].mxu0 %v2155
        %v2191 = vpop.f32.mrb[0].mxu0
        %v2192 = vadd.f32 0.0, %v2191
        %v2193 = vpop.f32.mrb[0].mxu0
        %v2194 = vpop.f32.mrb[0].mxu0
        %v2195 = vadd.f32 0.0, %v2194
        %v2196 = vpop.f32.mrb[0].mxu0
        %2197 = vdwg.mxu0
        %v2198 = vrcp.pop %v2146
        %v2199 = vrcp.pop %v2149
        %v2200 = vmul.f32 %v2192, %v2198
        %v2201 = vmul.f32 %v2195, %v2199
        %v2202 = vpack.c.bf16 %v2201, %v2200
        %2204 = vrot.lane.b32.xlu0 %v2202, 64
        %v2205 = vpop.permute.xlu0 %2204
        %2207 = vst.msk [vmem:[#allocation5 + $0x8] sm:$0xff] %vm1705, %v2205
        %2208 = vrot.lane.b32.xlu0 %v1304, 32
        %v2209 = vpop.permute.xlu0 %2208
        %2210 = vrot.lane.b32.xlu0 %v1308, 32
        %v2211 = vpop.permute.xlu0 %2210
        %v2213 = vsel %vm1330, %v2209, 0
        %v2216 = vsel %vm1330, %v2211, 0
        %2218 = vmatprep.subr.bf16.mxu0 0
        %2219 = vmatpush1.bf16.xpose.msra.mxu0 %v2216
        %2220 = vmatprep.subr.bf16.mxu0 0
        %2221 = vmatpush1.bf16.xpose.msra.mxu0 0
        %2222 = vmatprep.subr.bf16.mxu0 0
        %2223 = vmatpush1.bf16.xpose.msra.mxu0 0
        %2224 = vmatprep.subr.bf16.mxu0 0
        %2225 = vmatpush1.bf16.xpose.msra.mxu0 0
        %2226 = vmatprep.subr.bf16.mxu0 0
        %2227 = vmatpush1.bf16.xpose.msra.mxu0 0
        %2228 = vmatprep.subr.bf16.mxu0 0
        %2229 = vmatpush1.bf16.xpose.msra.mxu0 0
        %2230 = vmatprep.subr.bf16.mxu0 0
        %2231 = vmatpush1.bf16.xpose.msra.mxu0 0
        %2232 = vmatprep.subr.bf16.mxu0 0
        %2233 = vmatpush1.bf16.xpose.msra.mxu0 0
        %2234 = vmatprep.subr.bf16.mxu0 0
        %2235 = vmatpush1.bf16.xpose.msra.mxu0 0
        %2236 = vmatprep.subr.bf16.mxu0 0
        %2237 = vmatpush1.bf16.xpose.msra.mxu0 0
        %2238 = vmatprep.subr.bf16.mxu0 0
        %2239 = vmatpush1.bf16.xpose.msra.mxu0 0
        %2240 = vmatprep.subr.bf16.mxu0 0
        %2241 = vmatpush1.bf16.xpose.msra.mxu0 0
        %2242 = vmatprep.subr.bf16.mxu0 0
        %2243 = vmatpush1.bf16.xpose.msra.mxu0 0
        %2244 = vmatprep.subr.bf16.mxu0 0
        %2245 = vmatpush1.bf16.xpose.msra.mxu0 0
        %2246 = vmatprep.subr.bf16.mxu0 0
        %2247 = vmatpush1.bf16.xpose.msra.mxu0 0
        %2248 = vmatprep.subr.bf16.mxu0 0
        %2249 = vmatpush1.bf16.xpose.msra.mxu0 0
        %2250 = vmatprep.mubr.bf16.mxu0 0
        %2251 = vmatmul.mubr.bf16.gmra.mrb[0].mxu0 %v2213
        %v2252 = vpop.f32.mrb[0].mxu0
        %v2253 = vadd.f32 %v1328, %v2252
        %v2254 = vpop.f32.mrb[0].mxu0
        %v2255 = vpop.f32.mrb[0].mxu0
        %v2256 = vadd.f32 %v1329, %v2255
        %v2257 = vpop.f32.mrb[0].mxu0
        %2258 = vdwg.mxu0
        %v2259 = vsel %vm1378, %v2253, -inf
        %2260 = vmax.xlane.f32.xlu0 %v2259
        %v2261 = vpop.xlane.xlu0 %2260
        %v2262 = vsel %vm1378, %v2256, -inf
        %2263 = vmax.xlane.f32.xlu0 %v2262
        %v2264 = vpop.xlane.xlu0 %2263
        %v2265 = vsub.f32 %v2253, %v2261
        %v2266 = vsub.f32 %v2256, %v2264
        %v2267 = vmul.f32 %v2265, 1.442695
        %v2268 = vpow.pop %v2267
        %v2269 = vmul.f32 %v2266, 1.442695
        %v2270 = vpow.pop %v2269
        %v2271 = vsel %vm1378, %v2268, 0.0
        %2272 = vadd.xlane.f32.xlu0 %v2271
        %v2273 = vpop.xlane.xlu0 %2272
        %v2274 = vsel %vm1378, %v2270, 0.0
        %2275 = vadd.xlane.f32.xlu0 %v2274
        %v2276 = vpop.xlane.xlu0 %2275
        %v2277 = vpack.c.bf16 %v2270, %v2268
        %2278 = vrot.lane.b32.xlu0 %v1312, 32
        %v2279 = vpop.permute.xlu0 %2278
        %v2282 = vsel %vm1378, %v2277, 0
        %2284 = vmatprep.subr.bf16.mxu0 0
        %2285 = vmatpush1.bf16.msra.mxu0 %v2279
        %2286 = vmatprep.subr.bf16.mxu0 0
        %2287 = vmatpush1.bf16.msra.mxu0 0
        %2288 = vmatprep.subr.bf16.mxu0 0
        %2289 = vmatpush1.bf16.msra.mxu0 0
        %2290 = vmatprep.subr.bf16.mxu0 0
        %2291 = vmatpush1.bf16.msra.mxu0 0
        %2292 = vmatprep.subr.bf16.mxu0 0
        %2293 = vmatpush1.bf16.msra.mxu0 0
        %2294 = vmatprep.subr.bf16.mxu0 0
        %2295 = vmatpush1.bf16.msra.mxu0 0
        %2296 = vmatprep.subr.bf16.mxu0 0
        %2297 = vmatpush1.bf16.msra.mxu0 0
        %2298 = vmatprep.subr.bf16.mxu0 0
        %2299 = vmatpush1.bf16.msra.mxu0 0
        %2300 = vmatprep.subr.bf16.mxu0 0
        %2301 = vmatpush1.bf16.msra.mxu0 0
        %2302 = vmatprep.subr.bf16.mxu0 0
        %2303 = vmatpush1.bf16.msra.mxu0 0
        %2304 = vmatprep.subr.bf16.mxu0 0
        %2305 = vmatpush1.bf16.msra.mxu0 0
        %2306 = vmatprep.subr.bf16.mxu0 0
        %2307 = vmatpush1.bf16.msra.mxu0 0
        %2308 = vmatprep.subr.bf16.mxu0 0
        %2309 = vmatpush1.bf16.msra.mxu0 0
        %2310 = vmatprep.subr.bf16.mxu0 0
        %2311 = vmatpush1.bf16.msra.mxu0 0
        %2312 = vmatprep.subr.bf16.mxu0 0
        %2313 = vmatpush1.bf16.msra.mxu0 0
        %2314 = vmatprep.subr.bf16.mxu0 0
        %2315 = vmatpush1.bf16.msra.mxu0 0
        %2316 = vmatprep.mubr.bf16.mxu0 0
        %2317 = vmatmul.mubr.bf16.gmra.mrb[0].mxu0 %v2282
        %v2318 = vpop.f32.mrb[0].mxu0
        %v2319 = vadd.f32 0.0, %v2318
        %v2320 = vpop.f32.mrb[0].mxu0
        %v2321 = vpop.f32.mrb[0].mxu0
        %v2322 = vadd.f32 0.0, %v2321
        %v2323 = vpop.f32.mrb[0].mxu0
        %2324 = vdwg.mxu0
        %v2325 = vrcp.pop %v2273
        %v2326 = vrcp.pop %v2276
        %v2327 = vmul.f32 %v2319, %v2325
        %v2328 = vmul.f32 %v2322, %v2326
        %v2329 = vpack.c.bf16 %v2328, %v2327
        %2331 = vrot.lane.b32.xlu0 %v2329, 96
        %v2332 = vpop.permute.xlu0 %2331
        %2334 = vst.msk [vmem:[#allocation5 + $0x8] sm:$0xff] %vm1833, %v2332
        %v2335 = vld [vmem:[#allocation5] sm:$0xff]
        %v2336 = vld [vmem:[#allocation5 + $0x8] sm:$0xff]
        %v2337 = vld [vmem:[#allocation14] sm:$0xff]
        %v2338 = vld [vmem:[#allocation14 + $0x8] sm:$0xff]
        %v2339 = vld [vmem:[#allocation14 + $0x10] sm:$0xff]
        %v2340 = vld [vmem:[#allocation14 + $0x18] sm:$0xff]
        %v2341 = vld [vmem:[#allocation14 + $0x20] sm:$0xff]
        %v2342 = vld [vmem:[#allocation14 + $0x28] sm:$0xff]
        %v2343 = vld [vmem:[#allocation14 + $0x30] sm:$0xff]
        %v2344 = vld [vmem:[#allocation14 + $0x38] sm:$0xff]
        %v2345 = vld [vmem:[#allocation14 + $0x40] sm:$0xff]
        %v2346 = vld [vmem:[#allocation14 + $0x48] sm:$0xff]
        %v2347 = vld [vmem:[#allocation14 + $0x50] sm:$0xff]
        %v2348 = vld [vmem:[#allocation14 + $0x58] sm:$0xff]
        %v2349 = vld [vmem:[#allocation14 + $0x60] sm:$0xff]
        %v2350 = vld [vmem:[#allocation14 + $0x68] sm:$0xff]
        %v2351 = vld [vmem:[#allocation14 + $0x70] sm:$0xff]
        %v2352 = vld [vmem:[#allocation14 + $0x78] sm:$0xff]
        %v2353 = vld [vmem:[#allocation14 + $0x80] sm:$0xff]
        %v2354 = vld [vmem:[#allocation14 + $0x88] sm:$0xff]
        %v2355 = vld [vmem:[#allocation14 + $0x90] sm:$0xff]
        %v2356 = vld [vmem:[#allocation14 + $0x98] sm:$0xff]
        %v2357 = vld [vmem:[#allocation14 + $0xa0] sm:$0xff]
        %v2358 = vld [vmem:[#allocation14 + $0xa8] sm:$0xff]
        %v2359 = vld [vmem:[#allocation14 + $0xb0] sm:$0xff]
        %v2360 = vld [vmem:[#allocation14 + $0xb8] sm:$0xff]
        %v2361 = vld [vmem:[#allocation14 + $0xc0] sm:$0xff]
        %v2362 = vld [vmem:[#allocation14 + $0xc8] sm:$0xff]
        %v2363 = vld [vmem:[#allocation14 + $0xd0] sm:$0xff]
        %v2364 = vld [vmem:[#allocation14 + $0xd8] sm:$0xff]
        %v2365 = vld [vmem:[#allocation14 + $0xe0] sm:$0xff]
        %v2366 = vld [vmem:[#allocation14 + $0xe8] sm:$0xff]
        %v2367 = vld [vmem:[#allocation14 + $0xf0] sm:$0xff]
        %v2368 = vld [vmem:[#allocation14 + $0xf8] sm:$0xff]
        %v2370 = vlaneseq
        %v2371 = vshrl.u32 %v2370, 7
        %v2372 = vsub.s32 0, %v2371
        %v2373 = vrot.slane %v1297, %v2372
        %v2374 = vlaneseq
        %v2375 = vshrl.u32 %v2374, 7
        %v2376 = vsub.s32 1, %v2375
        %v2377 = vrot.slane %v1297, %v2376
        %v2412 = vunpack.c.l.b16 %v2337
        %v2413 = vunpack.c.h.b16 %v2337
        %v2414 = vunpack.c.l.b16 %v2338
        %v2415 = vunpack.c.h.b16 %v2338
        %v2416 = vunpack.c.l.b16 %v2339
        %v2417 = vunpack.c.h.b16 %v2339
        %v2418 = vunpack.c.l.b16 %v2340
        %v2419 = vunpack.c.h.b16 %v2340
        %v2420 = vunpack.c.l.b16 %v2341
        %v2421 = vunpack.c.h.b16 %v2341
        %v2422 = vunpack.c.l.b16 %v2342
        %v2423 = vunpack.c.h.b16 %v2342
        %v2424 = vunpack.c.l.b16 %v2343
        %v2425 = vunpack.c.h.b16 %v2343
        %v2426 = vunpack.c.l.b16 %v2344
        %v2427 = vunpack.c.h.b16 %v2344
        %v2428 = vunpack.c.l.b16 %v2345
        %v2429 = vunpack.c.h.b16 %v2345
        %v2430 = vunpack.c.l.b16 %v2346
        %v2431 = vunpack.c.h.b16 %v2346
        %v2432 = vunpack.c.l.b16 %v2347
        %v2433 = vunpack.c.h.b16 %v2347
        %v2434 = vunpack.c.l.b16 %v2348
        %v2435 = vunpack.c.h.b16 %v2348
        %v2436 = vunpack.c.l.b16 %v2349
        %v2437 = vunpack.c.h.b16 %v2349
        %v2438 = vunpack.c.l.b16 %v2350
        %v2439 = vunpack.c.h.b16 %v2350
        %v2440 = vunpack.c.l.b16 %v2351
        %v2441 = vunpack.c.h.b16 %v2351
        %v2442 = vunpack.c.l.b16 %v2352
        %v2443 = vunpack.c.h.b16 %v2352
        %v2444 = vunpack.c.l.b16 %v2353
        %v2445 = vunpack.c.h.b16 %v2353
        %v2446 = vunpack.c.l.b16 %v2354
        %v2447 = vunpack.c.h.b16 %v2354
        %v2448 = vunpack.c.l.b16 %v2355
        %v2449 = vunpack.c.h.b16 %v2355
        %v2450 = vunpack.c.l.b16 %v2356
        %v2451 = vunpack.c.h.b16 %v2356
        %v2452 = vunpack.c.l.b16 %v2357
        %v2453 = vunpack.c.h.b16 %v2357
        %v2454 = vunpack.c.l.b16 %v2358
        %v2455 = vunpack.c.h.b16 %v2358
        %v2456 = vunpack.c.l.b16 %v2359
        %v2457 = vunpack.c.h.b16 %v2359
        %v2458 = vunpack.c.l.b16 %v2360
        %v2459 = vunpack.c.h.b16 %v2360
        %v2460 = vunpack.c.l.b16 %v2361
        %v2461 = vunpack.c.h.b16 %v2361
        %v2462 = vunpack.c.l.b16 %v2362
        %v2463 = vunpack.c.h.b16 %v2362
        %v2464 = vunpack.c.l.b16 %v2363
        %v2465 = vunpack.c.h.b16 %v2363
        %v2466 = vunpack.c.l.b16 %v2364
        %v2467 = vunpack.c.h.b16 %v2364
        %v2468 = vunpack.c.l.b16 %v2365
        %v2469 = vunpack.c.h.b16 %v2365
        %v2470 = vunpack.c.l.b16 %v2366
        %v2471 = vunpack.c.h.b16 %v2366
        %v2472 = vunpack.c.l.b16 %v2367
        %v2473 = vunpack.c.h.b16 %v2367
        %v2474 = vunpack.c.l.b16 %v2368
        %v2475 = vunpack.c.h.b16 %v2368
        %v2476 = vpack.c.b16 %v2414, %v2412
        %v2477 = vpack.c.b16 %v2415, %v2413
        %v2478 = vpack.c.b16 %v2418, %v2416
        %v2479 = vpack.c.b16 %v2419, %v2417
        %v2480 = vpack.c.b16 %v2422, %v2420
        %v2481 = vpack.c.b16 %v2423, %v2421
        %v2482 = vpack.c.b16 %v2426, %v2424
        %v2483 = vpack.c.b16 %v2427, %v2425
        %v2484 = vpack.c.b16 %v2430, %v2428
        %v2485 = vpack.c.b16 %v2431, %v2429
        %v2486 = vpack.c.b16 %v2434, %v2432
        %v2487 = vpack.c.b16 %v2435, %v2433
        %v2488 = vpack.c.b16 %v2438, %v2436
        %v2489 = vpack.c.b16 %v2439, %v2437
        %v2490 = vpack.c.b16 %v2442, %v2440
        %v2491 = vpack.c.b16 %v2443, %v2441
        %v2492 = vpack.c.b16 %v2446, %v2444
        %v2493 = vpack.c.b16 %v2447, %v2445
        %v2494 = vpack.c.b16 %v2450, %v2448
        %v2495 = vpack.c.b16 %v2451, %v2449
        %v2496 = vpack.c.b16 %v2454, %v2452
        %v2497 = vpack.c.b16 %v2455, %v2453
        %v2498 = vpack.c.b16 %v2458, %v2456
        %v2499 = vpack.c.b16 %v2459, %v2457
        %v2500 = vpack.c.b16 %v2462, %v2460
        %v2501 = vpack.c.b16 %v2463, %v2461
        %v2502 = vpack.c.b16 %v2466, %v2464
        %v2503 = vpack.c.b16 %v2467, %v2465
        %v2504 = vpack.c.b16 %v2470, %v2468
        %v2505 = vpack.c.b16 %v2471, %v2469
        %v2506 = vpack.c.b16 %v2474, %v2472
        %v2507 = vpack.c.b16 %v2475, %v2473
        %2540 = vmatprep.subr.bf16.mxu0 %v2477
        %2541 = vmatpush1.bf16.msra.mxu0 %v2476
        %2542 = vmatprep.subr.bf16.mxu0 %v2479
        %2543 = vmatpush1.bf16.msra.mxu0 %v2478
        %2544 = vmatprep.subr.bf16.mxu0 %v2481
        %2545 = vmatpush1.bf16.msra.mxu0 %v2480
        %2546 = vmatprep.subr.bf16.mxu0 %v2483
        %2547 = vmatpush1.bf16.msra.mxu0 %v2482
        %2548 = vmatprep.subr.bf16.mxu0 %v2485
        %2549 = vmatpush1.bf16.msra.mxu0 %v2484
        %2550 = vmatprep.subr.bf16.mxu0 %v2487
        %2551 = vmatpush1.bf16.msra.mxu0 %v2486
        %2552 = vmatprep.subr.bf16.mxu0 %v2489
        %2553 = vmatpush1.bf16.msra.mxu0 %v2488
        %2554 = vmatprep.subr.bf16.mxu0 %v2491
        %2555 = vmatpush1.bf16.msra.mxu0 %v2490
        %2556 = vmatprep.subr.bf16.mxu0 %v2493
        %2557 = vmatpush1.bf16.msra.mxu0 %v2492
        %2558 = vmatprep.subr.bf16.mxu0 %v2495
        %2559 = vmatpush1.bf16.msra.mxu0 %v2494
        %2560 = vmatprep.subr.bf16.mxu0 %v2497
        %2561 = vmatpush1.bf16.msra.mxu0 %v2496
        %2562 = vmatprep.subr.bf16.mxu0 %v2499
        %2563 = vmatpush1.bf16.msra.mxu0 %v2498
        %2564 = vmatprep.subr.bf16.mxu0 %v2501
        %2565 = vmatpush1.bf16.msra.mxu0 %v2500
        %2566 = vmatprep.subr.bf16.mxu0 %v2503
        %2567 = vmatpush1.bf16.msra.mxu0 %v2502
        %2568 = vmatprep.subr.bf16.mxu0 %v2505
        %2569 = vmatpush1.bf16.msra.mxu0 %v2504
        %2570 = vmatprep.subr.bf16.mxu0 %v2507
        %2571 = vmatpush1.bf16.msra.mxu0 %v2506
        %2572 = vmatprep.mubr.bf16.mxu0 %v2336
        %2573 = vmatmul.mubr.bf16.gmra.mrb[0].mxu0 %v2335
        %v2574 = vpop.f32.mrb[0].mxu0
        %v2575 = vadd.f32 %v2373, %v2574
        %v2576 = vpop.f32.mrb[0].mxu0
        %v2577 = vadd.f32 %v2377, %v2576
        %v2578 = vpop.f32.mrb[0].mxu0
        %v2579 = vadd.f32 %v2373, %v2578
        %v2580 = vpop.f32.mrb[0].mxu0
        %v2581 = vadd.f32 %v2377, %v2580
        %2582 = vdwg.mxu0
        %v2583 = vld [vmem:[%s456] sm:$0xff]
        %v2584 = vld [vmem:[%s456 + $0x8] sm:$0xff]
        %v2585 = vld [vmem:[%s456 + $0x10] sm:$0xff]
        %v2586 = vld [vmem:[%s456 + $0x18] sm:$0xff]
        %v2587 = vadd.f32 %v2575, %v2583
        %v2588 = vadd.f32 %v2577, %v2584
        %v2589 = vadd.f32 %v2579, %v2585
        %v2590 = vadd.f32 %v2581, %v2586
        %v2591 = vadd.f32 %v2587, %v2588
        %2592 = vadd.xlane.f32.xlu0 %v2591
        %v2593 = vpop.xlane.xlu0 %2592
        %v2594 = vadd.f32 %v2589, %v2590
        %2595 = vadd.xlane.f32.xlu0 %v2594
        %v2596 = vpop.xlane.xlu0 %2595
        %v2597 = vrcp.pop 256.0
        %v2598 = vmul.f32 %v2593, %v2597
        %v2599 = vmul.f32 %v2596, %v2597
        %v2600 = vsub.f32 %v2587, %v2598
        %v2601 = vsub.f32 %v2588, %v2598
        %v2602 = vsub.f32 %v2589, %v2599
        %v2603 = vsub.f32 %v2590, %v2599
        %v2604 = vmul.f32 %v2600, %v2600
        %v2605 = vmul.f32 %v2601, %v2601
        %v2606 = vmul.f32 %v2602, %v2602
        %v2607 = vmul.f32 %v2603, %v2603
        %v2608 = vadd.f32 %v2604, %v2605
        %2609 = vadd.xlane.f32.xlu0 %v2608
        %v2610 = vpop.xlane.xlu0 %2609
        %v2611 = vadd.f32 %v2606, %v2607
        %2612 = vadd.xlane.f32.xlu0 %v2611
        %v2613 = vpop.xlane.xlu0 %2612
        %v2614 = vmul.f32 %v2610, %v2597
        %v2615 = vmul.f32 %v2613, %v2597
        %v2616 = vadd.f32 %v2614, 1e-05
        %v2617 = vadd.f32 %v2615, 1e-05
        %v2618 = vrsqrt.pop %v2616
        %v2619 = vrsqrt.pop %v2617
        %v2620 = vmul.f32 %v2600, %v2618
        %v2621 = vmul.f32 %v2601, %v2618
        %v2622 = vmul.f32 %v2602, %v2619
        %v2623 = vmul.f32 %v2603, %v2619
        %v2625 = vlaneseq
        %v2626 = vshrl.u32 %v2625, 7
        %v2627 = vsub.s32 0, %v2626
        %v2628 = vrot.slane %v1298, %v2627
        %v2629 = vlaneseq
        %v2630 = vshrl.u32 %v2629, 7
        %v2631 = vsub.s32 1, %v2630
        %v2632 = vrot.slane %v1298, %v2631
        %v2635 = vmul.f32 %v2620, %v2628
        %v2636 = vmul.f32 %v2621, %v2632
        %v2637 = vmul.f32 %v2622, %v2628
        %v2638 = vmul.f32 %v2623, %v2632
        %v2640 = vlaneseq
        %v2641 = vshrl.u32 %v2640, 7
        %v2642 = vsub.s32 0, %v2641
        %v2643 = vrot.slane %v1299, %v2642
        %v2644 = vlaneseq
        %v2645 = vshrl.u32 %v2644, 7
        %v2646 = vsub.s32 1, %v2645
        %v2647 = vrot.slane %v1299, %v2646
        %v2650 = vadd.f32 %v2635, %v2643
        %v2651 = vadd.f32 %v2636, %v2647
        %v2652 = vadd.f32 %v2637, %v2643
        %v2653 = vadd.f32 %v2638, %v2647
        %2654 = vst [vmem:[%s525] sm:$0xff] %v2650
        %2655 = vst [vmem:[%s525 + $0x8] sm:$0xff] %v2651
        %2656 = vst [vmem:[%s525 + $0x10] sm:$0xff] %v2652
        %2657 = vst [vmem:[%s525 + $0x18] sm:$0xff] %v2653
        %s2658 = sand.u32 %s308, 1
        %s2659 = scalar_lea.sflag [#allocation8], %s2658
        %s2660 = sand.u32 %s308, 1
        %s2661 = smul.addr %s2660, 32
        %s2662 = scalar_lea.vmem [#allocation15], %s2661
        // Predicated region
        $region89: #{tpu_custom_call.1} parent=67 // pred_check
          %p2663 = pneg %p318
        $region90: #{tpu_custom_call.1} parent=67 // pred_check_branch
          %2665 = sbr.rel (%p2663) target = $region92
        $region91: #{tpu_custom_call.1} parent=67 // pred_region
          %s2667 = ssub.s32 512, 512
          %2668 = vsyncadd %s2659, %s2667
          %s2669 = smul.addr %s33, 4
          %s2670 = smul.addr %s2669, 128
          %s2671 = scalar_lea.hbm %s12, %s2670
          %s2672 = sshll.u32 %s2662, 4
          %s2673 = int_to_ptr.vmem [resolvable:$true] %s2672
          %2678 = dma.vmem_to_hbm [thread:$0]  %s2673, 512, %s2671, %s2659, 256, 256, 16
        $region92: #{tpu_custom_call.1} parent=67 // pred_fallthru
          _
      $region68: #{tpu_custom_call.1} parent=5 // pred_fallthru
        _
      %p2679 = scmp.le.s32.totalorder 2, %s28
      // Predicated region
      $region93: #{tpu_custom_call.1} parent=5 // pred_check
        %p2680 = pneg %p2679
      $region94: #{tpu_custom_call.1} parent=5 // pred_check_branch
        %2682 = sbr.rel (%p2680) target = $region96
      $region95: #{tpu_custom_call.1} parent=5 // pred_region
        %s2683 = ssub.s32 %s28, 2
        // Predicated region
        $region97: #{tpu_custom_call.1} parent=95 // pred_check
          %p2684 = pneg %p324
        $region98: #{tpu_custom_call.1} parent=95 // pred_check_branch
          %2686 = sbr.rel (%p2684) target = $region100
        $region99: #{tpu_custom_call.1} parent=95 // pred_region
          %s2687 = sand.u32 %s309, 1
          %s2688 = scalar_lea.sflag [#allocation8], %s2687
          %s2689 = sand.u32 %s309, 1
          %s2690 = smul.addr %s2689, 32
          %s2691 = scalar_lea.vmem [#allocation15], %s2690
          %2692 = dma.done %s2688, 512
        $region100: #{tpu_custom_call.1} parent=95 // pred_fallthru
          _
      $region96: #{tpu_custom_call.1} parent=5 // pred_fallthru
        _
    $region6: #{tpu_custom_call.1} parent=1 // loop_footer
      %s32 = sadd.s32 1, %s28
    $region7: #{tpu_custom_call.1} parent=1 // loop_footer_branch
      %27 = sbr.rel target = $region3
    $region8: #{tpu_custom_call.1} parent=1 // loop_exit
      _
    %2693 = vsyncpa [#allocation7], 1
    %s2694 = scalar_lea.sflag [#allocation7], 1
    %2695 = vsyncpa %s2694, 1
    %2696 = vsyncpa [#allocation10], 1
    %s2697 = scalar_lea.sflag [#allocation10], 1
    %2698 = vsyncpa %s2697, 1
    %2699 = vsyncpa [#allocation13], 1
    %2700 = vsyncpa [#allocation8], 1
    %s2701 = scalar_lea.sflag [#allocation8], 1
    %2702 = vsyncpa %s2701, 1

// kernel: tpu_custom_call.1
$region0: #{tpu_custom_call.1}
  #allocation0 [shape = 'u32[]', space=smem, size = 0x4, offset = 0x4, fixed_abs, tag = 'smem constant byte address 0x4 - core index']
  #allocation1 [shape = 'u32[144,128]{1,0:T(1,128)}', space=vmem, size = 0x12000, scoped, tag = 'internal scratch']
  #allocation2 [shape = 'bf16[16,256]{1,0:T(16,128)(2,1)}', space=vmem, size = 0x2000, scoped, tag = 'scratch operand']
  #allocation3 [shape = 'bf16[16,256]{1,0:T(16,128)(2,1)}', space=vmem, size = 0x2000, scoped, tag = 'scratch operand']
  #allocation4 [shape = 'bf16[16,256]{1,0:T(16,128)(2,1)}', space=vmem, size = 0x2000, scoped, tag = 'scratch operand']
  #allocation5 [shape = 'bf16[16,256]{1,0:T(16,128)(2,1)}', space=vmem, size = 0x2000, scoped, tag = 'scratch operand']
  %s0 = inlined_call_operand.hbm [shape: f32[2,16,256], index: 0, kind: input, shape index: {}]
  %s1 = inlined_call_operand.hbm [shape: f32[2,16,256], index: 1, kind: input, shape index: {}]
  %s2 = inlined_call_operand.vmem [shape: f32[2,1,16], index: 2, kind: input, shape index: {}]
  %s3 = inlined_call_operand.vmem [shape: s8[1,16,16], index: 3, kind: input, shape index: {}]
  %s4 = inlined_call_operand.hbm [shape: bf16[256,512], index: 4, kind: input, shape index: {}]
  %s5 = inlined_call_operand.hbm [shape: bf16[256,256], index: 5, kind: input, shape index: {}]
  %s6 = inlined_call_operand.hbm [shape: bf16[256,256], index: 6, kind: input, shape index: {}]
  %s7 = inlined_call_operand.vmem [shape: f32[1,512], index: 7, kind: input, shape index: {}]
  %s8 = inlined_call_operand.vmem [shape: f32[1,256], index: 8, kind: input, shape index: {}]
  %s9 = inlined_call_operand.vmem [shape: f32[1,256], index: 9, kind: input, shape index: {}]
  %s10 = inlined_call_operand.vmem [shape: f32[1,256], index: 10, kind: input, shape index: {}]
  %s11 = inlined_call_operand.vmem [shape: f32[1,256], index: 11, kind: input, shape index: {}]
  %s12 = inlined_call_operand.hbm [shape: f32[2,16,256], index: 12, kind: output, shape index: {}]
  %s13 = sld [smem:[#allocation0]]
  $region101: #{tpu_custom_call.1} parent=0
    _
  %s15 = ssub.s32 1, %s13
  %s16 = scalar_select 0, %s15, %s13
  $region1: #{tpu_custom_call.1} parent=0
    #allocation6 [shape = 'u8[32768]{0}', space=vmem, size = 0x8000, scoped, tag = 'input window, operand 0']
    #allocation7 [shape = 's32[2]{0}', space=sflag, size = 0x8, scoped, tag = 'scoped memory for tpu_custom_call.1']
    #allocation8 [shape = 's32[2]{0}', space=sflag, size = 0x8, scoped, tag = 'scoped memory for tpu_custom_call.1']
    #allocation9 [shape = 'u8[32768]{0}', space=vmem, size = 0x8000, scoped, tag = 'input window, operand 1']
    #allocation10 [shape = 's32[2]{0}', space=sflag, size = 0x8, scoped, tag = 'scoped memory for tpu_custom_call.1']
    #allocation11 [shape = 'u8[262144]{0}', space=vmem, size = 0x40000, scoped, tag = 'input window, operand 4, single buffered']
    #allocation12 [shape = 'u8[131072]{0}', space=vmem, size = 0x20000, scoped, tag = 'input window, operand 5, single buffered']
    #allocation13 [shape = 's32[1]{0}', space=sflag, size = 0x4, scoped, tag = 'scoped memory for tpu_custom_call.1']
    #allocation14 [shape = 'u8[131072]{0}', space=vmem, size = 0x20000, scoped, tag = 'input window, operand 6, single buffered']
    #allocation15 [shape = 'u8[32768]{0}', space=vmem, size = 0x8000, scoped, tag = 'output window, operand 0']
    %17 = vsyncpa [#allocation7], 0
    %s18 = scalar_lea.sflag [#allocation7], 1
    %19 = vsyncpa %s18, 0
    %20 = vsyncpa [#allocation10], 0
    %s21 = scalar_lea.sflag [#allocation10], 1
    %22 = vsyncpa %s21, 0
    %23 = vsyncpa [#allocation13], 0
    %24 = vsyncpa [#allocation8], 0
    %s25 = scalar_lea.sflag [#allocation8], 1
    %26 = vsyncpa %s25, 0
    loop: start=0, step=1, limit=4
    $region2: #{tpu_custom_call.1} parent=1 // loop_pre_header
      _
    $region3: #{tpu_custom_call.1} parent=1 // loop_header
      %s28 = sphi 0, %s32
      %p29 = scmp.ge.s32.totalorder %s28, 4
      %s38 = sphi 0, %s40
      %s41 = sphi 0, %s38
      %s42 = sphi 0, %s41
      %s58 = sphi 0, %s42
      %s64 = sphi 0, %s66
      %s67 = sphi 0, %s64
      %s68 = sphi 0, %s67
      %s84 = sphi 0, %s68
      %s90 = sphi 0, %s92
      %s93 = sphi 0, %s90
      %s94 = sphi 0, %s93
      %s110 = sphi 0, %s94
      %s114 = sphi 0, %s114
      %s116 = sphi 0, %s114
      %s117 = sphi 0, %s116
      %s131 = sphi 0, %s117
      %s135 = sphi 0, %s135
      %s137 = sphi 0, %s135
      %s138 = sphi 0, %s137
      %s152 = sphi 0, %s138
      %s156 = sphi 0, %s156
      %s158 = sphi 0, %s156
      %s159 = sphi 0, %s158
      %s173 = sphi 0, %s159
      %s177 = sphi 0, %s177
      %s179 = sphi 0, %s177
      %s180 = sphi 0, %s179
      %s194 = sphi 0, %s180
      %s198 = sphi 0, %s198
      %s200 = sphi 0, %s198
      %s201 = sphi 0, %s200
      %s215 = sphi 0, %s201
      %s219 = sphi 0, %s219
      %s221 = sphi 0, %s219
      %s222 = sphi 0, %s221
      %s236 = sphi 0, %s222
      %s240 = sphi 0, %s240
      %s242 = sphi 0, %s240
      %s243 = sphi 0, %s242
      %s257 = sphi 0, %s243
      %s261 = sphi 0, %s261
      %s263 = sphi 0, %s261
      %s264 = sphi 0, %s263
      %s278 = sphi 0, %s264
      %s282 = sphi 0, %s282
      %s284 = sphi 0, %s282
      %s285 = sphi 0, %s284
      %s299 = sphi 0, %s285
      %s305 = sphi 0, %s307
      %s308 = sphi 0, %s305
      %s309 = sphi 0, %s308
      %s325 = sphi 0, %s309
    $region4: #{tpu_custom_call.1} parent=1 // loop_header_branch
      %31 = sbr.rel (%p29) target = $region8
    $region5: #{tpu_custom_call.1} parent=1 // loop_body
      %s33 = ssub.s32 %s28, 1
      %s34 = ssub.s32 %s28, 2
      %s35 = sadd.s32 %s28, 1
      %s36 = ssub.s32 %s28, %s35
      %p37 = scmp.eq.s32.totalorder %s36, 0
      %s39 = sadd.s32 %s38, 1
      %s40 = scalar_select %p37, %s38, %s39
      %p43 = pneg %p37
      %p44 = scmp.eq.s32.totalorder %s28, 1
      %p45 = por %p43, %p44
      %p46 = scmp.ne.s32.totalorder %s38, %s41
      %p47 = scmp.eq.s32.totalorder %s28, 0
      %p48 = por %p46, %p47
      %p49 = scmp.ne.s32.totalorder %s38, %s41
      %p50 = scmp.eq.s32.totalorder %s33, 1
      %p51 = por %p49, %p50
      %p52 = scmp.ne.s32.totalorder %s41, %s42
      %p53 = scmp.eq.s32.totalorder %s33, 0
      %p54 = por %p52, %p53
      %p55 = scmp.ne.s32.totalorder %s41, %s42
      %p56 = scmp.eq.s32.totalorder %s34, 1
      %p57 = por %p55, %p56
      %p59 = scmp.ne.s32.totalorder %s42, %s58
      %p60 = scmp.eq.s32.totalorder %s34, 0
      %p61 = por %p59, %p60
      %s62 = ssub.s32 %s28, %s35
      %p63 = scmp.eq.s32.totalorder %s62, 0
      %s65 = sadd.s32 %s64, 1
      %s66 = scalar_select %p63, %s64, %s65
      %p69 = pneg %p63
      %p70 = scmp.eq.s32.totalorder %s28, 1
      %p71 = por %p69, %p70
      %p72 = scmp.ne.s32.totalorder %s64, %s67
      %p73 = scmp.eq.s32.totalorder %s28, 0
      %p74 = por %p72, %p73
      %p75 = scmp.ne.s32.totalorder %s64, %s67
      %p76 = scmp.eq.s32.totalorder %s33, 1
      %p77 = por %p75, %p76
      %p78 = scmp.ne.s32.totalorder %s67, %s68
      %p79 = scmp.eq.s32.totalorder %s33, 0
      %p80 = por %p78, %p79
      %p81 = scmp.ne.s32.totalorder %s67, %s68
      %p82 = scmp.eq.s32.totalorder %s34, 1
      %p83 = por %p81, %p82
      %p85 = scmp.ne.s32.totalorder %s68, %s84
      %p86 = scmp.eq.s32.totalorder %s34, 0
      %p87 = por %p85, %p86
      %s88 = ssub.s32 %s28, %s35
      %p89 = scmp.eq.s32.totalorder %s88, 0
      %s91 = sadd.s32 %s90, 1
      %s92 = scalar_select %p89, %s90, %s91
      %p95 = pneg %p89
      %p96 = scmp.eq.s32.totalorder %s28, 1
      %p97 = por %p95, %p96
      %p98 = scmp.ne.s32.totalorder %s90, %s93
      %p99 = scmp.eq.s32.totalorder %s28, 0
      %p100 = por %p98, %p99
      %p101 = scmp.ne.s32.totalorder %s90, %s93
      %p102 = scmp.eq.s32.totalorder %s33, 1
      %p103 = por %p101, %p102
      %p104 = scmp.ne.s32.totalorder %s93, %s94
      %p105 = scmp.eq.s32.totalorder %s33, 0
      %p106 = por %p104, %p105
      %p107 = scmp.ne.s32.totalorder %s93, %s94
      %p108 = scmp.eq.s32.totalorder %s34, 1
      %p109 = por %p107, %p108
      %p111 = scmp.ne.s32.totalorder %s94, %s110
      %p112 = scmp.eq.s32.totalorder %s34, 0
      %p113 = por %p111, %p112
      %s115 = sadd.s32 %s114, 1
      %p118 = scmp.eq.s32.totalorder %s28, 1
      %p119 = scmp.ne.s32.totalorder %s114, %s116
      %p120 = scmp.eq.s32.totalorder %s28, 0
      %p121 = por %p119, %p120
      %p122 = scmp.ne.s32.totalorder %s114, %s116
      %p123 = scmp.eq.s32.totalorder %s33, 1
      %p124 = por %p122, %p123
      %p125 = scmp.ne.s32.totalorder %s116, %s117
      %p126 = scmp.eq.s32.totalorder %s33, 0
      %p127 = por %p125, %p126
      %p128 = scmp.ne.s32.totalorder %s116, %s117
      %p129 = scmp.eq.s32.totalorder %s34, 1
      %p130 = por %p128, %p129
      %p132 = scmp.ne.s32.totalorder %s117, %s131
      %p133 = scmp.eq.s32.totalorder %s34, 0
      %p134 = por %p132, %p133
      %s136 = sadd.s32 %s135, 1
      %p139 = scmp.eq.s32.totalorder %s28, 1
      %p140 = scmp.ne.s32.totalorder %s135, %s137
      %p141 = scmp.eq.s32.totalorder %s28, 0
      %p142 = por %p140, %p141
      %p143 = scmp.ne.s32.totalorder %s135, %s137
      %p144 = scmp.eq.s32.totalorder %s33, 1
      %p145 = por %p143, %p144
      %p146 = scmp.ne.s32.totalorder %s137, %s138
      %p147 = scmp.eq.s32.totalorder %s33, 0
      %p148 = por %p146, %p147
      %p149 = scmp.ne.s32.totalorder %s137, %s138
      %p150 = scmp.eq.s32.totalorder %s34, 1
      %p151 = por %p149, %p150
      %p153 = scmp.ne.s32.totalorder %s138, %s152
      %p154 = scmp.eq.s32.totalorder %s34, 0
      %p155 = por %p153, %p154
      %s157 = sadd.s32 %s156, 1
      %p160 = scmp.eq.s32.totalorder %s28, 1
      %p161 = scmp.ne.s32.totalorder %s156, %s158
      %p162 = scmp.eq.s32.totalorder %s28, 0
      %p163 = por %p161, %p162
      %p164 = scmp.ne.s32.totalorder %s156, %s158
      %p165 = scmp.eq.s32.totalorder %s33, 1
      %p166 = por %p164, %p165
      %p167 = scmp.ne.s32.totalorder %s158, %s159
      %p168 = scmp.eq.s32.totalorder %s33, 0
      %p169 = por %p167, %p168
      %p170 = scmp.ne.s32.totalorder %s158, %s159
      %p171 = scmp.eq.s32.totalorder %s34, 1
      %p172 = por %p170, %p171
      %p174 = scmp.ne.s32.totalorder %s159, %s173
      %p175 = scmp.eq.s32.totalorder %s34, 0
      %p176 = por %p174, %p175
      %s178 = sadd.s32 %s177, 1
      %p181 = scmp.eq.s32.totalorder %s28, 1
      %p182 = scmp.ne.s32.totalorder %s177, %s179
      %p183 = scmp.eq.s32.totalorder %s28, 0
      %p184 = por %p182, %p183
      %p185 = scmp.ne.s32.totalorder %s177, %s179
      %p186 = scmp.eq.s32.totalorder %s33, 1
      %p187 = por %p185, %p186
      %p188 = scmp.ne.s32.totalorder %s179, %s180
      %p189 = scmp.eq.s32.totalorder %s33, 0
      %p190 = por %p188, %p189
      %p191 = scmp.ne.s32.totalorder %s179, %s180
      %p192 = scmp.eq.s32.totalorder %s34, 1
      %p193 = por %p191, %p192
      %p195 = scmp.ne.s32.totalorder %s180, %s194
      %p196 = scmp.eq.s32.totalorder %s34, 0
      %p197 = por %p195, %p196
      %s199 = sadd.s32 %s198, 1
      %p202 = scmp.eq.s32.totalorder %s28, 1
      %p203 = scmp.ne.s32.totalorder %s198, %s200
      %p204 = scmp.eq.s32.totalorder %s28, 0
      %p205 = por %p203, %p204
      %p206 = scmp.ne.s32.totalorder %s198, %s200
      %p207 = scmp.eq.s32.totalorder %s33, 1
      %p208 = por %p206, %p207
      %p209 = scmp.ne.s32.totalorder %s200, %s201
      %p210 = scmp.eq.s32.totalorder %s33, 0
      %p211 = por %p209, %p210
      %p212 = scmp.ne.s32.totalorder %s200, %s201
      %p213 = scmp.eq.s32.totalorder %s34, 1
      %p214 = por %p212, %p213
      %p216 = scmp.ne.s32.totalorder %s201, %s215
      %p217 = scmp.eq.s32.totalorder %s34, 0
      %p218 = por %p216, %p217
      %s220 = sadd.s32 %s219, 1
      %p223 = scmp.eq.s32.totalorder %s28, 1
      %p224 = scmp.ne.s32.totalorder %s219, %s221
      %p225 = scmp.eq.s32.totalorder %s28, 0
      %p226 = por %p224, %p225
      %p227 = scmp.ne.s32.totalorder %s219, %s221
      %p228 = scmp.eq.s32.totalorder %s33, 1
      %p229 = por %p227, %p228
      %p230 = scmp.ne.s32.totalorder %s221, %s222
      %p231 = scmp.eq.s32.totalorder %s33, 0
      %p232 = por %p230, %p231
      %p233 = scmp.ne.s32.totalorder %s221, %s222
      %p234 = scmp.eq.s32.totalorder %s34, 1
      %p235 = por %p233, %p234
      %p237 = scmp.ne.s32.totalorder %s222, %s236
      %p238 = scmp.eq.s32.totalorder %s34, 0
      %p239 = por %p237, %p238
      %s241 = sadd.s32 %s240, 1
      %p244 = scmp.eq.s32.totalorder %s28, 1
      %p245 = scmp.ne.s32.totalorder %s240, %s242
      %p246 = scmp.eq.s32.totalorder %s28, 0
      %p247 = por %p245, %p246
      %p248 = scmp.ne.s32.totalorder %s240, %s242
      %p249 = scmp.eq.s32.totalorder %s33, 1
      %p250 = por %p248, %p249
      %p251 = scmp.ne.s32.totalorder %s242, %s243
      %p252 = scmp.eq.s32.totalorder %s33, 0
      %p253 = por %p251, %p252
      %p254 = scmp.ne.s32.totalorder %s242, %s243
      %p255 = scmp.eq.s32.totalorder %s34, 1
      %p256 = por %p254, %p255
      %p258 = scmp.ne.s32.totalorder %s243, %s257
      %p259 = scmp.eq.s32.totalorder %s34, 0
      %p260 = por %p258, %p259
      %s262 = sadd.s32 %s261, 1
      %p265 = scmp.eq.s32.totalorder %s28, 1
      %p266 = scmp.ne.s32.totalorder %s261, %s263
      %p267 = scmp.eq.s32.totalorder %s28, 0
      %p268 = por %p266, %p267
      %p269 = scmp.ne.s32.totalorder %s261, %s263
      %p270 = scmp.eq.s32.totalorder %s33, 1
      %p271 = por %p269, %p270
      %p272 = scmp.ne.s32.totalorder %s263, %s264
      %p273 = scmp.eq.s32.totalorder %s33, 0
      %p274 = por %p272, %p273
      %p275 = scmp.ne.s32.totalorder %s263, %s264
      %p276 = scmp.eq.s32.totalorder %s34, 1
      %p277 = por %p275, %p276
      %p279 = scmp.ne.s32.totalorder %s264, %s278
      %p280 = scmp.eq.s32.totalorder %s34, 0
      %p281 = por %p279, %p280
      %s283 = sadd.s32 %s282, 1
      %p286 = scmp.eq.s32.totalorder %s28, 1
      %p287 = scmp.ne.s32.totalorder %s282, %s284
      %p288 = scmp.eq.s32.totalorder %s28, 0
      %p289 = por %p287, %p288
      %p290 = scmp.ne.s32.totalorder %s282, %s284
      %p291 = scmp.eq.s32.totalorder %s33, 1
      %p292 = por %p290, %p291
      %p293 = scmp.ne.s32.totalorder %s284, %s285
      %p294 = scmp.eq.s32.totalorder %s33, 0
      %p295 = por %p293, %p294
      %p296 = scmp.ne.s32.totalorder %s284, %s285
      %p297 = scmp.eq.s32.totalorder %s34, 1
      %p298 = por %p296, %p297
      %p300 = scmp.ne.s32.totalorder %s285, %s299
      %p301 = scmp.eq.s32.totalorder %s34, 0
      %p302 = por %p300, %p301
      %s303 = ssub.s32 %s28, %s35
      %p304 = scmp.eq.s32.totalorder %s303, 0
      %s306 = sadd.s32 %s305, 1
      %s307 = scalar_select %p304, %s305, %s306
      %p310 = pneg %p304
      %p311 = scmp.eq.s32.totalorder %s28, 1
      %p312 = por %p310, %p311
      %p313 = scmp.ne.s32.totalorder %s305, %s308
      %p314 = scmp.eq.s32.totalorder %s28, 0
      %p315 = por %p313, %p314
      %p316 = scmp.ne.s32.totalorder %s305, %s308
      %p317 = scmp.eq.s32.totalorder %s33, 1
      %p318 = por %p316, %p317
      %p319 = scmp.ne.s32.totalorder %s308, %s309
      %p320 = scmp.eq.s32.totalorder %s33, 0
      %p321 = por %p319, %p320
      %p322 = scmp.ne.s32.totalorder %s308, %s309
      %p323 = scmp.eq.s32.totalorder %s34, 1
      %p324 = por %p322, %p323
      %p326 = scmp.ne.s32.totalorder %s309, %s325
      %p327 = scmp.eq.s32.totalorder %s34, 0
      %p328 = por %p326, %p327
      %p329 = scmp.le.s32.totalorder 1, %s28
      %p330 = scmp.lt.s32.totalorder %s28, 3
      %p331 = pnand %p329, %p330
      %p332 = pneg %p331
      // Predicated region
      $region9: #{tpu_custom_call.1} parent=5 // pred_check
        _
      $region10: #{tpu_custom_call.1} parent=5 // pred_check_branch
        %334 = sbr.rel (%p331) target = $region12
      $region11: #{tpu_custom_call.1} parent=5 // pred_region
        %s335 = ssub.s32 %s28, 1
        // Predicated region
        $region13: #{tpu_custom_call.1} parent=11 // pred_check
          %p336 = pneg %p127
        $region14: #{tpu_custom_call.1} parent=11 // pred_check_branch
          %338 = sbr.rel (%p336) target = $region16
        $region15: #{tpu_custom_call.1} parent=11 // pred_region
          _
        $region16: #{tpu_custom_call.1} parent=11 // pred_fallthru
          _
        // Predicated region
        $region17: #{tpu_custom_call.1} parent=11 // pred_check
          %p339 = pneg %p148
        $region18: #{tpu_custom_call.1} parent=11 // pred_check_branch
          %341 = sbr.rel (%p339) target = $region20
        $region19: #{tpu_custom_call.1} parent=11 // pred_region
          %s343 = ssub.s32 8192, 8192
          %344 = vsyncadd [#allocation10], %s343
          %s345 = sshll.u32 [#allocation11], 4
          %s346 = int_to_ptr.vmem [resolvable:$true] %s345
          %351 = dma.hbm_to_vmem [thread:$0]  %s4, 8192, %s346, [#allocation10], 256, 256, 16
        $region20: #{tpu_custom_call.1} parent=11 // pred_fallthru
          _
        // Predicated region
        $region21: #{tpu_custom_call.1} parent=11 // pred_check
          %p352 = pneg %p169
        $region22: #{tpu_custom_call.1} parent=11 // pred_check_branch
          %354 = sbr.rel (%p352) target = $region24
        $region23: #{tpu_custom_call.1} parent=11 // pred_region
          %s356 = ssub.s32 4096, 4096
          %357 = vsyncadd [#allocation13], %s356
          %s358 = sshll.u32 [#allocation12], 4
          %s359 = int_to_ptr.vmem [resolvable:$true] %s358
          %364 = dma.hbm_to_vmem [thread:$0]  %s5, 4096, %s359, [#allocation13], 128, 128, 8
        $region24: #{tpu_custom_call.1} parent=11 // pred_fallthru
          _
        // Predicated region
        $region25: #{tpu_custom_call.1} parent=11 // pred_check
          %p365 = pneg %p190
        $region26: #{tpu_custom_call.1} parent=11 // pred_check_branch
          %367 = sbr.rel (%p365) target = $region28
        $region27: #{tpu_custom_call.1} parent=11 // pred_region
          %s369 = ssub.s32 4096, 4096
          %370 = vsyncadd [#allocation13], %s369
          %s371 = sshll.u32 [#allocation14], 4
          %s372 = int_to_ptr.vmem [resolvable:$true] %s371
          %377 = dma.hbm_to_vmem [thread:$0]  %s6, 4096, %s372, [#allocation13], 128, 128, 8
        $region28: #{tpu_custom_call.1} parent=11 // pred_fallthru
          _
        // Predicated region
        $region29: #{tpu_custom_call.1} parent=11 // pred_check
          %p378 = pneg %p211
        $region30: #{tpu_custom_call.1} parent=11 // pred_check_branch
          %380 = sbr.rel (%p378) target = $region32
        $region31: #{tpu_custom_call.1} parent=11 // pred_region
          _
        $region32: #{tpu_custom_call.1} parent=11 // pred_fallthru
          _
        // Predicated region
        $region33: #{tpu_custom_call.1} parent=11 // pred_check
          %p381 = pneg %p232
        $region34: #{tpu_custom_call.1} parent=11 // pred_check_branch
          %383 = sbr.rel (%p381) target = $region36
        $region35: #{tpu_custom_call.1} parent=11 // pred_region
          _
        $region36: #{tpu_custom_call.1} parent=11 // pred_fallthru
          _
        // Predicated region
        $region37: #{tpu_custom_call.1} parent=11 // pred_check
          %p384 = pneg %p253
        $region38: #{tpu_custom_call.1} parent=11 // pred_check_branch
          %386 = sbr.rel (%p384) target = $region40
        $region39: #{tpu_custom_call.1} parent=11 // pred_region
          _
        $region40: #{tpu_custom_call.1} parent=11 // pred_fallthru
          _
        // Predicated region
        $region41: #{tpu_custom_call.1} parent=11 // pred_check
          %p387 = pneg %p274
        $region42: #{tpu_custom_call.1} parent=11 // pred_check_branch
          %389 = sbr.rel (%p387) target = $region44
        $region43: #{tpu_custom_call.1} parent=11 // pred_region
          _
        $region44: #{tpu_custom_call.1} parent=11 // pred_fallthru
          _
        // Predicated region
        $region45: #{tpu_custom_call.1} parent=11 // pred_check
          %p390 = pneg %p295
        $region46: #{tpu_custom_call.1} parent=11 // pred_check_branch
          %392 = sbr.rel (%p390) target = $region48
        $region47: #{tpu_custom_call.1} parent=11 // pred_region
          _
        $region48: #{tpu_custom_call.1} parent=11 // pred_fallthru
          _
      $region12: #{tpu_custom_call.1} parent=5 // pred_fallthru
        _
      %p393 = scmp.lt.s32.totalorder %s28, 2
      // Predicated region
      $region49: #{tpu_custom_call.1} parent=5 // pred_check
        %p394 = pneg %p393
      $region50: #{tpu_custom_call.1} parent=5 // pred_check_branch
        %396 = sbr.rel (%p394) target = $region52
      $region51: #{tpu_custom_call.1} parent=5 // pred_region
        // Predicated region
        $region53: #{tpu_custom_call.1} parent=51 // pred_check
          %p397 = pneg %p48
        $region54: #{tpu_custom_call.1} parent=51 // pred_check_branch
          %399 = sbr.rel (%p397) target = $region56
        $region55: #{tpu_custom_call.1} parent=51 // pred_region
          %s400 = sand.u32 %s38, 1
          %s401 = scalar_lea.sflag [#allocation7], %s400
          %s402 = sand.u32 %s38, 1
          %s403 = smul.addr %s402, 32
          %s404 = scalar_lea.vmem [#allocation6], %s403
          %s406 = ssub.s32 512, 512
          %407 = vsyncadd %s401, %s406
          %s408 = smul.addr %s28, 4
          %s409 = smul.addr %s408, 128
          %s410 = scalar_lea.hbm %s0, %s409
          %s411 = sshll.u32 %s404, 4
          %s412 = int_to_ptr.vmem [resolvable:$true] %s411
          %417 = dma.hbm_to_vmem [thread:$0]  %s410, 512, %s412, %s401, 256, 256, 16
        $region56: #{tpu_custom_call.1} parent=51 // pred_fallthru
          _
        // Predicated region
        $region57: #{tpu_custom_call.1} parent=51 // pred_check
          %p418 = pneg %p74
        $region58: #{tpu_custom_call.1} parent=51 // pred_check_branch
          %420 = sbr.rel (%p418) target = $region60
        $region59: #{tpu_custom_call.1} parent=51 // pred_region
          %s421 = sand.u32 %s28, 1
          %s422 = scalar_lea.sflag [#allocation10], %s421
          %s423 = sand.u32 %s64, 1
          %s424 = smul.addr %s423, 32
          %s425 = scalar_lea.vmem [#allocation9], %s424
          %s427 = ssub.s32 512, 512
          %428 = vsyncadd %s422, %s427
          %s429 = smul.addr %s28, 4
          %s430 = smul.addr %s429, 128
          %s431 = scalar_lea.hbm %s1, %s430
          %s432 = sshll.u32 %s425, 4
          %s433 = int_to_ptr.vmem [resolvable:$true] %s432
          %438 = dma.hbm_to_vmem [thread:$0]  %s431, 512, %s433, %s422, 256, 256, 16
        $region60: #{tpu_custom_call.1} parent=51 // pred_fallthru
          _
        // Predicated region
        $region61: #{tpu_custom_call.1} parent=51 // pred_check
          %p439 = pneg %p100
        $region62: #{tpu_custom_call.1} parent=51 // pred_check_branch
          %441 = sbr.rel (%p439) target = $region64
        $region63: #{tpu_custom_call.1} parent=51 // pred_region
          %p442 = scmp.lt.s32.totalorder %s28, 1
          %s443 = scalar_select %p442, %s28, 1
          %s444 = scalar_lea.vmem %s2, %s443
        $region64: #{tpu_custom_call.1} parent=51 // pred_fallthru
          _
      $region52: #{tpu_custom_call.1} parent=5 // pred_fallthru
        _
      %p445 = scmp.le.s32.totalorder 1, %s28
      %p446 = scmp.lt.s32.totalorder %s28, 3
      %p447 = pnand %p445, %p446
      %p448 = pneg %p447
      // Predicated region
      $region65: #{tpu_custom_call.1} parent=5 // pred_check
        _
      $region66: #{tpu_custom_call.1} parent=5 // pred_check_branch
        %450 = sbr.rel (%p447) target = $region68
      $region67: #{tpu_custom_call.1} parent=5 // pred_region
        %s451 = ssub.s32 %s28, 1
        %s452 = sand.u32 %s41, 1
        %s453 = scalar_lea.sflag [#allocation7], %s452
        %s454 = sand.u32 %s41, 1
        %s455 = smul.addr %s454, 32
        %s456 = scalar_lea.vmem [#allocation6], %s455
        // Predicated region
        $region69: #{tpu_custom_call.1} parent=67 // pred_check
          %p457 = pneg %p54
        $region70: #{tpu_custom_call.1} parent=67 // pred_check_branch
          %459 = sbr.rel (%p457) target = $region72
        $region71: #{tpu_custom_call.1} parent=67 // pred_region
          %460 = dma.done %s453, 512
        $region72: #{tpu_custom_call.1} parent=67 // pred_fallthru
          _
        %s461 = sand.u32 %s33, 1
        %s462 = scalar_lea.sflag [#allocation10], %s461
        %s463 = sand.u32 %s67, 1
        %s464 = smul.addr %s463, 32
        %s465 = scalar_lea.vmem [#allocation9], %s464
        // Predicated region
        $region73: #{tpu_custom_call.1} parent=67 // pred_check
          %p466 = pneg %p80
        $region74: #{tpu_custom_call.1} parent=67 // pred_check_branch
          %468 = sbr.rel (%p466) target = $region76
        $region75: #{tpu_custom_call.1} parent=67 // pred_region
          %469 = dma.done %s462, 512
        $region76: #{tpu_custom_call.1} parent=67 // pred_fallthru
          _
        // Predicated region
        $region77: #{tpu_custom_call.1} parent=67 // pred_check
          %p470 = pneg %p148
        $region78: #{tpu_custom_call.1} parent=67 // pred_check_branch
          %472 = sbr.rel (%p470) target = $region80
        $region79: #{tpu_custom_call.1} parent=67 // pred_region
          %473 = dma.done [#allocation10], 8192
        $region80: #{tpu_custom_call.1} parent=67 // pred_fallthru
          _
        // Predicated region
        $region81: #{tpu_custom_call.1} parent=67 // pred_check
          %p474 = pneg %p169
        $region82: #{tpu_custom_call.1} parent=67 // pred_check_branch
          %476 = sbr.rel (%p474) target = $region84
        $region83: #{tpu_custom_call.1} parent=67 // pred_region
          %477 = dma.done [#allocation13], 4096
        $region84: #{tpu_custom_call.1} parent=67 // pred_fallthru
          _
        // Predicated region
        $region85: #{tpu_custom_call.1} parent=67 // pred_check
          %p478 = pneg %p190
        $region86: #{tpu_custom_call.1} parent=67 // pred_check_branch
          %480 = sbr.rel (%p478) target = $region88
        $region87: #{tpu_custom_call.1} parent=67 // pred_region
          %481 = dma.done [#allocation13], 4096
        $region88: #{tpu_custom_call.1} parent=67 // pred_fallthru
          _
        %s482 = sand.u32 %s41, 1
        %s483 = scalar_lea.sflag [#allocation7], %s482
        %s484 = sand.u32 %s41, 1
        %s485 = smul.addr %s484, 32
        %s486 = scalar_lea.vmem [#allocation6], %s485
        %p487 = pneg %p54
        %p488 = pneg %p51
        %s489 = sand.u32 %s33, 1
        %s490 = scalar_lea.sflag [#allocation10], %s489
        %s491 = sand.u32 %s67, 1
        %s492 = smul.addr %s491, 32
        %s493 = scalar_lea.vmem [#allocation9], %s492
        %p494 = pneg %p80
        %p495 = pneg %p77
        %p496 = scmp.lt.s32.totalorder %s33, 1
        %s497 = scalar_select %p496, %s33, 1
        %s498 = scalar_lea.vmem %s2, %s497
        %p499 = pneg %p106
        %p500 = pneg %p103
        %p501 = pneg %p127
        %p502 = pneg %p124
        %p503 = pneg %p148
        %p504 = pneg %p145
        %p505 = pneg %p169
        %p506 = pneg %p166
        %p507 = pneg %p190
        %p508 = pneg %p187
        %p509 = pneg %p211
        %p510 = pneg %p208
        %p511 = pneg %p232
        %p512 = pneg %p229
        %p513 = pneg %p253
        %p514 = pneg %p250
        %p515 = pneg %p274
        %p516 = pneg %p271
        %p517 = pneg %p295
        %p518 = pneg %p292
        %p519 = pneg %p321
        %p520 = pneg %p318
        %s521 = sand.u32 %s308, 1
        %s522 = scalar_lea.sflag [#allocation8], %s521
        %s523 = sand.u32 %s308, 1
        %s524 = smul.addr %s523, 32
        %s525 = scalar_lea.vmem [#allocation15], %s524
        %p526 = scmp.lt.s32.totalorder %s33, 1
        %s527 = scalar_select %p526, %s33, 1
        %s528 = scalar_lea.vmem %s2, %s527
        %v530 = vld [vmem:[%s456] sm:$0xff]
        %v531 = vld [vmem:[%s456 + $0x8] sm:$0xff]
        %v532 = vld [vmem:[%s456 + $0x10] sm:$0xff]
        %v533 = vld [vmem:[%s456 + $0x18] sm:$0xff]
        %v534 = vld [vmem:[%s465] sm:$0xff]
        %v535 = vld [vmem:[%s465 + $0x8] sm:$0xff]
        %v536 = vld [vmem:[%s465 + $0x10] sm:$0xff]
        %v537 = vld [vmem:[%s465 + $0x18] sm:$0xff]
        %v538 = vadd.f32 %v530, %v534
        %v539 = vadd.f32 %v531, %v535
        %v540 = vadd.f32 %v532, %v536
        %v541 = vadd.f32 %v533, %v537
        %v542 = vpack.c.bf16 %v540, %v538
        %v543 = vpack.c.bf16 %v541, %v539
        %v544 = vld [vmem:[#allocation11] sm:$0xff]
        %v545 = vld [vmem:[#allocation11 + $0x8] sm:$0xff]
        %v546 = vld [vmem:[#allocation11 + $0x10] sm:$0xff]
        %v547 = vld [vmem:[#allocation11 + $0x18] sm:$0xff]
        %v548 = vld [vmem:[#allocation11 + $0x20] sm:$0xff]
        %v549 = vld [vmem:[#allocation11 + $0x28] sm:$0xff]
        %v550 = vld [vmem:[#allocation11 + $0x30] sm:$0xff]
        %v551 = vld [vmem:[#allocation11 + $0x38] sm:$0xff]
        %v552 = vld [vmem:[#allocation11 + $0x40] sm:$0xff]
        %v553 = vld [vmem:[#allocation11 + $0x48] sm:$0xff]
        %v554 = vld [vmem:[#allocation11 + $0x50] sm:$0xff]
        %v555 = vld [vmem:[#allocation11 + $0x58] sm:$0xff]
        %v556 = vld [vmem:[#allocation11 + $0x60] sm:$0xff]
        %v557 = vld [vmem:[#allocation11 + $0x68] sm:$0xff]
        %v558 = vld [vmem:[#allocation11 + $0x70] sm:$0xff]
        %v559 = vld [vmem:[#allocation11 + $0x78] sm:$0xff]
        %v560 = vld [vmem:[#allocation11 + $0x80] sm:$0xff]
        %v561 = vld [vmem:[#allocation11 + $0x88] sm:$0xff]
        %v562 = vld [vmem:[#allocation11 + $0x90] sm:$0xff]
        %v563 = vld [vmem:[#allocation11 + $0x98] sm:$0xff]
        %v564 = vld [vmem:[#allocation11 + $0xa0] sm:$0xff]
        %v565 = vld [vmem:[#allocation11 + $0xa8] sm:$0xff]
        %v566 = vld [vmem:[#allocation11 + $0xb0] sm:$0xff]
        %v567 = vld [vmem:[#allocation11 + $0xb8] sm:$0xff]
        %v568 = vld [vmem:[#allocation11 + $0xc0] sm:$0xff]
        %v569 = vld [vmem:[#allocation11 + $0xc8] sm:$0xff]
        %v570 = vld [vmem:[#allocation11 + $0xd0] sm:$0xff]
        %v571 = vld [vmem:[#allocation11 + $0xd8] sm:$0xff]
        %v572 = vld [vmem:[#allocation11 + $0xe0] sm:$0xff]
        %v573 = vld [vmem:[#allocation11 + $0xe8] sm:$0xff]
        %v574 = vld [vmem:[#allocation11 + $0xf0] sm:$0xff]
        %v575 = vld [vmem:[#allocation11 + $0xf8] sm:$0xff]
        %v576 = vld [vmem:[#allocation11 + $0x100] sm:$0xff]
        %v577 = vld [vmem:[#allocation11 + $0x108] sm:$0xff]
        %v578 = vld [vmem:[#allocation11 + $0x110] sm:$0xff]
        %v579 = vld [vmem:[#allocation11 + $0x118] sm:$0xff]
        %v580 = vld [vmem:[#allocation11 + $0x120] sm:$0xff]
        %v581 = vld [vmem:[#allocation11 + $0x128] sm:$0xff]
        %v582 = vld [vmem:[#allocation11 + $0x130] sm:$0xff]
        %v583 = vld [vmem:[#allocation11 + $0x138] sm:$0xff]
        %v584 = vld [vmem:[#allocation11 + $0x140] sm:$0xff]
        %v585 = vld [vmem:[#allocation11 + $0x148] sm:$0xff]
        %v586 = vld [vmem:[#allocation11 + $0x150] sm:$0xff]
        %v587 = vld [vmem:[#allocation11 + $0x158] sm:$0xff]
        %v588 = vld [vmem:[#allocation11 + $0x160] sm:$0xff]
        %v589 = vld [vmem:[#allocation11 + $0x168] sm:$0xff]
        %v590 = vld [vmem:[#allocation11 + $0x170] sm:$0xff]
        %v591 = vld [vmem:[#allocation11 + $0x178] sm:$0xff]
        %v592 = vld [vmem:[#allocation11 + $0x180] sm:$0xff]
        %v593 = vld [vmem:[#allocation11 + $0x188] sm:$0xff]
        %v594 = vld [vmem:[#allocation11 + $0x190] sm:$0xff]
        %v595 = vld [vmem:[#allocation11 + $0x198] sm:$0xff]
        %v596 = vld [vmem:[#allocation11 + $0x1a0] sm:$0xff]
        %v597 = vld [vmem:[#allocation11 + $0x1a8] sm:$0xff]
        %v598 = vld [vmem:[#allocation11 + $0x1b0] sm:$0xff]
        %v599 = vld [vmem:[#allocation11 + $0x1b8] sm:$0xff]
        %v600 = vld [vmem:[#allocation11 + $0x1c0] sm:$0xff]
        %v601 = vld [vmem:[#allocation11 + $0x1c8] sm:$0xff]
        %v602 = vld [vmem:[#allocation11 + $0x1d0] sm:$0xff]
        %v603 = vld [vmem:[#allocation11 + $0x1d8] sm:$0xff]
        %v604 = vld [vmem:[#allocation11 + $0x1e0] sm:$0xff]
        %v605 = vld [vmem:[#allocation11 + $0x1e8] sm:$0xff]
        %v606 = vld [vmem:[#allocation11 + $0x1f0] sm:$0xff]
        %v607 = vld [vmem:[#allocation11 + $0x1f8] sm:$0xff]
        %v608 = vld [vmem:[%s7] sm:$0xf]
        %v610 = vlaneseq
        %v611 = vshrl.u32 %v610, 7
        %v612 = vsub.s32 0, %v611
        %v613 = vrot.slane %v608, %v612
        %v614 = vlaneseq
        %v615 = vshrl.u32 %v614, 7
        %v616 = vsub.s32 1, %v615
        %v617 = vrot.slane %v608, %v616
        %v618 = vlaneseq
        %v619 = vshrl.u32 %v618, 7
        %v620 = vsub.s32 2, %v619
        %v621 = vrot.slane %v608, %v620
        %v622 = vlaneseq
        %v623 = vshrl.u32 %v622, 7
        %v624 = vsub.s32 3, %v623
        %v625 = vrot.slane %v608, %v624
        %v694 = vunpack.c.l.b16 %v544
        %v695 = vunpack.c.h.b16 %v544
        %v696 = vunpack.c.l.b16 %v545
        %v697 = vunpack.c.h.b16 %v545
        %v698 = vunpack.c.l.b16 %v546
        %v699 = vunpack.c.h.b16 %v546
        %v700 = vunpack.c.l.b16 %v547
        %v701 = vunpack.c.h.b16 %v547
        %v702 = vunpack.c.l.b16 %v548
        %v703 = vunpack.c.h.b16 %v548
        %v704 = vunpack.c.l.b16 %v549
        %v705 = vunpack.c.h.b16 %v549
        %v706 = vunpack.c.l.b16 %v550
        %v707 = vunpack.c.h.b16 %v550
        %v708 = vunpack.c.l.b16 %v551
        %v709 = vunpack.c.h.b16 %v551
        %v710 = vunpack.c.l.b16 %v552
        %v711 = vunpack.c.h.b16 %v552
        %v712 = vunpack.c.l.b16 %v553
        %v713 = vunpack.c.h.b16 %v553
        %v714 = vunpack.c.l.b16 %v554
        %v715 = vunpack.c.h.b16 %v554
        %v716 = vunpack.c.l.b16 %v555
        %v717 = vunpack.c.h.b16 %v555
        %v718 = vunpack.c.l.b16 %v556
        %v719 = vunpack.c.h.b16 %v556
        %v720 = vunpack.c.l.b16 %v557
        %v721 = vunpack.c.h.b16 %v557
        %v722 = vunpack.c.l.b16 %v558
        %v723 = vunpack.c.h.b16 %v558
        %v724 = vunpack.c.l.b16 %v559
        %v725 = vunpack.c.h.b16 %v559
        %v726 = vunpack.c.l.b16 %v560
        %v727 = vunpack.c.h.b16 %v560
        %v728 = vunpack.c.l.b16 %v561
        %v729 = vunpack.c.h.b16 %v561
        %v730 = vunpack.c.l.b16 %v562
        %v731 = vunpack.c.h.b16 %v562
        %v732 = vunpack.c.l.b16 %v563
        %v733 = vunpack.c.h.b16 %v563
        %v734 = vunpack.c.l.b16 %v564
        %v735 = vunpack.c.h.b16 %v564
        %v736 = vunpack.c.l.b16 %v565
        %v737 = vunpack.c.h.b16 %v565
        %v738 = vunpack.c.l.b16 %v566
        %v739 = vunpack.c.h.b16 %v566
        %v740 = vunpack.c.l.b16 %v567
        %v741 = vunpack.c.h.b16 %v567
        %v742 = vunpack.c.l.b16 %v568
        %v743 = vunpack.c.h.b16 %v568
        %v744 = vunpack.c.l.b16 %v569
        %v745 = vunpack.c.h.b16 %v569
        %v746 = vunpack.c.l.b16 %v570
        %v747 = vunpack.c.h.b16 %v570
        %v748 = vunpack.c.l.b16 %v571
        %v749 = vunpack.c.h.b16 %v571
        %v750 = vunpack.c.l.b16 %v572
        %v751 = vunpack.c.h.b16 %v572
        %v752 = vunpack.c.l.b16 %v573
        %v753 = vunpack.c.h.b16 %v573
        %v754 = vunpack.c.l.b16 %v574
        %v755 = vunpack.c.h.b16 %v574
        %v756 = vunpack.c.l.b16 %v575
        %v757 = vunpack.c.h.b16 %v575
        %v758 = vunpack.c.l.b16 %v576
        %v759 = vunpack.c.h.b16 %v576
        %v760 = vunpack.c.l.b16 %v577
        %v761 = vunpack.c.h.b16 %v577
        %v762 = vunpack.c.l.b16 %v578
        %v763 = vunpack.c.h.b16 %v578
        %v764 = vunpack.c.l.b16 %v579
        %v765 = vunpack.c.h.b16 %v579
        %v766 = vunpack.c.l.b16 %v580
        %v767 = vunpack.c.h.b16 %v580
        %v768 = vunpack.c.l.b16 %v581
        %v769 = vunpack.c.h.b16 %v581
        %v770 = vunpack.c.l.b16 %v582
        %v771 = vunpack.c.h.b16 %v582
        %v772 = vunpack.c.l.b16 %v583
        %v773 = vunpack.c.h.b16 %v583
        %v774 = vunpack.c.l.b16 %v584
        %v775 = vunpack.c.h.b16 %v584
        %v776 = vunpack.c.l.b16 %v585
        %v777 = vunpack.c.h.b16 %v585
        %v778 = vunpack.c.l.b16 %v586
        %v779 = vunpack.c.h.b16 %v586
        %v780 = vunpack.c.l.b16 %v587
        %v781 = vunpack.c.h.b16 %v587
        %v782 = vunpack.c.l.b16 %v588
        %v783 = vunpack.c.h.b16 %v588
        %v784 = vunpack.c.l.b16 %v589
        %v785 = vunpack.c.h.b16 %v589
        %v786 = vunpack.c.l.b16 %v590
        %v787 = vunpack.c.h.b16 %v590
        %v788 = vunpack.c.l.b16 %v591
        %v789 = vunpack.c.h.b16 %v591
        %v790 = vunpack.c.l.b16 %v592
        %v791 = vunpack.c.h.b16 %v592
        %v792 = vunpack.c.l.b16 %v593
        %v793 = vunpack.c.h.b16 %v593
        %v794 = vunpack.c.l.b16 %v594
        %v795 = vunpack.c.h.b16 %v594
        %v796 = vunpack.c.l.b16 %v595
        %v797 = vunpack.c.h.b16 %v595
        %v798 = vunpack.c.l.b16 %v596
        %v799 = vunpack.c.h.b16 %v596
        %v800 = vunpack.c.l.b16 %v597
        %v801 = vunpack.c.h.b16 %v597
        %v802 = vunpack.c.l.b16 %v598
        %v803 = vunpack.c.h.b16 %v598
        %v804 = vunpack.c.l.b16 %v599
        %v805 = vunpack.c.h.b16 %v599
        %v806 = vunpack.c.l.b16 %v600
        %v807 = vunpack.c.h.b16 %v600
        %v808 = vunpack.c.l.b16 %v601
        %v809 = vunpack.c.h.b16 %v601
        %v810 = vunpack.c.l.b16 %v602
        %v811 = vunpack.c.h.b16 %v602
        %v812 = vunpack.c.l.b16 %v603
        %v813 = vunpack.c.h.b16 %v603
        %v814 = vunpack.c.l.b16 %v604
        %v815 = vunpack.c.h.b16 %v604
        %v816 = vunpack.c.l.b16 %v605
        %v817 = vunpack.c.h.b16 %v605
        %v818 = vunpack.c.l.b16 %v606
        %v819 = vunpack.c.h.b16 %v606
        %v820 = vunpack.c.l.b16 %v607
        %v821 = vunpack.c.h.b16 %v607
        %v822 = vpack.c.b16 %v698, %v694
        %v823 = vpack.c.b16 %v699, %v695
        %v824 = vpack.c.b16 %v700, %v696
        %v825 = vpack.c.b16 %v701, %v697
        %v826 = vpack.c.b16 %v706, %v702
        %v827 = vpack.c.b16 %v707, %v703
        %v828 = vpack.c.b16 %v708, %v704
        %v829 = vpack.c.b16 %v709, %v705
        %v830 = vpack.c.b16 %v714, %v710
        %v831 = vpack.c.b16 %v715, %v711
        %v832 = vpack.c.b16 %v716, %v712
        %v833 = vpack.c.b16 %v717, %v713
        %v834 = vpack.c.b16 %v722, %v718
        %v835 = vpack.c.b16 %v723, %v719
        %v836 = vpack.c.b16 %v724, %v720
        %v837 = vpack.c.b16 %v725, %v721
        %v838 = vpack.c.b16 %v730, %v726
        %v839 = vpack.c.b16 %v731, %v727
        %v840 = vpack.c.b16 %v732, %v728
        %v841 = vpack.c.b16 %v733, %v729
        %v842 = vpack.c.b16 %v738, %v734
        %v843 = vpack.c.b16 %v739, %v735
        %v844 = vpack.c.b16 %v740, %v736
        %v845 = vpack.c.b16 %v741, %v737
        %v846 = vpack.c.b16 %v746, %v742
        %v847 = vpack.c.b16 %v747, %v743
        %v848 = vpack.c.b16 %v748, %v744
        %v849 = vpack.c.b16 %v749, %v745
        %v850 = vpack.c.b16 %v754, %v750
        %v851 = vpack.c.b16 %v755, %v751
        %v852 = vpack.c.b16 %v756, %v752
        %v853 = vpack.c.b16 %v757, %v753
        %v854 = vpack.c.b16 %v762, %v758
        %v855 = vpack.c.b16 %v763, %v759
        %v856 = vpack.c.b16 %v764, %v760
        %v857 = vpack.c.b16 %v765, %v761
        %v858 = vpack.c.b16 %v770, %v766
        %v859 = vpack.c.b16 %v771, %v767
        %v860 = vpack.c.b16 %v772, %v768
        %v861 = vpack.c.b16 %v773, %v769
        %v862 = vpack.c.b16 %v778, %v774
        %v863 = vpack.c.b16 %v779, %v775
        %v864 = vpack.c.b16 %v780, %v776
        %v865 = vpack.c.b16 %v781, %v777
        %v866 = vpack.c.b16 %v786, %v782
        %v867 = vpack.c.b16 %v787, %v783
        %v868 = vpack.c.b16 %v788, %v784
        %v869 = vpack.c.b16 %v789, %v785
        %v870 = vpack.c.b16 %v794, %v790
        %v871 = vpack.c.b16 %v795, %v791
        %v872 = vpack.c.b16 %v796, %v792
        %v873 = vpack.c.b16 %v797, %v793
        %v874 = vpack.c.b16 %v802, %v798
        %v875 = vpack.c.b16 %v803, %v799
        %v876 = vpack.c.b16 %v804, %v800
        %v877 = vpack.c.b16 %v805, %v801
        %v878 = vpack.c.b16 %v810, %v806
        %v879 = vpack.c.b16 %v811, %v807
        %v880 = vpack.c.b16 %v812, %v808
        %v881 = vpack.c.b16 %v813, %v809
        %v882 = vpack.c.b16 %v818, %v814
        %v883 = vpack.c.b16 %v819, %v815
        %v884 = vpack.c.b16 %v820, %v816
        %v885 = vpack.c.b16 %v821, %v817
        %950 = vmatprep.subr.bf16.mxu0 %v823
        %951 = vmatpush1.bf16.msra.mxu0 %v822
        %952 = vmatprep.subr.bf16.mxu0 %v827
        %953 = vmatpush1.bf16.msra.mxu0 %v826
        %954 = vmatprep.subr.bf16.mxu0 %v831
        %955 = vmatpush1.bf16.msra.mxu0 %v830
        %956 = vmatprep.subr.bf16.mxu0 %v835
        %957 = vmatpush1.bf16.msra.mxu0 %v834
        %958 = vmatprep.subr.bf16.mxu0 %v839
        %959 = vmatpush1.bf16.msra.mxu0 %v838
        %960 = vmatprep.subr.bf16.mxu0 %v843
        %961 = vmatpush1.bf16.msra.mxu0 %v842
        %962 = vmatprep.subr.bf16.mxu0 %v847
        %963 = vmatpush1.bf16.msra.mxu0 %v846
        %964 = vmatprep.subr.bf16.mxu0 %v851
        %965 = vmatpush1.bf16.msra.mxu0 %v850
        %966 = vmatprep.subr.bf16.mxu0 %v855
        %967 = vmatpush1.bf16.msra.mxu0 %v854
        %968 = vmatprep.subr.bf16.mxu0 %v859
        %969 = vmatpush1.bf16.msra.mxu0 %v858
        %970 = vmatprep.subr.bf16.mxu0 %v863
        %971 = vmatpush1.bf16.msra.mxu0 %v862
        %972 = vmatprep.subr.bf16.mxu0 %v867
        %973 = vmatpush1.bf16.msra.mxu0 %v866
        %974 = vmatprep.subr.bf16.mxu0 %v871
        %975 = vmatpush1.bf16.msra.mxu0 %v870
        %976 = vmatprep.subr.bf16.mxu0 %v875
        %977 = vmatpush1.bf16.msra.mxu0 %v874
        %978 = vmatprep.subr.bf16.mxu0 %v879
        %979 = vmatpush1.bf16.msra.mxu0 %v878
        %980 = vmatprep.subr.bf16.mxu0 %v883
        %981 = vmatpush1.bf16.msra.mxu0 %v882
        %982 = vmatprep.mubr.bf16.mxu0 %v543
        %983 = vmatmul.mubr.bf16.gmra.mrb[0].mxu0 %v542
        %v984 = vpop.f32.mrb[0].mxu0
        %v985 = vadd.f32 %v613, %v984
        %v986 = vpop.f32.mrb[0].mxu0
        %v987 = vadd.f32 %v617, %v986
        %v988 = vpop.f32.mrb[0].mxu0
        %v989 = vadd.f32 %v613, %v988
        %v990 = vpop.f32.mrb[0].mxu0
        %v991 = vadd.f32 %v617, %v990
        %992 = vdwg.mxu0
        %993 = vmatprep.subr.bf16.mxu0 %v825
        %994 = vmatpush1.bf16.msra.mxu0 %v824
        %995 = vmatprep.subr.bf16.mxu0 %v829
        %996 = vmatpush1.bf16.msra.mxu0 %v828
        %997 = vmatprep.subr.bf16.mxu0 %v833
        %998 = vmatpush1.bf16.msra.mxu0 %v832
        %999 = vmatprep.subr.bf16.mxu0 %v837
        %1000 = vmatpush1.bf16.msra.mxu0 %v836
        %1001 = vmatprep.subr.bf16.mxu0 %v841
        %1002 = vmatpush1.bf16.msra.mxu0 %v840
        %1003 = vmatprep.subr.bf16.mxu0 %v845
        %1004 = vmatpush1.bf16.msra.mxu0 %v844
        %1005 = vmatprep.subr.bf16.mxu0 %v849
        %1006 = vmatpush1.bf16.msra.mxu0 %v848
        %1007 = vmatprep.subr.bf16.mxu0 %v853
        %1008 = vmatpush1.bf16.msra.mxu0 %v852
        %1009 = vmatprep.subr.bf16.mxu0 %v857
        %1010 = vmatpush1.bf16.msra.mxu0 %v856
        %1011 = vmatprep.subr.bf16.mxu0 %v861
        %1012 = vmatpush1.bf16.msra.mxu0 %v860
        %1013 = vmatprep.subr.bf16.mxu0 %v865
        %1014 = vmatpush1.bf16.msra.mxu0 %v864
        %1015 = vmatprep.subr.bf16.mxu0 %v869
        %1016 = vmatpush1.bf16.msra.mxu0 %v868
        %1017 = vmatprep.subr.bf16.mxu0 %v873
        %1018 = vmatpush1.bf16.msra.mxu0 %v872
        %1019 = vmatprep.subr.bf16.mxu0 %v877
        %1020 = vmatpush1.bf16.msra.mxu0 %v876
        %1021 = vmatprep.subr.bf16.mxu0 %v881
        %1022 = vmatpush1.bf16.msra.mxu0 %v880
        %1023 = vmatprep.subr.bf16.mxu0 %v885
        %1024 = vmatpush1.bf16.msra.mxu0 %v884
        %1025 = vmatprep.mubr.bf16.mxu0 %v543
        %1026 = vmatmul.mubr.bf16.gmra.mrb[0].mxu0 %v542
        %v1027 = vpop.f32.mrb[0].mxu0
        %v1028 = vadd.f32 %v621, %v1027
        %v1029 = vpop.f32.mrb[0].mxu0
        %v1030 = vadd.f32 %v625, %v1029
        %v1031 = vpop.f32.mrb[0].mxu0
        %v1032 = vadd.f32 %v621, %v1031
        %v1033 = vpop.f32.mrb[0].mxu0
        %v1034 = vadd.f32 %v625, %v1033
        %1035 = vdwg.mxu0
        %v1036 = vpack.c.bf16 %v989, %v985
        %v1037 = vpack.c.bf16 %v991, %v987
        %1038 = vst [vmem:[#allocation2] sm:$0xff] %v1036
        %1039 = vst [vmem:[#allocation2 + $0x8] sm:$0xff] %v1037
        %v1040 = vpack.c.bf16 %v1032, %v1028
        %v1041 = vpack.c.bf16 %v1034, %v1030
        %1042 = vst [vmem:[#allocation3] sm:$0xff] %v1040
        %1043 = vst [vmem:[#allocation3 + $0x8] sm:$0xff] %v1041
        %v1044 = vpack.c.bf16 %v532, %v530
        %v1045 = vpack.c.bf16 %v533, %v531
        %v1046 = vld [vmem:[#allocation12] sm:$0xff]
        %v1047 = vld [vmem:[#allocation12 + $0x8] sm:$0xff]
        %v1048 = vld [vmem:[#allocation12 + $0x10] sm:$0xff]
        %v1049 = vld [vmem:[#allocation12 + $0x18] sm:$0xff]
        %v1050 = vld [vmem:[#allocation12 + $0x20] sm:$0xff]
        %v1051 = vld [vmem:[#allocation12 + $0x28] sm:$0xff]
        %v1052 = vld [vmem:[#allocation12 + $0x30] sm:$0xff]
        %v1053 = vld [vmem:[#allocation12 + $0x38] sm:$0xff]
        %v1054 = vld [vmem:[#allocation12 + $0x40] sm:$0xff]
        %v1055 = vld [vmem:[#allocation12 + $0x48] sm:$0xff]
        %v1056 = vld [vmem:[#allocation12 + $0x50] sm:$0xff]
        %v1057 = vld [vmem:[#allocation12 + $0x58] sm:$0xff]
        %v1058 = vld [vmem:[#allocation12 + $0x60] sm:$0xff]
        %v1059 = vld [vmem:[#allocation12 + $0x68] sm:$0xff]
        %v1060 = vld [vmem:[#allocation12 + $0x70] sm:$0xff]
        %v1061 = vld [vmem:[#allocation12 + $0x78] sm:$0xff]
        %v1062 = vld [vmem:[#allocation12 + $0x80] sm:$0xff]
        %v1063 = vld [vmem:[#allocation12 + $0x88] sm:$0xff]
        %v1064 = vld [vmem:[#allocation12 + $0x90] sm:$0xff]
        %v1065 = vld [vmem:[#allocation12 + $0x98] sm:$0xff]
        %v1066 = vld [vmem:[#allocation12 + $0xa0] sm:$0xff]
        %v1067 = vld [vmem:[#allocation12 + $0xa8] sm:$0xff]
        %v1068 = vld [vmem:[#allocation12 + $0xb0] sm:$0xff]
        %v1069 = vld [vmem:[#allocation12 + $0xb8] sm:$0xff]
        %v1070 = vld [vmem:[#allocation12 + $0xc0] sm:$0xff]
        %v1071 = vld [vmem:[#allocation12 + $0xc8] sm:$0xff]
        %v1072 = vld [vmem:[#allocation12 + $0xd0] sm:$0xff]
        %v1073 = vld [vmem:[#allocation12 + $0xd8] sm:$0xff]
        %v1074 = vld [vmem:[#allocation12 + $0xe0] sm:$0xff]
        %v1075 = vld [vmem:[#allocation12 + $0xe8] sm:$0xff]
        %v1076 = vld [vmem:[#allocation12 + $0xf0] sm:$0xff]
        %v1077 = vld [vmem:[#allocation12 + $0xf8] sm:$0xff]
        %v1078 = vld [vmem:[%s8] sm:$0x3]
        %v1080 = vlaneseq
        %v1081 = vshrl.u32 %v1080, 7
        %v1082 = vsub.s32 0, %v1081
        %v1083 = vrot.slane %v1078, %v1082
        %v1084 = vlaneseq
        %v1085 = vshrl.u32 %v1084, 7
        %v1086 = vsub.s32 1, %v1085
        %v1087 = vrot.slane %v1078, %v1086
        %v1122 = vunpack.c.l.b16 %v1046
        %v1123 = vunpack.c.h.b16 %v1046
        %v1124 = vunpack.c.l.b16 %v1047
        %v1125 = vunpack.c.h.b16 %v1047
        %v1126 = vunpack.c.l.b16 %v1048
        %v1127 = vunpack.c.h.b16 %v1048
        %v1128 = vunpack.c.l.b16 %v1049
        %v1129 = vunpack.c.h.b16 %v1049
        %v1130 = vunpack.c.l.b16 %v1050
        %v1131 = vunpack.c.h.b16 %v1050
        %v1132 = vunpack.c.l.b16 %v1051
        %v1133 = vunpack.c.h.b16 %v1051
        %v1134 = vunpack.c.l.b16 %v1052
        %v1135 = vunpack.c.h.b16 %v1052
        %v1136 = vunpack.c.l.b16 %v1053
        %v1137 = vunpack.c.h.b16 %v1053
        %v1138 = vunpack.c.l.b16 %v1054
        %v1139 = vunpack.c.h.b16 %v1054
        %v1140 = vunpack.c.l.b16 %v1055
        %v1141 = vunpack.c.h.b16 %v1055
        %v1142 = vunpack.c.l.b16 %v1056
        %v1143 = vunpack.c.h.b16 %v1056
        %v1144 = vunpack.c.l.b16 %v1057
        %v1145 = vunpack.c.h.b16 %v1057
        %v1146 = vunpack.c.l.b16 %v1058
        %v1147 = vunpack.c.h.b16 %v1058
        %v1148 = vunpack.c.l.b16 %v1059
        %v1149 = vunpack.c.h.b16 %v1059
        %v1150 = vunpack.c.l.b16 %v1060
        %v1151 = vunpack.c.h.b16 %v1060
        %v1152 = vunpack.c.l.b16 %v1061
        %v1153 = vunpack.c.h.b16 %v1061
        %v1154 = vunpack.c.l.b16 %v1062
        %v1155 = vunpack.c.h.b16 %v1062
        %v1156 = vunpack.c.l.b16 %v1063
        %v1157 = vunpack.c.h.b16 %v1063
        %v1158 = vunpack.c.l.b16 %v1064
        %v1159 = vunpack.c.h.b16 %v1064
        %v1160 = vunpack.c.l.b16 %v1065
        %v1161 = vunpack.c.h.b16 %v1065
        %v1162 = vunpack.c.l.b16 %v1066
        %v1163 = vunpack.c.h.b16 %v1066
        %v1164 = vunpack.c.l.b16 %v1067
        %v1165 = vunpack.c.h.b16 %v1067
        %v1166 = vunpack.c.l.b16 %v1068
        %v1167 = vunpack.c.h.b16 %v1068
        %v1168 = vunpack.c.l.b16 %v1069
        %v1169 = vunpack.c.h.b16 %v1069
        %v1170 = vunpack.c.l.b16 %v1070
        %v1171 = vunpack.c.h.b16 %v1070
        %v1172 = vunpack.c.l.b16 %v1071
        %v1173 = vunpack.c.h.b16 %v1071
        %v1174 = vunpack.c.l.b16 %v1072
        %v1175 = vunpack.c.h.b16 %v1072
        %v1176 = vunpack.c.l.b16 %v1073
        %v1177 = vunpack.c.h.b16 %v1073
        %v1178 = vunpack.c.l.b16 %v1074
        %v1179 = vunpack.c.h.b16 %v1074
        %v1180 = vunpack.c.l.b16 %v1075
        %v1181 = vunpack.c.h.b16 %v1075
        %v1182 = vunpack.c.l.b16 %v1076
        %v1183 = vunpack.c.h.b16 %v1076
        %v1184 = vunpack.c.l.b16 %v1077
        %v1185 = vunpack.c.h.b16 %v1077
        %v1186 = vpack.c.b16 %v1124, %v1122
        %v1187 = vpack.c.b16 %v1125, %v1123
        %v1188 = vpack.c.b16 %v1128, %v1126
        %v1189 = vpack.c.b16 %v1129, %v1127
        %v1190 = vpack.c.b16 %v1132, %v1130
        %v1191 = vpack.c.b16 %v1133, %v1131
        %v1192 = vpack.c.b16 %v1136, %v1134
        %v1193 = vpack.c.b16 %v1137, %v1135
        %v1194 = vpack.c.b16 %v1140, %v1138
        %v1195 = vpack.c.b16 %v1141, %v1139
        %v1196 = vpack.c.b16 %v1144, %v1142
        %v1197 = vpack.c.b16 %v1145, %v1143
        %v1198 = vpack.c.b16 %v1148, %v1146
        %v1199 = vpack.c.b16 %v1149, %v1147
        %v1200 = vpack.c.b16 %v1152, %v1150
        %v1201 = vpack.c.b16 %v1153, %v1151
        %v1202 = vpack.c.b16 %v1156, %v1154
        %v1203 = vpack.c.b16 %v1157, %v1155
        %v1204 = vpack.c.b16 %v1160, %v1158
        %v1205 = vpack.c.b16 %v1161, %v1159
        %v1206 = vpack.c.b16 %v1164, %v1162
        %v1207 = vpack.c.b16 %v1165, %v1163
        %v1208 = vpack.c.b16 %v1168, %v1166
        %v1209 = vpack.c.b16 %v1169, %v1167
        %v1210 = vpack.c.b16 %v1172, %v1170
        %v1211 = vpack.c.b16 %v1173, %v1171
        %v1212 = vpack.c.b16 %v1176, %v1174
        %v1213 = vpack.c.b16 %v1177, %v1175
        %v1214 = vpack.c.b16 %v1180, %v1178
        %v1215 = vpack.c.b16 %v1181, %v1179
        %v1216 = vpack.c.b16 %v1184, %v1182
        %v1217 = vpack.c.b16 %v1185, %v1183
        %1250 = vmatprep.subr.bf16.mxu0 %v1187
        %1251 = vmatpush1.bf16.msra.mxu0 %v1186
        %1252 = vmatprep.subr.bf16.mxu0 %v1189
        %1253 = vmatpush1.bf16.msra.mxu0 %v1188
        %1254 = vmatprep.subr.bf16.mxu0 %v1191
        %1255 = vmatpush1.bf16.msra.mxu0 %v1190
        %1256 = vmatprep.subr.bf16.mxu0 %v1193
        %1257 = vmatpush1.bf16.msra.mxu0 %v1192
        %1258 = vmatprep.subr.bf16.mxu0 %v1195
        %1259 = vmatpush1.bf16.msra.mxu0 %v1194
        %1260 = vmatprep.subr.bf16.mxu0 %v1197
        %1261 = vmatpush1.bf16.msra.mxu0 %v1196
        %1262 = vmatprep.subr.bf16.mxu0 %v1199
        %1263 = vmatpush1.bf16.msra.mxu0 %v1198
        %1264 = vmatprep.subr.bf16.mxu0 %v1201
        %1265 = vmatpush1.bf16.msra.mxu0 %v1200
        %1266 = vmatprep.subr.bf16.mxu0 %v1203
        %1267 = vmatpush1.bf16.msra.mxu0 %v1202
        %1268 = vmatprep.subr.bf16.mxu0 %v1205
        %1269 = vmatpush1.bf16.msra.mxu0 %v1204
        %1270 = vmatprep.subr.bf16.mxu0 %v1207
        %1271 = vmatpush1.bf16.msra.mxu0 %v1206
        %1272 = vmatprep.subr.bf16.mxu0 %v1209
        %1273 = vmatpush1.bf16.msra.mxu0 %v1208
        %1274 = vmatprep.subr.bf16.mxu0 %v1211
        %1275 = vmatpush1.bf16.msra.mxu0 %v1210
        %1276 = vmatprep.subr.bf16.mxu0 %v1213
        %1277 = vmatpush1.bf16.msra.mxu0 %v1212
        %1278 = vmatprep.subr.bf16.mxu0 %v1215
        %1279 = vmatpush1.bf16.msra.mxu0 %v1214
        %1280 = vmatprep.subr.bf16.mxu0 %v1217
        %1281 = vmatpush1.bf16.msra.mxu0 %v1216
        %1282 = vmatprep.mubr.bf16.mxu0 %v1045
        %1283 = vmatmul.mubr.bf16.gmra.mrb[0].mxu0 %v1044
        %v1284 = vpop.f32.mrb[0].mxu0
        %v1285 = vadd.f32 %v1083, %v1284
        %v1286 = vpop.f32.mrb[0].mxu0
        %v1287 = vadd.f32 %v1087, %v1286
        %v1288 = vpop.f32.mrb[0].mxu0
        %v1289 = vadd.f32 %v1083, %v1288
        %v1290 = vpop.f32.mrb[0].mxu0
        %v1291 = vadd.f32 %v1087, %v1290
        %1292 = vdwg.mxu0
        %v1293 = vpack.c.bf16 %v1289, %v1285
        %v1294 = vpack.c.bf16 %v1291, %v1287
        %1295 = vst [vmem:[#allocation4] sm:$0xff] %v1293
        %1296 = vst [vmem:[#allocation4 + $0x8] sm:$0xff] %v1294
        %v1297 = vld [vmem:[%s9] sm:$0x3]
        %v1298 = vld [vmem:[%s10] sm:$0x3]
        %v1299 = vld [vmem:[%s11] sm:$0x3]
        %s1300 = smul.u32 0, 2
        %s1301 = smul.addr %s1300, 8
        %s1302 = scalar_lea.vmem [#allocation2], %s1301
        %v1303 = vld [vmem:[%s1302] sm:$0xff]
        %v1304 = vld [vmem:[%s1302 + $0x8] sm:$0xff]
        %s1305 = smul.addr %s1300, 8
        %s1306 = scalar_lea.vmem [#allocation3], %s1305
        %v1307 = vld [vmem:[%s1306] sm:$0xff]
        %v1308 = vld [vmem:[%s1306 + $0x8] sm:$0xff]
        %s1309 = smul.addr %s1300, 8
        %s1310 = scalar_lea.vmem [#allocation4], %s1309
        %v1311 = vld [vmem:[%s1310] sm:$0xff]
        %v1312 = vld [vmem:[%s1310 + $0x8] sm:$0xff]
        %v1313 = vld [vmem:[%s3] sm:$0x3]
        %v1314 = vld [vmem:[%s3 + $0x2] sm:$0x3]
        %v1315 = vunpack.c.0.s8 %v1313
        %v1316 = vunpack.c.0.s8 %v1314
        %v1317 = vcvt.s32.f32 %v1315
        %v1318 = vcvt.s32.f32 %v1316
        %v1319 = vmul.f32 %v1317, -1e+30
        %v1320 = vmul.f32 %v1318, -1e+30
        %v1321 = vld [vmem:[%s528] sm:$0x1]
        %v1323 = vlaneseq
        %v1324 = vshrl.u32 %v1323, 7
        %v1325 = vsub.s32 0, %v1324
        %v1326 = vrot.slane %v1321, %v1325
        %v1328 = vadd.f32 %v1319, %v1326
        %v1329 = vadd.f32 %v1320, %v1326
        %vm1330 = vcmask 261120
        %v1332 = vsel %vm1330, %v1303, 0
        %v1335 = vsel %vm1330, %v1307, 0
        %1337 = vmatprep.subr.bf16.mxu0 0
        %1338 = vmatpush1.bf16.xpose.msra.mxu0 %v1335
        %1339 = vmatprep.subr.bf16.mxu0 0
        %1340 = vmatpush1.bf16.xpose.msra.mxu0 0
        %1341 = vmatprep.subr.bf16.mxu0 0
        %1342 = vmatpush1.bf16.xpose.msra.mxu0 0
        %1343 = vmatprep.subr.bf16.mxu0 0
        %1344 = vmatpush1.bf16.xpose.msra.mxu0 0
        %1345 = vmatprep.subr.bf16.mxu0 0
        %1346 = vmatpush1.bf16.xpose.msra.mxu0 0
        %1347 = vmatprep.subr.bf16.mxu0 0
        %1348 = vmatpush1.bf16.xpose.msra.mxu0 0
        %1349 = vmatprep.subr.bf16.mxu0 0
        %1350 = vmatpush1.bf16.xpose.msra.mxu0 0
        %1351 = vmatprep.subr.bf16.mxu0 0
        %1352 = vmatpush1.bf16.xpose.msra.mxu0 0
        %1353 = vmatprep.subr.bf16.mxu0 0
        %1354 = vmatpush1.bf16.xpose.msra.mxu0 0
        %1355 = vmatprep.subr.bf16.mxu0 0
        %1356 = vmatpush1.bf16.xpose.msra.mxu0 0
        %1357 = vmatprep.subr.bf16.mxu0 0
        %1358 = vmatpush1.bf16.xpose.msra.mxu0 0
        %1359 = vmatprep.subr.bf16.mxu0 0
        %1360 = vmatpush1.bf16.xpose.msra.mxu0 0
        %1361 = vmatprep.subr.bf16.mxu0 0
        %1362 = vmatpush1.bf16.xpose.msra.mxu0 0
        %1363 = vmatprep.subr.bf16.mxu0 0
        %1364 = vmatpush1.bf16.xpose.msra.mxu0 0
        %1365 = vmatprep.subr.bf16.mxu0 0
        %1366 = vmatpush1.bf16.xpose.msra.mxu0 0
        %1367 = vmatprep.subr.bf16.mxu0 0
        %1368 = vmatpush1.bf16.xpose.msra.mxu0 0
        %1369 = vmatprep.mubr.bf16.mxu0 0
        %1370 = vmatmul.mubr.bf16.gmra.mrb[0].mxu0 %v1332
        %v1371 = vpop.f32.mrb[0].mxu0
        %v1372 = vadd.f32 %v1328, %v1371
        %v1373 = vpop.f32.mrb[0].mxu0
        %v1374 = vpop.f32.mrb[0].mxu0
        %v1375 = vadd.f32 %v1329, %v1374
        %v1376 = vpop.f32.mrb[0].mxu0
        %1377 = vdwg.mxu0
        %vm1378 = vcmask 130048
        %v1379 = vsel %vm1378, %v1372, -inf
        %1380 = vmax.xlane.f32.xlu0 %v1379
        %v1381 = vpop.xlane.xlu0 %1380
        %v1382 = vsel %vm1378, %v1375, -inf
        %1383 = vmax.xlane.f32.xlu0 %v1382
        %v1384 = vpop.xlane.xlu0 %1383
        %v1385 = vsub.f32 %v1372, %v1381
        %v1386 = vsub.f32 %v1375, %v1384
        %v1387 = vmul.f32 %v1385, 1.442695
        %v1388 = vpow.pop %v1387
        %v1389 = vmul.f32 %v1386, 1.442695
        %v1390 = vpow.pop %v1389
        %v1391 = vsel %vm1378, %v1388, 0.0
        %1392 = vadd.xlane.f32.xlu0 %v1391
        %v1393 = vpop.xlane.xlu0 %1392
        %v1394 = vsel %vm1378, %v1390, 0.0
        %1395 = vadd.xlane.f32.xlu0 %v1394
        %v1396 = vpop.xlane.xlu0 %1395
        %v1397 = vpack.c.bf16 %v1390, %v1388
        %v1399 = vsel %vm1378, %v1397, 0
        %1401 = vmatprep.subr.bf16.mxu0 0
        %1402 = vmatpush1.bf16.msra.mxu0 %v1311
        %1403 = vmatprep.subr.bf16.mxu0 0
        %1404 = vmatpush1.bf16.msra.mxu0 0
        %1405 = vmatprep.subr.bf16.mxu0 0
        %1406 = vmatpush1.bf16.msra.mxu0 0
        %1407 = vmatprep.subr.bf16.mxu0 0
        %1408 = vmatpush1.bf16.msra.mxu0 0
        %1409 = vmatprep.subr.bf16.mxu0 0
        %1410 = vmatpush1.bf16.msra.mxu0 0
        %1411 = vmatprep.subr.bf16.mxu0 0
        %1412 = vmatpush1.bf16.msra.mxu0 0
        %1413 = vmatprep.subr.bf16.mxu0 0
        %1414 = vmatpush1.bf16.msra.mxu0 0
        %1415 = vmatprep.subr.bf16.mxu0 0
        %1416 = vmatpush1.bf16.msra.mxu0 0
        %1417 = vmatprep.subr.bf16.mxu0 0
        %1418 = vmatpush1.bf16.msra.mxu0 0
        %1419 = vmatprep.subr.bf16.mxu0 0
        %1420 = vmatpush1.bf16.msra.mxu0 0
        %1421 = vmatprep.subr.bf16.mxu0 0
        %1422 = vmatpush1.bf16.msra.mxu0 0
        %1423 = vmatprep.subr.bf16.mxu0 0
        %1424 = vmatpush1.bf16.msra.mxu0 0
        %1425 = vmatprep.subr.bf16.mxu0 0
        %1426 = vmatpush1.bf16.msra.mxu0 0
        %1427 = vmatprep.subr.bf16.mxu0 0
        %1428 = vmatpush1.bf16.msra.mxu0 0
        %1429 = vmatprep.subr.bf16.mxu0 0
        %1430 = vmatpush1.bf16.msra.mxu0 0
        %1431 = vmatprep.subr.bf16.mxu0 0
        %1432 = vmatpush1.bf16.msra.mxu0 0
        %1433 = vmatprep.mubr.bf16.mxu0 0
        %1434 = vmatmul.mubr.bf16.gmra.mrb[0].mxu0 %v1399
        %v1435 = vpop.f32.mrb[0].mxu0
        %v1436 = vadd.f32 0.0, %v1435
        %v1437 = vpop.f32.mrb[0].mxu0
        %v1438 = vpop.f32.mrb[0].mxu0
        %v1439 = vadd.f32 0.0, %v1438
        %v1440 = vpop.f32.mrb[0].mxu0
        %1441 = vdwg.mxu0
        %v1442 = vrcp.pop %v1393
        %v1443 = vrcp.pop %v1396
        %v1444 = vmul.f32 %v1436, %v1442
        %v1445 = vmul.f32 %v1439, %v1443
        %v1446 = vpack.c.bf16 %v1445, %v1444
        %1447 = vst.msk [vmem:[#allocation5] sm:$0xff] %vm1330, %v1446
        %1449 = vrot.lane.b32.xlu0 %v1303, 96
        %v1450 = vpop.permute.xlu0 %1449
        %1452 = vrot.lane.b32.xlu0 %v1307, 96
        %v1453 = vpop.permute.xlu0 %1452
        %v1455 = vsel %vm1330, %v1450, 0
        %v1458 = vsel %vm1330, %v1453, 0
        %1460 = vmatprep.subr.bf16.mxu0 0
        %1461 = vmatpush1.bf16.xpose.msra.mxu0 %v1458
        %1462 = vmatprep.subr.bf16.mxu0 0
        %1463 = vmatpush1.bf16.xpose.msra.mxu0 0
        %1464 = vmatprep.subr.bf16.mxu0 0
        %1465 = vmatpush1.bf16.xpose.msra.mxu0 0
        %1466 = vmatprep.subr.bf16.mxu0 0
        %1467 = vmatpush1.bf16.xpose.msra.mxu0 0
        %1468 = vmatprep.subr.bf16.mxu0 0
        %1469 = vmatpush1.bf16.xpose.msra.mxu0 0
        %1470 = vmatprep.subr.bf16.mxu0 0
        %1471 = vmatpush1.bf16.xpose.msra.mxu0 0
        %1472 = vmatprep.subr.bf16.mxu0 0
        %1473 = vmatpush1.bf16.xpose.msra.mxu0 0
        %1474 = vmatprep.subr.bf16.mxu0 0
        %1475 = vmatpush1.bf16.xpose.msra.mxu0 0
        %1476 = vmatprep.subr.bf16.mxu0 0
        %1477 = vmatpush1.bf16.xpose.msra.mxu0 0
        %1478 = vmatprep.subr.bf16.mxu0 0
        %1479 = vmatpush1.bf16.xpose.msra.mxu0 0
        %1480 = vmatprep.subr.bf16.mxu0 0
        %1481 = vmatpush1.bf16.xpose.msra.mxu0 0
        %1482 = vmatprep.subr.bf16.mxu0 0
        %1483 = vmatpush1.bf16.xpose.msra.mxu0 0
        %1484 = vmatprep.subr.bf16.mxu0 0
        %1485 = vmatpush1.bf16.xpose.msra.mxu0 0
        %1486 = vmatprep.subr.bf16.mxu0 0
        %1487 = vmatpush1.bf16.xpose.msra.mxu0 0
        %1488 = vmatprep.subr.bf16.mxu0 0
        %1489 = vmatpush1.bf16.xpose.msra.mxu0 0
        %1490 = vmatprep.subr.bf16.mxu0 0
        %1491 = vmatpush1.bf16.xpose.msra.mxu0 0
        %1492 = vmatprep.mubr.bf16.mxu0 0
        %1493 = vmatmul.mubr.bf16.gmra.mrb[0].mxu0 %v1455
        %v1494 = vpop.f32.mrb[0].mxu0
        %v1495 = vadd.f32 %v1328, %v1494
        %v1496 = vpop.f32.mrb[0].mxu0
        %v1497 = vpop.f32.mrb[0].mxu0
        %v1498 = vadd.f32 %v1329, %v1497
        %v1499 = vpop.f32.mrb[0].mxu0
        %1500 = vdwg.mxu0
        %v1501 = vsel %vm1378, %v1495, -inf
        %1502 = vmax.xlane.f32.xlu0 %v1501
        %v1503 = vpop.xlane.xlu0 %1502
        %v1504 = vsel %vm1378, %v1498, -inf
        %1505 = vmax.xlane.f32.xlu0 %v1504
        %v1506 = vpop.xlane.xlu0 %1505
        %v1507 = vsub.f32 %v1495, %v1503
        %v1508 = vsub.f32 %v1498, %v1506
        %v1509 = vmul.f32 %v1507, 1.442695
        %v1510 = vpow.pop %v1509
        %v1511 = vmul.f32 %v1508, 1.442695
        %v1512 = vpow.pop %v1511
        %v1513 = vsel %vm1378, %v1510, 0.0
        %1514 = vadd.xlane.f32.xlu0 %v1513
        %v1515 = vpop.xlane.xlu0 %1514
        %v1516 = vsel %vm1378, %v1512, 0.0
        %1517 = vadd.xlane.f32.xlu0 %v1516
        %v1518 = vpop.xlane.xlu0 %1517
        %v1519 = vpack.c.bf16 %v1512, %v1510
        %1521 = vrot.lane.b32.xlu0 %v1311, 96
        %v1522 = vpop.permute.xlu0 %1521
        %v1525 = vsel %vm1378, %v1519, 0
        %1527 = vmatprep.subr.bf16.mxu0 0
        %1528 = vmatpush1.bf16.msra.mxu0 %v1522
        %1529 = vmatprep.subr.bf16.mxu0 0
        %1530 = vmatpush1.bf16.msra.mxu0 0
        %1531 = vmatprep.subr.bf16.mxu0 0
        %1532 = vmatpush1.bf16.msra.mxu0 0
        %1533 = vmatprep.subr.bf16.mxu0 0
        %1534 = vmatpush1.bf16.msra.mxu0 0
        %1535 = vmatprep.subr.bf16.mxu0 0
        %1536 = vmatpush1.bf16.msra.mxu0 0
        %1537 = vmatprep.subr.bf16.mxu0 0
        %1538 = vmatpush1.bf16.msra.mxu0 0
        %1539 = vmatprep.subr.bf16.mxu0 0
        %1540 = vmatpush1.bf16.msra.mxu0 0
        %1541 = vmatprep.subr.bf16.mxu0 0
        %1542 = vmatpush1.bf16.msra.mxu0 0
        %1543 = vmatprep.subr.bf16.mxu0 0
        %1544 = vmatpush1.bf16.msra.mxu0 0
        %1545 = vmatprep.subr.bf16.mxu0 0
        %1546 = vmatpush1.bf16.msra.mxu0 0
        %1547 = vmatprep.subr.bf16.mxu0 0
        %1548 = vmatpush1.bf16.msra.mxu0 0
        %1549 = vmatprep.subr.bf16.mxu0 0
        %1550 = vmatpush1.bf16.msra.mxu0 0
        %1551 = vmatprep.subr.bf16.mxu0 0
        %1552 = vmatpush1.bf16.msra.mxu0 0
        %1553 = vmatprep.subr.bf16.mxu0 0
        %1554 = vmatpush1.bf16.msra.mxu0 0
        %1555 = vmatprep.subr.bf16.mxu0 0
        %1556 = vmatpush1.bf16.msra.mxu0 0
        %1557 = vmatprep.subr.bf16.mxu0 0
        %1558 = vmatpush1.bf16.msra.mxu0 0
        %1559 = vmatprep.mubr.bf16.mxu0 0
        %1560 = vmatmul.mubr.bf16.gmra.mrb[0].mxu0 %v1525
        %v1561 = vpop.f32.mrb[0].mxu0
        %v1562 = vadd.f32 0.0, %v1561
        %v1563 = vpop.f32.mrb[0].mxu0
        %v1564 = vpop.f32.mrb[0].mxu0
        %v1565 = vadd.f32 0.0, %v1564
        %v1566 = vpop.f32.mrb[0].mxu0
        %1567 = vdwg.mxu0
        %v1568 = vrcp.pop %v1515
        %v1569 = vrcp.pop %v1518
        %v1570 = vmul.f32 %v1562, %v1568
        %v1571 = vmul.f32 %v1565, %v1569
        %v1572 = vpack.c.bf16 %v1571, %v1570
        %1574 = vrot.lane.b32.xlu0 %v1572, 32
        %v1575 = vpop.permute.xlu0 %1574
        %vm1577 = vcmask 523520
        %1578 = vst.msk [vmem:[#allocation5] sm:$0xff] %vm1577, %v1575
        %1579 = vrot.lane.b32.xlu0 %v1303, 64
        %v1580 = vpop.permute.xlu0 %1579
        %1581 = vrot.lane.b32.xlu0 %v1307, 64
        %v1582 = vpop.permute.xlu0 %1581
        %v1584 = vsel %vm1330, %v1580, 0
        %v1587 = vsel %vm1330, %v1582, 0
        %1589 = vmatprep.subr.bf16.mxu0 0
        %1590 = vmatpush1.bf16.xpose.msra.mxu0 %v1587
        %1591 = vmatprep.subr.bf16.mxu0 0
        %1592 = vmatpush1.bf16.xpose.msra.mxu0 0
        %1593 = vmatprep.subr.bf16.mxu0 0
        %1594 = vmatpush1.bf16.xpose.msra.mxu0 0
        %1595 = vmatprep.subr.bf16.mxu0 0
        %1596 = vmatpush1.bf16.xpose.msra.mxu0 0
        %1597 = vmatprep.subr.bf16.mxu0 0
        %1598 = vmatpush1.bf16.xpose.msra.mxu0 0
        %1599 = vmatprep.subr.bf16.mxu0 0
        %1600 = vmatpush1.bf16.xpose.msra.mxu0 0
        %1601 = vmatprep.subr.bf16.mxu0 0
        %1602 = vmatpush1.bf16.xpose.msra.mxu0 0
        %1603 = vmatprep.subr.bf16.mxu0 0
        %1604 = vmatpush1.bf16.xpose.msra.mxu0 0
        %1605 = vmatprep.subr.bf16.mxu0 0
        %1606 = vmatpush1.bf16.xpose.msra.mxu0 0
        %1607 = vmatprep.subr.bf16.mxu0 0
        %1608 = vmatpush1.bf16.xpose.msra.mxu0 0
        %1609 = vmatprep.subr.bf16.mxu0 0
        %1610 = vmatpush1.bf16.xpose.msra.mxu0 0
        %1611 = vmatprep.subr.bf16.mxu0 0
        %1612 = vmatpush1.bf16.xpose.msra.mxu0 0
        %1613 = vmatprep.subr.bf16.mxu0 0
        %1614 = vmatpush1.bf16.xpose.msra.mxu0 0
        %1615 = vmatprep.subr.bf16.mxu0 0
        %1616 = vmatpush1.bf16.xpose.msra.mxu0 0
        %1617 = vmatprep.subr.bf16.mxu0 0
        %1618 = vmatpush1.bf16.xpose.msra.mxu0 0
        %1619 = vmatprep.subr.bf16.mxu0 0
        %1620 = vmatpush1.bf16.xpose.msra.mxu0 0
        %1621 = vmatprep.mubr.bf16.mxu0 0
        %1622 = vmatmul.mubr.bf16.gmra.mrb[0].mxu0 %v1584
        %v1623 = vpop.f32.mrb[0].mxu0
        %v1624 = vadd.f32 %v1328, %v1623
        %v1625 = vpop.f32.mrb[0].mxu0
        %v1626 = vpop.f32.mrb[0].mxu0
        %v1627 = vadd.f32 %v1329, %v1626
        %v1628 = vpop.f32.mrb[0].mxu0
        %1629 = vdwg.mxu0
        %v1630 = vsel %vm1378, %v1624, -inf
        %1631 = vmax.xlane.f32.xlu0 %v1630
        %v1632 = vpop.xlane.xlu0 %1631
        %v1633 = vsel %vm1378, %v1627, -inf
        %1634 = vmax.xlane.f32.xlu0 %v1633
        %v1635 = vpop.xlane.xlu0 %1634
        %v1636 = vsub.f32 %v1624, %v1632
        %v1637 = vsub.f32 %v1627, %v1635
        %v1638 = vmul.f32 %v1636, 1.442695
        %v1639 = vpow.pop %v1638
        %v1640 = vmul.f32 %v1637, 1.442695
        %v1641 = vpow.pop %v1640
        %v1642 = vsel %vm1378, %v1639, 0.0
        %1643 = vadd.xlane.f32.xlu0 %v1642
        %v1644 = vpop.xlane.xlu0 %1643
        %v1645 = vsel %vm1378, %v1641, 0.0
        %1646 = vadd.xlane.f32.xlu0 %v1645
        %v1647 = vpop.xlane.xlu0 %1646
        %v1648 = vpack.c.bf16 %v1641, %v1639
        %1649 = vrot.lane.b32.xlu0 %v1311, 64
        %v1650 = vpop.permute.xlu0 %1649
        %v1653 = vsel %vm1378, %v1648, 0
        %1655 = vmatprep.subr.bf16.mxu0 0
        %1656 = vmatpush1.bf16.msra.mxu0 %v1650
        %1657 = vmatprep.subr.bf16.mxu0 0
        %1658 = vmatpush1.bf16.msra.mxu0 0
        %1659 = vmatprep.subr.bf16.mxu0 0
        %1660 = vmatpush1.bf16.msra.mxu0 0
        %1661 = vmatprep.subr.bf16.mxu0 0
        %1662 = vmatpush1.bf16.msra.mxu0 0
        %1663 = vmatprep.subr.bf16.mxu0 0
        %1664 = vmatpush1.bf16.msra.mxu0 0
        %1665 = vmatprep.subr.bf16.mxu0 0
        %1666 = vmatpush1.bf16.msra.mxu0 0
        %1667 = vmatprep.subr.bf16.mxu0 0
        %1668 = vmatpush1.bf16.msra.mxu0 0
        %1669 = vmatprep.subr.bf16.mxu0 0
        %1670 = vmatpush1.bf16.msra.mxu0 0
        %1671 = vmatprep.subr.bf16.mxu0 0
        %1672 = vmatpush1.bf16.msra.mxu0 0
        %1673 = vmatprep.subr.bf16.mxu0 0
        %1674 = vmatpush1.bf16.msra.mxu0 0
        %1675 = vmatprep.subr.bf16.mxu0 0
        %1676 = vmatpush1.bf16.msra.mxu0 0
        %1677 = vmatprep.subr.bf16.mxu0 0
        %1678 = vmatpush1.bf16.msra.mxu0 0
        %1679 = vmatprep.subr.bf16.mxu0 0
        %1680 = vmatpush1.bf16.msra.mxu0 0
        %1681 = vmatprep.subr.bf16.mxu0 0
        %1682 = vmatpush1.bf16.msra.mxu0 0
        %1683 = vmatprep.subr.bf16.mxu0 0
        %1684 = vmatpush1.bf16.msra.mxu0 0
        %1685 = vmatprep.subr.bf16.mxu0 0
        %1686 = vmatpush1.bf16.msra.mxu0 0
        %1687 = vmatprep.mubr.bf16.mxu0 0
        %1688 = vmatmul.mubr.bf16.gmra.mrb[0].mxu0 %v1653
        %v1689 = vpop.f32.mrb[0].mxu0
        %v1690 = vadd.f32 0.0, %v1689
        %v1691 = vpop.f32.mrb[0].mxu0
        %v1692 = vpop.f32.mrb[0].mxu0
        %v1693 = vadd.f32 0.0, %v1692
        %v1694 = vpop.f32.mrb[0].mxu0
        %1695 = vdwg.mxu0
        %v1696 = vrcp.pop %v1644
        %v1697 = vrcp.pop %v1647
        %v1698 = vmul.f32 %v1690, %v1696
        %v1699 = vmul.f32 %v1693, %v1697
        %v1700 = vpack.c.bf16 %v1699, %v1698
        %1702 = vrot.lane.b32.xlu0 %v1700, 64
        %v1703 = vpop.permute.xlu0 %1702
        %vm1705 = vcmask 785920
        %1706 = vst.msk [vmem:[#allocation5] sm:$0xff] %vm1705, %v1703
        %1707 = vrot.lane.b32.xlu0 %v1303, 32
        %v1708 = vpop.permute.xlu0 %1707
        %1709 = vrot.lane.b32.xlu0 %v1307, 32
        %v1710 = vpop.permute.xlu0 %1709
        %v1712 = vsel %vm1330, %v1708, 0
        %v1715 = vsel %vm1330, %v1710, 0
        %1717 = vmatprep.subr.bf16.mxu0 0
        %1718 = vmatpush1.bf16.xpose.msra.mxu0 %v1715
        %1719 = vmatprep.subr.bf16.mxu0 0
        %1720 = vmatpush1.bf16.xpose.msra.mxu0 0
        %1721 = vmatprep.subr.bf16.mxu0 0
        %1722 = vmatpush1.bf16.xpose.msra.mxu0 0
        %1723 = vmatprep.subr.bf16.mxu0 0
        %1724 = vmatpush1.bf16.xpose.msra.mxu0 0
        %1725 = vmatprep.subr.bf16.mxu0 0
        %1726 = vmatpush1.bf16.xpose.msra.mxu0 0
        %1727 = vmatprep.subr.bf16.mxu0 0
        %1728 = vmatpush1.bf16.xpose.msra.mxu0 0
        %1729 = vmatprep.subr.bf16.mxu0 0
        %1730 = vmatpush1.bf16.xpose.msra.mxu0 0
        %1731 = vmatprep.subr.bf16.mxu0 0
        %1732 = vmatpush1.bf16.xpose.msra.mxu0 0
        %1733 = vmatprep.subr.bf16.mxu0 0
        %1734 = vmatpush1.bf16.xpose.msra.mxu0 0
        %1735 = vmatprep.subr.bf16.mxu0 0
        %1736 = vmatpush1.bf16.xpose.msra.mxu0 0
        %1737 = vmatprep.subr.bf16.mxu0 0
        %1738 = vmatpush1.bf16.xpose.msra.mxu0 0
        %1739 = vmatprep.subr.bf16.mxu0 0
        %1740 = vmatpush1.bf16.xpose.msra.mxu0 0
        %1741 = vmatprep.subr.bf16.mxu0 0
        %1742 = vmatpush1.bf16.xpose.msra.mxu0 0
        %1743 = vmatprep.subr.bf16.mxu0 0
        %1744 = vmatpush1.bf16.xpose.msra.mxu0 0
        %1745 = vmatprep.subr.bf16.mxu0 0
        %1746 = vmatpush1.bf16.xpose.msra.mxu0 0
        %1747 = vmatprep.subr.bf16.mxu0 0
        %1748 = vmatpush1.bf16.xpose.msra.mxu0 0
        %1749 = vmatprep.mubr.bf16.mxu0 0
        %1750 = vmatmul.mubr.bf16.gmra.mrb[0].mxu0 %v1712
        %v1751 = vpop.f32.mrb[0].mxu0
        %v1752 = vadd.f32 %v1328, %v1751
        %v1753 = vpop.f32.mrb[0].mxu0
        %v1754 = vpop.f32.mrb[0].mxu0
        %v1755 = vadd.f32 %v1329, %v1754
        %v1756 = vpop.f32.mrb[0].mxu0
        %1757 = vdwg.mxu0
        %v1758 = vsel %vm1378, %v1752, -inf
        %1759 = vmax.xlane.f32.xlu0 %v1758
        %v1760 = vpop.xlane.xlu0 %1759
        %v1761 = vsel %vm1378, %v1755, -inf
        %1762 = vmax.xlane.f32.xlu0 %v1761
        %v1763 = vpop.xlane.xlu0 %1762
        %v1764 = vsub.f32 %v1752, %v1760
        %v1765 = vsub.f32 %v1755, %v1763
        %v1766 = vmul.f32 %v1764, 1.442695
        %v1767 = vpow.pop %v1766
        %v1768 = vmul.f32 %v1765, 1.442695
        %v1769 = vpow.pop %v1768
        %v1770 = vsel %vm1378, %v1767, 0.0
        %1771 = vadd.xlane.f32.xlu0 %v1770
        %v1772 = vpop.xlane.xlu0 %1771
        %v1773 = vsel %vm1378, %v1769, 0.0
        %1774 = vadd.xlane.f32.xlu0 %v1773
        %v1775 = vpop.xlane.xlu0 %1774
        %v1776 = vpack.c.bf16 %v1769, %v1767
        %1777 = vrot.lane.b32.xlu0 %v1311, 32
        %v1778 = vpop.permute.xlu0 %1777
        %v1781 = vsel %vm1378, %v1776, 0
        %1783 = vmatprep.subr.bf16.mxu0 0
        %1784 = vmatpush1.bf16.msra.mxu0 %v1778
        %1785 = vmatprep.subr.bf16.mxu0 0
        %1786 = vmatpush1.bf16.msra.mxu0 0
        %1787 = vmatprep.subr.bf16.mxu0 0
        %1788 = vmatpush1.bf16.msra.mxu0 0
        %1789 = vmatprep.subr.bf16.mxu0 0
        %1790 = vmatpush1.bf16.msra.mxu0 0
        %1791 = vmatprep.subr.bf16.mxu0 0
        %1792 = vmatpush1.bf16.msra.mxu0 0
        %1793 = vmatprep.subr.bf16.mxu0 0
        %1794 = vmatpush1.bf16.msra.mxu0 0
        %1795 = vmatprep.subr.bf16.mxu0 0
        %1796 = vmatpush1.bf16.msra.mxu0 0
        %1797 = vmatprep.subr.bf16.mxu0 0
        %1798 = vmatpush1.bf16.msra.mxu0 0
        %1799 = vmatprep.subr.bf16.mxu0 0
        %1800 = vmatpush1.bf16.msra.mxu0 0
        %1801 = vmatprep.subr.bf16.mxu0 0
        %1802 = vmatpush1.bf16.msra.mxu0 0
        %1803 = vmatprep.subr.bf16.mxu0 0
        %1804 = vmatpush1.bf16.msra.mxu0 0
        %1805 = vmatprep.subr.bf16.mxu0 0
        %1806 = vmatpush1.bf16.msra.mxu0 0
        %1807 = vmatprep.subr.bf16.mxu0 0
        %1808 = vmatpush1.bf16.msra.mxu0 0
        %1809 = vmatprep.subr.bf16.mxu0 0
        %1810 = vmatpush1.bf16.msra.mxu0 0
        %1811 = vmatprep.subr.bf16.mxu0 0
        %1812 = vmatpush1.bf16.msra.mxu0 0
        %1813 = vmatprep.subr.bf16.mxu0 0
        %1814 = vmatpush1.bf16.msra.mxu0 0
        %1815 = vmatprep.mubr.bf16.mxu0 0
        %1816 = vmatmul.mubr.bf16.gmra.mrb[0].mxu0 %v1781
        %v1817 = vpop.f32.mrb[0].mxu0
        %v1818 = vadd.f32 0.0, %v1817
        %v1819 = vpop.f32.mrb[0].mxu0
        %v1820 = vpop.f32.mrb[0].mxu0
        %v1821 = vadd.f32 0.0, %v1820
        %v1822 = vpop.f32.mrb[0].mxu0
        %1823 = vdwg.mxu0
        %v1824 = vrcp.pop %v1772
        %v1825 = vrcp.pop %v1775
        %v1826 = vmul.f32 %v1818, %v1824
        %v1827 = vmul.f32 %v1821, %v1825
        %v1828 = vpack.c.bf16 %v1827, %v1826
        %1830 = vrot.lane.b32.xlu0 %v1828, 96
        %v1831 = vpop.permute.xlu0 %1830
        %vm1833 = vcmask 1048320
        %1834 = vst.msk [vmem:[#allocation5] sm:$0xff] %vm1833, %v1831
        %v1836 = vsel %vm1330, %v1304, 0
        %v1839 = vsel %vm1330, %v1308, 0
        %1841 = vmatprep.subr.bf16.mxu0 0
        %1842 = vmatpush1.bf16.xpose.msra.mxu0 %v1839
        %1843 = vmatprep.subr.bf16.mxu0 0
        %1844 = vmatpush1.bf16.xpose.msra.mxu0 0
        %1845 = vmatprep.subr.bf16.mxu0 0
        %1846 = vmatpush1.bf16.xpose.msra.mxu0 0
        %1847 = vmatprep.subr.bf16.mxu0 0
        %1848 = vmatpush1.bf16.xpose.msra.mxu0 0
        %1849 = vmatprep.subr.bf16.mxu0 0
        %1850 = vmatpush1.bf16.xpose.msra.mxu0 0
        %1851 = vmatprep.subr.bf16.mxu0 0
        %1852 = vmatpush1.bf16.xpose.msra.mxu0 0
        %1853 = vmatprep.subr.bf16.mxu0 0
        %1854 = vmatpush1.bf16.xpose.msra.mxu0 0
        %1855 = vmatprep.subr.bf16.mxu0 0
        %1856 = vmatpush1.bf16.xpose.msra.mxu0 0
        %1857 = vmatprep.subr.bf16.mxu0 0
        %1858 = vmatpush1.bf16.xpose.msra.mxu0 0
        %1859 = vmatprep.subr.bf16.mxu0 0
        %1860 = vmatpush1.bf16.xpose.msra.mxu0 0
        %1861 = vmatprep.subr.bf16.mxu0 0
        %1862 = vmatpush1.bf16.xpose.msra.mxu0 0
        %1863 = vmatprep.subr.bf16.mxu0 0
        %1864 = vmatpush1.bf16.xpose.msra.mxu0 0
        %1865 = vmatprep.subr.bf16.mxu0 0
        %1866 = vmatpush1.bf16.xpose.msra.mxu0 0
        %1867 = vmatprep.subr.bf16.mxu0 0
        %1868 = vmatpush1.bf16.xpose.msra.mxu0 0
        %1869 = vmatprep.subr.bf16.mxu0 0
        %1870 = vmatpush1.bf16.xpose.msra.mxu0 0
        %1871 = vmatprep.subr.bf16.mxu0 0
        %1872 = vmatpush1.bf16.xpose.msra.mxu0 0
        %1873 = vmatprep.mubr.bf16.mxu0 0
        %1874 = vmatmul.mubr.bf16.gmra.mrb[0].mxu0 %v1836
        %v1875 = vpop.f32.mrb[0].mxu0
        %v1876 = vadd.f32 %v1328, %v1875
        %v1877 = vpop.f32.mrb[0].mxu0
        %v1878 = vpop.f32.mrb[0].mxu0
        %v1879 = vadd.f32 %v1329, %v1878
        %v1880 = vpop.f32.mrb[0].mxu0
        %1881 = vdwg.mxu0
        %v1882 = vsel %vm1378, %v1876, -inf
        %1883 = vmax.xlane.f32.xlu0 %v1882
        %v1884 = vpop.xlane.xlu0 %1883
        %v1885 = vsel %vm1378, %v1879, -inf
        %1886 = vmax.xlane.f32.xlu0 %v1885
        %v1887 = vpop.xlane.xlu0 %1886
        %v1888 = vsub.f32 %v1876, %v1884
        %v1889 = vsub.f32 %v1879, %v1887
        %v1890 = vmul.f32 %v1888, 1.442695
        %v1891 = vpow.pop %v1890
        %v1892 = vmul.f32 %v1889, 1.442695
        %v1893 = vpow.pop %v1892
        %v1894 = vsel %vm1378, %v1891, 0.0
        %1895 = vadd.xlane.f32.xlu0 %v1894
        %v1896 = vpop.xlane.xlu0 %1895
        %v1897 = vsel %vm1378, %v1893, 0.0
        %1898 = vadd.xlane.f32.xlu0 %v1897
        %v1899 = vpop.xlane.xlu0 %1898
        %v1900 = vpack.c.bf16 %v1893, %v1891
        %v1902 = vsel %vm1378, %v1900, 0
        %1904 = vmatprep.subr.bf16.mxu0 0
        %1905 = vmatpush1.bf16.msra.mxu0 %v1312
        %1906 = vmatprep.subr.bf16.mxu0 0
        %1907 = vmatpush1.bf16.msra.mxu0 0
        %1908 = vmatprep.subr.bf16.mxu0 0
        %1909 = vmatpush1.bf16.msra.mxu0 0
        %1910 = vmatprep.subr.bf16.mxu0 0
        %1911 = vmatpush1.bf16.msra.mxu0 0
        %1912 = vmatprep.subr.bf16.mxu0 0
        %1913 = vmatpush1.bf16.msra.mxu0 0
        %1914 = vmatprep.subr.bf16.mxu0 0
        %1915 = vmatpush1.bf16.msra.mxu0 0
        %1916 = vmatprep.subr.bf16.mxu0 0
        %1917 = vmatpush1.bf16.msra.mxu0 0
        %1918 = vmatprep.subr.bf16.mxu0 0
        %1919 = vmatpush1.bf16.msra.mxu0 0
        %1920 = vmatprep.subr.bf16.mxu0 0
        %1921 = vmatpush1.bf16.msra.mxu0 0
        %1922 = vmatprep.subr.bf16.mxu0 0
        %1923 = vmatpush1.bf16.msra.mxu0 0
        %1924 = vmatprep.subr.bf16.mxu0 0
        %1925 = vmatpush1.bf16.msra.mxu0 0
        %1926 = vmatprep.subr.bf16.mxu0 0
        %1927 = vmatpush1.bf16.msra.mxu0 0
        %1928 = vmatprep.subr.bf16.mxu0 0
        %1929 = vmatpush1.bf16.msra.mxu0 0
        %1930 = vmatprep.subr.bf16.mxu0 0
        %1931 = vmatpush1.bf16.msra.mxu0 0
        %1932 = vmatprep.subr.bf16.mxu0 0
        %1933 = vmatpush1.bf16.msra.mxu0 0
        %1934 = vmatprep.subr.bf16.mxu0 0
        %1935 = vmatpush1.bf16.msra.mxu0 0
        %1936 = vmatprep.mubr.bf16.mxu0 0
        %1937 = vmatmul.mubr.bf16.gmra.mrb[0].mxu0 %v1902
        %v1938 = vpop.f32.mrb[0].mxu0
        %v1939 = vadd.f32 0.0, %v1938
        %v1940 = vpop.f32.mrb[0].mxu0
        %v1941 = vpop.f32.mrb[0].mxu0
        %v1942 = vadd.f32 0.0, %v1941
        %v1943 = vpop.f32.mrb[0].mxu0
        %1944 = vdwg.mxu0
        %v1945 = vrcp.pop %v1896
        %v1946 = vrcp.pop %v1899
        %v1947 = vmul.f32 %v1939, %v1945
        %v1948 = vmul.f32 %v1942, %v1946
        %v1949 = vpack.c.bf16 %v1948, %v1947
        %1950 = vst.msk [vmem:[#allocation5 + $0x8] sm:$0xff] %vm1330, %v1949
        %1952 = vrot.lane.b32.xlu0 %v1304, 96
        %v1953 = vpop.permute.xlu0 %1952
        %1955 = vrot.lane.b32.xlu0 %v1308, 96
        %v1956 = vpop.permute.xlu0 %1955
        %v1958 = vsel %vm1330, %v1953, 0
        %v1961 = vsel %vm1330, %v1956, 0
        %1963 = vmatprep.subr.bf16.mxu0 0
        %1964 = vmatpush1.bf16.xpose.msra.mxu0 %v1961
        %1965 = vmatprep.subr.bf16.mxu0 0
        %1966 = vmatpush1.bf16.xpose.msra.mxu0 0
        %1967 = vmatprep.subr.bf16.mxu0 0
        %1968 = vmatpush1.bf16.xpose.msra.mxu0 0
        %1969 = vmatprep.subr.bf16.mxu0 0
        %1970 = vmatpush1.bf16.xpose.msra.mxu0 0
        %1971 = vmatprep.subr.bf16.mxu0 0
        %1972 = vmatpush1.bf16.xpose.msra.mxu0 0
        %1973 = vmatprep.subr.bf16.mxu0 0
        %1974 = vmatpush1.bf16.xpose.msra.mxu0 0
        %1975 = vmatprep.subr.bf16.mxu0 0
        %1976 = vmatpush1.bf16.xpose.msra.mxu0 0
        %1977 = vmatprep.subr.bf16.mxu0 0
        %1978 = vmatpush1.bf16.xpose.msra.mxu0 0
        %1979 = vmatprep.subr.bf16.mxu0 0
        %1980 = vmatpush1.bf16.xpose.msra.mxu0 0
        %1981 = vmatprep.subr.bf16.mxu0 0
        %1982 = vmatpush1.bf16.xpose.msra.mxu0 0
        %1983 = vmatprep.subr.bf16.mxu0 0
        %1984 = vmatpush1.bf16.xpose.msra.mxu0 0
        %1985 = vmatprep.subr.bf16.mxu0 0
        %1986 = vmatpush1.bf16.xpose.msra.mxu0 0
        %1987 = vmatprep.subr.bf16.mxu0 0
        %1988 = vmatpush1.bf16.xpose.msra.mxu0 0
        %1989 = vmatprep.subr.bf16.mxu0 0
        %1990 = vmatpush1.bf16.xpose.msra.mxu0 0
        %1991 = vmatprep.subr.bf16.mxu0 0
        %1992 = vmatpush1.bf16.xpose.msra.mxu0 0
        %1993 = vmatprep.subr.bf16.mxu0 0
        %1994 = vmatpush1.bf16.xpose.msra.mxu0 0
        %1995 = vmatprep.mubr.bf16.mxu0 0
        %1996 = vmatmul.mubr.bf16.gmra.mrb[0].mxu0 %v1958
        %v1997 = vpop.f32.mrb[0].mxu0
        %v1998 = vadd.f32 %v1328, %v1997
        %v1999 = vpop.f32.mrb[0].mxu0
        %v2000 = vpop.f32.mrb[0].mxu0
        %v2001 = vadd.f32 %v1329, %v2000
        %v2002 = vpop.f32.mrb[0].mxu0
        %2003 = vdwg.mxu0
        %v2004 = vsel %vm1378, %v1998, -inf
        %2005 = vmax.xlane.f32.xlu0 %v2004
        %v2006 = vpop.xlane.xlu0 %2005
        %v2007 = vsel %vm1378, %v2001, -inf
        %2008 = vmax.xlane.f32.xlu0 %v2007
        %v2009 = vpop.xlane.xlu0 %2008
        %v2010 = vsub.f32 %v1998, %v2006
        %v2011 = vsub.f32 %v2001, %v2009
        %v2012 = vmul.f32 %v2010, 1.442695
        %v2013 = vpow.pop %v2012
        %v2014 = vmul.f32 %v2011, 1.442695
        %v2015 = vpow.pop %v2014
        %v2016 = vsel %vm1378, %v2013, 0.0
        %2017 = vadd.xlane.f32.xlu0 %v2016
        %v2018 = vpop.xlane.xlu0 %2017
        %v2019 = vsel %vm1378, %v2015, 0.0
        %2020 = vadd.xlane.f32.xlu0 %v2019
        %v2021 = vpop.xlane.xlu0 %2020
        %v2022 = vpack.c.bf16 %v2015, %v2013
        %2024 = vrot.lane.b32.xlu0 %v1312, 96
        %v2025 = vpop.permute.xlu0 %2024
        %v2028 = vsel %vm1378, %v2022, 0
        %2030 = vmatprep.subr.bf16.mxu0 0
        %2031 = vmatpush1.bf16.msra.mxu0 %v2025
        %2032 = vmatprep.subr.bf16.mxu0 0
        %2033 = vmatpush1.bf16.msra.mxu0 0
        %2034 = vmatprep.subr.bf16.mxu0 0
        %2035 = vmatpush1.bf16.msra.mxu0 0
        %2036 = vmatprep.subr.bf16.mxu0 0
        %2037 = vmatpush1.bf16.msra.mxu0 0
        %2038 = vmatprep.subr.bf16.mxu0 0
        %2039 = vmatpush1.bf16.msra.mxu0 0
        %2040 = vmatprep.subr.bf16.mxu0 0
        %2041 = vmatpush1.bf16.msra.mxu0 0
        %2042 = vmatprep.subr.bf16.mxu0 0
        %2043 = vmatpush1.bf16.msra.mxu0 0
        %2044 = vmatprep.subr.bf16.mxu0 0
        %2045 = vmatpush1.bf16.msra.mxu0 0
        %2046 = vmatprep.subr.bf16.mxu0 0
        %2047 = vmatpush1.bf16.msra.mxu0 0
        %2048 = vmatprep.subr.bf16.mxu0 0
        %2049 = vmatpush1.bf16.msra.mxu0 0
        %2050 = vmatprep.subr.bf16.mxu0 0
        %2051 = vmatpush1.bf16.msra.mxu0 0
        %2052 = vmatprep.subr.bf16.mxu0 0
        %2053 = vmatpush1.bf16.msra.mxu0 0
        %2054 = vmatprep.subr.bf16.mxu0 0
        %2055 = vmatpush1.bf16.msra.mxu0 0
        %2056 = vmatprep.subr.bf16.mxu0 0
        %2057 = vmatpush1.bf16.msra.mxu0 0
        %2058 = vmatprep.subr.bf16.mxu0 0
        %2059 = vmatpush1.bf16.msra.mxu0 0
        %2060 = vmatprep.subr.bf16.mxu0 0
        %2061 = vmatpush1.bf16.msra.mxu0 0
        %2062 = vmatprep.mubr.bf16.mxu0 0
        %2063 = vmatmul.mubr.bf16.gmra.mrb[0].mxu0 %v2028
        %v2064 = vpop.f32.mrb[0].mxu0
        %v2065 = vadd.f32 0.0, %v2064
        %v2066 = vpop.f32.mrb[0].mxu0
        %v2067 = vpop.f32.mrb[0].mxu0
        %v2068 = vadd.f32 0.0, %v2067
        %v2069 = vpop.f32.mrb[0].mxu0
        %2070 = vdwg.mxu0
        %v2071 = vrcp.pop %v2018
        %v2072 = vrcp.pop %v2021
        %v2073 = vmul.f32 %v2065, %v2071
        %v2074 = vmul.f32 %v2068, %v2072
        %v2075 = vpack.c.bf16 %v2074, %v2073
        %2077 = vrot.lane.b32.xlu0 %v2075, 32
        %v2078 = vpop.permute.xlu0 %2077
        %2080 = vst.msk [vmem:[#allocation5 + $0x8] sm:$0xff] %vm1577, %v2078
        %2081 = vrot.lane.b32.xlu0 %v1304, 64
        %v2082 = vpop.permute.xlu0 %2081
        %2083 = vrot.lane.b32.xlu0 %v1308, 64
        %v2084 = vpop.permute.xlu0 %2083
        %v2086 = vsel %vm1330, %v2082, 0
        %v2089 = vsel %vm1330, %v2084, 0
        %2091 = vmatprep.subr.bf16.mxu0 0
        %2092 = vmatpush1.bf16.xpose.msra.mxu0 %v2089
        %2093 = vmatprep.subr.bf16.mxu0 0
        %2094 = vmatpush1.bf16.xpose.msra.mxu0 0
        %2095 = vmatprep.subr.bf16.mxu0 0
        %2096 = vmatpush1.bf16.xpose.msra.mxu0 0
        %2097 = vmatprep.subr.bf16.mxu0 0
        %2098 = vmatpush1.bf16.xpose.msra.mxu0 0
        %2099 = vmatprep.subr.bf16.mxu0 0
        %2100 = vmatpush1.bf16.xpose.msra.mxu0 0
        %2101 = vmatprep.subr.bf16.mxu0 0
        %2102 = vmatpush1.bf16.xpose.msra.mxu0 0
        %2103 = vmatprep.subr.bf16.mxu0 0
        %2104 = vmatpush1.bf16.xpose.msra.mxu0 0
        %2105 = vmatprep.subr.bf16.mxu0 0
        %2106 = vmatpush1.bf16.xpose.msra.mxu0 0
        %2107 = vmatprep.subr.bf16.mxu0 0
        %2108 = vmatpush1.bf16.xpose.msra.mxu0 0
        %2109 = vmatprep.subr.bf16.mxu0 0
        %2110 = vmatpush1.bf16.xpose.msra.mxu0 0
        %2111 = vmatprep.subr.bf16.mxu0 0
        %2112 = vmatpush1.bf16.xpose.msra.mxu0 0
        %2113 = vmatprep.subr.bf16.mxu0 0
        %2114 = vmatpush1.bf16.xpose.msra.mxu0 0
        %2115 = vmatprep.subr.bf16.mxu0 0
        %2116 = vmatpush1.bf16.xpose.msra.mxu0 0
        %2117 = vmatprep.subr.bf16.mxu0 0
        %2118 = vmatpush1.bf16.xpose.msra.mxu0 0
        %2119 = vmatprep.subr.bf16.mxu0 0
        %2120 = vmatpush1.bf16.xpose.msra.mxu0 0
        %2121 = vmatprep.subr.bf16.mxu0 0
        %2122 = vmatpush1.bf16.xpose.msra.mxu0 0
        %2123 = vmatprep.mubr.bf16.mxu0 0
        %2124 = vmatmul.mubr.bf16.gmra.mrb[0].mxu0 %v2086
        %v2125 = vpop.f32.mrb[0].mxu0
        %v2126 = vadd.f32 %v1328, %v2125
        %v2127 = vpop.f32.mrb[0].mxu0
        %v2128 = vpop.f32.mrb[0].mxu0
        %v2129 = vadd.f32 %v1329, %v2128
        %v2130 = vpop.f32.mrb[0].mxu0
        %2131 = vdwg.mxu0
        %v2132 = vsel %vm1378, %v2126, -inf
        %2133 = vmax.xlane.f32.xlu0 %v2132
        %v2134 = vpop.xlane.xlu0 %2133
        %v2135 = vsel %vm1378, %v2129, -inf
        %2136 = vmax.xlane.f32.xlu0 %v2135
        %v2137 = vpop.xlane.xlu0 %2136
        %v2138 = vsub.f32 %v2126, %v2134
        %v2139 = vsub.f32 %v2129, %v2137
        %v2140 = vmul.f32 %v2138, 1.442695
        %v2141 = vpow.pop %v2140
        %v2142 = vmul.f32 %v2139, 1.442695
        %v2143 = vpow.pop %v2142
        %v2144 = vsel %vm1378, %v2141, 0.0
        %2145 = vadd.xlane.f32.xlu0 %v2144
        %v2146 = vpop.xlane.xlu0 %2145
        %v2147 = vsel %vm1378, %v2143, 0.0
        %2148 = vadd.xlane.f32.xlu0 %v2147
        %v2149 = vpop.xlane.xlu0 %2148
        %v2150 = vpack.c.bf16 %v2143, %v2141
        %2151 = vrot.lane.b32.xlu0 %v1312, 64
        %v2152 = vpop.permute.xlu0 %2151
        %v2155 = vsel %vm1378, %v2150, 0
        %2157 = vmatprep.subr.bf16.mxu0 0
        %2158 = vmatpush1.bf16.msra.mxu0 %v2152
        %2159 = vmatprep.subr.bf16.mxu0 0
        %2160 = vmatpush1.bf16.msra.mxu0 0
        %2161 = vmatprep.subr.bf16.mxu0 0
        %2162 = vmatpush1.bf16.msra.mxu0 0
        %2163 = vmatprep.subr.bf16.mxu0 0
        %2164 = vmatpush1.bf16.msra.mxu0 0
        %2165 = vmatprep.subr.bf16.mxu0 0
        %2166 = vmatpush1.bf16.msra.mxu0 0
        %2167 = vmatprep.subr.bf16.mxu0 0
        %2168 = vmatpush1.bf16.msra.mxu0 0
        %2169 = vmatprep.subr.bf16.mxu0 0
        %2170 = vmatpush1.bf16.msra.mxu0 0
        %2171 = vmatprep.subr.bf16.mxu0 0
        %2172 = vmatpush1.bf16.msra.mxu0 0
        %2173 = vmatprep.subr.bf16.mxu0 0
        %2174 = vmatpush1.bf16.msra.mxu0 0
        %2175 = vmatprep.subr.bf16.mxu0 0
        %2176 = vmatpush1.bf16.msra.mxu0 0
        %2177 = vmatprep.subr.bf16.mxu0 0
        %2178 = vmatpush1.bf16.msra.mxu0 0
        %2179 = vmatprep.subr.bf16.mxu0 0
        %2180 = vmatpush1.bf16.msra.mxu0 0
        %2181 = vmatprep.subr.bf16.mxu0 0
        %2182 = vmatpush1.bf16.msra.mxu0 0
        %2183 = vmatprep.subr.bf16.mxu0 0
        %2184 = vmatpush1.bf16.msra.mxu0 0
        %2185 = vmatprep.subr.bf16.mxu0 0
        %2186 = vmatpush1.bf16.msra.mxu0 0
        %2187 = vmatprep.subr.bf16.mxu0 0
        %2188 = vmatpush1.bf16.msra.mxu0 0
        %2189 = vmatprep.mubr.bf16.mxu0 0
        %2190 = vmatmul.mubr.bf16.gmra.mrb[0].mxu0 %v2155
        %v2191 = vpop.f32.mrb[0].mxu0
        %v2192 = vadd.f32 0.0, %v2191
        %v2193 = vpop.f32.mrb[0].mxu0
        %v2194 = vpop.f32.mrb[0].mxu0
        %v2195 = vadd.f32 0.0, %v2194
        %v2196 = vpop.f32.mrb[0].mxu0
        %2197 = vdwg.mxu0
        %v2198 = vrcp.pop %v2146
        %v2199 = vrcp.pop %v2149
        %v2200 = vmul.f32 %v2192, %v2198
        %v2201 = vmul.f32 %v2195, %v2199
        %v2202 = vpack.c.bf16 %v2201, %v2200
        %2204 = vrot.lane.b32.xlu0 %v2202, 64
        %v2205 = vpop.permute.xlu0 %2204
        %2207 = vst.msk [vmem:[#allocation5 + $0x8] sm:$0xff] %vm1705, %v2205
        %2208 = vrot.lane.b32.xlu0 %v1304, 32
        %v2209 = vpop.permute.xlu0 %2208
        %2210 = vrot.lane.b32.xlu0 %v1308, 32
        %v2211 = vpop.permute.xlu0 %2210
        %v2213 = vsel %vm1330, %v2209, 0
        %v2216 = vsel %vm1330, %v2211, 0
        %2218 = vmatprep.subr.bf16.mxu0 0
        %2219 = vmatpush1.bf16.xpose.msra.mxu0 %v2216
        %2220 = vmatprep.subr.bf16.mxu0 0
        %2221 = vmatpush1.bf16.xpose.msra.mxu0 0
        %2222 = vmatprep.subr.bf16.mxu0 0
        %2223 = vmatpush1.bf16.xpose.msra.mxu0 0
        %2224 = vmatprep.subr.bf16.mxu0 0
        %2225 = vmatpush1.bf16.xpose.msra.mxu0 0
        %2226 = vmatprep.subr.bf16.mxu0 0
        %2227 = vmatpush1.bf16.xpose.msra.mxu0 0
        %2228 = vmatprep.subr.bf16.mxu0 0
        %2229 = vmatpush1.bf16.xpose.msra.mxu0 0
        %2230 = vmatprep.subr.bf16.mxu0 0
        %2231 = vmatpush1.bf16.xpose.msra.mxu0 0
        %2232 = vmatprep.subr.bf16.mxu0 0
        %2233 = vmatpush1.bf16.xpose.msra.mxu0 0
        %2234 = vmatprep.subr.bf16.mxu0 0
        %2235 = vmatpush1.bf16.xpose.msra.mxu0 0
        %2236 = vmatprep.subr.bf16.mxu0 0
        %2237 = vmatpush1.bf16.xpose.msra.mxu0 0
        %2238 = vmatprep.subr.bf16.mxu0 0
        %2239 = vmatpush1.bf16.xpose.msra.mxu0 0
        %2240 = vmatprep.subr.bf16.mxu0 0
        %2241 = vmatpush1.bf16.xpose.msra.mxu0 0
        %2242 = vmatprep.subr.bf16.mxu0 0
        %2243 = vmatpush1.bf16.xpose.msra.mxu0 0
        %2244 = vmatprep.subr.bf16.mxu0 0
        %2245 = vmatpush1.bf16.xpose.msra.mxu0 0
        %2246 = vmatprep.subr.bf16.mxu0 0
        %2247 = vmatpush1.bf16.xpose.msra.mxu0 0
        %2248 = vmatprep.subr.bf16.mxu0 0
        %2249 = vmatpush1.bf16.xpose.msra.mxu0 0
        %2250 = vmatprep.mubr.bf16.mxu0 0
        %2251 = vmatmul.mubr.bf16.gmra.mrb[0].mxu0 %v2213
        %v2252 = vpop.f32.mrb[0].mxu0
        %v2253 = vadd.f32 %v1328, %v2252
        %v2254 = vpop.f32.mrb[0].mxu0
        %v2255 = vpop.f32.mrb[0].mxu0
        %v2256 = vadd.f32 %v1329, %v2255
        %v2257 = vpop.f32.mrb[0].mxu0
        %2258 = vdwg.mxu0
        %v2259 = vsel %vm1378, %v2253, -inf
        %2260 = vmax.xlane.f32.xlu0 %v2259
        %v2261 = vpop.xlane.xlu0 %2260
        %v2262 = vsel %vm1378, %v2256, -inf
        %2263 = vmax.xlane.f32.xlu0 %v2262
        %v2264 = vpop.xlane.xlu0 %2263
        %v2265 = vsub.f32 %v2253, %v2261
        %v2266 = vsub.f32 %v2256, %v2264
        %v2267 = vmul.f32 %v2265, 1.442695
        %v2268 = vpow.pop %v2267
        %v2269 = vmul.f32 %v2266, 1.442695
        %v2270 = vpow.pop %v2269
        %v2271 = vsel %vm1378, %v2268, 0.0
        %2272 = vadd.xlane.f32.xlu0 %v2271
        %v2273 = vpop.xlane.xlu0 %2272
        %v2274 = vsel %vm1378, %v2270, 0.0
        %2275 = vadd.xlane.f32.xlu0 %v2274
        %v2276 = vpop.xlane.xlu0 %2275
        %v2277 = vpack.c.bf16 %v2270, %v2268
        %2278 = vrot.lane.b32.xlu0 %v1312, 32
        %v2279 = vpop.permute.xlu0 %2278
        %v2282 = vsel %vm1378, %v2277, 0
        %2284 = vmatprep.subr.bf16.mxu0 0
        %2285 = vmatpush1.bf16.msra.mxu0 %v2279
        %2286 = vmatprep.subr.bf16.mxu0 0
        %2287 = vmatpush1.bf16.msra.mxu0 0
        %2288 = vmatprep.subr.bf16.mxu0 0
        %2289 = vmatpush1.bf16.msra.mxu0 0
        %2290 = vmatprep.subr.bf16.mxu0 0
        %2291 = vmatpush1.bf16.msra.mxu0 0
        %2292 = vmatprep.subr.bf16.mxu0 0
        %2293 = vmatpush1.bf16.msra.mxu0 0
        %2294 = vmatprep.subr.bf16.mxu0 0
        %2295 = vmatpush1.bf16.msra.mxu0 0
        %2296 = vmatprep.subr.bf16.mxu0 0
        %2297 = vmatpush1.bf16.msra.mxu0 0
        %2298 = vmatprep.subr.bf16.mxu0 0
        %2299 = vmatpush1.bf16.msra.mxu0 0
        %2300 = vmatprep.subr.bf16.mxu0 0
        %2301 = vmatpush1.bf16.msra.mxu0 0
        %2302 = vmatprep.subr.bf16.mxu0 0
        %2303 = vmatpush1.bf16.msra.mxu0 0
        %2304 = vmatprep.subr.bf16.mxu0 0
        %2305 = vmatpush1.bf16.msra.mxu0 0
        %2306 = vmatprep.subr.bf16.mxu0 0
        %2307 = vmatpush1.bf16.msra.mxu0 0
        %2308 = vmatprep.subr.bf16.mxu0 0
        %2309 = vmatpush1.bf16.msra.mxu0 0
        %2310 = vmatprep.subr.bf16.mxu0 0
        %2311 = vmatpush1.bf16.msra.mxu0 0
        %2312 = vmatprep.subr.bf16.mxu0 0
        %2313 = vmatpush1.bf16.msra.mxu0 0
        %2314 = vmatprep.subr.bf16.mxu0 0
        %2315 = vmatpush1.bf16.msra.mxu0 0
        %2316 = vmatprep.mubr.bf16.mxu0 0
        %2317 = vmatmul.mubr.bf16.gmra.mrb[0].mxu0 %v2282
        %v2318 = vpop.f32.mrb[0].mxu0
        %v2319 = vadd.f32 0.0, %v2318
        %v2320 = vpop.f32.mrb[0].mxu0
        %v2321 = vpop.f32.mrb[0].mxu0
        %v2322 = vadd.f32 0.0, %v2321
        %v2323 = vpop.f32.mrb[0].mxu0
        %2324 = vdwg.mxu0
        %v2325 = vrcp.pop %v2273
        %v2326 = vrcp.pop %v2276
        %v2327 = vmul.f32 %v2319, %v2325
        %v2328 = vmul.f32 %v2322, %v2326
        %v2329 = vpack.c.bf16 %v2328, %v2327
        %2331 = vrot.lane.b32.xlu0 %v2329, 96
        %v2332 = vpop.permute.xlu0 %2331
        %2334 = vst.msk [vmem:[#allocation5 + $0x8] sm:$0xff] %vm1833, %v2332
        %v2335 = vld [vmem:[#allocation5] sm:$0xff]
        %v2336 = vld [vmem:[#allocation5 + $0x8] sm:$0xff]
        %v2337 = vld [vmem:[#allocation14] sm:$0xff]
        %v2338 = vld [vmem:[#allocation14 + $0x8] sm:$0xff]
        %v2339 = vld [vmem:[#allocation14 + $0x10] sm:$0xff]
        %v2340 = vld [vmem:[#allocation14 + $0x18] sm:$0xff]
        %v2341 = vld [vmem:[#allocation14 + $0x20] sm:$0xff]
        %v2342 = vld [vmem:[#allocation14 + $0x28] sm:$0xff]
        %v2343 = vld [vmem:[#allocation14 + $0x30] sm:$0xff]
        %v2344 = vld [vmem:[#allocation14 + $0x38] sm:$0xff]
        %v2345 = vld [vmem:[#allocation14 + $0x40] sm:$0xff]
        %v2346 = vld [vmem:[#allocation14 + $0x48] sm:$0xff]
        %v2347 = vld [vmem:[#allocation14 + $0x50] sm:$0xff]
        %v2348 = vld [vmem:[#allocation14 + $0x58] sm:$0xff]
        %v2349 = vld [vmem:[#allocation14 + $0x60] sm:$0xff]
        %v2350 = vld [vmem:[#allocation14 + $0x68] sm:$0xff]
        %v2351 = vld [vmem:[#allocation14 + $0x70] sm:$0xff]
        %v2352 = vld [vmem:[#allocation14 + $0x78] sm:$0xff]
        %v2353 = vld [vmem:[#allocation14 + $0x80] sm:$0xff]
        %v2354 = vld [vmem:[#allocation14 + $0x88] sm:$0xff]
        %v2355 = vld [vmem:[#allocation14 + $0x90] sm:$0xff]
        %v2356 = vld [vmem:[#allocation14 + $0x98] sm:$0xff]
        %v2357 = vld [vmem:[#allocation14 + $0xa0] sm:$0xff]
        %v2358 = vld [vmem:[#allocation14 + $0xa8] sm:$0xff]
        %v2359 = vld [vmem:[#allocation14 + $0xb0] sm:$0xff]
        %v2360 = vld [vmem:[#allocation14 + $0xb8] sm:$0xff]
        %v2361 = vld [vmem:[#allocation14 + $0xc0] sm:$0xff]
        %v2362 = vld [vmem:[#allocation14 + $0xc8] sm:$0xff]
        %v2363 = vld [vmem:[#allocation14 + $0xd0] sm:$0xff]
        %v2364 = vld [vmem:[#allocation14 + $0xd8] sm:$0xff]
        %v2365 = vld [vmem:[#allocation14 + $0xe0] sm:$0xff]
        %v2366 = vld [vmem:[#allocation14 + $0xe8] sm:$0xff]
        %v2367 = vld [vmem:[#allocation14 + $0xf0] sm:$0xff]
        %v2368 = vld [vmem:[#allocation14 + $0xf8] sm:$0xff]
        %v2370 = vlaneseq
        %v2371 = vshrl.u32 %v2370, 7
        %v2372 = vsub.s32 0, %v2371
        %v2373 = vrot.slane %v1297, %v2372
        %v2374 = vlaneseq
        %v2375 = vshrl.u32 %v2374, 7
        %v2376 = vsub.s32 1, %v2375
        %v2377 = vrot.slane %v1297, %v2376
        %v2412 = vunpack.c.l.b16 %v2337
        %v2413 = vunpack.c.h.b16 %v2337
        %v2414 = vunpack.c.l.b16 %v2338
        %v2415 = vunpack.c.h.b16 %v2338
        %v2416 = vunpack.c.l.b16 %v2339
        %v2417 = vunpack.c.h.b16 %v2339
        %v2418 = vunpack.c.l.b16 %v2340
        %v2419 = vunpack.c.h.b16 %v2340
        %v2420 = vunpack.c.l.b16 %v2341
        %v2421 = vunpack.c.h.b16 %v2341
        %v2422 = vunpack.c.l.b16 %v2342
        %v2423 = vunpack.c.h.b16 %v2342
        %v2424 = vunpack.c.l.b16 %v2343
        %v2425 = vunpack.c.h.b16 %v2343
        %v2426 = vunpack.c.l.b16 %v2344
        %v2427 = vunpack.c.h.b16 %v2344
        %v2428 = vunpack.c.l.b16 %v2345
        %v2429 = vunpack.c.h.b16 %v2345
        %v2430 = vunpack.c.l.b16 %v2346
        %v2431 = vunpack.c.h.b16 %v2346
        %v2432 = vunpack.c.l.b16 %v2347
        %v2433 = vunpack.c.h.b16 %v2347
        %v2434 = vunpack.c.l.b16 %v2348
        %v2435 = vunpack.c.h.b16 %v2348
        %v2436 = vunpack.c.l.b16 %v2349
        %v2437 = vunpack.c.h.b16 %v2349
        %v2438 = vunpack.c.l.b16 %v2350
        %v2439 = vunpack.c.h.b16 %v2350
        %v2440 = vunpack.c.l.b16 %v2351
        %v2441 = vunpack.c.h.b16 %v2351
        %v2442 = vunpack.c.l.b16 %v2352
        %v2443 = vunpack.c.h.b16 %v2352
        %v2444 = vunpack.c.l.b16 %v2353
        %v2445 = vunpack.c.h.b16 %v2353
        %v2446 = vunpack.c.l.b16 %v2354
        %v2447 = vunpack.c.h.b16 %v2354
        %v2448 = vunpack.c.l.b16 %v2355
        %v2449 = vunpack.c.h.b16 %v2355
        %v2450 = vunpack.c.l.b16 %v2356
        %v2451 = vunpack.c.h.b16 %v2356
        %v2452 = vunpack.c.l.b16 %v2357
        %v2453 = vunpack.c.h.b16 %v2357
        %v2454 = vunpack.c.l.b16 %v2358
        %v2455 = vunpack.c.h.b16 %v2358
        %v2456 = vunpack.c.l.b16 %v2359
        %v2457 = vunpack.c.h.b16 %v2359
        %v2458 = vunpack.c.l.b16 %v2360
        %v2459 = vunpack.c.h.b16 %v2360
        %v2460 = vunpack.c.l.b16 %v2361
        %v2461 = vunpack.c.h.b16 %v2361
        %v2462 = vunpack.c.l.b16 %v2362
        %v2463 = vunpack.c.h.b16 %v2362
        %v2464 = vunpack.c.l.b16 %v2363
        %v2465 = vunpack.c.h.b16 %v2363
        %v2466 = vunpack.c.l.b16 %v2364
        %v2467 = vunpack.c.h.b16 %v2364
        %v2468 = vunpack.c.l.b16 %v2365
        %v2469 = vunpack.c.h.b16 %v2365
        %v2470 = vunpack.c.l.b16 %v2366
        %v2471 = vunpack.c.h.b16 %v2366
        %v2472 = vunpack.c.l.b16 %v2367
        %v2473 = vunpack.c.h.b16 %v2367
        %v2474 = vunpack.c.l.b16 %v2368
        %v2475 = vunpack.c.h.b16 %v2368
        %v2476 = vpack.c.b16 %v2414, %v2412
        %v2477 = vpack.c.b16 %v2415, %v2413
        %v2478 = vpack.c.b16 %v2418, %v2416
        %v2479 = vpack.c.b16 %v2419, %v2417
        %v2480 = vpack.c.b16 %v2422, %v2420
        %v2481 = vpack.c.b16 %v2423, %v2421
        %v2482 = vpack.c.b16 %v2426, %v2424
        %v2483 = vpack.c.b16 %v2427, %v2425
        %v2484 = vpack.c.b16 %v2430, %v2428
        %v2485 = vpack.c.b16 %v2431, %v2429
        %v2486 = vpack.c.b16 %v2434, %v2432
        %v2487 = vpack.c.b16 %v2435, %v2433
        %v2488 = vpack.c.b16 %v2438, %v2436
        %v2489 = vpack.c.b16 %v2439, %v2437
        %v2490 = vpack.c.b16 %v2442, %v2440
        %v2491 = vpack.c.b16 %v2443, %v2441
        %v2492 = vpack.c.b16 %v2446, %v2444
        %v2493 = vpack.c.b16 %v2447, %v2445
        %v2494 = vpack.c.b16 %v2450, %v2448
        %v2495 = vpack.c.b16 %v2451, %v2449
        %v2496 = vpack.c.b16 %v2454, %v2452
        %v2497 = vpack.c.b16 %v2455, %v2453
        %v2498 = vpack.c.b16 %v2458, %v2456
        %v2499 = vpack.c.b16 %v2459, %v2457
        %v2500 = vpack.c.b16 %v2462, %v2460
        %v2501 = vpack.c.b16 %v2463, %v2461
        %v2502 = vpack.c.b16 %v2466, %v2464
        %v2503 = vpack.c.b16 %v2467, %v2465
        %v2504 = vpack.c.b16 %v2470, %v2468
        %v2505 = vpack.c.b16 %v2471, %v2469
        %v2506 = vpack.c.b16 %v2474, %v2472
        %v2507 = vpack.c.b16 %v2475, %v2473
        %2540 = vmatprep.subr.bf16.mxu0 %v2477
        %2541 = vmatpush1.bf16.msra.mxu0 %v2476
        %2542 = vmatprep.subr.bf16.mxu0 %v2479
        %2543 = vmatpush1.bf16.msra.mxu0 %v2478
        %2544 = vmatprep.subr.bf16.mxu0 %v2481
        %2545 = vmatpush1.bf16.msra.mxu0 %v2480
        %2546 = vmatprep.subr.bf16.mxu0 %v2483
        %2547 = vmatpush1.bf16.msra.mxu0 %v2482
        %2548 = vmatprep.subr.bf16.mxu0 %v2485
        %2549 = vmatpush1.bf16.msra.mxu0 %v2484
        %2550 = vmatprep.subr.bf16.mxu0 %v2487
        %2551 = vmatpush1.bf16.msra.mxu0 %v2486
        %2552 = vmatprep.subr.bf16.mxu0 %v2489
        %2553 = vmatpush1.bf16.msra.mxu0 %v2488
        %2554 = vmatprep.subr.bf16.mxu0 %v2491
        %2555 = vmatpush1.bf16.msra.mxu0 %v2490
        %2556 = vmatprep.subr.bf16.mxu0 %v2493
        %2557 = vmatpush1.bf16.msra.mxu0 %v2492
        %2558 = vmatprep.subr.bf16.mxu0 %v2495
        %2559 = vmatpush1.bf16.msra.mxu0 %v2494
        %2560 = vmatprep.subr.bf16.mxu0 %v2497
        %2561 = vmatpush1.bf16.msra.mxu0 %v2496
        %2562 = vmatprep.subr.bf16.mxu0 %v2499
        %2563 = vmatpush1.bf16.msra.mxu0 %v2498
        %2564 = vmatprep.subr.bf16.mxu0 %v2501
        %2565 = vmatpush1.bf16.msra.mxu0 %v2500
        %2566 = vmatprep.subr.bf16.mxu0 %v2503
        %2567 = vmatpush1.bf16.msra.mxu0 %v2502
        %2568 = vmatprep.subr.bf16.mxu0 %v2505
        %2569 = vmatpush1.bf16.msra.mxu0 %v2504
        %2570 = vmatprep.subr.bf16.mxu0 %v2507
        %2571 = vmatpush1.bf16.msra.mxu0 %v2506
        %2572 = vmatprep.mubr.bf16.mxu0 %v2336
        %2573 = vmatmul.mubr.bf16.gmra.mrb[0].mxu0 %v2335
        %v2574 = vpop.f32.mrb[0].mxu0
        %v2575 = vadd.f32 %v2373, %v2574
        %v2576 = vpop.f32.mrb[0].mxu0
        %v2577 = vadd.f32 %v2377, %v2576
        %v2578 = vpop.f32.mrb[0].mxu0
        %v2579 = vadd.f32 %v2373, %v2578
        %v2580 = vpop.f32.mrb[0].mxu0
        %v2581 = vadd.f32 %v2377, %v2580
        %2582 = vdwg.mxu0
        %v2583 = vld [vmem:[%s456] sm:$0xff]
        %v2584 = vld [vmem:[%s456 + $0x8] sm:$0xff]
        %v2585 = vld [vmem:[%s456 + $0x10] sm:$0xff]
        %v2586 = vld [vmem:[%s456 + $0x18] sm:$0xff]
        %v2587 = vadd.f32 %v2575, %v2583
        %v2588 = vadd.f32 %v2577, %v2584
        %v2589 = vadd.f32 %v2579, %v2585
        %v2590 = vadd.f32 %v2581, %v2586
        %v2591 = vadd.f32 %v2587, %v2588
        %2592 = vadd.xlane.f32.xlu0 %v2591
        %v2593 = vpop.xlane.xlu0 %2592
        %v2594 = vadd.f32 %v2589, %v2590
        %2595 = vadd.xlane.f32.xlu0 %v2594
        %v2596 = vpop.xlane.xlu0 %2595
        %v2597 = vrcp.pop 256.0
        %v2598 = vmul.f32 %v2593, %v2597
        %v2599 = vmul.f32 %v2596, %v2597
        %v2600 = vsub.f32 %v2587, %v2598
        %v2601 = vsub.f32 %v2588, %v2598
        %v2602 = vsub.f32 %v2589, %v2599
        %v2603 = vsub.f32 %v2590, %v2599
        %v2604 = vmul.f32 %v2600, %v2600
        %v2605 = vmul.f32 %v2601, %v2601
        %v2606 = vmul.f32 %v2602, %v2602
        %v2607 = vmul.f32 %v2603, %v2603
        %v2608 = vadd.f32 %v2604, %v2605
        %2609 = vadd.xlane.f32.xlu0 %v2608
        %v2610 = vpop.xlane.xlu0 %2609
        %v2611 = vadd.f32 %v2606, %v2607
        %2612 = vadd.xlane.f32.xlu0 %v2611
        %v2613 = vpop.xlane.xlu0 %2612
        %v2614 = vmul.f32 %v2610, %v2597
        %v2615 = vmul.f32 %v2613, %v2597
        %v2616 = vadd.f32 %v2614, 1e-05
        %v2617 = vadd.f32 %v2615, 1e-05
        %v2618 = vrsqrt.pop %v2616
        %v2619 = vrsqrt.pop %v2617
        %v2620 = vmul.f32 %v2600, %v2618
        %v2621 = vmul.f32 %v2601, %v2618
        %v2622 = vmul.f32 %v2602, %v2619
        %v2623 = vmul.f32 %v2603, %v2619
        %v2625 = vlaneseq
        %v2626 = vshrl.u32 %v2625, 7
        %v2627 = vsub.s32 0, %v2626
        %v2628 = vrot.slane %v1298, %v2627
        %v2629 = vlaneseq
        %v2630 = vshrl.u32 %v2629, 7
        %v2631 = vsub.s32 1, %v2630
        %v2632 = vrot.slane %v1298, %v2631
        %v2635 = vmul.f32 %v2620, %v2628
        %v2636 = vmul.f32 %v2621, %v2632
        %v2637 = vmul.f32 %v2622, %v2628
        %v2638 = vmul.f32 %v2623, %v2632
        %v2640 = vlaneseq
        %v2641 = vshrl.u32 %v2640, 7
        %v2642 = vsub.s32 0, %v2641
        %v2643 = vrot.slane %v1299, %v2642
        %v2644 = vlaneseq
        %v2645 = vshrl.u32 %v2644, 7
        %v2646 = vsub.s32 1, %v2645
        %v2647 = vrot.slane %v1299, %v2646
        %v2650 = vadd.f32 %v2635, %v2643
        %v2651 = vadd.f32 %v2636, %v2647
        %v2652 = vadd.f32 %v2637, %v2643
        %v2653 = vadd.f32 %v2638, %v2647
        %2654 = vst [vmem:[%s525] sm:$0xff] %v2650
        %2655 = vst [vmem:[%s525 + $0x8] sm:$0xff] %v2651
        %2656 = vst [vmem:[%s525 + $0x10] sm:$0xff] %v2652
        %2657 = vst [vmem:[%s525 + $0x18] sm:$0xff] %v2653
        %s2658 = sand.u32 %s308, 1
        %s2659 = scalar_lea.sflag [#allocation8], %s2658
        %s2660 = sand.u32 %s308, 1
        %s2661 = smul.addr %s2660, 32
        %s2662 = scalar_lea.vmem [#allocation15], %s2661
        // Predicated region
        $region89: #{tpu_custom_call.1} parent=67 // pred_check
          %p2663 = pneg %p318
        $region90: #{tpu_custom_call.1} parent=67 // pred_check_branch
          %2665 = sbr.rel (%p2663) target = $region92
        $region91: #{tpu_custom_call.1} parent=67 // pred_region
          %s2667 = ssub.s32 512, 512
          %2668 = vsyncadd %s2659, %s2667
          %s2669 = smul.addr %s33, 4
          %s2670 = smul.addr %s2669, 128
          %s2671 = scalar_lea.hbm %s12, %s2670
          %s2672 = sshll.u32 %s2662, 4
          %s2673 = int_to_ptr.vmem [resolvable:$true] %s2672
          %2678 = dma.vmem_to_hbm [thread:$0]  %s2673, 512, %s2671, %s2659, 256, 256, 16
        $region92: #{tpu_custom_call.1} parent=67 // pred_fallthru
          _
      $region68: #{tpu_custom_call.1} parent=5 // pred_fallthru
        _
      %p2679 = scmp.le.s32.totalorder 2, %s28
      // Predicated region
      $region93: #{tpu_custom_call.1} parent=5 // pred_check
        %p2680 = pneg %p2679
      $region94: #{tpu_custom_call.1} parent=5 // pred_check_branch
        %2682 = sbr.rel (%p2680) target = $region96
      $region95: #{tpu_custom_call.1} parent=5 // pred_region
        %s2683 = ssub.s32 %s28, 2
        // Predicated region
        $region97: #{tpu_custom_call.1} parent=95 // pred_check
          %p2684 = pneg %p324
        $region98: #{tpu_custom_call.1} parent=95 // pred_check_branch
          %2686 = sbr.rel (%p2684) target = $region100
        $region99: #{tpu_custom_call.1} parent=95 // pred_region
          %s2687 = sand.u32 %s309, 1
          %s2688 = scalar_lea.sflag [#allocation8], %s2687
          %s2689 = sand.u32 %s309, 1
          %s2690 = smul.addr %s2689, 32
          %s2691 = scalar_lea.vmem [#allocation15], %s2690
          %2692 = dma.done %s2688, 512
        $region100: #{tpu_custom_call.1} parent=95 // pred_fallthru
          _
      $region96: #{tpu_custom_call.1} parent=5 // pred_fallthru
        _
    $region6: #{tpu_custom_call.1} parent=1 // loop_footer
      %s32 = sadd.s32 1, %s28
    $region7: #{tpu_custom_call.1} parent=1 // loop_footer_branch
      %27 = sbr.rel target = $region3
    $region8: #{tpu_custom_call.1} parent=1 // loop_exit
      _
    %2693 = vsyncpa [#allocation7], 1
    %s2694 = scalar_lea.sflag [#allocation7], 1
    %2695 = vsyncpa %s2694, 1
    %2696 = vsyncpa [#allocation10], 1
    %s2697 = scalar_lea.sflag [#allocation10], 1
    %2698 = vsyncpa %s2697, 1
    %2699 = vsyncpa [#allocation13], 1
    %2700 = vsyncpa [#allocation8], 1
    %s2701 = scalar_lea.sflag [#allocation8], 1
    %2702 = vsyncpa %s2701, 1

</llo_original>
